<compile_context>
chip_gen: v7x
topology: tpu7x:2x2x1
jax: 0.10.0
libtpu: 0.0.40
codegen_flags: <defaults>
</compile_context>

<pallas_src>
import functools

import jax
import jax.numpy as jnp
from jax.experimental import pallas as pl
from jax.experimental.pallas import tpu as pltpu


def _round_up(x, m):
    return (x + m - 1) // m * m


def _pick_block(n, unit_rows, cap):
    """Largest batch block b <= cap with b | n and (b*unit_rows) % 8 == 0,
    preferring >= 2 grid steps (v7x has 2 TensorCores sharding the 'parallel'
    axis).  Falls back to the whole batch (block == full dim is always legal)."""
    cands = [b for b in range(1, min(n, cap) + 1)
             if n % b == 0 and (b * unit_rows) % 8 == 0]
    multi = [b for b in cands if n // b >= 2]
    if multi:
        return max(multi)
    if cands:
        return max(cands)
    return n


def _im2col_nhwc(x_nhwc, KH, KW):
    """(N,H,W,C) -> ((N*Mp, KH*KW*C) bf16 patches, Mp).

    Rows are ordered (b, h, w); columns are ordered (kh, kw, c), matching an
    HWIO weight flattened to (KH*KW*C, Cout).  Mp = H*W rounded up to a
    multiple of 8 (sublane alignment); the padding rows are zeros and are
    never read back by the pooling stage.  Pure layout plumbing, done in XLA.
    """
    N, H, W, C = x_nhwc.shape
    ph, pw = KH // 2, KW // 2
    xp = jnp.pad(x_nhwc, ((0, 0), (ph, ph), (pw, pw), (0, 0)))
    taps = [xp[:, i:i + H, j:j + W, :] for i in range(KH) for j in range(KW)]
    cols = jnp.concatenate(taps, axis=-1).reshape(N, H * W, KH * KW * C)
    Mp = _round_up(H * W, 8)
    if Mp != H * W:
        cols = jnp.pad(cols, ((0, 0), (0, Mp - H * W), (0, 0)))
    return cols.reshape(N * Mp, KH * KW * C).astype(jnp.bfloat16), Mp


# ---------------------------------------------------------------------------
# Fused conv (as one big im2col matmul) + 2x2/2 maxpool + bias + ReLU kernel
# ---------------------------------------------------------------------------
def conv_pool_kernel(cols_ref, w_ref, b_ref, o_ref, y_scr, r_scr,
                     *, B, Mp, H, W):
    # cols_ref: (B*Mp, KC) bf16  im2col patches, rows ordered (b, h, w)
    # w_ref   : (KC, Cout) bf16  im2col weights
    # b_ref   : (1, Cout)  f32
    # o_ref   : (B, H2*W2, Cout) f32 pooled+bias+ReLU output
    # y_scr   : (B*Mp, Cout)     f32 conv result
    # r_scr   : (B*H*W2, Cout)   f32 W-pooled result
    H2, W2 = H // 2, W // 2
    HW2 = H * W2                       # rows per image after W-pooling

    # Single MXU matmul over all B images, all taps and all input channels
    # (bf16 operands, f32 accumulation).
    y_scr[...] = jnp.dot(cols_ref[...], w_ref[...],
                         preferred_element_type=jnp.float32)

    bias = b_ref[...]                  # hoisted: JAX does not CSE broadcasts

    # Max-pool over W: adjacent (even, odd) rows of each image's (H, W) grid.
    # W is even, so stride-2 pairs never cross an h (or image) boundary.
    for b in range(B):
        yb = b * Mp
        r_scr[pl.ds(b * HW2, HW2), :] = jnp.maximum(
            y_scr[pl.ds(yb, HW2, 2), :], y_scr[pl.ds(yb + 1, HW2, 2), :])

    # Max-pool over H, then bias + ReLU on the 4x smaller buffer (exact:
    # max-pool and ReLU are monotone and the bias is a per-channel constant).
    for b in range(B):
        rb = b * HW2
        for i in range(H2):
            pooled = jnp.maximum(r_scr[pl.ds(rb + 2 * i * W2, W2), :],
                                 r_scr[pl.ds(rb + (2 * i + 1) * W2, W2), :])
            o_ref[b, pl.ds(i * W2, W2), :] = jnp.maximum(pooled + bias, 0.0)


def conv_relu_pool(x_nhwc, w_im2col, bias, *, KH=5, KW=5, block_cap=8):
    N, H, W, Cin = x_nhwc.shape
    KC, Cout = w_im2col.shape
    assert KC == KH * KW * Cin
    assert H % 2 == 0 and W % 2 == 0, "2x2/2 max-pool assumes even spatial dims"

    cols, Mp = _im2col_nhwc(x_nhwc, KH, KW)          # (N*Mp, KC) bf16
    H2, W2 = H // 2, W // 2
    B = _pick_block(N, Mp, block_cap)

    kernel = functools.partial(conv_pool_kernel, B=B, Mp=Mp, H=H, W=W)
    out = pl.pallas_call(
        kernel,
        out_shape=jax.ShapeDtypeStruct((N, H2 * W2, Cout), jnp.float32),
        grid=(N // B,),
        in_specs=[
            pl.BlockSpec((B * Mp, KC), lambda g: (g, 0)),
            pl.BlockSpec((KC, Cout), lambda g: (0, 0)),   # resident weight
            pl.BlockSpec((1, Cout), lambda g: (0, 0)),
        ],
        out_specs=pl.BlockSpec((B, H2 * W2, Cout), lambda g: (g, 0, 0)),
        scratch_shapes=[
            pltpu.VMEM((B * Mp, Cout), jnp.float32),      # conv result
            pltpu.VMEM((B * H * W2, Cout), jnp.float32),  # W-pooled result
        ],
        compiler_params=pltpu.CompilerParams(
            dimension_semantics=("parallel",),
            vmem_limit_bytes=32 * 1024 * 1024),
    )(cols, w_im2col, bias.reshape(1, Cout))
    return out.reshape(N, H2, W2, Cout)


# ---------------------------------------------------------------------------
# Fused fc1 + ReLU + fc2 kernel (fc1 weight fully VMEM-resident, no K tiling)
# ---------------------------------------------------------------------------
def fc_fused_kernel(x_ref, w1_ref, b1_ref, w2_ref, b2_ref, o_ref):
    # x_ref : (Bn, K)  bf16      w1_ref: (K, Hd) bf16      w2_ref: (Hd, Cls) bf16
    # b1/b2 : (1, Hd)/(1, Cls) f32                          o_ref : (Bn, Cls) f32
    h = jnp.dot(x_ref[...], w1_ref[...], preferred_element_type=jnp.float32)
    h = jnp.maximum(h + b1_ref[...], 0.0)                   # fc1 bias + ReLU (f32)
    o_ref[...] = (jnp.dot(h.astype(jnp.bfloat16), w2_ref[...],
                          preferred_element_type=jnp.float32)
                  + b2_ref[...]).astype(o_ref.dtype)         # fc2


def fc_fused(x, w1, b1, w2, b2, *, block_cap=256):
    N, K = x.shape
    Kw, Hd = w1.shape
    Hd2, Cls = w2.shape
    assert Kw == K and Hd2 == Hd
    Bn = _pick_block(N, 1, block_cap)
    return pl.pallas_call(
        fc_fused_kernel,
        out_shape=jax.ShapeDtypeStruct((N, Cls), jnp.float32),
        grid=(N // Bn,),
        in_specs=[
            pl.BlockSpec((Bn, K), lambda n: (n, 0)),
            # Batch-invariant index_map: the 3.2 MB bf16 fc1 weight is DMA'd
            # once and stays VMEM-resident across all batch blocks.
            pl.BlockSpec((K, Hd), lambda n: (0, 0)),
            pl.BlockSpec((1, Hd), lambda n: (0, 0)),
            pl.BlockSpec((Hd, Cls), lambda n: (0, 0)),
            pl.BlockSpec((1, Cls), lambda n: (0, 0)),
        ],
        out_specs=pl.BlockSpec((Bn, Cls), lambda n: (n, 0)),
        compiler_params=pltpu.CompilerParams(
            dimension_semantics=("parallel",),
            vmem_limit_bytes=32 * 1024 * 1024),
    )(x.astype(jnp.bfloat16), w1, b1.reshape(1, Hd), w2, b2.reshape(1, Cls))


# ---------------------------------------------------------------------------
# Full Mnist_CNN forward (Pallas kernels + minimal plain-JAX layout glue)
# ---------------------------------------------------------------------------
def mnist_cnn_forward(x, params):
    N = x.shape[0]
    t = x.reshape(N, 1, 28, 28)                     # PyTorch view(-1, 1, 28, 28)
    t = jnp.transpose(t, (0, 2, 3, 1))              # NCHW -> NHWC for the kernels
    t = conv_relu_pool(t, params["w1_im2col"], params["b1"])   # (N, 14, 14, 32)
    t = conv_relu_pool(t, params["w2_im2col"], params["b2"])   # (N, 7, 7, 64)
    t = t.reshape(N, 7 * 7 * 64)                    # NHWC flatten (h, w, c)
    return fc_fused(t, params["wfc1_hwc"], params["bfc1"],
                    params["wfc2_bf16"], params["bfc2"])       # (N, 10)


def init_params(key):
    ks = jax.random.split(key, 8)
    w1 = jax.random.normal(ks[0], (5, 5, 1, 32), jnp.float32) * 0.1      # HWIO
    b1 = jax.random.normal(ks[1], (32,), jnp.float32) * 0.01
    w2 = jax.random.normal(ks[2], (5, 5, 32, 64), jnp.float32) * 0.05
    b2 = jax.random.normal(ks[3], (64,), jnp.float32) * 0.01
    wfc1 = jax.random.normal(ks[4], (7 * 7 * 64, 512), jnp.float32) * 0.02  # rows (c,h,w)
    bfc1 = jax.random.normal(ks[5], (512,), jnp.float32) * 0.01
    wfc2 = jax.random.normal(ks[6], (512, 10), jnp.float32) * 0.05
    bfc2 = jax.random.normal(ks[7], (10,), jnp.float32) * 0.01
    # Kernel-side layouts: pure weight transforms + bf16 matmul operands.
    w1_im2col = w1.reshape(5 * 5 * 1, 32).astype(jnp.bfloat16)
    w2_im2col = w2.reshape(5 * 5 * 32, 64).astype(jnp.bfloat16)
    wfc1_hwc = (wfc1.reshape(64, 7, 7, 512)
                .transpose(1, 2, 0, 3).reshape(7 * 7 * 64, 512)
                ).astype(jnp.bfloat16)
    wfc2_bf16 = wfc2.astype(jnp.bfloat16)
    return dict(w1=w1, b1=b1, w2=w2, b2=b2,
                w1_im2col=w1_im2col, w2_im2col=w2_im2col,
                wfc1=wfc1, wfc1_hwc=wfc1_hwc, bfc1=bfc1,
                wfc2=wfc2, wfc2_bf16=wfc2_bf16, bfc2=bfc2)


def reference_forward(x, params):
    # Pure-JAX f32 reference mirroring the PyTorch forward (original layouts).
    N = x.shape[0]
    hi = jax.lax.Precision.HIGHEST
    t = x.reshape(N, 1, 28, 28).transpose(0, 2, 3, 1)

    def conv(t, w, b):
        y = jax.lax.conv_general_dilated(
            t, w, window_strides=(1, 1), padding=((2, 2), (2, 2)),
            dimension_numbers=("NHWC", "HWIO", "NHWC"), precision=hi)
        return jax.nn.relu(y + b)

    def pool(t):
        n, h, w, c = t.shape
        return t.reshape(n, h // 2, 2, w // 2, 2, c).max(axis=(2, 4))

    t = pool(conv(t, params["w1"], params["b1"]))
    t = pool(conv(t, params["w2"], params["b2"]))
    t = t.transpose(0, 3, 1, 2).reshape(N, 7 * 7 * 64)      # PyTorch NCHW flatten
    t = jax.nn.relu(jnp.dot(t, params["wfc1"], precision=hi) + params["bfc1"])
    return jnp.dot(t, params["wfc2"], precision=hi) + params["bfc2"]


if __name__ == "__main__":
    key = jax.random.PRNGKey(0)
    kp, kx = jax.random.split(key)
    params = init_params(kp)
    x = jax.random.normal(kx, (2, 784), jnp.float32)   # batch=2 flat 28x28 images

    out = jax.jit(lambda inp: mnist_cnn_forward(inp, params))(x)
    out = jax.block_until_ready(out)

    ref = reference_forward(x, params)
    assert out.shape == (2, 10)
    # Looser tolerance than the all-f32 version: matmul operands are bf16
    # (f32 accumulation) across four stacked matmuls.
    assert jnp.allclose(out, ref, rtol=1e-1, atol=1e-1), (out, ref)
    print("KERNEL_OK")
</pallas_src>

<mosaic_0001>
module attributes {stable_mosaic.version = 11 : i64} {
  func.func @conv_pool_kernel(%arg0: i32, %arg1: memref<784x25xbf16, #tpu.memory_space<vmem>>, %arg2: memref<25x32xbf16, #tpu.memory_space<vmem>>, %arg3: memref<1x32xf32, #tpu.memory_space<vmem>>, %arg4: memref<1x196x32xf32, #tpu.memory_space<vmem>>, %arg5: memref<784x32xf32, #tpu.memory_space<vmem>>, %arg6: memref<392x32xf32, #tpu.memory_space<vmem>>) attributes {dimension_semantics = [#tpu.dimension_semantics<parallel>], iteration_bounds = array<i64: 2>, scalar_prefetch = 0 : i64, scratch_operands = 2 : i64, tpu.core_type = #tpu.core_type<tc>, window_params = [{transform_indices = @transform_0, window_bounds = array<i64: 784, 25>}, {pipeline_mode = #tpu.pipeline_mode<synchronous>, transform_indices = @transform_1, window_bounds = array<i64: 25, 32>}, {pipeline_mode = #tpu.pipeline_mode<synchronous>, transform_indices = @transform_2, window_bounds = array<i64: 1, 32>}, {transform_indices = @transform_3, window_bounds = array<i64: 1, 196, 32>}]} {
    %c0 = arith.constant 0 : index
    %c0_0 = arith.constant 0 : index
    %0 = vector.load %arg1[%c0, %c0_0] : memref<784x25xbf16, #tpu.memory_space<vmem>>, vector<784x25xbf16>
    %c0_1 = arith.constant 0 : index
    %c0_2 = arith.constant 0 : index
    %1 = vector.load %arg2[%c0_1, %c0_2] : memref<25x32xbf16, #tpu.memory_space<vmem>>, vector<25x32xbf16>
    %cst = arith.constant dense<0.000000e+00> : vector<784x32xf32>
    %2 = tpu.matmul %0, %1, %cst {dimension_numbers = #tpu.dot_dimension_numbers<[1], [0], [0], [1], [0, 0, 1, 1], [], []>} : vector<784x25xbf16>, vector<25x32xbf16>, vector<784x32xf32> -> vector<784x32xf32>
    %c0_3 = arith.constant 0 : index
    %c0_4 = arith.constant 0 : index
    %3 = vector.load %arg5[%c0_3, %c0_4] : memref<784x32xf32, #tpu.memory_space<vmem>>, vector<784x32xf32>
    tpu.vector_store %arg5[%c0_3, %c0_4], %2 {strides = array<i32>} : memref<784x32xf32, #tpu.memory_space<vmem>>, vector<784x32xf32>,
    %c0_5 = arith.constant 0 : index
    %c0_6 = arith.constant 0 : index
    %4 = vector.load %arg3[%c0_5, %c0_6] : memref<1x32xf32, #tpu.memory_space<vmem>>, vector<1x32xf32>
    %c0_7 = arith.constant 0 : index
    %c0_8 = arith.constant 0 : index
    %5 = tpu.strided_load %arg5[%c0_7, %c0_8] {strides = array<i32: 2, 1>} : memref<784x32xf32, #tpu.memory_space<vmem>>, vector<392x32xf32>
    %c1 = arith.constant 1 : index
    %c0_9 = arith.constant 0 : index
    %6 = tpu.strided_load %arg5[%c1, %c0_9] {strides = array<i32: 2, 1>} : memref<784x32xf32, #tpu.memory_space<vmem>>, vector<392x32xf32>
    %7 = arith.maximumf %5, %6 : vector<392x32xf32>
    %c0_10 = arith.constant 0 : index
    %c0_11 = arith.constant 0 : index
    %8 = vector.load %arg6[%c0_10, %c0_11] : memref<392x32xf32, #tpu.memory_space<vmem>>, vector<392x32xf32>
    tpu.vector_store %arg6[%c0_10, %c0_11], %7 {strides = array<i32>} : memref<392x32xf32, #tpu.memory_space<vmem>>, vector<392x32xf32>,
    %c0_12 = arith.constant 0 : index
    %c0_13 = arith.constant 0 : index
    %9 = vector.load %arg6[%c0_12, %c0_13] : memref<392x32xf32, #tpu.memory_space<vmem>>, vector<14x32xf32>
    %c14 = arith.constant 14 : index
    %c0_14 = arith.constant 0 : index
    %10 = vector.load %arg6[%c14, %c0_14] : memref<392x32xf32, #tpu.memory_space<vmem>>, vector<14x32xf32>
    %11 = arith.maximumf %9, %10 : vector<14x32xf32>
    %12 = vector.broadcast %4 : vector<1x32xf32> to vector<14x32xf32>
    %13 = arith.addf %11, %12 : vector<14x32xf32>
    %cst_15 = arith.constant 0.000000e+00 : f32
    %14 = vector.broadcast %cst_15 : f32 to vector<14x32xf32>
    %15 = arith.maximumf %13, %14 : vector<14x32xf32>
    %c0_16 = arith.constant 0 : index
    %c0_17 = arith.constant 0 : index
    %c0_18 = arith.constant 0 : index
    %16 = vector.load %arg4[%c0_16, %c0_17, %c0_18] : memref<1x196x32xf32, #tpu.memory_space<vmem>>, vector<1x14x32xf32>
    %17 = vector.shape_cast %16 : vector<1x14x32xf32> to vector<14x32xf32>
    %18 = vector.shape_cast %15 : vector<14x32xf32> to vector<1x14x32xf32>
    tpu.vector_store %arg4[%c0_16, %c0_17, %c0_18], %18 {strides = array<i32>} : memref<1x196x32xf32, #tpu.memory_space<vmem>>, vector<1x14x32xf32>,
    %c28 = arith.constant 28 : index
    %c0_19 = arith.constant 0 : index
    %19 = vector.load %arg6[%c28, %c0_19] : memref<392x32xf32, #tpu.memory_space<vmem>>, vector<14x32xf32>
    %c42 = arith.constant 42 : index
    %c0_20 = arith.constant 0 : index
    %20 = vector.load %arg6[%c42, %c0_20] : memref<392x32xf32, #tpu.memory_space<vmem>>, vector<14x32xf32>
    %21 = arith.maximumf %19, %20 : vector<14x32xf32>
    %22 = vector.broadcast %4 : vector<1x32xf32> to vector<14x32xf32>
    %23 = arith.addf %21, %22 : vector<14x32xf32>
    %cst_21 = arith.constant 0.000000e+00 : f32
    %24 = vector.broadcast %cst_21 : f32 to vector<14x32xf32>
    %25 = arith.maximumf %23, %24 : vector<14x32xf32>
    %c0_22 = arith.constant 0 : index
    %c14_23 = arith.constant 14 : index
    %c0_24 = arith.constant 0 : index
    %26 = vector.load %arg4[%c0_22, %c14_23, %c0_24] : memref<1x196x32xf32, #tpu.memory_space<vmem>>, vector<1x14x32xf32>
    %27 = vector.shape_cast %26 : vector<1x14x32xf32> to vector<14x32xf32>
    %28 = vector.shape_cast %25 : vector<14x32xf32> to vector<1x14x32xf32>
    tpu.vector_store %arg4[%c0_22, %c14_23, %c0_24], %28 {strides = array<i32>} : memref<1x196x32xf32, #tpu.memory_space<vmem>>, vector<1x14x32xf32>,
    %c56 = arith.constant 56 : index
    %c0_25 = arith.constant 0 : index
    %29 = vector.load %arg6[%c56, %c0_25] : memref<392x32xf32, #tpu.memory_space<vmem>>, vector<14x32xf32>
    %c70 = arith.constant 70 : index
    %c0_26 = arith.constant 0 : index
    %30 = vector.load %arg6[%c70, %c0_26] : memref<392x32xf32, #tpu.memory_space<vmem>>, vector<14x32xf32>
    %31 = arith.maximumf %29, %30 : vector<14x32xf32>
    %32 = vector.broadcast %4 : vector<1x32xf32> to vector<14x32xf32>
    %33 = arith.addf %31, %32 : vector<14x32xf32>
    %cst_27 = arith.constant 0.000000e+00 : f32
    %34 = vector.broadcast %cst_27 : f32 to vector<14x32xf32>
    %35 = arith.maximumf %33, %34 : vector<14x32xf32>
    %c0_28 = arith.constant 0 : index
    %c28_29 = arith.constant 28 : index
    %c0_30 = arith.constant 0 : index
    %36 = vector.load %arg4[%c0_28, %c28_29, %c0_30] : memref<1x196x32xf32, #tpu.memory_space<vmem>>, vector<1x14x32xf32>
    %37 = vector.shape_cast %36 : vector<1x14x32xf32> to vector<14x32xf32>
    %38 = vector.shape_cast %35 : vector<14x32xf32> to vector<1x14x32xf32>
    tpu.vector_store %arg4[%c0_28, %c28_29, %c0_30], %38 {strides = array<i32>} : memref<1x196x32xf32, #tpu.memory_space<vmem>>, vector<1x14x32xf32>,
    %c84 = arith.constant 84 : index
    %c0_31 = arith.constant 0 : index
    %39 = vector.load %arg6[%c84, %c0_31] : memref<392x32xf32, #tpu.memory_space<vmem>>, vector<14x32xf32>
    %c98 = arith.constant 98 : index
    %c0_32 = arith.constant 0 : index
    %40 = vector.load %arg6[%c98, %c0_32] : memref<392x32xf32, #tpu.memory_space<vmem>>, vector<14x32xf32>
    %41 = arith.maximumf %39, %40 : vector<14x32xf32>
    %42 = vector.broadcast %4 : vector<1x32xf32> to vector<14x32xf32>
    %43 = arith.addf %41, %42 : vector<14x32xf32>
    %cst_33 = arith.constant 0.000000e+00 : f32
    %44 = vector.broadcast %cst_33 : f32 to vector<14x32xf32>
    %45 = arith.maximumf %43, %44 : vector<14x32xf32>
    %c0_34 = arith.constant 0 : index
    %c42_35 = arith.constant 42 : index
    %c0_36 = arith.constant 0 : index
    %46 = vector.load %arg4[%c0_34, %c42_35, %c0_36] : memref<1x196x32xf32, #tpu.memory_space<vmem>>, vector<1x14x32xf32>
    %47 = vector.shape_cast %46 : vector<1x14x32xf32> to vector<14x32xf32>
    %48 = vector.shape_cast %45 : vector<14x32xf32> to vector<1x14x32xf32>
    tpu.vector_store %arg4[%c0_34, %c42_35, %c0_36], %48 {strides = array<i32>} : memref<1x196x32xf32, #tpu.memory_space<vmem>>, vector<1x14x32xf32>,
    %c112 = arith.constant 112 : index
    %c0_37 = arith.constant 0 : index
    %49 = vector.load %arg6[%c112, %c0_37] : memref<392x32xf32, #tpu.memory_space<vmem>>, vector<14x32xf32>
    %c126 = arith.constant 126 : index
    %c0_38 = arith.constant 0 : index
    %50 = vector.load %arg6[%c126, %c0_38] : memref<392x32xf32, #tpu.memory_space<vmem>>, vector<14x32xf32>
    %51 = arith.maximumf %49, %50 : vector<14x32xf32>
    %52 = vector.broadcast %4 : vector<1x32xf32> to vector<14x32xf32>
    %53 = arith.addf %51, %52 : vector<14x32xf32>
    %cst_39 = arith.constant 0.000000e+00 : f32
    %54 = vector.broadcast %cst_39 : f32 to vector<14x32xf32>
    %55 = arith.maximumf %53, %54 : vector<14x32xf32>
    %c0_40 = arith.constant 0 : index
    %c56_41 = arith.constant 56 : index
    %c0_42 = arith.constant 0 : index
    %56 = vector.load %arg4[%c0_40, %c56_41, %c0_42] : memref<1x196x32xf32, #tpu.memory_space<vmem>>, vector<1x14x32xf32>
    %57 = vector.shape_cast %56 : vector<1x14x32xf32> to vector<14x32xf32>
    %58 = vector.shape_cast %55 : vector<14x32xf32> to vector<1x14x32xf32>
    tpu.vector_store %arg4[%c0_40, %c56_41, %c0_42], %58 {strides = array<i32>} : memref<1x196x32xf32, #tpu.memory_space<vmem>>, vector<1x14x32xf32>,
    %c140 = arith.constant 140 : index
    %c0_43 = arith.constant 0 : index
    %59 = vector.load %arg6[%c140, %c0_43] : memref<392x32xf32, #tpu.memory_space<vmem>>, vector<14x32xf32>
    %c154 = arith.constant 154 : index
    %c0_44 = arith.constant 0 : index
    %60 = vector.load %arg6[%c154, %c0_44] : memref<392x32xf32, #tpu.memory_space<vmem>>, vector<14x32xf32>
    %61 = arith.maximumf %59, %60 : vector<14x32xf32>
    %62 = vector.broadcast %4 : vector<1x32xf32> to vector<14x32xf32>
    %63 = arith.addf %61, %62 : vector<14x32xf32>
    %cst_45 = arith.constant 0.000000e+00 : f32
    %64 = vector.broadcast %cst_45 : f32 to vector<14x32xf32>
    %65 = arith.maximumf %63, %64 : vector<14x32xf32>
    %c0_46 = arith.constant 0 : index
    %c70_47 = arith.constant 70 : index
    %c0_48 = arith.constant 0 : index
    %66 = vector.load %arg4[%c0_46, %c70_47, %c0_48] : memref<1x196x32xf32, #tpu.memory_space<vmem>>, vector<1x14x32xf32>
    %67 = vector.shape_cast %66 : vector<1x14x32xf32> to vector<14x32xf32>
    %68 = vector.shape_cast %65 : vector<14x32xf32> to vector<1x14x32xf32>
    tpu.vector_store %arg4[%c0_46, %c70_47, %c0_48], %68 {strides = array<i32>} : memref<1x196x32xf32, #tpu.memory_space<vmem>>, vector<1x14x32xf32>,
    %c168 = arith.constant 168 : index
    %c0_49 = arith.constant 0 : index
    %69 = vector.load %arg6[%c168, %c0_49] : memref<392x32xf32, #tpu.memory_space<vmem>>, vector<14x32xf32>
    %c182 = arith.constant 182 : index
    %c0_50 = arith.constant 0 : index
    %70 = vector.load %arg6[%c182, %c0_50] : memref<392x32xf32, #tpu.memory_space<vmem>>, vector<14x32xf32>
    %71 = arith.maximumf %69, %70 : vector<14x32xf32>
    %72 = vector.broadcast %4 : vector<1x32xf32> to vector<14x32xf32>
    %73 = arith.addf %71, %72 : vector<14x32xf32>
    %cst_51 = arith.constant 0.000000e+00 : f32
    %74 = vector.broadcast %cst_51 : f32 to vector<14x32xf32>
    %75 = arith.maximumf %73, %74 : vector<14x32xf32>
    %c0_52 = arith.constant 0 : index
    %c84_53 = arith.constant 84 : index
    %c0_54 = arith.constant 0 : index
    %76 = vector.load %arg4[%c0_52, %c84_53, %c0_54] : memref<1x196x32xf32, #tpu.memory_space<vmem>>, vector<1x14x32xf32>
    %77 = vector.shape_cast %76 : vector<1x14x32xf32> to vector<14x32xf32>
    %78 = vector.shape_cast %75 : vector<14x32xf32> to vector<1x14x32xf32>
    tpu.vector_store %arg4[%c0_52, %c84_53, %c0_54], %78 {strides = array<i32>} : memref<1x196x32xf32, #tpu.memory_space<vmem>>, vector<1x14x32xf32>,
    %c196 = arith.constant 196 : index
    %c0_55 = arith.constant 0 : index
    %79 = vector.load %arg6[%c196, %c0_55] : memref<392x32xf32, #tpu.memory_space<vmem>>, vector<14x32xf32>
    %c210 = arith.constant 210 : index
    %c0_56 = arith.constant 0 : index
    %80 = vector.load %arg6[%c210, %c0_56] : memref<392x32xf32, #tpu.memory_space<vmem>>, vector<14x32xf32>
    %81 = arith.maximumf %79, %80 : vector<14x32xf32>
    %82 = vector.broadcast %4 : vector<1x32xf32> to vector<14x32xf32>
    %83 = arith.addf %81, %82 : vector<14x32xf32>
    %cst_57 = arith.constant 0.000000e+00 : f32
    %84 = vector.broadcast %cst_57 : f32 to vector<14x32xf32>
    %85 = arith.maximumf %83, %84 : vector<14x32xf32>
    %c0_58 = arith.constant 0 : index
    %c98_59 = arith.constant 98 : index
    %c0_60 = arith.constant 0 : index
    %86 = vector.load %arg4[%c0_58, %c98_59, %c0_60] : memref<1x196x32xf32, #tpu.memory_space<vmem>>, vector<1x14x32xf32>
    %87 = vector.shape_cast %86 : vector<1x14x32xf32> to vector<14x32xf32>
    %88 = vector.shape_cast %85 : vector<14x32xf32> to vector<1x14x32xf32>
    tpu.vector_store %arg4[%c0_58, %c98_59, %c0_60], %88 {strides = array<i32>} : memref<1x196x32xf32, #tpu.memory_space<vmem>>, vector<1x14x32xf32>,
    %c224 = arith.constant 224 : index
    %c0_61 = arith.constant 0 : index
    %89 = vector.load %arg6[%c224, %c0_61] : memref<392x32xf32, #tpu.memory_space<vmem>>, vector<14x32xf32>
    %c238 = arith.constant 238 : index
    %c0_62 = arith.constant 0 : index
    %90 = vector.load %arg6[%c238, %c0_62] : memref<392x32xf32, #tpu.memory_space<vmem>>, vector<14x32xf32>
    %91 = arith.maximumf %89, %90 : vector<14x32xf32>
    %92 = vector.broadcast %4 : vector<1x32xf32> to vector<14x32xf32>
    %93 = arith.addf %91, %92 : vector<14x32xf32>
    %cst_63 = arith.constant 0.000000e+00 : f32
    %94 = vector.broadcast %cst_63 : f32 to vector<14x32xf32>
    %95 = arith.maximumf %93, %94 : vector<14x32xf32>
    %c0_64 = arith.constant 0 : index
    %c112_65 = arith.constant 112 : index
    %c0_66 = arith.constant 0 : index
    %96 = vector.load %arg4[%c0_64, %c112_65, %c0_66] : memref<1x196x32xf32, #tpu.memory_space<vmem>>, vector<1x14x32xf32>
    %97 = vector.shape_cast %96 : vector<1x14x32xf32> to vector<14x32xf32>
    %98 = vector.shape_cast %95 : vector<14x32xf32> to vector<1x14x32xf32>
    tpu.vector_store %arg4[%c0_64, %c112_65, %c0_66], %98 {strides = array<i32>} : memref<1x196x32xf32, #tpu.memory_space<vmem>>, vector<1x14x32xf32>,
    %c252 = arith.constant 252 : index
    %c0_67 = arith.constant 0 : index
    %99 = vector.load %arg6[%c252, %c0_67] : memref<392x32xf32, #tpu.memory_space<vmem>>, vector<14x32xf32>
    %c266 = arith.constant 266 : index
    %c0_68 = arith.constant 0 : index
    %100 = vector.load %arg6[%c266, %c0_68] : memref<392x32xf32, #tpu.memory_space<vmem>>, vector<14x32xf32>
    %101 = arith.maximumf %99, %100 : vector<14x32xf32>
    %102 = vector.broadcast %4 : vector<1x32xf32> to vector<14x32xf32>
    %103 = arith.addf %101, %102 : vector<14x32xf32>
    %cst_69 = arith.constant 0.000000e+00 : f32
    %104 = vector.broadcast %cst_69 : f32 to vector<14x32xf32>
    %105 = arith.maximumf %103, %104 : vector<14x32xf32>
    %c0_70 = arith.constant 0 : index
    %c126_71 = arith.constant 126 : index
    %c0_72 = arith.constant 0 : index
    %106 = vector.load %arg4[%c0_70, %c126_71, %c0_72] : memref<1x196x32xf32, #tpu.memory_space<vmem>>, vector<1x14x32xf32>
    %107 = vector.shape_cast %106 : vector<1x14x32xf32> to vector<14x32xf32>
    %108 = vector.shape_cast %105 : vector<14x32xf32> to vector<1x14x32xf32>
    tpu.vector_store %arg4[%c0_70, %c126_71, %c0_72], %108 {strides = array<i32>} : memref<1x196x32xf32, #tpu.memory_space<vmem>>, vector<1x14x32xf32>,
    %c280 = arith.constant 280 : index
    %c0_73 = arith.constant 0 : index
    %109 = vector.load %arg6[%c280, %c0_73] : memref<392x32xf32, #tpu.memory_space<vmem>>, vector<14x32xf32>
    %c294 = arith.constant 294 : index
    %c0_74 = arith.constant 0 : index
    %110 = vector.load %arg6[%c294, %c0_74] : memref<392x32xf32, #tpu.memory_space<vmem>>, vector<14x32xf32>
    %111 = arith.maximumf %109, %110 : vector<14x32xf32>
    %112 = vector.broadcast %4 : vector<1x32xf32> to vector<14x32xf32>
    %113 = arith.addf %111, %112 : vector<14x32xf32>
    %cst_75 = arith.constant 0.000000e+00 : f32
    %114 = vector.broadcast %cst_75 : f32 to vector<14x32xf32>
    %115 = arith.maximumf %113, %114 : vector<14x32xf32>
    %c0_76 = arith.constant 0 : index
    %c140_77 = arith.constant 140 : index
    %c0_78 = arith.constant 0 : index
    %116 = vector.load %arg4[%c0_76, %c140_77, %c0_78] : memref<1x196x32xf32, #tpu.memory_space<vmem>>, vector<1x14x32xf32>
    %117 = vector.shape_cast %116 : vector<1x14x32xf32> to vector<14x32xf32>
    %118 = vector.shape_cast %115 : vector<14x32xf32> to vector<1x14x32xf32>
    tpu.vector_store %arg4[%c0_76, %c140_77, %c0_78], %118 {strides = array<i32>} : memref<1x196x32xf32, #tpu.memory_space<vmem>>, vector<1x14x32xf32>,
    %c308 = arith.constant 308 : index
    %c0_79 = arith.constant 0 : index
    %119 = vector.load %arg6[%c308, %c0_79] : memref<392x32xf32, #tpu.memory_space<vmem>>, vector<14x32xf32>
    %c322 = arith.constant 322 : index
    %c0_80 = arith.constant 0 : index
    %120 = vector.load %arg6[%c322, %c0_80] : memref<392x32xf32, #tpu.memory_space<vmem>>, vector<14x32xf32>
    %121 = arith.maximumf %119, %120 : vector<14x32xf32>
    %122 = vector.broadcast %4 : vector<1x32xf32> to vector<14x32xf32>
    %123 = arith.addf %121, %122 : vector<14x32xf32>
    %cst_81 = arith.constant 0.000000e+00 : f32
    %124 = vector.broadcast %cst_81 : f32 to vector<14x32xf32>
    %125 = arith.maximumf %123, %124 : vector<14x32xf32>
    %c0_82 = arith.constant 0 : index
    %c154_83 = arith.constant 154 : index
    %c0_84 = arith.constant 0 : index
    %126 = vector.load %arg4[%c0_82, %c154_83, %c0_84] : memref<1x196x32xf32, #tpu.memory_space<vmem>>, vector<1x14x32xf32>
    %127 = vector.shape_cast %126 : vector<1x14x32xf32> to vector<14x32xf32>
    %128 = vector.shape_cast %125 : vector<14x32xf32> to vector<1x14x32xf32>
    tpu.vector_store %arg4[%c0_82, %c154_83, %c0_84], %128 {strides = array<i32>} : memref<1x196x32xf32, #tpu.memory_space<vmem>>, vector<1x14x32xf32>,
    %c336 = arith.constant 336 : index
    %c0_85 = arith.constant 0 : index
    %129 = vector.load %arg6[%c336, %c0_85] : memref<392x32xf32, #tpu.memory_space<vmem>>, vector<14x32xf32>
    %c350 = arith.constant 350 : index
    %c0_86 = arith.constant 0 : index
    %130 = vector.load %arg6[%c350, %c0_86] : memref<392x32xf32, #tpu.memory_space<vmem>>, vector<14x32xf32>
    %131 = arith.maximumf %129, %130 : vector<14x32xf32>
    %132 = vector.broadcast %4 : vector<1x32xf32> to vector<14x32xf32>
    %133 = arith.addf %131, %132 : vector<14x32xf32>
    %cst_87 = arith.constant 0.000000e+00 : f32
    %134 = vector.broadcast %cst_87 : f32 to vector<14x32xf32>
    %135 = arith.maximumf %133, %134 : vector<14x32xf32>
    %c0_88 = arith.constant 0 : index
    %c168_89 = arith.constant 168 : index
    %c0_90 = arith.constant 0 : index
    %136 = vector.load %arg4[%c0_88, %c168_89, %c0_90] : memref<1x196x32xf32, #tpu.memory_space<vmem>>, vector<1x14x32xf32>
    %137 = vector.shape_cast %136 : vector<1x14x32xf32> to vector<14x32xf32>
    %138 = vector.shape_cast %135 : vector<14x32xf32> to vector<1x14x32xf32>
    tpu.vector_store %arg4[%c0_88, %c168_89, %c0_90], %138 {strides = array<i32>} : memref<1x196x32xf32, #tpu.memory_space<vmem>>, vector<1x14x32xf32>,
    %c364 = arith.constant 364 : index
    %c0_91 = arith.constant 0 : index
    %139 = vector.load %arg6[%c364, %c0_91] : memref<392x32xf32, #tpu.memory_space<vmem>>, vector<14x32xf32>
    %c378 = arith.constant 378 : index
    %c0_92 = arith.constant 0 : index
    %140 = vector.load %arg6[%c378, %c0_92] : memref<392x32xf32, #tpu.memory_space<vmem>>, vector<14x32xf32>
    %141 = arith.maximumf %139, %140 : vector<14x32xf32>
    %142 = vector.broadcast %4 : vector<1x32xf32> to vector<14x32xf32>
    %143 = arith.addf %141, %142 : vector<14x32xf32>
    %cst_93 = arith.constant 0.000000e+00 : f32
    %144 = vector.broadcast %cst_93 : f32 to vector<14x32xf32>
    %145 = arith.maximumf %143, %144 : vector<14x32xf32>
    %c0_94 = arith.constant 0 : index
    %c182_95 = arith.constant 182 : index
    %c0_96 = arith.constant 0 : index
    %146 = vector.load %arg4[%c0_94, %c182_95, %c0_96] : memref<1x196x32xf32, #tpu.memory_space<vmem>>, vector<1x14x32xf32>
    %147 = vector.shape_cast %146 : vector<1x14x32xf32> to vector<14x32xf32>
    %148 = vector.shape_cast %145 : vector<14x32xf32> to vector<1x14x32xf32>
    tpu.vector_store %arg4[%c0_94, %c182_95, %c0_96], %148 {strides = array<i32>} : memref<1x196x32xf32, #tpu.memory_space<vmem>>, vector<1x14x32xf32>,
    return
  }
  func.func @transform_0(%arg0: i32) -> (i32, i32) {
    %c0_i32 = arith.constant 0 : i32
    %c0_i32_0 = arith.constant 0 : i32
    return %arg0, %c0_i32 : i32, i32
  }
  func.func @transform_1(%arg0: i32) -> (i32, i32) {
    %c0_i32 = arith.constant 0 : i32
    %c0_i32_0 = arith.constant 0 : i32
    %c0_i32_1 = arith.constant 0 : i32
    return %c0_i32, %c0_i32_0 : i32, i32
  }
  func.func @transform_2(%arg0: i32) -> (i32, i32) {
    %c0_i32 = arith.constant 0 : i32
    %c0_i32_0 = arith.constant 0 : i32
    %c0_i32_1 = arith.constant 0 : i32
    return %c0_i32, %c0_i32_0 : i32, i32
  }
  func.func @transform_3(%arg0: i32) -> (i32, i32, i32) {
    %c0_i32 = arith.constant 0 : i32
    %c0_i32_0 = arith.constant 0 : i32
    %c0_i32_1 = arith.constant 0 : i32
    return %arg0, %c0_i32, %c0_i32_0 : i32, i32, i32
  }
}

module attributes {stable_mosaic.version = 11 : i64} {
  func.func @conv_pool_kernel(%arg0: i32, %arg1: memref<200x800xbf16, #tpu.memory_space<vmem>>, %arg2: memref<800x64xbf16, #tpu.memory_space<vmem>>, %arg3: memref<1x64xf32, #tpu.memory_space<vmem>>, %arg4: memref<1x49x64xf32, #tpu.memory_space<vmem>>, %arg5: memref<200x64xf32, #tpu.memory_space<vmem>>, %arg6: memref<98x64xf32, #tpu.memory_space<vmem>>) attributes {dimension_semantics = [#tpu.dimension_semantics<parallel>], iteration_bounds = array<i64: 2>, scalar_prefetch = 0 : i64, scratch_operands = 2 : i64, tpu.core_type = #tpu.core_type<tc>, window_params = [{transform_indices = @transform_0, window_bounds = array<i64: 200, 800>}, {pipeline_mode = #tpu.pipeline_mode<synchronous>, transform_indices = @transform_1, window_bounds = array<i64: 800, 64>}, {pipeline_mode = #tpu.pipeline_mode<synchronous>, transform_indices = @transform_2, window_bounds = array<i64: 1, 64>}, {transform_indices = @transform_3, window_bounds = array<i64: 1, 49, 64>}]} {
    %c0 = arith.constant 0 : index
    %c0_0 = arith.constant 0 : index
    %0 = vector.load %arg1[%c0, %c0_0] : memref<200x800xbf16, #tpu.memory_space<vmem>>, vector<200x800xbf16>
    %c0_1 = arith.constant 0 : index
    %c0_2 = arith.constant 0 : index
    %1 = vector.load %arg2[%c0_1, %c0_2] : memref<800x64xbf16, #tpu.memory_space<vmem>>, vector<800x64xbf16>
    %cst = arith.constant dense<0.000000e+00> : vector<200x64xf32>
    %2 = tpu.matmul %0, %1, %cst {dimension_numbers = #tpu.dot_dimension_numbers<[1], [0], [0], [1], [0, 0, 1, 1], [], []>} : vector<200x800xbf16>, vector<800x64xbf16>, vector<200x64xf32> -> vector<200x64xf32>
    %c0_3 = arith.constant 0 : index
    %c0_4 = arith.constant 0 : index
    %3 = vector.load %arg5[%c0_3, %c0_4] : memref<200x64xf32, #tpu.memory_space<vmem>>, vector<200x64xf32>
    tpu.vector_store %arg5[%c0_3, %c0_4], %2 {strides = array<i32>} : memref<200x64xf32, #tpu.memory_space<vmem>>, vector<200x64xf32>,
    %c0_5 = arith.constant 0 : index
    %c0_6 = arith.constant 0 : index
    %4 = vector.load %arg3[%c0_5, %c0_6] : memref<1x64xf32, #tpu.memory_space<vmem>>, vector<1x64xf32>
    %c0_7 = arith.constant 0 : index
    %c0_8 = arith.constant 0 : index
    %5 = tpu.strided_load %arg5[%c0_7, %c0_8] {strides = array<i32: 2, 1>} : memref<200x64xf32, #tpu.memory_space<vmem>>, vector<98x64xf32>
    %c1 = arith.constant 1 : index
    %c0_9 = arith.constant 0 : index
    %6 = tpu.strided_load %arg5[%c1, %c0_9] {strides = array<i32: 2, 1>} : memref<200x64xf32, #tpu.memory_space<vmem>>, vector<98x64xf32>
    %7 = arith.maximumf %5, %6 : vector<98x64xf32>
    %c0_10 = arith.constant 0 : index
    %c0_11 = arith.constant 0 : index
    %8 = vector.load %arg6[%c0_10, %c0_11] : memref<98x64xf32, #tpu.memory_space<vmem>>, vector<98x64xf32>
    tpu.vector_store %arg6[%c0_10, %c0_11], %7 {strides = array<i32>} : memref<98x64xf32, #tpu.memory_space<vmem>>, vector<98x64xf32>,
    %c0_12 = arith.constant 0 : index
    %c0_13 = arith.constant 0 : index
    %9 = vector.load %arg6[%c0_12, %c0_13] : memref<98x64xf32, #tpu.memory_space<vmem>>, vector<7x64xf32>
    %c7 = arith.constant 7 : index
    %c0_14 = arith.constant 0 : index
    %10 = vector.load %arg6[%c7, %c0_14] : memref<98x64xf32, #tpu.memory_space<vmem>>, vector<7x64xf32>
    %11 = arith.maximumf %9, %10 : vector<7x64xf32>
    %12 = vector.broadcast %4 : vector<1x64xf32> to vector<7x64xf32>
    %13 = arith.addf %11, %12 : vector<7x64xf32>
    %cst_15 = arith.constant 0.000000e+00 : f32
    %14 = vector.broadcast %cst_15 : f32 to vector<7x64xf32>
    %15 = arith.maximumf %13, %14 : vector<7x64xf32>
    %c0_16 = arith.constant 0 : index
    %c0_17 = arith.constant 0 : index
    %c0_18 = arith.constant 0 : index
    %16 = vector.load %arg4[%c0_16, %c0_17, %c0_18] : memref<1x49x64xf32, #tpu.memory_space<vmem>>, vector<1x7x64xf32>
    %17 = vector.shape_cast %16 : vector<1x7x64xf32> to vector<7x64xf32>
    %18 = vector.shape_cast %15 : vector<7x64xf32> to vector<1x7x64xf32>
    tpu.vector_store %arg4[%c0_16, %c0_17, %c0_18], %18 {strides = array<i32>} : memref<1x49x64xf32, #tpu.memory_space<vmem>>, vector<1x7x64xf32>,
    %c14 = arith.constant 14 : index
    %c0_19 = arith.constant 0 : index
    %19 = vector.load %arg6[%c14, %c0_19] : memref<98x64xf32, #tpu.memory_space<vmem>>, vector<7x64xf32>
    %c21 = arith.constant 21 : index
    %c0_20 = arith.constant 0 : index
    %20 = vector.load %arg6[%c21, %c0_20] : memref<98x64xf32, #tpu.memory_space<vmem>>, vector<7x64xf32>
    %21 = arith.maximumf %19, %20 : vector<7x64xf32>
    %22 = vector.broadcast %4 : vector<1x64xf32> to vector<7x64xf32>
    %23 = arith.addf %21, %22 : vector<7x64xf32>
    %cst_21 = arith.constant 0.000000e+00 : f32
    %24 = vector.broadcast %cst_21 : f32 to vector<7x64xf32>
    %25 = arith.maximumf %23, %24 : vector<7x64xf32>
    %c0_22 = arith.constant 0 : index
    %c7_23 = arith.constant 7 : index
    %c0_24 = arith.constant 0 : index
    %26 = vector.load %arg4[%c0_22, %c7_23, %c0_24] : memref<1x49x64xf32, #tpu.memory_space<vmem>>, vector<1x7x64xf32>
    %27 = vector.shape_cast %26 : vector<1x7x64xf32> to vector<7x64xf32>
    %28 = vector.shape_cast %25 : vector<7x64xf32> to vector<1x7x64xf32>
    tpu.vector_store %arg4[%c0_22, %c7_23, %c0_24], %28 {strides = array<i32>} : memref<1x49x64xf32, #tpu.memory_space<vmem>>, vector<1x7x64xf32>,
    %c28 = arith.constant 28 : index
    %c0_25 = arith.constant 0 : index
    %29 = vector.load %arg6[%c28, %c0_25] : memref<98x64xf32, #tpu.memory_space<vmem>>, vector<7x64xf32>
    %c35 = arith.constant 35 : index
    %c0_26 = arith.constant 0 : index
    %30 = vector.load %arg6[%c35, %c0_26] : memref<98x64xf32, #tpu.memory_space<vmem>>, vector<7x64xf32>
    %31 = arith.maximumf %29, %30 : vector<7x64xf32>
    %32 = vector.broadcast %4 : vector<1x64xf32> to vector<7x64xf32>
    %33 = arith.addf %31, %32 : vector<7x64xf32>
    %cst_27 = arith.constant 0.000000e+00 : f32
    %34 = vector.broadcast %cst_27 : f32 to vector<7x64xf32>
    %35 = arith.maximumf %33, %34 : vector<7x64xf32>
    %c0_28 = arith.constant 0 : index
    %c14_29 = arith.constant 14 : index
    %c0_30 = arith.constant 0 : index
    %36 = vector.load %arg4[%c0_28, %c14_29, %c0_30] : memref<1x49x64xf32, #tpu.memory_space<vmem>>, vector<1x7x64xf32>
    %37 = vector.shape_cast %36 : vector<1x7x64xf32> to vector<7x64xf32>
    %38 = vector.shape_cast %35 : vector<7x64xf32> to vector<1x7x64xf32>
    tpu.vector_store %arg4[%c0_28, %c14_29, %c0_30], %38 {strides = array<i32>} : memref<1x49x64xf32, #tpu.memory_space<vmem>>, vector<1x7x64xf32>,
    %c42 = arith.constant 42 : index
    %c0_31 = arith.constant 0 : index
    %39 = vector.load %arg6[%c42, %c0_31] : memref<98x64xf32, #tpu.memory_space<vmem>>, vector<7x64xf32>
    %c49 = arith.constant 49 : index
    %c0_32 = arith.constant 0 : index
    %40 = vector.load %arg6[%c49, %c0_32] : memref<98x64xf32, #tpu.memory_space<vmem>>, vector<7x64xf32>
    %41 = arith.maximumf %39, %40 : vector<7x64xf32>
    %42 = vector.broadcast %4 : vector<1x64xf32> to vector<7x64xf32>
    %43 = arith.addf %41, %42 : vector<7x64xf32>
    %cst_33 = arith.constant 0.000000e+00 : f32
    %44 = vector.broadcast %cst_33 : f32 to vector<7x64xf32>
    %45 = arith.maximumf %43, %44 : vector<7x64xf32>
    %c0_34 = arith.constant 0 : index
    %c21_35 = arith.constant 21 : index
    %c0_36 = arith.constant 0 : index
    %46 = vector.load %arg4[%c0_34, %c21_35, %c0_36] : memref<1x49x64xf32, #tpu.memory_space<vmem>>, vector<1x7x64xf32>
    %47 = vector.shape_cast %46 : vector<1x7x64xf32> to vector<7x64xf32>
    %48 = vector.shape_cast %45 : vector<7x64xf32> to vector<1x7x64xf32>
    tpu.vector_store %arg4[%c0_34, %c21_35, %c0_36], %48 {strides = array<i32>} : memref<1x49x64xf32, #tpu.memory_space<vmem>>, vector<1x7x64xf32>,
    %c56 = arith.constant 56 : index
    %c0_37 = arith.constant 0 : index
    %49 = vector.load %arg6[%c56, %c0_37] : memref<98x64xf32, #tpu.memory_space<vmem>>, vector<7x64xf32>
    %c63 = arith.constant 63 : index
    %c0_38 = arith.constant 0 : index
    %50 = vector.load %arg6[%c63, %c0_38] : memref<98x64xf32, #tpu.memory_space<vmem>>, vector<7x64xf32>
    %51 = arith.maximumf %49, %50 : vector<7x64xf32>
    %52 = vector.broadcast %4 : vector<1x64xf32> to vector<7x64xf32>
    %53 = arith.addf %51, %52 : vector<7x64xf32>
    %cst_39 = arith.constant 0.000000e+00 : f32
    %54 = vector.broadcast %cst_39 : f32 to vector<7x64xf32>
    %55 = arith.maximumf %53, %54 : vector<7x64xf32>
    %c0_40 = arith.constant 0 : index
    %c28_41 = arith.constant 28 : index
    %c0_42 = arith.constant 0 : index
    %56 = vector.load %arg4[%c0_40, %c28_41, %c0_42] : memref<1x49x64xf32, #tpu.memory_space<vmem>>, vector<1x7x64xf32>
    %57 = vector.shape_cast %56 : vector<1x7x64xf32> to vector<7x64xf32>
    %58 = vector.shape_cast %55 : vector<7x64xf32> to vector<1x7x64xf32>
    tpu.vector_store %arg4[%c0_40, %c28_41, %c0_42], %58 {strides = array<i32>} : memref<1x49x64xf32, #tpu.memory_space<vmem>>, vector<1x7x64xf32>,
    %c70 = arith.constant 70 : index
    %c0_43 = arith.constant 0 : index
    %59 = vector.load %arg6[%c70, %c0_43] : memref<98x64xf32, #tpu.memory_space<vmem>>, vector<7x64xf32>
    %c77 = arith.constant 77 : index
    %c0_44 = arith.constant 0 : index
    %60 = vector.load %arg6[%c77, %c0_44] : memref<98x64xf32, #tpu.memory_space<vmem>>, vector<7x64xf32>
    %61 = arith.maximumf %59, %60 : vector<7x64xf32>
    %62 = vector.broadcast %4 : vector<1x64xf32> to vector<7x64xf32>
    %63 = arith.addf %61, %62 : vector<7x64xf32>
    %cst_45 = arith.constant 0.000000e+00 : f32
    %64 = vector.broadcast %cst_45 : f32 to vector<7x64xf32>
    %65 = arith.maximumf %63, %64 : vector<7x64xf32>
    %c0_46 = arith.constant 0 : index
    %c35_47 = arith.constant 35 : index
    %c0_48 = arith.constant 0 : index
    %66 = vector.load %arg4[%c0_46, %c35_47, %c0_48] : memref<1x49x64xf32, #tpu.memory_space<vmem>>, vector<1x7x64xf32>
    %67 = vector.shape_cast %66 : vector<1x7x64xf32> to vector<7x64xf32>
    %68 = vector.shape_cast %65 : vector<7x64xf32> to vector<1x7x64xf32>
    tpu.vector_store %arg4[%c0_46, %c35_47, %c0_48], %68 {strides = array<i32>} : memref<1x49x64xf32, #tpu.memory_space<vmem>>, vector<1x7x64xf32>,
    %c84 = arith.constant 84 : index
    %c0_49 = arith.constant 0 : index
    %69 = vector.load %arg6[%c84, %c0_49] : memref<98x64xf32, #tpu.memory_space<vmem>>, vector<7x64xf32>
    %c91 = arith.constant 91 : index
    %c0_50 = arith.constant 0 : index
    %70 = vector.load %arg6[%c91, %c0_50] : memref<98x64xf32, #tpu.memory_space<vmem>>, vector<7x64xf32>
    %71 = arith.maximumf %69, %70 : vector<7x64xf32>
    %72 = vector.broadcast %4 : vector<1x64xf32> to vector<7x64xf32>
    %73 = arith.addf %71, %72 : vector<7x64xf32>
    %cst_51 = arith.constant 0.000000e+00 : f32
    %74 = vector.broadcast %cst_51 : f32 to vector<7x64xf32>
    %75 = arith.maximumf %73, %74 : vector<7x64xf32>
    %c0_52 = arith.constant 0 : index
    %c42_53 = arith.constant 42 : index
    %c0_54 = arith.constant 0 : index
    %76 = vector.load %arg4[%c0_52, %c42_53, %c0_54] : memref<1x49x64xf32, #tpu.memory_space<vmem>>, vector<1x7x64xf32>
    %77 = vector.shape_cast %76 : vector<1x7x64xf32> to vector<7x64xf32>
    %78 = vector.shape_cast %75 : vector<7x64xf32> to vector<1x7x64xf32>
    tpu.vector_store %arg4[%c0_52, %c42_53, %c0_54], %78 {strides = array<i32>} : memref<1x49x64xf32, #tpu.memory_space<vmem>>, vector<1x7x64xf32>,
    return
  }
  func.func @transform_0(%arg0: i32) -> (i32, i32) {
    %c0_i32 = arith.constant 0 : i32
    %c0_i32_0 = arith.constant 0 : i32
    return %arg0, %c0_i32 : i32, i32
  }
  func.func @transform_1(%arg0: i32) -> (i32, i32) {
    %c0_i32 = arith.constant 0 : i32
    %c0_i32_0 = arith.constant 0 : i32
    %c0_i32_1 = arith.constant 0 : i32
    return %c0_i32, %c0_i32_0 : i32, i32
  }
  func.func @transform_2(%arg0: i32) -> (i32, i32) {
    %c0_i32 = arith.constant 0 : i32
    %c0_i32_0 = arith.constant 0 : i32
    %c0_i32_1 = arith.constant 0 : i32
    return %c0_i32, %c0_i32_0 : i32, i32
  }
  func.func @transform_3(%arg0: i32) -> (i32, i32, i32) {
    %c0_i32 = arith.constant 0 : i32
    %c0_i32_0 = arith.constant 0 : i32
    %c0_i32_1 = arith.constant 0 : i32
    return %arg0, %c0_i32, %c0_i32_0 : i32, i32, i32
  }
}

module attributes {stable_mosaic.version = 11 : i64} {
  func.func @fc_fused_kernel(%arg0: i32, %arg1: memref<2x3136xbf16, #tpu.memory_space<vmem>>, %arg2: memref<3136x512xbf16, #tpu.memory_space<vmem>>, %arg3: memref<1x512xf32, #tpu.memory_space<vmem>>, %arg4: memref<512x10xbf16, #tpu.memory_space<vmem>>, %arg5: memref<1x10xf32, #tpu.memory_space<vmem>>, %arg6: memref<2x10xf32, #tpu.memory_space<vmem>>) attributes {dimension_semantics = [#tpu.dimension_semantics<parallel>], iteration_bounds = array<i64: 1>, scalar_prefetch = 0 : i64, scratch_operands = 0 : i64, tpu.core_type = #tpu.core_type<tc>, window_params = [{transform_indices = @transform_0, window_bounds = array<i64: 2, 3136>}, {pipeline_mode = #tpu.pipeline_mode<synchronous>, transform_indices = @transform_1, window_bounds = array<i64: 3136, 512>}, {pipeline_mode = #tpu.pipeline_mode<synchronous>, transform_indices = @transform_2, window_bounds = array<i64: 1, 512>}, {pipeline_mode = #tpu.pipeline_mode<synchronous>, transform_indices = @transform_3, window_bounds = array<i64: 512, 10>}, {pipeline_mode = #tpu.pipeline_mode<synchronous>, transform_indices = @transform_4, window_bounds = array<i64: 1, 10>}, {transform_indices = @transform_5, window_bounds = array<i64: 2, 10>}]} {
    %c0 = arith.constant 0 : index
    %c0_0 = arith.constant 0 : index
    %0 = vector.load %arg1[%c0, %c0_0] : memref<2x3136xbf16, #tpu.memory_space<vmem>>, vector<2x3136xbf16>
    %c0_1 = arith.constant 0 : index
    %c0_2 = arith.constant 0 : index
    %1 = vector.load %arg2[%c0_1, %c0_2] : memref<3136x512xbf16, #tpu.memory_space<vmem>>, vector<3136x512xbf16>
    %cst = arith.constant dense<0.000000e+00> : vector<2x512xf32>
    %2 = tpu.matmul %0, %1, %cst {dimension_numbers = #tpu.dot_dimension_numbers<[1], [0], [0], [1], [0, 0, 1, 1], [], []>} : vector<2x3136xbf16>, vector<3136x512xbf16>, vector<2x512xf32> -> vector<2x512xf32>
    %c0_3 = arith.constant 0 : index
    %c0_4 = arith.constant 0 : index
    %3 = vector.load %arg3[%c0_3, %c0_4] : memref<1x512xf32, #tpu.memory_space<vmem>>, vector<1x512xf32>
    %4 = vector.broadcast %3 : vector<1x512xf32> to vector<2x512xf32>
    %5 = arith.addf %2, %4 : vector<2x512xf32>
    %cst_5 = arith.constant 0.000000e+00 : f32
    %6 = vector.broadcast %cst_5 : f32 to vector<2x512xf32>
    %7 = arith.maximumf %5, %6 : vector<2x512xf32>
    %8 = arith.truncf %7 : vector<2x512xf32> to vector<2x512xbf16>
    %c0_6 = arith.constant 0 : index
    %c0_7 = arith.constant 0 : index
    %9 = vector.load %arg4[%c0_6, %c0_7] : memref<512x10xbf16, #tpu.memory_space<vmem>>, vector<512x10xbf16>
    %cst_8 = arith.constant dense<0.000000e+00> : vector<2x10xf32>
    %10 = tpu.matmul %8, %9, %cst_8 {dimension_numbers = #tpu.dot_dimension_numbers<[1], [0], [0], [1], [0, 0, 1, 1], [], []>} : vector<2x512xbf16>, vector<512x10xbf16>, vector<2x10xf32> -> vector<2x10xf32>
    %c0_9 = arith.constant 0 : index
    %c0_10 = arith.constant 0 : index
    %11 = vector.load %arg5[%c0_9, %c0_10] : memref<1x10xf32, #tpu.memory_space<vmem>>, vector<1x10xf32>
    %12 = vector.broadcast %11 : vector<1x10xf32> to vector<2x10xf32>
    %13 = arith.addf %10, %12 : vector<2x10xf32>
    %c0_11 = arith.constant 0 : index
    %c0_12 = arith.constant 0 : index
    %14 = vector.load %arg6[%c0_11, %c0_12] : memref<2x10xf32, #tpu.memory_space<vmem>>, vector<2x10xf32>
    tpu.vector_store %arg6[%c0_11, %c0_12], %13 {strides = array<i32>} : memref<2x10xf32, #tpu.memory_space<vmem>>, vector<2x10xf32>,
    return
  }
  func.func @transform_0(%arg0: i32) -> (i32, i32) {
    %c0_i32 = arith.constant 0 : i32
    %c0_i32_0 = arith.constant 0 : i32
    return %arg0, %c0_i32 : i32, i32
  }
  func.func @transform_1(%arg0: i32) -> (i32, i32) {
    %c0_i32 = arith.constant 0 : i32
    %c0_i32_0 = arith.constant 0 : i32
    %c0_i32_1 = arith.constant 0 : i32
    return %c0_i32, %c0_i32_0 : i32, i32
  }
  func.func @transform_2(%arg0: i32) -> (i32, i32) {
    %c0_i32 = arith.constant 0 : i32
    %c0_i32_0 = arith.constant 0 : i32
    %c0_i32_1 = arith.constant 0 : i32
    return %c0_i32, %c0_i32_0 : i32, i32
  }
  func.func @transform_3(%arg0: i32) -> (i32, i32) {
    %c0_i32 = arith.constant 0 : i32
    %c0_i32_0 = arith.constant 0 : i32
    %c0_i32_1 = arith.constant 0 : i32
    return %c0_i32, %c0_i32_0 : i32, i32
  }
  func.func @transform_4(%arg0: i32) -> (i32, i32) {
    %c0_i32 = arith.constant 0 : i32
    %c0_i32_0 = arith.constant 0 : i32
    %c0_i32_1 = arith.constant 0 : i32
    return %c0_i32, %c0_i32_0 : i32, i32
  }
  func.func @transform_5(%arg0: i32) -> (i32, i32) {
    %c0_i32 = arith.constant 0 : i32
    %c0_i32_0 = arith.constant 0 : i32
    return %arg0, %c0_i32 : i32, i32
  }
}

</mosaic_0001>

<llo_original>
// kernel: _lambda_.3
$region0: #{_lambda_.3}
  #allocation0 [shape = 'u32[]', space=smem, size = 0x4, offset = 0x4, fixed_abs, tag = 'smem constant byte address 0x4 - core index']
  #allocation1 [shape = 'u32[144,128]{1,0:T(1,128)}', space=vmem, size = 0x12000, scoped, tag = 'internal scratch']
  #allocation2 [shape = 'f32[784,32]{1,0:T(8,128)}', space=vmem, size = 0x62000, scoped, tag = 'scratch operand']
  #allocation3 [shape = 'f32[392,32]{1,0:T(8,128)}', space=vmem, size = 0x31000, scoped, tag = 'scratch operand']
  %s0 = inlined_call_operand.vmem [shape: bf16[1568,25], index: 0, kind: input, shape index: {}]
  %s1 = inlined_call_operand.hbm [shape: bf16[25,32], index: 1, kind: input, shape index: {}]
  %s2 = inlined_call_operand.hbm [shape: f32[1,32], index: 2, kind: input, shape index: {}]
  %s3 = inlined_call_operand.vmem [shape: f32[2,196,32], index: 3, kind: output, shape index: {}]
  %s4 = sld [smem:[#allocation0]]
  $region53: #{_lambda_.3} parent=0
    _
  %s6 = ssub.s32 1, %s4
  %s7 = scalar_select 0, %s6, %s4
  $region1: #{_lambda_.3} parent=0
    #allocation4 [shape = 'u8[8192]{0}', space=vmem, size = 0x2000, scoped, tag = 'input window, operand 1, single buffered']
    #allocation5 [shape = 's32[2]{0}', space=sflag, size = 0x8, scoped, tag = 'scoped memory for _lambda_.3']
    #allocation6 [shape = 'u8[512]{0}', space=vmem, size = 0x400, scoped, tag = 'input window, operand 2, single buffered']
    #allocation7 [shape = 's32[1]{0}', space=sflag, size = 0x4, scoped, tag = 'scoped memory for _lambda_.3']
    %8 = vsyncpa [#allocation5], 0
    %9 = vsyncpa [#allocation7], 0
    loop: start=0, step=1, limit=4
    $region2: #{_lambda_.3} parent=1 // loop_pre_header
      _
    $region3: #{_lambda_.3} parent=1 // loop_header
      %s11 = sphi 0, %s15
      %p12 = scmp.ge.s32.totalorder %s11, 4
      %s21 = sphi 0, %s23
      %s24 = sphi 0, %s21
      %s25 = sphi 0, %s24
      %s41 = sphi 0, %s25
      %s45 = sphi 0, %s45
      %s47 = sphi 0, %s45
      %s48 = sphi 0, %s47
      %s62 = sphi 0, %s48
      %s66 = sphi 0, %s66
      %s68 = sphi 0, %s66
      %s69 = sphi 0, %s68
      %s83 = sphi 0, %s69
      %s89 = sphi 0, %s91
      %s92 = sphi 0, %s89
      %s93 = sphi 0, %s92
      %s109 = sphi 0, %s93
    $region4: #{_lambda_.3} parent=1 // loop_header_branch
      %14 = sbr.rel (%p12) target = $region8
    $region5: #{_lambda_.3} parent=1 // loop_body
      %s16 = ssub.s32 %s11, 1
      %s17 = ssub.s32 %s11, 2
      %s18 = sadd.s32 %s11, 1
      %s19 = ssub.s32 %s11, %s18
      %p20 = scmp.eq.s32.totalorder %s19, 0
      %s22 = sadd.s32 %s21, 1
      %s23 = scalar_select %p20, %s21, %s22
      %p26 = pneg %p20
      %p27 = scmp.eq.s32.totalorder %s11, 1
      %p28 = por %p26, %p27
      %p29 = scmp.ne.s32.totalorder %s21, %s24
      %p30 = scmp.eq.s32.totalorder %s11, 0
      %p31 = por %p29, %p30
      %p32 = scmp.ne.s32.totalorder %s21, %s24
      %p33 = scmp.eq.s32.totalorder %s16, 1
      %p34 = por %p32, %p33
      %p35 = scmp.ne.s32.totalorder %s24, %s25
      %p36 = scmp.eq.s32.totalorder %s16, 0
      %p37 = por %p35, %p36
      %p38 = scmp.ne.s32.totalorder %s24, %s25
      %p39 = scmp.eq.s32.totalorder %s17, 1
      %p40 = por %p38, %p39
      %p42 = scmp.ne.s32.totalorder %s25, %s41
      %p43 = scmp.eq.s32.totalorder %s17, 0
      %p44 = por %p42, %p43
      %s46 = sadd.s32 %s45, 1
      %p49 = scmp.eq.s32.totalorder %s11, 1
      %p50 = scmp.ne.s32.totalorder %s45, %s47
      %p51 = scmp.eq.s32.totalorder %s11, 0
      %p52 = por %p50, %p51
      %p53 = scmp.ne.s32.totalorder %s45, %s47
      %p54 = scmp.eq.s32.totalorder %s16, 1
      %p55 = por %p53, %p54
      %p56 = scmp.ne.s32.totalorder %s47, %s48
      %p57 = scmp.eq.s32.totalorder %s16, 0
      %p58 = por %p56, %p57
      %p59 = scmp.ne.s32.totalorder %s47, %s48
      %p60 = scmp.eq.s32.totalorder %s17, 1
      %p61 = por %p59, %p60
      %p63 = scmp.ne.s32.totalorder %s48, %s62
      %p64 = scmp.eq.s32.totalorder %s17, 0
      %p65 = por %p63, %p64
      %s67 = sadd.s32 %s66, 1
      %p70 = scmp.eq.s32.totalorder %s11, 1
      %p71 = scmp.ne.s32.totalorder %s66, %s68
      %p72 = scmp.eq.s32.totalorder %s11, 0
      %p73 = por %p71, %p72
      %p74 = scmp.ne.s32.totalorder %s66, %s68
      %p75 = scmp.eq.s32.totalorder %s16, 1
      %p76 = por %p74, %p75
      %p77 = scmp.ne.s32.totalorder %s68, %s69
      %p78 = scmp.eq.s32.totalorder %s16, 0
      %p79 = por %p77, %p78
      %p80 = scmp.ne.s32.totalorder %s68, %s69
      %p81 = scmp.eq.s32.totalorder %s17, 1
      %p82 = por %p80, %p81
      %p84 = scmp.ne.s32.totalorder %s69, %s83
      %p85 = scmp.eq.s32.totalorder %s17, 0
      %p86 = por %p84, %p85
      %s87 = ssub.s32 %s11, %s18
      %p88 = scmp.eq.s32.totalorder %s87, 0
      %s90 = sadd.s32 %s89, 1
      %s91 = scalar_select %p88, %s89, %s90
      %p94 = pneg %p88
      %p95 = scmp.eq.s32.totalorder %s11, 1
      %p96 = por %p94, %p95
      %p97 = scmp.ne.s32.totalorder %s89, %s92
      %p98 = scmp.eq.s32.totalorder %s11, 0
      %p99 = por %p97, %p98
      %p100 = scmp.ne.s32.totalorder %s89, %s92
      %p101 = scmp.eq.s32.totalorder %s16, 1
      %p102 = por %p100, %p101
      %p103 = scmp.ne.s32.totalorder %s92, %s93
      %p104 = scmp.eq.s32.totalorder %s16, 0
      %p105 = por %p103, %p104
      %p106 = scmp.ne.s32.totalorder %s92, %s93
      %p107 = scmp.eq.s32.totalorder %s17, 1
      %p108 = por %p106, %p107
      %p110 = scmp.ne.s32.totalorder %s93, %s109
      %p111 = scmp.eq.s32.totalorder %s17, 0
      %p112 = por %p110, %p111
      %p113 = scmp.le.s32.totalorder 1, %s11
      %p114 = scmp.lt.s32.totalorder %s11, 3
      %p115 = pnand %p113, %p114
      %p116 = pneg %p115
      // Predicated region
      $region9: #{_lambda_.3} parent=5 // pred_check
        _
      $region10: #{_lambda_.3} parent=5 // pred_check_branch
        %118 = sbr.rel (%p115) target = $region12
      $region11: #{_lambda_.3} parent=5 // pred_region
        %s119 = ssub.s32 %s11, 1
        // Predicated region
        $region13: #{_lambda_.3} parent=11 // pred_check
          %p120 = pneg %p58
        $region14: #{_lambda_.3} parent=11 // pred_check_branch
          %122 = sbr.rel (%p120) target = $region16
        $region15: #{_lambda_.3} parent=11 // pred_region
          %s124 = ssub.s32 256, 256
          %125 = vsyncadd [#allocation5], %s124
          %s126 = sshll.u32 [#allocation4], 4
          %s127 = int_to_ptr.vmem [resolvable:$true] %s126
          %132 = dma.hbm_to_vmem [thread:$0]  %s1, 256, %s127, [#allocation5], 64, 64, 4
        $region16: #{_lambda_.3} parent=11 // pred_fallthru
          _
        // Predicated region
        $region17: #{_lambda_.3} parent=11 // pred_check
          %p133 = pneg %p79
        $region18: #{_lambda_.3} parent=11 // pred_check_branch
          %135 = sbr.rel (%p133) target = $region20
        $region19: #{_lambda_.3} parent=11 // pred_region
          %s137 = ssub.s32 16, 16
          %138 = vsyncadd [#allocation7], %s137
          %s140 = sshll.u32 [#allocation6], 4
          %s141 = int_to_ptr.vmem [resolvable:$true] %s140
          %143 = dma.hbm_to_vmem [thread:$0]  %s2, 16, %s141, [#allocation7]
        $region20: #{_lambda_.3} parent=11 // pred_fallthru
          _
      $region12: #{_lambda_.3} parent=5 // pred_fallthru
        _
      %p144 = scmp.lt.s32.totalorder %s11, 2
      // Predicated region
      $region21: #{_lambda_.3} parent=5 // pred_check
        %p145 = pneg %p144
      $region22: #{_lambda_.3} parent=5 // pred_check_branch
        %147 = sbr.rel (%p145) target = $region24
      $region23: #{_lambda_.3} parent=5 // pred_region
        // Predicated region
        $region25: #{_lambda_.3} parent=23 // pred_check
          %p148 = pneg %p31
        $region26: #{_lambda_.3} parent=23 // pred_check_branch
          %150 = sbr.rel (%p148) target = $region28
        $region27: #{_lambda_.3} parent=23 // pred_region
          %s151 = smul.u32 98, %s11
          %p152 = scmp.lt.s32.totalorder %s151, 195
          %s153 = scalar_select %p152, %s151, 195
          %s154 = smul.addr %s153, 4
          %s155 = scalar_lea.vmem %s0, %s154
          %s156 = smul.u32 98, %s11
        $region28: #{_lambda_.3} parent=23 // pred_fallthru
          _
      $region24: #{_lambda_.3} parent=5 // pred_fallthru
        _
      %p157 = scmp.le.s32.totalorder 1, %s11
      %p158 = scmp.lt.s32.totalorder %s11, 3
      %p159 = pnand %p157, %p158
      %p160 = pneg %p159
      // Predicated region
      $region29: #{_lambda_.3} parent=5 // pred_check
        _
      $region30: #{_lambda_.3} parent=5 // pred_check_branch
        %162 = sbr.rel (%p159) target = $region32
      $region31: #{_lambda_.3} parent=5 // pred_region
        %s163 = ssub.s32 %s11, 1
        // Predicated region
        $region33: #{_lambda_.3} parent=31 // pred_check
          %p164 = pneg %p58
        $region34: #{_lambda_.3} parent=31 // pred_check_branch
          %166 = sbr.rel (%p164) target = $region36
        $region35: #{_lambda_.3} parent=31 // pred_region
          %167 = dma.done [#allocation5], 256
        $region36: #{_lambda_.3} parent=31 // pred_fallthru
          _
        // Predicated region
        $region37: #{_lambda_.3} parent=31 // pred_check
          %p168 = pneg %p79
        $region38: #{_lambda_.3} parent=31 // pred_check_branch
          %170 = sbr.rel (%p168) target = $region40
        $region39: #{_lambda_.3} parent=31 // pred_region
          %171 = dma.done [#allocation7], 16
        $region40: #{_lambda_.3} parent=31 // pred_fallthru
          _
        %s172 = smul.u32 98, %s16
        %p173 = scmp.lt.s32.totalorder %s172, 195
        %s174 = scalar_select %p173, %s172, 195
        %s175 = smul.addr %s174, 4
        %s176 = scalar_lea.vmem %s0, %s175
        %p177 = pneg %p37
        %p178 = pneg %p34
        %p179 = pneg %p58
        %p180 = pneg %p55
        %p181 = pneg %p79
        %p182 = pneg %p76
        %p183 = pneg %p105
        %p184 = pneg %p102
        %p185 = scmp.lt.s32.totalorder %s16, 1
        %s186 = scalar_select %p185, %s16, 1
        %s187 = smul.addr %s186, 25
        %s188 = smul.addr %s187, 8
        %s189 = scalar_lea.vmem %s3, %s188
        %s190 = smul.u32 98, %s16
        %p191 = scmp.lt.s32.totalorder %s190, 195
        %s192 = scalar_select %p191, %s190, 195
        %s193 = smul.addr %s192, 4
        %s194 = scalar_lea.vmem %s0, %s193
        %s195 = smul.u32 98, %s16
        %p196 = scmp.lt.s32.totalorder %s16, 1
        %s197 = scalar_select %p196, %s16, 1
        %s198 = smul.addr %s197, 25
        %s199 = smul.addr %s198, 8
        %s200 = scalar_lea.vmem %s3, %s199
        %v202 = vld [vmem:[%s194] sm:$0xf]
        %v203 = vld [vmem:[%s194 + $0x4] sm:$0xf]
        %v204 = vld [vmem:[%s194 + $0x8] sm:$0xf]
        %v205 = vld [vmem:[%s194 + $0xc] sm:$0xf]
        %v206 = vld [vmem:[%s194 + $0x10] sm:$0xf]
        %v207 = vld [vmem:[%s194 + $0x14] sm:$0xf]
        %v208 = vld [vmem:[%s194 + $0x18] sm:$0xf]
        %v209 = vld [vmem:[%s194 + $0x1c] sm:$0xf]
        %v210 = vld [vmem:[%s194 + $0x20] sm:$0xf]
        %v211 = vld [vmem:[%s194 + $0x24] sm:$0xf]
        %v212 = vld [vmem:[%s194 + $0x28] sm:$0xf]
        %v213 = vld [vmem:[%s194 + $0x2c] sm:$0xf]
        %v214 = vld [vmem:[%s194 + $0x30] sm:$0xf]
        %v215 = vld [vmem:[%s194 + $0x34] sm:$0xf]
        %v216 = vld [vmem:[%s194 + $0x38] sm:$0xf]
        %v217 = vld [vmem:[%s194 + $0x3c] sm:$0xf]
        %v218 = vld [vmem:[%s194 + $0x40] sm:$0xf]
        %v219 = vld [vmem:[%s194 + $0x44] sm:$0xf]
        %v220 = vld [vmem:[%s194 + $0x48] sm:$0xf]
        %v221 = vld [vmem:[%s194 + $0x4c] sm:$0xf]
        %v222 = vld [vmem:[%s194 + $0x50] sm:$0xf]
        %v223 = vld [vmem:[%s194 + $0x54] sm:$0xf]
        %v224 = vld [vmem:[%s194 + $0x58] sm:$0xf]
        %v225 = vld [vmem:[%s194 + $0x5c] sm:$0xf]
        %v226 = vld [vmem:[%s194 + $0x60] sm:$0xf]
        %v227 = vld [vmem:[%s194 + $0x64] sm:$0xf]
        %v228 = vld [vmem:[%s194 + $0x68] sm:$0xf]
        %v229 = vld [vmem:[%s194 + $0x6c] sm:$0xf]
        %v230 = vld [vmem:[%s194 + $0x70] sm:$0xf]
        %v231 = vld [vmem:[%s194 + $0x74] sm:$0xf]
        %v232 = vld [vmem:[%s194 + $0x78] sm:$0xf]
        %v233 = vld [vmem:[%s194 + $0x7c] sm:$0xf]
        %v234 = vld [vmem:[%s194 + $0x80] sm:$0xf]
        %v235 = vld [vmem:[%s194 + $0x84] sm:$0xf]
        %v236 = vld [vmem:[%s194 + $0x88] sm:$0xf]
        %v237 = vld [vmem:[%s194 + $0x8c] sm:$0xf]
        %v238 = vld [vmem:[%s194 + $0x90] sm:$0xf]
        %v239 = vld [vmem:[%s194 + $0x94] sm:$0xf]
        %v240 = vld [vmem:[%s194 + $0x98] sm:$0xf]
        %v241 = vld [vmem:[%s194 + $0x9c] sm:$0xf]
        %v242 = vld [vmem:[%s194 + $0xa0] sm:$0xf]
        %v243 = vld [vmem:[%s194 + $0xa4] sm:$0xf]
        %v244 = vld [vmem:[%s194 + $0xa8] sm:$0xf]
        %v245 = vld [vmem:[%s194 + $0xac] sm:$0xf]
        %v246 = vld [vmem:[%s194 + $0xb0] sm:$0xf]
        %v247 = vld [vmem:[%s194 + $0xb4] sm:$0xf]
        %v248 = vld [vmem:[%s194 + $0xb8] sm:$0xf]
        %v249 = vld [vmem:[%s194 + $0xbc] sm:$0xf]
        %v250 = vld [vmem:[%s194 + $0xc0] sm:$0xf]
        %v251 = vld [vmem:[%s194 + $0xc4] sm:$0xf]
        %v252 = vld [vmem:[%s194 + $0xc8] sm:$0xf]
        %v253 = vld [vmem:[%s194 + $0xcc] sm:$0xf]
        %v254 = vld [vmem:[%s194 + $0xd0] sm:$0xf]
        %v255 = vld [vmem:[%s194 + $0xd4] sm:$0xf]
        %v256 = vld [vmem:[%s194 + $0xd8] sm:$0xf]
        %v257 = vld [vmem:[%s194 + $0xdc] sm:$0xf]
        %v258 = vld [vmem:[%s194 + $0xe0] sm:$0xf]
        %v259 = vld [vmem:[%s194 + $0xe4] sm:$0xf]
        %v260 = vld [vmem:[%s194 + $0xe8] sm:$0xf]
        %v261 = vld [vmem:[%s194 + $0xec] sm:$0xf]
        %v262 = vld [vmem:[%s194 + $0xf0] sm:$0xf]
        %v263 = vld [vmem:[%s194 + $0xf4] sm:$0xf]
        %v264 = vld [vmem:[%s194 + $0xf8] sm:$0xf]
        %v265 = vld [vmem:[%s194 + $0xfc] sm:$0xf]
        %v266 = vld [vmem:[%s194 + $0x100] sm:$0xf]
        %v267 = vld [vmem:[%s194 + $0x104] sm:$0xf]
        %v268 = vld [vmem:[%s194 + $0x108] sm:$0xf]
        %v269 = vld [vmem:[%s194 + $0x10c] sm:$0xf]
        %v270 = vld [vmem:[%s194 + $0x110] sm:$0xf]
        %v271 = vld [vmem:[%s194 + $0x114] sm:$0xf]
        %v272 = vld [vmem:[%s194 + $0x118] sm:$0xf]
        %v273 = vld [vmem:[%s194 + $0x11c] sm:$0xf]
        %v274 = vld [vmem:[%s194 + $0x120] sm:$0xf]
        %v275 = vld [vmem:[%s194 + $0x124] sm:$0xf]
        %v276 = vld [vmem:[%s194 + $0x128] sm:$0xf]
        %v277 = vld [vmem:[%s194 + $0x12c] sm:$0xf]
        %v278 = vld [vmem:[%s194 + $0x130] sm:$0xf]
        %v279 = vld [vmem:[%s194 + $0x134] sm:$0xf]
        %v280 = vld [vmem:[%s194 + $0x138] sm:$0xf]
        %v281 = vld [vmem:[%s194 + $0x13c] sm:$0xf]
        %v282 = vld [vmem:[%s194 + $0x140] sm:$0xf]
        %v283 = vld [vmem:[%s194 + $0x144] sm:$0xf]
        %v284 = vld [vmem:[%s194 + $0x148] sm:$0xf]
        %v285 = vld [vmem:[%s194 + $0x14c] sm:$0xf]
        %v286 = vld [vmem:[%s194 + $0x150] sm:$0xf]
        %v287 = vld [vmem:[%s194 + $0x154] sm:$0xf]
        %v288 = vld [vmem:[%s194 + $0x158] sm:$0xf]
        %v289 = vld [vmem:[%s194 + $0x15c] sm:$0xf]
        %v290 = vld [vmem:[%s194 + $0x160] sm:$0xf]
        %v291 = vld [vmem:[%s194 + $0x164] sm:$0xf]
        %v292 = vld [vmem:[%s194 + $0x168] sm:$0xf]
        %v293 = vld [vmem:[%s194 + $0x16c] sm:$0xf]
        %v294 = vld [vmem:[%s194 + $0x170] sm:$0xf]
        %v295 = vld [vmem:[%s194 + $0x174] sm:$0xf]
        %v296 = vld [vmem:[%s194 + $0x178] sm:$0xf]
        %v297 = vld [vmem:[%s194 + $0x17c] sm:$0xf]
        %v298 = vld [vmem:[%s194 + $0x180] sm:$0xf]
        %v299 = vld [vmem:[%s194 + $0x184] sm:$0xf]
        %v300 = vld [vmem:[#allocation4] sm:$0xf]
        %v301 = vld [vmem:[#allocation4 + $0x4] sm:$0xf]
        %v302 = vld [vmem:[#allocation4 + $0x8] sm:$0xf]
        %v303 = vld [vmem:[#allocation4 + $0xc] sm:$0x1]
        %v402 = vunpack.c.l.b16 %v202
        %v403 = vunpack.c.l.b16 %v203
        %v404 = vunpack.c.l.b16 %v204
        %v405 = vunpack.c.l.b16 %v205
        %v406 = vunpack.c.l.b16 %v206
        %v407 = vunpack.c.l.b16 %v207
        %v408 = vunpack.c.l.b16 %v208
        %v409 = vunpack.c.l.b16 %v209
        %v410 = vunpack.c.l.b16 %v210
        %v411 = vunpack.c.l.b16 %v211
        %v412 = vunpack.c.l.b16 %v212
        %v413 = vunpack.c.l.b16 %v213
        %v414 = vunpack.c.l.b16 %v214
        %v415 = vunpack.c.l.b16 %v215
        %v416 = vunpack.c.l.b16 %v216
        %v417 = vunpack.c.l.b16 %v217
        %v418 = vunpack.c.l.b16 %v218
        %v419 = vunpack.c.l.b16 %v219
        %v420 = vunpack.c.l.b16 %v220
        %v421 = vunpack.c.l.b16 %v221
        %v422 = vunpack.c.l.b16 %v222
        %v423 = vunpack.c.l.b16 %v223
        %v424 = vunpack.c.l.b16 %v224
        %v425 = vunpack.c.l.b16 %v225
        %v426 = vunpack.c.l.b16 %v226
        %v427 = vunpack.c.l.b16 %v227
        %v428 = vunpack.c.l.b16 %v228
        %v429 = vunpack.c.l.b16 %v229
        %v430 = vunpack.c.l.b16 %v230
        %v431 = vunpack.c.l.b16 %v231
        %v432 = vunpack.c.l.b16 %v232
        %v433 = vunpack.c.l.b16 %v233
        %v434 = vunpack.c.l.b16 %v234
        %v435 = vunpack.c.l.b16 %v235
        %v436 = vunpack.c.l.b16 %v236
        %v437 = vunpack.c.l.b16 %v237
        %v438 = vunpack.c.l.b16 %v238
        %v439 = vunpack.c.l.b16 %v239
        %v440 = vunpack.c.l.b16 %v240
        %v441 = vunpack.c.l.b16 %v241
        %v442 = vunpack.c.l.b16 %v242
        %v443 = vunpack.c.l.b16 %v243
        %v444 = vunpack.c.l.b16 %v244
        %v445 = vunpack.c.l.b16 %v245
        %v446 = vunpack.c.l.b16 %v246
        %v447 = vunpack.c.l.b16 %v247
        %v448 = vunpack.c.l.b16 %v248
        %v449 = vunpack.c.l.b16 %v249
        %v450 = vunpack.c.l.b16 %v250
        %v451 = vunpack.c.l.b16 %v251
        %v452 = vunpack.c.l.b16 %v252
        %v453 = vunpack.c.l.b16 %v253
        %v454 = vunpack.c.l.b16 %v254
        %v455 = vunpack.c.l.b16 %v255
        %v456 = vunpack.c.l.b16 %v256
        %v457 = vunpack.c.l.b16 %v257
        %v458 = vunpack.c.l.b16 %v258
        %v459 = vunpack.c.l.b16 %v259
        %v460 = vunpack.c.l.b16 %v260
        %v461 = vunpack.c.l.b16 %v261
        %v462 = vunpack.c.l.b16 %v262
        %v463 = vunpack.c.l.b16 %v263
        %v464 = vunpack.c.l.b16 %v264
        %v465 = vunpack.c.l.b16 %v265
        %v466 = vunpack.c.l.b16 %v266
        %v467 = vunpack.c.l.b16 %v267
        %v468 = vunpack.c.l.b16 %v268
        %v469 = vunpack.c.l.b16 %v269
        %v470 = vunpack.c.l.b16 %v270
        %v471 = vunpack.c.l.b16 %v271
        %v472 = vunpack.c.l.b16 %v272
        %v473 = vunpack.c.l.b16 %v273
        %v474 = vunpack.c.l.b16 %v274
        %v475 = vunpack.c.l.b16 %v275
        %v476 = vunpack.c.l.b16 %v276
        %v477 = vunpack.c.l.b16 %v277
        %v478 = vunpack.c.l.b16 %v278
        %v479 = vunpack.c.l.b16 %v279
        %v480 = vunpack.c.l.b16 %v280
        %v481 = vunpack.c.l.b16 %v281
        %v482 = vunpack.c.l.b16 %v282
        %v483 = vunpack.c.l.b16 %v283
        %v484 = vunpack.c.l.b16 %v284
        %v485 = vunpack.c.l.b16 %v285
        %v486 = vunpack.c.l.b16 %v286
        %v487 = vunpack.c.l.b16 %v287
        %v488 = vunpack.c.l.b16 %v288
        %v489 = vunpack.c.l.b16 %v289
        %v490 = vunpack.c.l.b16 %v290
        %v491 = vunpack.c.l.b16 %v291
        %v492 = vunpack.c.l.b16 %v292
        %v493 = vunpack.c.l.b16 %v293
        %v494 = vunpack.c.l.b16 %v294
        %v495 = vunpack.c.l.b16 %v295
        %v496 = vunpack.c.l.b16 %v296
        %v497 = vunpack.c.l.b16 %v297
        %v498 = vunpack.c.l.b16 %v298
        %v499 = vunpack.c.l.b16 %v299
        %v500 = vpack.c.b16 %v403, %v402
        %v501 = vpack.c.b16 %v405, %v404
        %v502 = vpack.c.b16 %v407, %v406
        %v503 = vpack.c.b16 %v409, %v408
        %v504 = vpack.c.b16 %v411, %v410
        %v505 = vpack.c.b16 %v413, %v412
        %v506 = vpack.c.b16 %v415, %v414
        %v507 = vpack.c.b16 %v417, %v416
        %v508 = vpack.c.b16 %v419, %v418
        %v509 = vpack.c.b16 %v421, %v420
        %v510 = vpack.c.b16 %v423, %v422
        %v511 = vpack.c.b16 %v425, %v424
        %v512 = vpack.c.b16 %v427, %v426
        %v513 = vpack.c.b16 %v429, %v428
        %v514 = vpack.c.b16 %v431, %v430
        %v515 = vpack.c.b16 %v433, %v432
        %v516 = vpack.c.b16 %v435, %v434
        %v517 = vpack.c.b16 %v437, %v436
        %v518 = vpack.c.b16 %v439, %v438
        %v519 = vpack.c.b16 %v441, %v440
        %v520 = vpack.c.b16 %v443, %v442
        %v521 = vpack.c.b16 %v445, %v444
        %v522 = vpack.c.b16 %v447, %v446
        %v523 = vpack.c.b16 %v449, %v448
        %v524 = vpack.c.b16 %v451, %v450
        %v525 = vpack.c.b16 %v453, %v452
        %v526 = vpack.c.b16 %v455, %v454
        %v527 = vpack.c.b16 %v457, %v456
        %v528 = vpack.c.b16 %v459, %v458
        %v529 = vpack.c.b16 %v461, %v460
        %v530 = vpack.c.b16 %v463, %v462
        %v531 = vpack.c.b16 %v465, %v464
        %v532 = vpack.c.b16 %v467, %v466
        %v533 = vpack.c.b16 %v469, %v468
        %v534 = vpack.c.b16 %v471, %v470
        %v535 = vpack.c.b16 %v473, %v472
        %v536 = vpack.c.b16 %v475, %v474
        %v537 = vpack.c.b16 %v477, %v476
        %v538 = vpack.c.b16 %v479, %v478
        %v539 = vpack.c.b16 %v481, %v480
        %v540 = vpack.c.b16 %v483, %v482
        %v541 = vpack.c.b16 %v485, %v484
        %v542 = vpack.c.b16 %v487, %v486
        %v543 = vpack.c.b16 %v489, %v488
        %v544 = vpack.c.b16 %v491, %v490
        %v545 = vpack.c.b16 %v493, %v492
        %v546 = vpack.c.b16 %v495, %v494
        %v547 = vpack.c.b16 %v497, %v496
        %v548 = vpack.c.b16 %v499, %v498
        %v553 = vunpack.c.l.b16 %v300
        %v554 = vunpack.c.l.b16 %v301
        %v555 = vunpack.c.l.b16 %v302
        %v556 = vunpack.c.l.b16 %v303
        %v557 = vpack.c.b16 %v554, %v553
        %v558 = vpack.c.b16 %v556, %v555
        %vm560 = vcmask 203776
        %v562 = vsel %vm560, %v500, 0
        %v565 = vsel %vm560, %v501, 0
        %v568 = vsel %vm560, %v502, 0
        %v571 = vsel %vm560, %v503, 0
        %v574 = vsel %vm560, %v504, 0
        %v577 = vsel %vm560, %v505, 0
        %v580 = vsel %vm560, %v506, 0
        %v583 = vsel %vm560, %v507, 0
        %v586 = vsel %vm560, %v508, 0
        %v589 = vsel %vm560, %v509, 0
        %v592 = vsel %vm560, %v510, 0
        %v595 = vsel %vm560, %v511, 0
        %v598 = vsel %vm560, %v512, 0
        %v601 = vsel %vm560, %v513, 0
        %v604 = vsel %vm560, %v514, 0
        %v607 = vsel %vm560, %v515, 0
        %v610 = vsel %vm560, %v516, 0
        %v613 = vsel %vm560, %v517, 0
        %v616 = vsel %vm560, %v518, 0
        %v619 = vsel %vm560, %v519, 0
        %v622 = vsel %vm560, %v520, 0
        %v625 = vsel %vm560, %v521, 0
        %v628 = vsel %vm560, %v522, 0
        %v631 = vsel %vm560, %v523, 0
        %v634 = vsel %vm560, %v524, 0
        %v637 = vsel %vm560, %v525, 0
        %v640 = vsel %vm560, %v526, 0
        %v643 = vsel %vm560, %v527, 0
        %v646 = vsel %vm560, %v528, 0
        %v649 = vsel %vm560, %v529, 0
        %v652 = vsel %vm560, %v530, 0
        %v655 = vsel %vm560, %v531, 0
        %v658 = vsel %vm560, %v532, 0
        %v661 = vsel %vm560, %v533, 0
        %v664 = vsel %vm560, %v534, 0
        %v667 = vsel %vm560, %v535, 0
        %v670 = vsel %vm560, %v536, 0
        %v673 = vsel %vm560, %v537, 0
        %v676 = vsel %vm560, %v538, 0
        %v679 = vsel %vm560, %v539, 0
        %v682 = vsel %vm560, %v540, 0
        %v685 = vsel %vm560, %v541, 0
        %v688 = vsel %vm560, %v542, 0
        %v691 = vsel %vm560, %v543, 0
        %v694 = vsel %vm560, %v544, 0
        %v697 = vsel %vm560, %v545, 0
        %v700 = vsel %vm560, %v546, 0
        %v703 = vsel %vm560, %v547, 0
        %v706 = vsel %vm560, %v548, 0
        %vm708 = vcmask 1043456
        %vm709 = vcmask 1044480
        %v710 = vsel %vm708, 4294967295, 65535
        %v711 = vsel %vm709, %v710, 0
        %v713 = vand.u32 %v558, %v711
        %715 = vmatprep.subr.bf16.mxu0 0
        %716 = vmatpush1.bf16.msra.mxu0 %v557
        %717 = vmatprep.subr.bf16.mxu0 0
        %718 = vmatpush1.bf16.msra.mxu0 %v713
        %719 = vmatprep.subr.bf16.mxu0 0
        %720 = vmatpush1.bf16.msra.mxu0 0
        %721 = vmatprep.subr.bf16.mxu0 0
        %722 = vmatpush1.bf16.msra.mxu0 0
        %723 = vmatprep.subr.bf16.mxu0 0
        %724 = vmatpush1.bf16.msra.mxu0 0
        %725 = vmatprep.subr.bf16.mxu0 0
        %726 = vmatpush1.bf16.msra.mxu0 0
        %727 = vmatprep.subr.bf16.mxu0 0
        %728 = vmatpush1.bf16.msra.mxu0 0
        %729 = vmatprep.subr.bf16.mxu0 0
        %730 = vmatpush1.bf16.msra.mxu0 0
        %731 = vmatprep.subr.bf16.mxu0 0
        %732 = vmatpush1.bf16.msra.mxu0 0
        %733 = vmatprep.subr.bf16.mxu0 0
        %734 = vmatpush1.bf16.msra.mxu0 0
        %735 = vmatprep.subr.bf16.mxu0 0
        %736 = vmatpush1.bf16.msra.mxu0 0
        %737 = vmatprep.subr.bf16.mxu0 0
        %738 = vmatpush1.bf16.msra.mxu0 0
        %739 = vmatprep.subr.bf16.mxu0 0
        %740 = vmatpush1.bf16.msra.mxu0 0
        %741 = vmatprep.subr.bf16.mxu0 0
        %742 = vmatpush1.bf16.msra.mxu0 0
        %743 = vmatprep.subr.bf16.mxu0 0
        %744 = vmatpush1.bf16.msra.mxu0 0
        %745 = vmatprep.subr.bf16.mxu0 0
        %746 = vmatpush1.bf16.msra.mxu0 0
        %747 = vmatprep.mubr.bf16.mxu0 0
        %748 = vmatmul.mubr.bf16.gmra.mrb[0].mxu0 %v562
        %v749 = vpop.f32.mrb[0].mxu0
        %v750 = vadd.f32 0.0, %v749
        %v751 = vpop.f32.mrb[0].mxu0
        %v752 = vpop.f32.mrb[0].mxu0
        %v753 = vadd.f32 0.0, %v752
        %v754 = vpop.f32.mrb[0].mxu0
        %755 = vmatprep.mubr.bf16.mxu0 0
        %756 = vmatmul.mubr.bf16.gmra.mrb[0].mxu0 %v565
        %v757 = vpop.f32.mrb[0].mxu0
        %v758 = vadd.f32 0.0, %v757
        %v759 = vpop.f32.mrb[0].mxu0
        %v760 = vpop.f32.mrb[0].mxu0
        %v761 = vadd.f32 0.0, %v760
        %v762 = vpop.f32.mrb[0].mxu0
        %763 = vmatprep.mubr.bf16.mxu0 0
        %764 = vmatmul.mubr.bf16.gmra.mrb[0].mxu0 %v568
        %v765 = vpop.f32.mrb[0].mxu0
        %v766 = vadd.f32 0.0, %v765
        %v767 = vpop.f32.mrb[0].mxu0
        %v768 = vpop.f32.mrb[0].mxu0
        %v769 = vadd.f32 0.0, %v768
        %v770 = vpop.f32.mrb[0].mxu0
        %771 = vmatprep.mubr.bf16.mxu0 0
        %772 = vmatmul.mubr.bf16.gmra.mrb[0].mxu0 %v571
        %v773 = vpop.f32.mrb[0].mxu0
        %v774 = vadd.f32 0.0, %v773
        %v775 = vpop.f32.mrb[0].mxu0
        %v776 = vpop.f32.mrb[0].mxu0
        %v777 = vadd.f32 0.0, %v776
        %v778 = vpop.f32.mrb[0].mxu0
        %779 = vmatprep.mubr.bf16.mxu0 0
        %780 = vmatmul.mubr.bf16.gmra.mrb[0].mxu0 %v574
        %v781 = vpop.f32.mrb[0].mxu0
        %v782 = vadd.f32 0.0, %v781
        %v783 = vpop.f32.mrb[0].mxu0
        %v784 = vpop.f32.mrb[0].mxu0
        %v785 = vadd.f32 0.0, %v784
        %v786 = vpop.f32.mrb[0].mxu0
        %787 = vmatprep.mubr.bf16.mxu0 0
        %788 = vmatmul.mubr.bf16.gmra.mrb[0].mxu0 %v577
        %v789 = vpop.f32.mrb[0].mxu0
        %v790 = vadd.f32 0.0, %v789
        %v791 = vpop.f32.mrb[0].mxu0
        %v792 = vpop.f32.mrb[0].mxu0
        %v793 = vadd.f32 0.0, %v792
        %v794 = vpop.f32.mrb[0].mxu0
        %795 = vmatprep.mubr.bf16.mxu0 0
        %796 = vmatmul.mubr.bf16.gmra.mrb[0].mxu0 %v580
        %v797 = vpop.f32.mrb[0].mxu0
        %v798 = vadd.f32 0.0, %v797
        %v799 = vpop.f32.mrb[0].mxu0
        %v800 = vpop.f32.mrb[0].mxu0
        %v801 = vadd.f32 0.0, %v800
        %v802 = vpop.f32.mrb[0].mxu0
        %803 = vmatprep.mubr.bf16.mxu0 0
        %804 = vmatmul.mubr.bf16.gmra.mrb[0].mxu0 %v583
        %v805 = vpop.f32.mrb[0].mxu0
        %v806 = vadd.f32 0.0, %v805
        %v807 = vpop.f32.mrb[0].mxu0
        %v808 = vpop.f32.mrb[0].mxu0
        %v809 = vadd.f32 0.0, %v808
        %v810 = vpop.f32.mrb[0].mxu0
        %811 = vmatprep.mubr.bf16.mxu0 0
        %812 = vmatmul.mubr.bf16.gmra.mrb[0].mxu0 %v586
        %v813 = vpop.f32.mrb[0].mxu0
        %v814 = vadd.f32 0.0, %v813
        %v815 = vpop.f32.mrb[0].mxu0
        %v816 = vpop.f32.mrb[0].mxu0
        %v817 = vadd.f32 0.0, %v816
        %v818 = vpop.f32.mrb[0].mxu0
        %819 = vmatprep.mubr.bf16.mxu0 0
        %820 = vmatmul.mubr.bf16.gmra.mrb[0].mxu0 %v589
        %v821 = vpop.f32.mrb[0].mxu0
        %v822 = vadd.f32 0.0, %v821
        %v823 = vpop.f32.mrb[0].mxu0
        %v824 = vpop.f32.mrb[0].mxu0
        %v825 = vadd.f32 0.0, %v824
        %v826 = vpop.f32.mrb[0].mxu0
        %827 = vmatprep.mubr.bf16.mxu0 0
        %828 = vmatmul.mubr.bf16.gmra.mrb[0].mxu0 %v592
        %v829 = vpop.f32.mrb[0].mxu0
        %v830 = vadd.f32 0.0, %v829
        %v831 = vpop.f32.mrb[0].mxu0
        %v832 = vpop.f32.mrb[0].mxu0
        %v833 = vadd.f32 0.0, %v832
        %v834 = vpop.f32.mrb[0].mxu0
        %835 = vmatprep.mubr.bf16.mxu0 0
        %836 = vmatmul.mubr.bf16.gmra.mrb[0].mxu0 %v595
        %v837 = vpop.f32.mrb[0].mxu0
        %v838 = vadd.f32 0.0, %v837
        %v839 = vpop.f32.mrb[0].mxu0
        %v840 = vpop.f32.mrb[0].mxu0
        %v841 = vadd.f32 0.0, %v840
        %v842 = vpop.f32.mrb[0].mxu0
        %843 = vmatprep.mubr.bf16.mxu0 0
        %844 = vmatmul.mubr.bf16.gmra.mrb[0].mxu0 %v598
        %v845 = vpop.f32.mrb[0].mxu0
        %v846 = vadd.f32 0.0, %v845
        %v847 = vpop.f32.mrb[0].mxu0
        %v848 = vpop.f32.mrb[0].mxu0
        %v849 = vadd.f32 0.0, %v848
        %v850 = vpop.f32.mrb[0].mxu0
        %851 = vmatprep.mubr.bf16.mxu0 0
        %852 = vmatmul.mubr.bf16.gmra.mrb[0].mxu0 %v601
        %v853 = vpop.f32.mrb[0].mxu0
        %v854 = vadd.f32 0.0, %v853
        %v855 = vpop.f32.mrb[0].mxu0
        %v856 = vpop.f32.mrb[0].mxu0
        %v857 = vadd.f32 0.0, %v856
        %v858 = vpop.f32.mrb[0].mxu0
        %859 = vmatprep.mubr.bf16.mxu0 0
        %860 = vmatmul.mubr.bf16.gmra.mrb[0].mxu0 %v604
        %v861 = vpop.f32.mrb[0].mxu0
        %v862 = vadd.f32 0.0, %v861
        %v863 = vpop.f32.mrb[0].mxu0
        %v864 = vpop.f32.mrb[0].mxu0
        %v865 = vadd.f32 0.0, %v864
        %v866 = vpop.f32.mrb[0].mxu0
        %867 = vmatprep.mubr.bf16.mxu0 0
        %868 = vmatmul.mubr.bf16.gmra.mrb[0].mxu0 %v607
        %v869 = vpop.f32.mrb[0].mxu0
        %v870 = vadd.f32 0.0, %v869
        %v871 = vpop.f32.mrb[0].mxu0
        %v872 = vpop.f32.mrb[0].mxu0
        %v873 = vadd.f32 0.0, %v872
        %v874 = vpop.f32.mrb[0].mxu0
        %875 = vmatprep.mubr.bf16.mxu0 0
        %876 = vmatmul.mubr.bf16.gmra.mrb[0].mxu0 %v610
        %v877 = vpop.f32.mrb[0].mxu0
        %v878 = vadd.f32 0.0, %v877
        %v879 = vpop.f32.mrb[0].mxu0
        %v880 = vpop.f32.mrb[0].mxu0
        %v881 = vadd.f32 0.0, %v880
        %v882 = vpop.f32.mrb[0].mxu0
        %883 = vmatprep.mubr.bf16.mxu0 0
        %884 = vmatmul.mubr.bf16.gmra.mrb[0].mxu0 %v613
        %v885 = vpop.f32.mrb[0].mxu0
        %v886 = vadd.f32 0.0, %v885
        %v887 = vpop.f32.mrb[0].mxu0
        %v888 = vpop.f32.mrb[0].mxu0
        %v889 = vadd.f32 0.0, %v888
        %v890 = vpop.f32.mrb[0].mxu0
        %891 = vmatprep.mubr.bf16.mxu0 0
        %892 = vmatmul.mubr.bf16.gmra.mrb[0].mxu0 %v616
        %v893 = vpop.f32.mrb[0].mxu0
        %v894 = vadd.f32 0.0, %v893
        %v895 = vpop.f32.mrb[0].mxu0
        %v896 = vpop.f32.mrb[0].mxu0
        %v897 = vadd.f32 0.0, %v896
        %v898 = vpop.f32.mrb[0].mxu0
        %899 = vmatprep.mubr.bf16.mxu0 0
        %900 = vmatmul.mubr.bf16.gmra.mrb[0].mxu0 %v619
        %v901 = vpop.f32.mrb[0].mxu0
        %v902 = vadd.f32 0.0, %v901
        %v903 = vpop.f32.mrb[0].mxu0
        %v904 = vpop.f32.mrb[0].mxu0
        %v905 = vadd.f32 0.0, %v904
        %v906 = vpop.f32.mrb[0].mxu0
        %907 = vmatprep.mubr.bf16.mxu0 0
        %908 = vmatmul.mubr.bf16.gmra.mrb[0].mxu0 %v622
        %v909 = vpop.f32.mrb[0].mxu0
        %v910 = vadd.f32 0.0, %v909
        %v911 = vpop.f32.mrb[0].mxu0
        %v912 = vpop.f32.mrb[0].mxu0
        %v913 = vadd.f32 0.0, %v912
        %v914 = vpop.f32.mrb[0].mxu0
        %915 = vmatprep.mubr.bf16.mxu0 0
        %916 = vmatmul.mubr.bf16.gmra.mrb[0].mxu0 %v625
        %v917 = vpop.f32.mrb[0].mxu0
        %v918 = vadd.f32 0.0, %v917
        %v919 = vpop.f32.mrb[0].mxu0
        %v920 = vpop.f32.mrb[0].mxu0
        %v921 = vadd.f32 0.0, %v920
        %v922 = vpop.f32.mrb[0].mxu0
        %923 = vmatprep.mubr.bf16.mxu0 0
        %924 = vmatmul.mubr.bf16.gmra.mrb[0].mxu0 %v628
        %v925 = vpop.f32.mrb[0].mxu0
        %v926 = vadd.f32 0.0, %v925
        %v927 = vpop.f32.mrb[0].mxu0
        %v928 = vpop.f32.mrb[0].mxu0
        %v929 = vadd.f32 0.0, %v928
        %v930 = vpop.f32.mrb[0].mxu0
        %931 = vmatprep.mubr.bf16.mxu0 0
        %932 = vmatmul.mubr.bf16.gmra.mrb[0].mxu0 %v631
        %v933 = vpop.f32.mrb[0].mxu0
        %v934 = vadd.f32 0.0, %v933
        %v935 = vpop.f32.mrb[0].mxu0
        %v936 = vpop.f32.mrb[0].mxu0
        %v937 = vadd.f32 0.0, %v936
        %v938 = vpop.f32.mrb[0].mxu0
        %939 = vmatprep.mubr.bf16.mxu0 0
        %940 = vmatmul.mubr.bf16.gmra.mrb[0].mxu0 %v634
        %v941 = vpop.f32.mrb[0].mxu0
        %v942 = vadd.f32 0.0, %v941
        %v943 = vpop.f32.mrb[0].mxu0
        %v944 = vpop.f32.mrb[0].mxu0
        %v945 = vadd.f32 0.0, %v944
        %v946 = vpop.f32.mrb[0].mxu0
        %947 = vmatprep.mubr.bf16.mxu0 0
        %948 = vmatmul.mubr.bf16.gmra.mrb[0].mxu0 %v637
        %v949 = vpop.f32.mrb[0].mxu0
        %v950 = vadd.f32 0.0, %v949
        %v951 = vpop.f32.mrb[0].mxu0
        %v952 = vpop.f32.mrb[0].mxu0
        %v953 = vadd.f32 0.0, %v952
        %v954 = vpop.f32.mrb[0].mxu0
        %955 = vmatprep.mubr.bf16.mxu0 0
        %956 = vmatmul.mubr.bf16.gmra.mrb[0].mxu0 %v640
        %v957 = vpop.f32.mrb[0].mxu0
        %v958 = vadd.f32 0.0, %v957
        %v959 = vpop.f32.mrb[0].mxu0
        %v960 = vpop.f32.mrb[0].mxu0
        %v961 = vadd.f32 0.0, %v960
        %v962 = vpop.f32.mrb[0].mxu0
        %963 = vmatprep.mubr.bf16.mxu0 0
        %964 = vmatmul.mubr.bf16.gmra.mrb[0].mxu0 %v643
        %v965 = vpop.f32.mrb[0].mxu0
        %v966 = vadd.f32 0.0, %v965
        %v967 = vpop.f32.mrb[0].mxu0
        %v968 = vpop.f32.mrb[0].mxu0
        %v969 = vadd.f32 0.0, %v968
        %v970 = vpop.f32.mrb[0].mxu0
        %971 = vmatprep.mubr.bf16.mxu0 0
        %972 = vmatmul.mubr.bf16.gmra.mrb[0].mxu0 %v646
        %v973 = vpop.f32.mrb[0].mxu0
        %v974 = vadd.f32 0.0, %v973
        %v975 = vpop.f32.mrb[0].mxu0
        %v976 = vpop.f32.mrb[0].mxu0
        %v977 = vadd.f32 0.0, %v976
        %v978 = vpop.f32.mrb[0].mxu0
        %979 = vmatprep.mubr.bf16.mxu0 0
        %980 = vmatmul.mubr.bf16.gmra.mrb[0].mxu0 %v649
        %v981 = vpop.f32.mrb[0].mxu0
        %v982 = vadd.f32 0.0, %v981
        %v983 = vpop.f32.mrb[0].mxu0
        %v984 = vpop.f32.mrb[0].mxu0
        %v985 = vadd.f32 0.0, %v984
        %v986 = vpop.f32.mrb[0].mxu0
        %987 = vmatprep.mubr.bf16.mxu0 0
        %988 = vmatmul.mubr.bf16.gmra.mrb[0].mxu0 %v652
        %v989 = vpop.f32.mrb[0].mxu0
        %v990 = vadd.f32 0.0, %v989
        %v991 = vpop.f32.mrb[0].mxu0
        %v992 = vpop.f32.mrb[0].mxu0
        %v993 = vadd.f32 0.0, %v992
        %v994 = vpop.f32.mrb[0].mxu0
        %995 = vmatprep.mubr.bf16.mxu0 0
        %996 = vmatmul.mubr.bf16.gmra.mrb[0].mxu0 %v655
        %v997 = vpop.f32.mrb[0].mxu0
        %v998 = vadd.f32 0.0, %v997
        %v999 = vpop.f32.mrb[0].mxu0
        %v1000 = vpop.f32.mrb[0].mxu0
        %v1001 = vadd.f32 0.0, %v1000
        %v1002 = vpop.f32.mrb[0].mxu0
        %1003 = vmatprep.mubr.bf16.mxu0 0
        %1004 = vmatmul.mubr.bf16.gmra.mrb[0].mxu0 %v658
        %v1005 = vpop.f32.mrb[0].mxu0
        %v1006 = vadd.f32 0.0, %v1005
        %v1007 = vpop.f32.mrb[0].mxu0
        %v1008 = vpop.f32.mrb[0].mxu0
        %v1009 = vadd.f32 0.0, %v1008
        %v1010 = vpop.f32.mrb[0].mxu0
        %1011 = vmatprep.mubr.bf16.mxu0 0
        %1012 = vmatmul.mubr.bf16.gmra.mrb[0].mxu0 %v661
        %v1013 = vpop.f32.mrb[0].mxu0
        %v1014 = vadd.f32 0.0, %v1013
        %v1015 = vpop.f32.mrb[0].mxu0
        %v1016 = vpop.f32.mrb[0].mxu0
        %v1017 = vadd.f32 0.0, %v1016
        %v1018 = vpop.f32.mrb[0].mxu0
        %1019 = vmatprep.mubr.bf16.mxu0 0
        %1020 = vmatmul.mubr.bf16.gmra.mrb[0].mxu0 %v664
        %v1021 = vpop.f32.mrb[0].mxu0
        %v1022 = vadd.f32 0.0, %v1021
        %v1023 = vpop.f32.mrb[0].mxu0
        %v1024 = vpop.f32.mrb[0].mxu0
        %v1025 = vadd.f32 0.0, %v1024
        %v1026 = vpop.f32.mrb[0].mxu0
        %1027 = vmatprep.mubr.bf16.mxu0 0
        %1028 = vmatmul.mubr.bf16.gmra.mrb[0].mxu0 %v667
        %v1029 = vpop.f32.mrb[0].mxu0
        %v1030 = vadd.f32 0.0, %v1029
        %v1031 = vpop.f32.mrb[0].mxu0
        %v1032 = vpop.f32.mrb[0].mxu0
        %v1033 = vadd.f32 0.0, %v1032
        %v1034 = vpop.f32.mrb[0].mxu0
        %1035 = vmatprep.mubr.bf16.mxu0 0
        %1036 = vmatmul.mubr.bf16.gmra.mrb[0].mxu0 %v670
        %v1037 = vpop.f32.mrb[0].mxu0
        %v1038 = vadd.f32 0.0, %v1037
        %v1039 = vpop.f32.mrb[0].mxu0
        %v1040 = vpop.f32.mrb[0].mxu0
        %v1041 = vadd.f32 0.0, %v1040
        %v1042 = vpop.f32.mrb[0].mxu0
        %1043 = vmatprep.mubr.bf16.mxu0 0
        %1044 = vmatmul.mubr.bf16.gmra.mrb[0].mxu0 %v673
        %v1045 = vpop.f32.mrb[0].mxu0
        %v1046 = vadd.f32 0.0, %v1045
        %v1047 = vpop.f32.mrb[0].mxu0
        %v1048 = vpop.f32.mrb[0].mxu0
        %v1049 = vadd.f32 0.0, %v1048
        %v1050 = vpop.f32.mrb[0].mxu0
        %1051 = vmatprep.mubr.bf16.mxu0 0
        %1052 = vmatmul.mubr.bf16.gmra.mrb[0].mxu0 %v676
        %v1053 = vpop.f32.mrb[0].mxu0
        %v1054 = vadd.f32 0.0, %v1053
        %v1055 = vpop.f32.mrb[0].mxu0
        %v1056 = vpop.f32.mrb[0].mxu0
        %v1057 = vadd.f32 0.0, %v1056
        %v1058 = vpop.f32.mrb[0].mxu0
        %1059 = vmatprep.mubr.bf16.mxu0 0
        %1060 = vmatmul.mubr.bf16.gmra.mrb[0].mxu0 %v679
        %v1061 = vpop.f32.mrb[0].mxu0
        %v1062 = vadd.f32 0.0, %v1061
        %v1063 = vpop.f32.mrb[0].mxu0
        %v1064 = vpop.f32.mrb[0].mxu0
        %v1065 = vadd.f32 0.0, %v1064
        %v1066 = vpop.f32.mrb[0].mxu0
        %1067 = vmatprep.mubr.bf16.mxu0 0
        %1068 = vmatmul.mubr.bf16.gmra.mrb[0].mxu0 %v682
        %v1069 = vpop.f32.mrb[0].mxu0
        %v1070 = vadd.f32 0.0, %v1069
        %v1071 = vpop.f32.mrb[0].mxu0
        %v1072 = vpop.f32.mrb[0].mxu0
        %v1073 = vadd.f32 0.0, %v1072
        %v1074 = vpop.f32.mrb[0].mxu0
        %1075 = vmatprep.mubr.bf16.mxu0 0
        %1076 = vmatmul.mubr.bf16.gmra.mrb[0].mxu0 %v685
        %v1077 = vpop.f32.mrb[0].mxu0
        %v1078 = vadd.f32 0.0, %v1077
        %v1079 = vpop.f32.mrb[0].mxu0
        %v1080 = vpop.f32.mrb[0].mxu0
        %v1081 = vadd.f32 0.0, %v1080
        %v1082 = vpop.f32.mrb[0].mxu0
        %1083 = vmatprep.mubr.bf16.mxu0 0
        %1084 = vmatmul.mubr.bf16.gmra.mrb[0].mxu0 %v688
        %v1085 = vpop.f32.mrb[0].mxu0
        %v1086 = vadd.f32 0.0, %v1085
        %v1087 = vpop.f32.mrb[0].mxu0
        %v1088 = vpop.f32.mrb[0].mxu0
        %v1089 = vadd.f32 0.0, %v1088
        %v1090 = vpop.f32.mrb[0].mxu0
        %1091 = vmatprep.mubr.bf16.mxu0 0
        %1092 = vmatmul.mubr.bf16.gmra.mrb[0].mxu0 %v691
        %v1093 = vpop.f32.mrb[0].mxu0
        %v1094 = vadd.f32 0.0, %v1093
        %v1095 = vpop.f32.mrb[0].mxu0
        %v1096 = vpop.f32.mrb[0].mxu0
        %v1097 = vadd.f32 0.0, %v1096
        %v1098 = vpop.f32.mrb[0].mxu0
        %1099 = vmatprep.mubr.bf16.mxu0 0
        %1100 = vmatmul.mubr.bf16.gmra.mrb[0].mxu0 %v694
        %v1101 = vpop.f32.mrb[0].mxu0
        %v1102 = vadd.f32 0.0, %v1101
        %v1103 = vpop.f32.mrb[0].mxu0
        %v1104 = vpop.f32.mrb[0].mxu0
        %v1105 = vadd.f32 0.0, %v1104
        %v1106 = vpop.f32.mrb[0].mxu0
        %1107 = vmatprep.mubr.bf16.mxu0 0
        %1108 = vmatmul.mubr.bf16.gmra.mrb[0].mxu0 %v697
        %v1109 = vpop.f32.mrb[0].mxu0
        %v1110 = vadd.f32 0.0, %v1109
        %v1111 = vpop.f32.mrb[0].mxu0
        %v1112 = vpop.f32.mrb[0].mxu0
        %v1113 = vadd.f32 0.0, %v1112
        %v1114 = vpop.f32.mrb[0].mxu0
        %1115 = vmatprep.mubr.bf16.mxu0 0
        %1116 = vmatmul.mubr.bf16.gmra.mrb[0].mxu0 %v700
        %v1117 = vpop.f32.mrb[0].mxu0
        %v1118 = vadd.f32 0.0, %v1117
        %v1119 = vpop.f32.mrb[0].mxu0
        %v1120 = vpop.f32.mrb[0].mxu0
        %v1121 = vadd.f32 0.0, %v1120
        %v1122 = vpop.f32.mrb[0].mxu0
        %1123 = vmatprep.mubr.bf16.mxu0 0
        %1124 = vmatmul.mubr.bf16.gmra.mrb[0].mxu0 %v703
        %v1125 = vpop.f32.mrb[0].mxu0
        %v1126 = vadd.f32 0.0, %v1125
        %v1127 = vpop.f32.mrb[0].mxu0
        %v1128 = vpop.f32.mrb[0].mxu0
        %v1129 = vadd.f32 0.0, %v1128
        %v1130 = vpop.f32.mrb[0].mxu0
        %1131 = vmatprep.mubr.bf16.mxu0 0
        %1132 = vmatmul.mubr.bf16.gmra.mrb[0].mxu0 %v706
        %v1133 = vpop.f32.mrb[0].mxu0
        %v1134 = vadd.f32 0.0, %v1133
        %v1135 = vpop.f32.mrb[0].mxu0
        %v1136 = vpop.f32.mrb[0].mxu0
        %v1137 = vadd.f32 0.0, %v1136
        %v1138 = vpop.f32.mrb[0].mxu0
        %1139 = vdwg.mxu0
        %vm1140 = vcmask 261120
        %1141 = vst.msk [vmem:[#allocation2] sm:$0xff] %vm1140, %v750
        %1142 = vst.msk [vmem:[#allocation2 + $0x8] sm:$0xff] %vm1140, %v753
        %1143 = vst.msk [vmem:[#allocation2 + $0x10] sm:$0xff] %vm1140, %v758
        %1144 = vst.msk [vmem:[#allocation2 + $0x18] sm:$0xff] %vm1140, %v761
        %1145 = vst.msk [vmem:[#allocation2 + $0x20] sm:$0xff] %vm1140, %v766
        %1146 = vst.msk [vmem:[#allocation2 + $0x28] sm:$0xff] %vm1140, %v769
        %1147 = vst.msk [vmem:[#allocation2 + $0x30] sm:$0xff] %vm1140, %v774
        %1148 = vst.msk [vmem:[#allocation2 + $0x38] sm:$0xff] %vm1140, %v777
        %1149 = vst.msk [vmem:[#allocation2 + $0x40] sm:$0xff] %vm1140, %v782
        %1150 = vst.msk [vmem:[#allocation2 + $0x48] sm:$0xff] %vm1140, %v785
        %1151 = vst.msk [vmem:[#allocation2 + $0x50] sm:$0xff] %vm1140, %v790
        %1152 = vst.msk [vmem:[#allocation2 + $0x58] sm:$0xff] %vm1140, %v793
        %1153 = vst.msk [vmem:[#allocation2 + $0x60] sm:$0xff] %vm1140, %v798
        %1154 = vst.msk [vmem:[#allocation2 + $0x68] sm:$0xff] %vm1140, %v801
        %1155 = vst.msk [vmem:[#allocation2 + $0x70] sm:$0xff] %vm1140, %v806
        %1156 = vst.msk [vmem:[#allocation2 + $0x78] sm:$0xff] %vm1140, %v809
        %1157 = vst.msk [vmem:[#allocation2 + $0x80] sm:$0xff] %vm1140, %v814
        %1158 = vst.msk [vmem:[#allocation2 + $0x88] sm:$0xff] %vm1140, %v817
        %1159 = vst.msk [vmem:[#allocation2 + $0x90] sm:$0xff] %vm1140, %v822
        %1160 = vst.msk [vmem:[#allocation2 + $0x98] sm:$0xff] %vm1140, %v825
        %1161 = vst.msk [vmem:[#allocation2 + $0xa0] sm:$0xff] %vm1140, %v830
        %1162 = vst.msk [vmem:[#allocation2 + $0xa8] sm:$0xff] %vm1140, %v833
        %1163 = vst.msk [vmem:[#allocation2 + $0xb0] sm:$0xff] %vm1140, %v838
        %1164 = vst.msk [vmem:[#allocation2 + $0xb8] sm:$0xff] %vm1140, %v841
        %1165 = vst.msk [vmem:[#allocation2 + $0xc0] sm:$0xff] %vm1140, %v846
        %1166 = vst.msk [vmem:[#allocation2 + $0xc8] sm:$0xff] %vm1140, %v849
        %1167 = vst.msk [vmem:[#allocation2 + $0xd0] sm:$0xff] %vm1140, %v854
        %1168 = vst.msk [vmem:[#allocation2 + $0xd8] sm:$0xff] %vm1140, %v857
        %1169 = vst.msk [vmem:[#allocation2 + $0xe0] sm:$0xff] %vm1140, %v862
        %1170 = vst.msk [vmem:[#allocation2 + $0xe8] sm:$0xff] %vm1140, %v865
        %1171 = vst.msk [vmem:[#allocation2 + $0xf0] sm:$0xff] %vm1140, %v870
        %1172 = vst.msk [vmem:[#allocation2 + $0xf8] sm:$0xff] %vm1140, %v873
        %1173 = vst.msk [vmem:[#allocation2 + $0x100] sm:$0xff] %vm1140, %v878
        %1174 = vst.msk [vmem:[#allocation2 + $0x108] sm:$0xff] %vm1140, %v881
        %1175 = vst.msk [vmem:[#allocation2 + $0x110] sm:$0xff] %vm1140, %v886
        %1176 = vst.msk [vmem:[#allocation2 + $0x118] sm:$0xff] %vm1140, %v889
        %1177 = vst.msk [vmem:[#allocation2 + $0x120] sm:$0xff] %vm1140, %v894
        %1178 = vst.msk [vmem:[#allocation2 + $0x128] sm:$0xff] %vm1140, %v897
        %1179 = vst.msk [vmem:[#allocation2 + $0x130] sm:$0xff] %vm1140, %v902
        %1180 = vst.msk [vmem:[#allocation2 + $0x138] sm:$0xff] %vm1140, %v905
        %1181 = vst.msk [vmem:[#allocation2 + $0x140] sm:$0xff] %vm1140, %v910
        %1182 = vst.msk [vmem:[#allocation2 + $0x148] sm:$0xff] %vm1140, %v913
        %1183 = vst.msk [vmem:[#allocation2 + $0x150] sm:$0xff] %vm1140, %v918
        %1184 = vst.msk [vmem:[#allocation2 + $0x158] sm:$0xff] %vm1140, %v921
        %1185 = vst.msk [vmem:[#allocation2 + $0x160] sm:$0xff] %vm1140, %v926
        %1186 = vst.msk [vmem:[#allocation2 + $0x168] sm:$0xff] %vm1140, %v929
        %1187 = vst.msk [vmem:[#allocation2 + $0x170] sm:$0xff] %vm1140, %v934
        %1188 = vst.msk [vmem:[#allocation2 + $0x178] sm:$0xff] %vm1140, %v937
        %1189 = vst.msk [vmem:[#allocation2 + $0x180] sm:$0xff] %vm1140, %v942
        %1190 = vst.msk [vmem:[#allocation2 + $0x188] sm:$0xff] %vm1140, %v945
        %1191 = vst.msk [vmem:[#allocation2 + $0x190] sm:$0xff] %vm1140, %v950
        %1192 = vst.msk [vmem:[#allocation2 + $0x198] sm:$0xff] %vm1140, %v953
        %1193 = vst.msk [vmem:[#allocation2 + $0x1a0] sm:$0xff] %vm1140, %v958
        %1194 = vst.msk [vmem:[#allocation2 + $0x1a8] sm:$0xff] %vm1140, %v961
        %1195 = vst.msk [vmem:[#allocation2 + $0x1b0] sm:$0xff] %vm1140, %v966
        %1196 = vst.msk [vmem:[#allocation2 + $0x1b8] sm:$0xff] %vm1140, %v969
        %1197 = vst.msk [vmem:[#allocation2 + $0x1c0] sm:$0xff] %vm1140, %v974
        %1198 = vst.msk [vmem:[#allocation2 + $0x1c8] sm:$0xff] %vm1140, %v977
        %1199 = vst.msk [vmem:[#allocation2 + $0x1d0] sm:$0xff] %vm1140, %v982
        %1200 = vst.msk [vmem:[#allocation2 + $0x1d8] sm:$0xff] %vm1140, %v985
        %1201 = vst.msk [vmem:[#allocation2 + $0x1e0] sm:$0xff] %vm1140, %v990
        %1202 = vst.msk [vmem:[#allocation2 + $0x1e8] sm:$0xff] %vm1140, %v993
        %1203 = vst.msk [vmem:[#allocation2 + $0x1f0] sm:$0xff] %vm1140, %v998
        %1204 = vst.msk [vmem:[#allocation2 + $0x1f8] sm:$0xff] %vm1140, %v1001
        %1205 = vst.msk [vmem:[#allocation2 + $0x200] sm:$0xff] %vm1140, %v1006
        %1206 = vst.msk [vmem:[#allocation2 + $0x208] sm:$0xff] %vm1140, %v1009
        %1207 = vst.msk [vmem:[#allocation2 + $0x210] sm:$0xff] %vm1140, %v1014
        %1208 = vst.msk [vmem:[#allocation2 + $0x218] sm:$0xff] %vm1140, %v1017
        %1209 = vst.msk [vmem:[#allocation2 + $0x220] sm:$0xff] %vm1140, %v1022
        %1210 = vst.msk [vmem:[#allocation2 + $0x228] sm:$0xff] %vm1140, %v1025
        %1211 = vst.msk [vmem:[#allocation2 + $0x230] sm:$0xff] %vm1140, %v1030
        %1212 = vst.msk [vmem:[#allocation2 + $0x238] sm:$0xff] %vm1140, %v1033
        %1213 = vst.msk [vmem:[#allocation2 + $0x240] sm:$0xff] %vm1140, %v1038
        %1214 = vst.msk [vmem:[#allocation2 + $0x248] sm:$0xff] %vm1140, %v1041
        %1215 = vst.msk [vmem:[#allocation2 + $0x250] sm:$0xff] %vm1140, %v1046
        %1216 = vst.msk [vmem:[#allocation2 + $0x258] sm:$0xff] %vm1140, %v1049
        %1217 = vst.msk [vmem:[#allocation2 + $0x260] sm:$0xff] %vm1140, %v1054
        %1218 = vst.msk [vmem:[#allocation2 + $0x268] sm:$0xff] %vm1140, %v1057
        %1219 = vst.msk [vmem:[#allocation2 + $0x270] sm:$0xff] %vm1140, %v1062
        %1220 = vst.msk [vmem:[#allocation2 + $0x278] sm:$0xff] %vm1140, %v1065
        %1221 = vst.msk [vmem:[#allocation2 + $0x280] sm:$0xff] %vm1140, %v1070
        %1222 = vst.msk [vmem:[#allocation2 + $0x288] sm:$0xff] %vm1140, %v1073
        %1223 = vst.msk [vmem:[#allocation2 + $0x290] sm:$0xff] %vm1140, %v1078
        %1224 = vst.msk [vmem:[#allocation2 + $0x298] sm:$0xff] %vm1140, %v1081
        %1225 = vst.msk [vmem:[#allocation2 + $0x2a0] sm:$0xff] %vm1140, %v1086
        %1226 = vst.msk [vmem:[#allocation2 + $0x2a8] sm:$0xff] %vm1140, %v1089
        %1227 = vst.msk [vmem:[#allocation2 + $0x2b0] sm:$0xff] %vm1140, %v1094
        %1228 = vst.msk [vmem:[#allocation2 + $0x2b8] sm:$0xff] %vm1140, %v1097
        %1229 = vst.msk [vmem:[#allocation2 + $0x2c0] sm:$0xff] %vm1140, %v1102
        %1230 = vst.msk [vmem:[#allocation2 + $0x2c8] sm:$0xff] %vm1140, %v1105
        %1231 = vst.msk [vmem:[#allocation2 + $0x2d0] sm:$0xff] %vm1140, %v1110
        %1232 = vst.msk [vmem:[#allocation2 + $0x2d8] sm:$0xff] %vm1140, %v1113
        %1233 = vst.msk [vmem:[#allocation2 + $0x2e0] sm:$0xff] %vm1140, %v1118
        %1234 = vst.msk [vmem:[#allocation2 + $0x2e8] sm:$0xff] %vm1140, %v1121
        %1235 = vst.msk [vmem:[#allocation2 + $0x2f0] sm:$0xff] %vm1140, %v1126
        %1236 = vst.msk [vmem:[#allocation2 + $0x2f8] sm:$0xff] %vm1140, %v1129
        %1237 = vst.msk [vmem:[#allocation2 + $0x300] sm:$0xff] %vm1140, %v1134
        %1238 = vst.msk [vmem:[#allocation2 + $0x308] sm:$0xff] %vm1140, %v1137
        %v1239 = vld [vmem:[#allocation6] sm:$0x1]
        %v1240 = vld [vmem:[#allocation2] ss:$2 sm:$0xff]
        %s1241 = scalar_lea.vmem [#allocation2], 16
        %v1242 = vld [vmem:[%s1241] ss:$2 sm:$0xff]
        %s1243 = scalar_lea.vmem [#allocation2], 32
        %v1244 = vld [vmem:[%s1243] ss:$2 sm:$0xff]
        %s1245 = scalar_lea.vmem [#allocation2], 48
        %v1246 = vld [vmem:[%s1245] ss:$2 sm:$0xff]
        %s1247 = scalar_lea.vmem [#allocation2], 64
        %v1248 = vld [vmem:[%s1247] ss:$2 sm:$0xff]
        %s1249 = scalar_lea.vmem [#allocation2], 80
        %v1250 = vld [vmem:[%s1249] ss:$2 sm:$0xff]
        %s1251 = scalar_lea.vmem [#allocation2], 96
        %v1252 = vld [vmem:[%s1251] ss:$2 sm:$0xff]
        %s1253 = scalar_lea.vmem [#allocation2], 112
        %v1254 = vld [vmem:[%s1253] ss:$2 sm:$0xff]
        %s1255 = scalar_lea.vmem [#allocation2], 128
        %v1256 = vld [vmem:[%s1255] ss:$2 sm:$0xff]
        %s1257 = scalar_lea.vmem [#allocation2], 144
        %v1258 = vld [vmem:[%s1257] ss:$2 sm:$0xff]
        %s1259 = scalar_lea.vmem [#allocation2], 160
        %v1260 = vld [vmem:[%s1259] ss:$2 sm:$0xff]
        %s1261 = scalar_lea.vmem [#allocation2], 176
        %v1262 = vld [vmem:[%s1261] ss:$2 sm:$0xff]
        %s1263 = scalar_lea.vmem [#allocation2], 192
        %v1264 = vld [vmem:[%s1263] ss:$2 sm:$0xff]
        %s1265 = scalar_lea.vmem [#allocation2], 208
        %v1266 = vld [vmem:[%s1265] ss:$2 sm:$0xff]
        %s1267 = scalar_lea.vmem [#allocation2], 224
        %v1268 = vld [vmem:[%s1267] ss:$2 sm:$0xff]
        %s1269 = scalar_lea.vmem [#allocation2], 240
        %v1270 = vld [vmem:[%s1269] ss:$2 sm:$0xff]
        %s1271 = scalar_lea.vmem [#allocation2], 256
        %v1272 = vld [vmem:[%s1271] ss:$2 sm:$0xff]
        %s1273 = scalar_lea.vmem [#allocation2], 272
        %v1274 = vld [vmem:[%s1273] ss:$2 sm:$0xff]
        %s1275 = scalar_lea.vmem [#allocation2], 288
        %v1276 = vld [vmem:[%s1275] ss:$2 sm:$0xff]
        %s1277 = scalar_lea.vmem [#allocation2], 304
        %v1278 = vld [vmem:[%s1277] ss:$2 sm:$0xff]
        %s1279 = scalar_lea.vmem [#allocation2], 320
        %v1280 = vld [vmem:[%s1279] ss:$2 sm:$0xff]
        %s1281 = scalar_lea.vmem [#allocation2], 336
        %v1282 = vld [vmem:[%s1281] ss:$2 sm:$0xff]
        %s1283 = scalar_lea.vmem [#allocation2], 352
        %v1284 = vld [vmem:[%s1283] ss:$2 sm:$0xff]
        %s1285 = scalar_lea.vmem [#allocation2], 368
        %v1286 = vld [vmem:[%s1285] ss:$2 sm:$0xff]
        %s1287 = scalar_lea.vmem [#allocation2], 384
        %v1288 = vld [vmem:[%s1287] ss:$2 sm:$0xff]
        %s1289 = scalar_lea.vmem [#allocation2], 400
        %v1290 = vld [vmem:[%s1289] ss:$2 sm:$0xff]
        %s1291 = scalar_lea.vmem [#allocation2], 416
        %v1292 = vld [vmem:[%s1291] ss:$2 sm:$0xff]
        %s1293 = scalar_lea.vmem [#allocation2], 432
        %v1294 = vld [vmem:[%s1293] ss:$2 sm:$0xff]
        %s1295 = scalar_lea.vmem [#allocation2], 448
        %v1296 = vld [vmem:[%s1295] ss:$2 sm:$0xff]
        %s1297 = scalar_lea.vmem [#allocation2], 464
        %v1298 = vld [vmem:[%s1297] ss:$2 sm:$0xff]
        %s1299 = scalar_lea.vmem [#allocation2], 480
        %v1300 = vld [vmem:[%s1299] ss:$2 sm:$0xff]
        %s1301 = scalar_lea.vmem [#allocation2], 496
        %v1302 = vld [vmem:[%s1301] ss:$2 sm:$0xff]
        %s1303 = scalar_lea.vmem [#allocation2], 512
        %v1304 = vld [vmem:[%s1303] ss:$2 sm:$0xff]
        %s1305 = scalar_lea.vmem [#allocation2], 528
        %v1306 = vld [vmem:[%s1305] ss:$2 sm:$0xff]
        %s1307 = scalar_lea.vmem [#allocation2], 544
        %v1308 = vld [vmem:[%s1307] ss:$2 sm:$0xff]
        %s1309 = scalar_lea.vmem [#allocation2], 560
        %v1310 = vld [vmem:[%s1309] ss:$2 sm:$0xff]
        %s1311 = scalar_lea.vmem [#allocation2], 576
        %v1312 = vld [vmem:[%s1311] ss:$2 sm:$0xff]
        %s1313 = scalar_lea.vmem [#allocation2], 592
        %v1314 = vld [vmem:[%s1313] ss:$2 sm:$0xff]
        %s1315 = scalar_lea.vmem [#allocation2], 608
        %v1316 = vld [vmem:[%s1315] ss:$2 sm:$0xff]
        %s1317 = scalar_lea.vmem [#allocation2], 624
        %v1318 = vld [vmem:[%s1317] ss:$2 sm:$0xff]
        %s1319 = scalar_lea.vmem [#allocation2], 640
        %v1320 = vld [vmem:[%s1319] ss:$2 sm:$0xff]
        %s1321 = scalar_lea.vmem [#allocation2], 656
        %v1322 = vld [vmem:[%s1321] ss:$2 sm:$0xff]
        %s1323 = scalar_lea.vmem [#allocation2], 672
        %v1324 = vld [vmem:[%s1323] ss:$2 sm:$0xff]
        %s1325 = scalar_lea.vmem [#allocation2], 688
        %v1326 = vld [vmem:[%s1325] ss:$2 sm:$0xff]
        %s1327 = scalar_lea.vmem [#allocation2], 704
        %v1328 = vld [vmem:[%s1327] ss:$2 sm:$0xff]
        %s1329 = scalar_lea.vmem [#allocation2], 720
        %v1330 = vld [vmem:[%s1329] ss:$2 sm:$0xff]
        %s1331 = scalar_lea.vmem [#allocation2], 736
        %v1332 = vld [vmem:[%s1331] ss:$2 sm:$0xff]
        %s1333 = scalar_lea.vmem [#allocation2], 752
        %v1334 = vld [vmem:[%s1333] ss:$2 sm:$0xff]
        %s1335 = scalar_lea.vmem [#allocation2], 768
        %v1336 = vld [vmem:[%s1335] ss:$2 sm:$0xff]
        %s1337 = scalar_lea.vmem [#allocation2], 1
        %v1338 = vld [vmem:[%s1337] ss:$2 sm:$0xff]
        %s1339 = scalar_lea.vmem [#allocation2], 17
        %v1340 = vld [vmem:[%s1339] ss:$2 sm:$0xff]
        %s1341 = scalar_lea.vmem [#allocation2], 33
        %v1342 = vld [vmem:[%s1341] ss:$2 sm:$0xff]
        %s1343 = scalar_lea.vmem [#allocation2], 49
        %v1344 = vld [vmem:[%s1343] ss:$2 sm:$0xff]
        %s1345 = scalar_lea.vmem [#allocation2], 65
        %v1346 = vld [vmem:[%s1345] ss:$2 sm:$0xff]
        %s1347 = scalar_lea.vmem [#allocation2], 81
        %v1348 = vld [vmem:[%s1347] ss:$2 sm:$0xff]
        %s1349 = scalar_lea.vmem [#allocation2], 97
        %v1350 = vld [vmem:[%s1349] ss:$2 sm:$0xff]
        %s1351 = scalar_lea.vmem [#allocation2], 113
        %v1352 = vld [vmem:[%s1351] ss:$2 sm:$0xff]
        %s1353 = scalar_lea.vmem [#allocation2], 129
        %v1354 = vld [vmem:[%s1353] ss:$2 sm:$0xff]
        %s1355 = scalar_lea.vmem [#allocation2], 145
        %v1356 = vld [vmem:[%s1355] ss:$2 sm:$0xff]
        %s1357 = scalar_lea.vmem [#allocation2], 161
        %v1358 = vld [vmem:[%s1357] ss:$2 sm:$0xff]
        %s1359 = scalar_lea.vmem [#allocation2], 177
        %v1360 = vld [vmem:[%s1359] ss:$2 sm:$0xff]
        %s1361 = scalar_lea.vmem [#allocation2], 193
        %v1362 = vld [vmem:[%s1361] ss:$2 sm:$0xff]
        %s1363 = scalar_lea.vmem [#allocation2], 209
        %v1364 = vld [vmem:[%s1363] ss:$2 sm:$0xff]
        %s1365 = scalar_lea.vmem [#allocation2], 225
        %v1366 = vld [vmem:[%s1365] ss:$2 sm:$0xff]
        %s1367 = scalar_lea.vmem [#allocation2], 241
        %v1368 = vld [vmem:[%s1367] ss:$2 sm:$0xff]
        %s1369 = scalar_lea.vmem [#allocation2], 257
        %v1370 = vld [vmem:[%s1369] ss:$2 sm:$0xff]
        %s1371 = scalar_lea.vmem [#allocation2], 273
        %v1372 = vld [vmem:[%s1371] ss:$2 sm:$0xff]
        %s1373 = scalar_lea.vmem [#allocation2], 289
        %v1374 = vld [vmem:[%s1373] ss:$2 sm:$0xff]
        %s1375 = scalar_lea.vmem [#allocation2], 305
        %v1376 = vld [vmem:[%s1375] ss:$2 sm:$0xff]
        %s1377 = scalar_lea.vmem [#allocation2], 321
        %v1378 = vld [vmem:[%s1377] ss:$2 sm:$0xff]
        %s1379 = scalar_lea.vmem [#allocation2], 337
        %v1380 = vld [vmem:[%s1379] ss:$2 sm:$0xff]
        %s1381 = scalar_lea.vmem [#allocation2], 353
        %v1382 = vld [vmem:[%s1381] ss:$2 sm:$0xff]
        %s1383 = scalar_lea.vmem [#allocation2], 369
        %v1384 = vld [vmem:[%s1383] ss:$2 sm:$0xff]
        %s1385 = scalar_lea.vmem [#allocation2], 385
        %v1386 = vld [vmem:[%s1385] ss:$2 sm:$0xff]
        %s1387 = scalar_lea.vmem [#allocation2], 401
        %v1388 = vld [vmem:[%s1387] ss:$2 sm:$0xff]
        %s1389 = scalar_lea.vmem [#allocation2], 417
        %v1390 = vld [vmem:[%s1389] ss:$2 sm:$0xff]
        %s1391 = scalar_lea.vmem [#allocation2], 433
        %v1392 = vld [vmem:[%s1391] ss:$2 sm:$0xff]
        %s1393 = scalar_lea.vmem [#allocation2], 449
        %v1394 = vld [vmem:[%s1393] ss:$2 sm:$0xff]
        %s1395 = scalar_lea.vmem [#allocation2], 465
        %v1396 = vld [vmem:[%s1395] ss:$2 sm:$0xff]
        %s1397 = scalar_lea.vmem [#allocation2], 481
        %v1398 = vld [vmem:[%s1397] ss:$2 sm:$0xff]
        %s1399 = scalar_lea.vmem [#allocation2], 497
        %v1400 = vld [vmem:[%s1399] ss:$2 sm:$0xff]
        %s1401 = scalar_lea.vmem [#allocation2], 513
        %v1402 = vld [vmem:[%s1401] ss:$2 sm:$0xff]
        %s1403 = scalar_lea.vmem [#allocation2], 529
        %v1404 = vld [vmem:[%s1403] ss:$2 sm:$0xff]
        %s1405 = scalar_lea.vmem [#allocation2], 545
        %v1406 = vld [vmem:[%s1405] ss:$2 sm:$0xff]
        %s1407 = scalar_lea.vmem [#allocation2], 561
        %v1408 = vld [vmem:[%s1407] ss:$2 sm:$0xff]
        %s1409 = scalar_lea.vmem [#allocation2], 577
        %v1410 = vld [vmem:[%s1409] ss:$2 sm:$0xff]
        %s1411 = scalar_lea.vmem [#allocation2], 593
        %v1412 = vld [vmem:[%s1411] ss:$2 sm:$0xff]
        %s1413 = scalar_lea.vmem [#allocation2], 609
        %v1414 = vld [vmem:[%s1413] ss:$2 sm:$0xff]
        %s1415 = scalar_lea.vmem [#allocation2], 625
        %v1416 = vld [vmem:[%s1415] ss:$2 sm:$0xff]
        %s1417 = scalar_lea.vmem [#allocation2], 641
        %v1418 = vld [vmem:[%s1417] ss:$2 sm:$0xff]
        %s1419 = scalar_lea.vmem [#allocation2], 657
        %v1420 = vld [vmem:[%s1419] ss:$2 sm:$0xff]
        %s1421 = scalar_lea.vmem [#allocation2], 673
        %v1422 = vld [vmem:[%s1421] ss:$2 sm:$0xff]
        %s1423 = scalar_lea.vmem [#allocation2], 689
        %v1424 = vld [vmem:[%s1423] ss:$2 sm:$0xff]
        %s1425 = scalar_lea.vmem [#allocation2], 705
        %v1426 = vld [vmem:[%s1425] ss:$2 sm:$0xff]
        %s1427 = scalar_lea.vmem [#allocation2], 721
        %v1428 = vld [vmem:[%s1427] ss:$2 sm:$0xff]
        %s1429 = scalar_lea.vmem [#allocation2], 737
        %v1430 = vld [vmem:[%s1429] ss:$2 sm:$0xff]
        %s1431 = scalar_lea.vmem [#allocation2], 753
        %v1432 = vld [vmem:[%s1431] ss:$2 sm:$0xff]
        %s1433 = scalar_lea.vmem [#allocation2], 769
        %v1434 = vld [vmem:[%s1433] ss:$2 sm:$0xff]
        %v1435 = vmax.f32 %v1240, %v1338
        %v1436 = vmax.f32 %v1242, %v1340
        %v1437 = vmax.f32 %v1244, %v1342
        %v1438 = vmax.f32 %v1246, %v1344
        %v1439 = vmax.f32 %v1248, %v1346
        %v1440 = vmax.f32 %v1250, %v1348
        %v1441 = vmax.f32 %v1252, %v1350
        %v1442 = vmax.f32 %v1254, %v1352
        %v1443 = vmax.f32 %v1256, %v1354
        %v1444 = vmax.f32 %v1258, %v1356
        %v1445 = vmax.f32 %v1260, %v1358
        %v1446 = vmax.f32 %v1262, %v1360
        %v1447 = vmax.f32 %v1264, %v1362
        %v1448 = vmax.f32 %v1266, %v1364
        %v1449 = vmax.f32 %v1268, %v1366
        %v1450 = vmax.f32 %v1270, %v1368
        %v1451 = vmax.f32 %v1272, %v1370
        %v1452 = vmax.f32 %v1274, %v1372
        %v1453 = vmax.f32 %v1276, %v1374
        %v1454 = vmax.f32 %v1278, %v1376
        %v1455 = vmax.f32 %v1280, %v1378
        %v1456 = vmax.f32 %v1282, %v1380
        %v1457 = vmax.f32 %v1284, %v1382
        %v1458 = vmax.f32 %v1286, %v1384
        %v1459 = vmax.f32 %v1288, %v1386
        %v1460 = vmax.f32 %v1290, %v1388
        %v1461 = vmax.f32 %v1292, %v1390
        %v1462 = vmax.f32 %v1294, %v1392
        %v1463 = vmax.f32 %v1296, %v1394
        %v1464 = vmax.f32 %v1298, %v1396
        %v1465 = vmax.f32 %v1300, %v1398
        %v1466 = vmax.f32 %v1302, %v1400
        %v1467 = vmax.f32 %v1304, %v1402
        %v1468 = vmax.f32 %v1306, %v1404
        %v1469 = vmax.f32 %v1308, %v1406
        %v1470 = vmax.f32 %v1310, %v1408
        %v1471 = vmax.f32 %v1312, %v1410
        %v1472 = vmax.f32 %v1314, %v1412
        %v1473 = vmax.f32 %v1316, %v1414
        %v1474 = vmax.f32 %v1318, %v1416
        %v1475 = vmax.f32 %v1320, %v1418
        %v1476 = vmax.f32 %v1322, %v1420
        %v1477 = vmax.f32 %v1324, %v1422
        %v1478 = vmax.f32 %v1326, %v1424
        %v1479 = vmax.f32 %v1328, %v1426
        %v1480 = vmax.f32 %v1330, %v1428
        %v1481 = vmax.f32 %v1332, %v1430
        %v1482 = vmax.f32 %v1334, %v1432
        %v1483 = vmax.f32 %v1336, %v1434
        %1484 = vst.msk [vmem:[#allocation3] sm:$0xff] %vm1140, %v1435
        %1485 = vst.msk [vmem:[#allocation3 + $0x8] sm:$0xff] %vm1140, %v1436
        %1486 = vst.msk [vmem:[#allocation3 + $0x10] sm:$0xff] %vm1140, %v1437
        %1487 = vst.msk [vmem:[#allocation3 + $0x18] sm:$0xff] %vm1140, %v1438
        %1488 = vst.msk [vmem:[#allocation3 + $0x20] sm:$0xff] %vm1140, %v1439
        %1489 = vst.msk [vmem:[#allocation3 + $0x28] sm:$0xff] %vm1140, %v1440
        %1490 = vst.msk [vmem:[#allocation3 + $0x30] sm:$0xff] %vm1140, %v1441
        %1491 = vst.msk [vmem:[#allocation3 + $0x38] sm:$0xff] %vm1140, %v1442
        %1492 = vst.msk [vmem:[#allocation3 + $0x40] sm:$0xff] %vm1140, %v1443
        %1493 = vst.msk [vmem:[#allocation3 + $0x48] sm:$0xff] %vm1140, %v1444
        %1494 = vst.msk [vmem:[#allocation3 + $0x50] sm:$0xff] %vm1140, %v1445
        %1495 = vst.msk [vmem:[#allocation3 + $0x58] sm:$0xff] %vm1140, %v1446
        %1496 = vst.msk [vmem:[#allocation3 + $0x60] sm:$0xff] %vm1140, %v1447
        %1497 = vst.msk [vmem:[#allocation3 + $0x68] sm:$0xff] %vm1140, %v1448
        %1498 = vst.msk [vmem:[#allocation3 + $0x70] sm:$0xff] %vm1140, %v1449
        %1499 = vst.msk [vmem:[#allocation3 + $0x78] sm:$0xff] %vm1140, %v1450
        %1500 = vst.msk [vmem:[#allocation3 + $0x80] sm:$0xff] %vm1140, %v1451
        %1501 = vst.msk [vmem:[#allocation3 + $0x88] sm:$0xff] %vm1140, %v1452
        %1502 = vst.msk [vmem:[#allocation3 + $0x90] sm:$0xff] %vm1140, %v1453
        %1503 = vst.msk [vmem:[#allocation3 + $0x98] sm:$0xff] %vm1140, %v1454
        %1504 = vst.msk [vmem:[#allocation3 + $0xa0] sm:$0xff] %vm1140, %v1455
        %1505 = vst.msk [vmem:[#allocation3 + $0xa8] sm:$0xff] %vm1140, %v1456
        %1506 = vst.msk [vmem:[#allocation3 + $0xb0] sm:$0xff] %vm1140, %v1457
        %1507 = vst.msk [vmem:[#allocation3 + $0xb8] sm:$0xff] %vm1140, %v1458
        %1508 = vst.msk [vmem:[#allocation3 + $0xc0] sm:$0xff] %vm1140, %v1459
        %1509 = vst.msk [vmem:[#allocation3 + $0xc8] sm:$0xff] %vm1140, %v1460
        %1510 = vst.msk [vmem:[#allocation3 + $0xd0] sm:$0xff] %vm1140, %v1461
        %1511 = vst.msk [vmem:[#allocation3 + $0xd8] sm:$0xff] %vm1140, %v1462
        %1512 = vst.msk [vmem:[#allocation3 + $0xe0] sm:$0xff] %vm1140, %v1463
        %1513 = vst.msk [vmem:[#allocation3 + $0xe8] sm:$0xff] %vm1140, %v1464
        %1514 = vst.msk [vmem:[#allocation3 + $0xf0] sm:$0xff] %vm1140, %v1465
        %1515 = vst.msk [vmem:[#allocation3 + $0xf8] sm:$0xff] %vm1140, %v1466
        %1516 = vst.msk [vmem:[#allocation3 + $0x100] sm:$0xff] %vm1140, %v1467
        %1517 = vst.msk [vmem:[#allocation3 + $0x108] sm:$0xff] %vm1140, %v1468
        %1518 = vst.msk [vmem:[#allocation3 + $0x110] sm:$0xff] %vm1140, %v1469
        %1519 = vst.msk [vmem:[#allocation3 + $0x118] sm:$0xff] %vm1140, %v1470
        %1520 = vst.msk [vmem:[#allocation3 + $0x120] sm:$0xff] %vm1140, %v1471
        %1521 = vst.msk [vmem:[#allocation3 + $0x128] sm:$0xff] %vm1140, %v1472
        %1522 = vst.msk [vmem:[#allocation3 + $0x130] sm:$0xff] %vm1140, %v1473
        %1523 = vst.msk [vmem:[#allocation3 + $0x138] sm:$0xff] %vm1140, %v1474
        %1524 = vst.msk [vmem:[#allocation3 + $0x140] sm:$0xff] %vm1140, %v1475
        %1525 = vst.msk [vmem:[#allocation3 + $0x148] sm:$0xff] %vm1140, %v1476
        %1526 = vst.msk [vmem:[#allocation3 + $0x150] sm:$0xff] %vm1140, %v1477
        %1527 = vst.msk [vmem:[#allocation3 + $0x158] sm:$0xff] %vm1140, %v1478
        %1528 = vst.msk [vmem:[#allocation3 + $0x160] sm:$0xff] %vm1140, %v1479
        %1529 = vst.msk [vmem:[#allocation3 + $0x168] sm:$0xff] %vm1140, %v1480
        %1530 = vst.msk [vmem:[#allocation3 + $0x170] sm:$0xff] %vm1140, %v1481
        %1531 = vst.msk [vmem:[#allocation3 + $0x178] sm:$0xff] %vm1140, %v1482
        %1532 = vst.msk [vmem:[#allocation3 + $0x180] sm:$0xff] %vm1140, %v1483
        %v1533 = vld [vmem:[#allocation3] sm:$0xff]
        %v1534 = vld [vmem:[#allocation3 + $0x8] sm:$0x3f]
        %v1535 = vld [vmem:[#allocation3 + $0xe] sm:$0xff]
        %v1536 = vld [vmem:[#allocation3 + $0x16] sm:$0x3f]
        %v1537 = vmax.f32 %v1533, %v1535
        %v1538 = vmax.f32 %v1534, %v1536
        %v1540 = vlaneseq
        %v1541 = vshrl.u32 %v1540, 7
        %v1542 = vsub.s32 0, %v1541
        %v1543 = vrot.slane %v1239, %v1542
        %v1545 = vadd.f32 %v1537, %v1543
        %v1546 = vadd.f32 %v1538, %v1543
        %v1547 = vmax.f32 %v1545, 0.0
        %v1548 = vmax.f32 %v1546, 0.0
        %1549 = vst.msk [vmem:[%s200] sm:$0xff] %vm1140, %v1547
        %vm1550 = vcmask 259072
        %1551 = vst.msk [vmem:[%s200 + $0x8] sm:$0x3f] %vm1550, %v1548
        %v1552 = vld [vmem:[#allocation3 + $0x1c] sm:$0xff]
        %v1553 = vld [vmem:[#allocation3 + $0x24] sm:$0x3f]
        %v1554 = vld [vmem:[#allocation3 + $0x2a] sm:$0xff]
        %v1555 = vld [vmem:[#allocation3 + $0x32] sm:$0x3f]
        %v1556 = vmax.f32 %v1552, %v1554
        %v1557 = vmax.f32 %v1553, %v1555
        %v1558 = vadd.f32 %v1556, %v1543
        %v1559 = vadd.f32 %v1557, %v1543
        %v1560 = vmax.f32 %v1558, 0.0
        %v1561 = vmax.f32 %v1559, 0.0
        %1562 = vst.msk [vmem:[%s200 + $0xe] sm:$0xff] %vm1140, %v1560
        %1563 = vst.msk [vmem:[%s200 + $0x16] sm:$0x3f] %vm1550, %v1561
        %v1564 = vld [vmem:[#allocation3 + $0x38] sm:$0xff]
        %v1565 = vld [vmem:[#allocation3 + $0x40] sm:$0x3f]
        %v1566 = vld [vmem:[#allocation3 + $0x46] sm:$0xff]
        %v1567 = vld [vmem:[#allocation3 + $0x4e] sm:$0x3f]
        %v1568 = vmax.f32 %v1564, %v1566
        %v1569 = vmax.f32 %v1565, %v1567
        %v1570 = vadd.f32 %v1568, %v1543
        %v1571 = vadd.f32 %v1569, %v1543
        %v1572 = vmax.f32 %v1570, 0.0
        %v1573 = vmax.f32 %v1571, 0.0
        %1574 = vst.msk [vmem:[%s200 + $0x1c] sm:$0xff] %vm1140, %v1572
        %1575 = vst.msk [vmem:[%s200 + $0x24] sm:$0x3f] %vm1550, %v1573
        %v1576 = vld [vmem:[#allocation3 + $0x54] sm:$0xff]
        %v1577 = vld [vmem:[#allocation3 + $0x5c] sm:$0x3f]
        %v1578 = vld [vmem:[#allocation3 + $0x62] sm:$0xff]
        %v1579 = vld [vmem:[#allocation3 + $0x6a] sm:$0x3f]
        %v1580 = vmax.f32 %v1576, %v1578
        %v1581 = vmax.f32 %v1577, %v1579
        %v1582 = vadd.f32 %v1580, %v1543
        %v1583 = vadd.f32 %v1581, %v1543
        %v1584 = vmax.f32 %v1582, 0.0
        %v1585 = vmax.f32 %v1583, 0.0
        %1586 = vst.msk [vmem:[%s200 + $0x2a] sm:$0xff] %vm1140, %v1584
        %1587 = vst.msk [vmem:[%s200 + $0x32] sm:$0x3f] %vm1550, %v1585
        %v1588 = vld [vmem:[#allocation3 + $0x70] sm:$0xff]
        %v1589 = vld [vmem:[#allocation3 + $0x78] sm:$0x3f]
        %v1590 = vld [vmem:[#allocation3 + $0x7e] sm:$0xff]
        %v1591 = vld [vmem:[#allocation3 + $0x86] sm:$0x3f]
        %v1592 = vmax.f32 %v1588, %v1590
        %v1593 = vmax.f32 %v1589, %v1591
        %v1594 = vadd.f32 %v1592, %v1543
        %v1595 = vadd.f32 %v1593, %v1543
        %v1596 = vmax.f32 %v1594, 0.0
        %v1597 = vmax.f32 %v1595, 0.0
        %1598 = vst.msk [vmem:[%s200 + $0x38] sm:$0xff] %vm1140, %v1596
        %1599 = vst.msk [vmem:[%s200 + $0x40] sm:$0x3f] %vm1550, %v1597
        %v1600 = vld [vmem:[#allocation3 + $0x8c] sm:$0xff]
        %v1601 = vld [vmem:[#allocation3 + $0x94] sm:$0x3f]
        %v1602 = vld [vmem:[#allocation3 + $0x9a] sm:$0xff]
        %v1603 = vld [vmem:[#allocation3 + $0xa2] sm:$0x3f]
        %v1604 = vmax.f32 %v1600, %v1602
        %v1605 = vmax.f32 %v1601, %v1603
        %v1606 = vadd.f32 %v1604, %v1543
        %v1607 = vadd.f32 %v1605, %v1543
        %v1608 = vmax.f32 %v1606, 0.0
        %v1609 = vmax.f32 %v1607, 0.0
        %1610 = vst.msk [vmem:[%s200 + $0x46] sm:$0xff] %vm1140, %v1608
        %1611 = vst.msk [vmem:[%s200 + $0x4e] sm:$0x3f] %vm1550, %v1609
        %v1612 = vld [vmem:[#allocation3 + $0xa8] sm:$0xff]
        %v1613 = vld [vmem:[#allocation3 + $0xb0] sm:$0x3f]
        %v1614 = vld [vmem:[#allocation3 + $0xb6] sm:$0xff]
        %v1615 = vld [vmem:[#allocation3 + $0xbe] sm:$0x3f]
        %v1616 = vmax.f32 %v1612, %v1614
        %v1617 = vmax.f32 %v1613, %v1615
        %v1618 = vadd.f32 %v1616, %v1543
        %v1619 = vadd.f32 %v1617, %v1543
        %v1620 = vmax.f32 %v1618, 0.0
        %v1621 = vmax.f32 %v1619, 0.0
        %1622 = vst.msk [vmem:[%s200 + $0x54] sm:$0xff] %vm1140, %v1620
        %1623 = vst.msk [vmem:[%s200 + $0x5c] sm:$0x3f] %vm1550, %v1621
        %v1624 = vld [vmem:[#allocation3 + $0xc4] sm:$0xff]
        %v1625 = vld [vmem:[#allocation3 + $0xcc] sm:$0x3f]
        %v1626 = vld [vmem:[#allocation3 + $0xd2] sm:$0xff]
        %v1627 = vld [vmem:[#allocation3 + $0xda] sm:$0x3f]
        %v1628 = vmax.f32 %v1624, %v1626
        %v1629 = vmax.f32 %v1625, %v1627
        %v1630 = vadd.f32 %v1628, %v1543
        %v1631 = vadd.f32 %v1629, %v1543
        %v1632 = vmax.f32 %v1630, 0.0
        %v1633 = vmax.f32 %v1631, 0.0
        %1634 = vst.msk [vmem:[%s200 + $0x62] sm:$0xff] %vm1140, %v1632
        %1635 = vst.msk [vmem:[%s200 + $0x6a] sm:$0x3f] %vm1550, %v1633
        %v1636 = vld [vmem:[#allocation3 + $0xe0] sm:$0xff]
        %v1637 = vld [vmem:[#allocation3 + $0xe8] sm:$0x3f]
        %v1638 = vld [vmem:[#allocation3 + $0xee] sm:$0xff]
        %v1639 = vld [vmem:[#allocation3 + $0xf6] sm:$0x3f]
        %v1640 = vmax.f32 %v1636, %v1638
        %v1641 = vmax.f32 %v1637, %v1639
        %v1642 = vadd.f32 %v1640, %v1543
        %v1643 = vadd.f32 %v1641, %v1543
        %v1644 = vmax.f32 %v1642, 0.0
        %v1645 = vmax.f32 %v1643, 0.0
        %1646 = vst.msk [vmem:[%s200 + $0x70] sm:$0xff] %vm1140, %v1644
        %1647 = vst.msk [vmem:[%s200 + $0x78] sm:$0x3f] %vm1550, %v1645
        %v1648 = vld [vmem:[#allocation3 + $0xfc] sm:$0xff]
        %v1649 = vld [vmem:[#allocation3 + $0x104] sm:$0x3f]
        %v1650 = vld [vmem:[#allocation3 + $0x10a] sm:$0xff]
        %v1651 = vld [vmem:[#allocation3 + $0x112] sm:$0x3f]
        %v1652 = vmax.f32 %v1648, %v1650
        %v1653 = vmax.f32 %v1649, %v1651
        %v1654 = vadd.f32 %v1652, %v1543
        %v1655 = vadd.f32 %v1653, %v1543
        %v1656 = vmax.f32 %v1654, 0.0
        %v1657 = vmax.f32 %v1655, 0.0
        %1658 = vst.msk [vmem:[%s200 + $0x7e] sm:$0xff] %vm1140, %v1656
        %1659 = vst.msk [vmem:[%s200 + $0x86] sm:$0x3f] %vm1550, %v1657
        %v1660 = vld [vmem:[#allocation3 + $0x118] sm:$0xff]
        %v1661 = vld [vmem:[#allocation3 + $0x120] sm:$0x3f]
        %v1662 = vld [vmem:[#allocation3 + $0x126] sm:$0xff]
        %v1663 = vld [vmem:[#allocation3 + $0x12e] sm:$0x3f]
        %v1664 = vmax.f32 %v1660, %v1662
        %v1665 = vmax.f32 %v1661, %v1663
        %v1666 = vadd.f32 %v1664, %v1543
        %v1667 = vadd.f32 %v1665, %v1543
        %v1668 = vmax.f32 %v1666, 0.0
        %v1669 = vmax.f32 %v1667, 0.0
        %1670 = vst.msk [vmem:[%s200 + $0x8c] sm:$0xff] %vm1140, %v1668
        %1671 = vst.msk [vmem:[%s200 + $0x94] sm:$0x3f] %vm1550, %v1669
        %v1672 = vld [vmem:[#allocation3 + $0x134] sm:$0xff]
        %v1673 = vld [vmem:[#allocation3 + $0x13c] sm:$0x3f]
        %v1674 = vld [vmem:[#allocation3 + $0x142] sm:$0xff]
        %v1675 = vld [vmem:[#allocation3 + $0x14a] sm:$0x3f]
        %v1676 = vmax.f32 %v1672, %v1674
        %v1677 = vmax.f32 %v1673, %v1675
        %v1678 = vadd.f32 %v1676, %v1543
        %v1679 = vadd.f32 %v1677, %v1543
        %v1680 = vmax.f32 %v1678, 0.0
        %v1681 = vmax.f32 %v1679, 0.0
        %1682 = vst.msk [vmem:[%s200 + $0x9a] sm:$0xff] %vm1140, %v1680
        %1683 = vst.msk [vmem:[%s200 + $0xa2] sm:$0x3f] %vm1550, %v1681
        %v1684 = vld [vmem:[#allocation3 + $0x150] sm:$0xff]
        %v1685 = vld [vmem:[#allocation3 + $0x158] sm:$0x3f]
        %v1686 = vld [vmem:[#allocation3 + $0x15e] sm:$0xff]
        %v1687 = vld [vmem:[#allocation3 + $0x166] sm:$0x3f]
        %v1688 = vmax.f32 %v1684, %v1686
        %v1689 = vmax.f32 %v1685, %v1687
        %v1690 = vadd.f32 %v1688, %v1543
        %v1691 = vadd.f32 %v1689, %v1543
        %v1692 = vmax.f32 %v1690, 0.0
        %v1693 = vmax.f32 %v1691, 0.0
        %1694 = vst.msk [vmem:[%s200 + $0xa8] sm:$0xff] %vm1140, %v1692
        %1695 = vst.msk [vmem:[%s200 + $0xb0] sm:$0x3f] %vm1550, %v1693
        %v1696 = vld [vmem:[#allocation3 + $0x16c] sm:$0xff]
        %v1697 = vld [vmem:[#allocation3 + $0x174] sm:$0x3f]
        %v1698 = vld [vmem:[#allocation3 + $0x17a] sm:$0xff]
        %v1699 = vld [vmem:[#allocation3 + $0x182] sm:$0x3f]
        %v1700 = vmax.f32 %v1696, %v1698
        %v1701 = vmax.f32 %v1697, %v1699
        %v1702 = vadd.f32 %v1700, %v1543
        %v1703 = vadd.f32 %v1701, %v1543
        %v1704 = vmax.f32 %v1702, 0.0
        %v1705 = vmax.f32 %v1703, 0.0
        %1706 = vst.msk [vmem:[%s200 + $0xb6] sm:$0xff] %vm1140, %v1704
        %1707 = vst.msk [vmem:[%s200 + $0xbe] sm:$0x3f] %vm1550, %v1705
        %p1708 = scmp.lt.s32.totalorder %s16, 1
        %s1709 = scalar_select %p1708, %s16, 1
        %s1710 = smul.addr %s1709, 25
        %s1711 = smul.addr %s1710, 8
        %s1712 = scalar_lea.vmem %s3, %s1711
        // Predicated region
        $region41: #{_lambda_.3} parent=31 // pred_check
          %p1713 = pneg %p102
        $region42: #{_lambda_.3} parent=31 // pred_check_branch
          %1715 = sbr.rel (%p1713) target = $region44
        $region43: #{_lambda_.3} parent=31 // pred_region
          _
        $region44: #{_lambda_.3} parent=31 // pred_fallthru
          _
      $region32: #{_lambda_.3} parent=5 // pred_fallthru
        _
      %p1716 = scmp.le.s32.totalorder 2, %s11
      // Predicated region
      $region45: #{_lambda_.3} parent=5 // pred_check
        %p1717 = pneg %p1716
      $region46: #{_lambda_.3} parent=5 // pred_check_branch
        %1719 = sbr.rel (%p1717) target = $region48
      $region47: #{_lambda_.3} parent=5 // pred_region
        %s1720 = ssub.s32 %s11, 2
        // Predicated region
        $region49: #{_lambda_.3} parent=47 // pred_check
          %p1721 = pneg %p108
        $region50: #{_lambda_.3} parent=47 // pred_check_branch
          %1723 = sbr.rel (%p1721) target = $region52
        $region51: #{_lambda_.3} parent=47 // pred_region
          %p1724 = scmp.lt.s32.totalorder %s17, 1
          %s1725 = scalar_select %p1724, %s17, 1
          %s1726 = smul.addr %s1725, 25
          %s1727 = smul.addr %s1726, 8
          %s1728 = scalar_lea.vmem %s3, %s1727
        $region52: #{_lambda_.3} parent=47 // pred_fallthru
          _
      $region48: #{_lambda_.3} parent=5 // pred_fallthru
        _
    $region6: #{_lambda_.3} parent=1 // loop_footer
      %s15 = sadd.s32 1, %s11
    $region7: #{_lambda_.3} parent=1 // loop_footer_branch
      %10 = sbr.rel target = $region3
    $region8: #{_lambda_.3} parent=1 // loop_exit
      _
    %1729 = vsyncpa [#allocation5], 1
    %s1730 = scalar_lea.sflag [#allocation5], 1
    %1731 = vsyncpa %s1730, 1
    %1732 = vsyncpa [#allocation7], 1

// kernel: _lambda_.4
$region0: #{_lambda_.4}
  #allocation0 [shape = 'u32[]', space=smem, size = 0x4, offset = 0x4, fixed_abs, tag = 'smem constant byte address 0x4 - core index']
  #allocation1 [shape = 'u32[144,128]{1,0:T(1,128)}', space=vmem, size = 0x12000, scoped, tag = 'internal scratch']
  #allocation2 [shape = 'f32[200,64]{1,0:T(8,128)}', space=vmem, size = 0x19000, scoped, tag = 'scratch operand']
  #allocation3 [shape = 'f32[98,64]{1,0:T(8,128)}', space=vmem, size = 0xd000, scoped, tag = 'scratch operand']
  %s0 = inlined_call_operand.vmem [shape: bf16[400,800], index: 0, kind: input, shape index: {}]
  %s1 = inlined_call_operand.vmem [shape: bf16[800,64], index: 1, kind: input, shape index: {}]
  %s2 = inlined_call_operand.vmem [shape: f32[1,64], index: 2, kind: input, shape index: {}]
  %s3 = inlined_call_operand.vmem [shape: f32[2,49,64], index: 3, kind: output, shape index: {}]
  %s4 = sld [smem:[#allocation0]]
  $region45: #{_lambda_.4} parent=0
    _
  %s6 = ssub.s32 1, %s4
  %s7 = scalar_select 0, %s6, %s4
  loop: start=0, step=1, limit=4
  $region2: #{_lambda_.4} parent=0 // loop_pre_header
    _
  $region3: #{_lambda_.4} parent=0 // loop_header
    %s9 = sphi 0, %s13
    %p10 = scmp.ge.s32.totalorder %s9, 4
    %s19 = sphi 0, %s21
    %s22 = sphi 0, %s19
    %s23 = sphi 0, %s22
    %s39 = sphi 0, %s23
    %s43 = sphi 0, %s43
    %s45 = sphi 0, %s43
    %s46 = sphi 0, %s45
    %s60 = sphi 0, %s46
    %s64 = sphi 0, %s64
    %s66 = sphi 0, %s64
    %s67 = sphi 0, %s66
    %s81 = sphi 0, %s67
    %s87 = sphi 0, %s89
    %s90 = sphi 0, %s87
    %s91 = sphi 0, %s90
    %s107 = sphi 0, %s91
  $region4: #{_lambda_.4} parent=0 // loop_header_branch
    %12 = sbr.rel (%p10) target = $region8
  $region5: #{_lambda_.4} parent=0 // loop_body
    %s14 = ssub.s32 %s9, 1
    %s15 = ssub.s32 %s9, 2
    %s16 = sadd.s32 %s9, 1
    %s17 = ssub.s32 %s9, %s16
    %p18 = scmp.eq.s32.totalorder %s17, 0
    %s20 = sadd.s32 %s19, 1
    %s21 = scalar_select %p18, %s19, %s20
    %p24 = pneg %p18
    %p25 = scmp.eq.s32.totalorder %s9, 1
    %p26 = por %p24, %p25
    %p27 = scmp.ne.s32.totalorder %s19, %s22
    %p28 = scmp.eq.s32.totalorder %s9, 0
    %p29 = por %p27, %p28
    %p30 = scmp.ne.s32.totalorder %s19, %s22
    %p31 = scmp.eq.s32.totalorder %s14, 1
    %p32 = por %p30, %p31
    %p33 = scmp.ne.s32.totalorder %s22, %s23
    %p34 = scmp.eq.s32.totalorder %s14, 0
    %p35 = por %p33, %p34
    %p36 = scmp.ne.s32.totalorder %s22, %s23
    %p37 = scmp.eq.s32.totalorder %s15, 1
    %p38 = por %p36, %p37
    %p40 = scmp.ne.s32.totalorder %s23, %s39
    %p41 = scmp.eq.s32.totalorder %s15, 0
    %p42 = por %p40, %p41
    %s44 = sadd.s32 %s43, 1
    %p47 = scmp.eq.s32.totalorder %s9, 1
    %p48 = scmp.ne.s32.totalorder %s43, %s45
    %p49 = scmp.eq.s32.totalorder %s9, 0
    %p50 = por %p48, %p49
    %p51 = scmp.ne.s32.totalorder %s43, %s45
    %p52 = scmp.eq.s32.totalorder %s14, 1
    %p53 = por %p51, %p52
    %p54 = scmp.ne.s32.totalorder %s45, %s46
    %p55 = scmp.eq.s32.totalorder %s14, 0
    %p56 = por %p54, %p55
    %p57 = scmp.ne.s32.totalorder %s45, %s46
    %p58 = scmp.eq.s32.totalorder %s15, 1
    %p59 = por %p57, %p58
    %p61 = scmp.ne.s32.totalorder %s46, %s60
    %p62 = scmp.eq.s32.totalorder %s15, 0
    %p63 = por %p61, %p62
    %s65 = sadd.s32 %s64, 1
    %p68 = scmp.eq.s32.totalorder %s9, 1
    %p69 = scmp.ne.s32.totalorder %s64, %s66
    %p70 = scmp.eq.s32.totalorder %s9, 0
    %p71 = por %p69, %p70
    %p72 = scmp.ne.s32.totalorder %s64, %s66
    %p73 = scmp.eq.s32.totalorder %s14, 1
    %p74 = por %p72, %p73
    %p75 = scmp.ne.s32.totalorder %s66, %s67
    %p76 = scmp.eq.s32.totalorder %s14, 0
    %p77 = por %p75, %p76
    %p78 = scmp.ne.s32.totalorder %s66, %s67
    %p79 = scmp.eq.s32.totalorder %s15, 1
    %p80 = por %p78, %p79
    %p82 = scmp.ne.s32.totalorder %s67, %s81
    %p83 = scmp.eq.s32.totalorder %s15, 0
    %p84 = por %p82, %p83
    %s85 = ssub.s32 %s9, %s16
    %p86 = scmp.eq.s32.totalorder %s85, 0
    %s88 = sadd.s32 %s87, 1
    %s89 = scalar_select %p86, %s87, %s88
    %p92 = pneg %p86
    %p93 = scmp.eq.s32.totalorder %s9, 1
    %p94 = por %p92, %p93
    %p95 = scmp.ne.s32.totalorder %s87, %s90
    %p96 = scmp.eq.s32.totalorder %s9, 0
    %p97 = por %p95, %p96
    %p98 = scmp.ne.s32.totalorder %s87, %s90
    %p99 = scmp.eq.s32.totalorder %s14, 1
    %p100 = por %p98, %p99
    %p101 = scmp.ne.s32.totalorder %s90, %s91
    %p102 = scmp.eq.s32.totalorder %s14, 0
    %p103 = por %p101, %p102
    %p104 = scmp.ne.s32.totalorder %s90, %s91
    %p105 = scmp.eq.s32.totalorder %s15, 1
    %p106 = por %p104, %p105
    %p108 = scmp.ne.s32.totalorder %s91, %s107
    %p109 = scmp.eq.s32.totalorder %s15, 0
    %p110 = por %p108, %p109
    %p111 = scmp.le.s32.totalorder 1, %s9
    %p112 = scmp.lt.s32.totalorder %s9, 3
    %p113 = pnand %p111, %p112
    %p114 = pneg %p113
    // Predicated region
    $region9: #{_lambda_.4} parent=5 // pred_check
      _
    $region10: #{_lambda_.4} parent=5 // pred_check_branch
      %116 = sbr.rel (%p113) target = $region12
    $region11: #{_lambda_.4} parent=5 // pred_region
      %s117 = ssub.s32 %s9, 1
      // Predicated region
      $region13: #{_lambda_.4} parent=11 // pred_check
        %p118 = pneg %p56
      $region14: #{_lambda_.4} parent=11 // pred_check_branch
        %120 = sbr.rel (%p118) target = $region16
      $region15: #{_lambda_.4} parent=11 // pred_region
        _
      $region16: #{_lambda_.4} parent=11 // pred_fallthru
        _
      // Predicated region
      $region17: #{_lambda_.4} parent=11 // pred_check
        %p121 = pneg %p77
      $region18: #{_lambda_.4} parent=11 // pred_check_branch
        %123 = sbr.rel (%p121) target = $region20
      $region19: #{_lambda_.4} parent=11 // pred_region
        _
      $region20: #{_lambda_.4} parent=11 // pred_fallthru
        _
    $region12: #{_lambda_.4} parent=5 // pred_fallthru
      _
    %p124 = scmp.lt.s32.totalorder %s9, 2
    // Predicated region
    $region21: #{_lambda_.4} parent=5 // pred_check
      %p125 = pneg %p124
    $region22: #{_lambda_.4} parent=5 // pred_check_branch
      %127 = sbr.rel (%p125) target = $region24
    $region23: #{_lambda_.4} parent=5 // pred_region
      // Predicated region
      $region25: #{_lambda_.4} parent=23 // pred_check
        %p128 = pneg %p29
      $region26: #{_lambda_.4} parent=23 // pred_check_branch
        %130 = sbr.rel (%p128) target = $region28
      $region27: #{_lambda_.4} parent=23 // pred_region
        %s131 = smul.u32 25, %s9
        %p132 = scmp.lt.s32.totalorder %s131, 49
        %s133 = scalar_select %p132, %s131, 49
        %s134 = smul.addr %s133, 7
        %s135 = smul.addr %s134, 4
        %s136 = scalar_lea.vmem %s0, %s135
        %s137 = smul.u32 25, %s9
      $region28: #{_lambda_.4} parent=23 // pred_fallthru
        _
    $region24: #{_lambda_.4} parent=5 // pred_fallthru
      _
    %p138 = scmp.le.s32.totalorder 1, %s9
    %p139 = scmp.lt.s32.totalorder %s9, 3
    %p140 = pnand %p138, %p139
    %p141 = pneg %p140
    // Predicated region
    $region29: #{_lambda_.4} parent=5 // pred_check
      _
    $region30: #{_lambda_.4} parent=5 // pred_check_branch
      %143 = sbr.rel (%p140) target = $region32
    $region31: #{_lambda_.4} parent=5 // pred_region
      %s144 = ssub.s32 %s9, 1
      %s145 = smul.u32 25, %s14
      %p146 = scmp.lt.s32.totalorder %s145, 49
      %s147 = scalar_select %p146, %s145, 49
      %s148 = smul.addr %s147, 7
      %s149 = smul.addr %s148, 4
      %s150 = scalar_lea.vmem %s0, %s149
      %p151 = pneg %p35
      %p152 = pneg %p32
      %p153 = pneg %p56
      %p154 = pneg %p53
      %p155 = pneg %p77
      %p156 = pneg %p74
      %p157 = pneg %p103
      %p158 = pneg %p100
      %p159 = scmp.lt.s32.totalorder %s14, 1
      %s160 = scalar_select %p159, %s14, 1
      %s161 = smul.addr %s160, 7
      %s162 = smul.addr %s161, 8
      %s163 = scalar_lea.vmem %s3, %s162
      %s164 = smul.u32 25, %s14
      %p165 = scmp.lt.s32.totalorder %s164, 49
      %s166 = scalar_select %p165, %s164, 49
      %s167 = smul.addr %s166, 7
      %s168 = smul.addr %s167, 4
      %s169 = scalar_lea.vmem %s0, %s168
      %s170 = smul.u32 25, %s14
      %p171 = scmp.lt.s32.totalorder %s14, 1
      %s172 = scalar_select %p171, %s14, 1
      %s173 = smul.addr %s172, 7
      %s174 = smul.addr %s173, 8
      %s175 = scalar_lea.vmem %s3, %s174
      %v177 = vld [vmem:[%s169] sm:$0xff]
      %v178 = vld [vmem:[%s169 + $0x8] sm:$0xff]
      %v179 = vld [vmem:[%s169 + $0x10] sm:$0xff]
      %v180 = vld [vmem:[%s169 + $0x18] sm:$0xf]
      %v181 = vld [vmem:[%s169 + $0x1c] sm:$0xff]
      %v182 = vld [vmem:[%s169 + $0x24] sm:$0xff]
      %v183 = vld [vmem:[%s169 + $0x2c] sm:$0xff]
      %v184 = vld [vmem:[%s169 + $0x34] sm:$0xf]
      %v185 = vld [vmem:[%s169 + $0x38] sm:$0xff]
      %v186 = vld [vmem:[%s169 + $0x40] sm:$0xff]
      %v187 = vld [vmem:[%s169 + $0x48] sm:$0xff]
      %v188 = vld [vmem:[%s169 + $0x50] sm:$0xf]
      %v189 = vld [vmem:[%s169 + $0x54] sm:$0xff]
      %v190 = vld [vmem:[%s169 + $0x5c] sm:$0xff]
      %v191 = vld [vmem:[%s169 + $0x64] sm:$0xff]
      %v192 = vld [vmem:[%s169 + $0x6c] sm:$0xf]
      %v193 = vld [vmem:[%s169 + $0x70] sm:$0xff]
      %v194 = vld [vmem:[%s169 + $0x78] sm:$0xff]
      %v195 = vld [vmem:[%s169 + $0x80] sm:$0xff]
      %v196 = vld [vmem:[%s169 + $0x88] sm:$0xf]
      %v197 = vld [vmem:[%s169 + $0x8c] sm:$0xff]
      %v198 = vld [vmem:[%s169 + $0x94] sm:$0xff]
      %v199 = vld [vmem:[%s169 + $0x9c] sm:$0xff]
      %v200 = vld [vmem:[%s169 + $0xa4] sm:$0xf]
      %v201 = vld [vmem:[%s169 + $0xa8] sm:$0xff]
      %v202 = vld [vmem:[%s169 + $0xb0] sm:$0xff]
      %v203 = vld [vmem:[%s169 + $0xb8] sm:$0xff]
      %v204 = vld [vmem:[%s169 + $0xc0] sm:$0xf]
      %v205 = vld [vmem:[%s169 + $0xc4] sm:$0xff]
      %v206 = vld [vmem:[%s169 + $0xcc] sm:$0xff]
      %v207 = vld [vmem:[%s169 + $0xd4] sm:$0xff]
      %v208 = vld [vmem:[%s169 + $0xdc] sm:$0xf]
      %v209 = vld [vmem:[%s169 + $0xe0] sm:$0xff]
      %v210 = vld [vmem:[%s169 + $0xe8] sm:$0xff]
      %v211 = vld [vmem:[%s169 + $0xf0] sm:$0xff]
      %v212 = vld [vmem:[%s169 + $0xf8] sm:$0xf]
      %v213 = vld [vmem:[%s169 + $0xfc] sm:$0xff]
      %v214 = vld [vmem:[%s169 + $0x104] sm:$0xff]
      %v215 = vld [vmem:[%s169 + $0x10c] sm:$0xff]
      %v216 = vld [vmem:[%s169 + $0x114] sm:$0xf]
      %v217 = vld [vmem:[%s169 + $0x118] sm:$0xff]
      %v218 = vld [vmem:[%s169 + $0x120] sm:$0xff]
      %v219 = vld [vmem:[%s169 + $0x128] sm:$0xff]
      %v220 = vld [vmem:[%s169 + $0x130] sm:$0xf]
      %v221 = vld [vmem:[%s169 + $0x134] sm:$0xff]
      %v222 = vld [vmem:[%s169 + $0x13c] sm:$0xff]
      %v223 = vld [vmem:[%s169 + $0x144] sm:$0xff]
      %v224 = vld [vmem:[%s169 + $0x14c] sm:$0xf]
      %v225 = vld [vmem:[%s169 + $0x150] sm:$0xff]
      %v226 = vld [vmem:[%s169 + $0x158] sm:$0xff]
      %v227 = vld [vmem:[%s169 + $0x160] sm:$0xff]
      %v228 = vld [vmem:[%s169 + $0x168] sm:$0xf]
      %v229 = vld [vmem:[%s169 + $0x16c] sm:$0xff]
      %v230 = vld [vmem:[%s169 + $0x174] sm:$0xff]
      %v231 = vld [vmem:[%s169 + $0x17c] sm:$0xff]
      %v232 = vld [vmem:[%s169 + $0x184] sm:$0xf]
      %v233 = vld [vmem:[%s169 + $0x188] sm:$0xff]
      %v234 = vld [vmem:[%s169 + $0x190] sm:$0xff]
      %v235 = vld [vmem:[%s169 + $0x198] sm:$0xff]
      %v236 = vld [vmem:[%s169 + $0x1a0] sm:$0xf]
      %v237 = vld [vmem:[%s169 + $0x1a4] sm:$0xff]
      %v238 = vld [vmem:[%s169 + $0x1ac] sm:$0xff]
      %v239 = vld [vmem:[%s169 + $0x1b4] sm:$0xff]
      %v240 = vld [vmem:[%s169 + $0x1bc] sm:$0xf]
      %v241 = vld [vmem:[%s169 + $0x1c0] sm:$0xff]
      %v242 = vld [vmem:[%s169 + $0x1c8] sm:$0xff]
      %v243 = vld [vmem:[%s169 + $0x1d0] sm:$0xff]
      %v244 = vld [vmem:[%s169 + $0x1d8] sm:$0xf]
      %v245 = vld [vmem:[%s169 + $0x1dc] sm:$0xff]
      %v246 = vld [vmem:[%s169 + $0x1e4] sm:$0xff]
      %v247 = vld [vmem:[%s169 + $0x1ec] sm:$0xff]
      %v248 = vld [vmem:[%s169 + $0x1f4] sm:$0xf]
      %v249 = vld [vmem:[%s169 + $0x1f8] sm:$0xff]
      %v250 = vld [vmem:[%s169 + $0x200] sm:$0xff]
      %v251 = vld [vmem:[%s169 + $0x208] sm:$0xff]
      %v252 = vld [vmem:[%s169 + $0x210] sm:$0xf]
      %v253 = vld [vmem:[%s169 + $0x214] sm:$0xff]
      %v254 = vld [vmem:[%s169 + $0x21c] sm:$0xff]
      %v255 = vld [vmem:[%s169 + $0x224] sm:$0xff]
      %v256 = vld [vmem:[%s169 + $0x22c] sm:$0xf]
      %v257 = vld [vmem:[%s169 + $0x230] sm:$0xff]
      %v258 = vld [vmem:[%s169 + $0x238] sm:$0xff]
      %v259 = vld [vmem:[%s169 + $0x240] sm:$0xff]
      %v260 = vld [vmem:[%s169 + $0x248] sm:$0xf]
      %v261 = vld [vmem:[%s169 + $0x24c] sm:$0xff]
      %v262 = vld [vmem:[%s169 + $0x254] sm:$0xff]
      %v263 = vld [vmem:[%s169 + $0x25c] sm:$0xff]
      %v264 = vld [vmem:[%s169 + $0x264] sm:$0xf]
      %v265 = vld [vmem:[%s169 + $0x268] sm:$0xff]
      %v266 = vld [vmem:[%s169 + $0x270] sm:$0xff]
      %v267 = vld [vmem:[%s169 + $0x278] sm:$0xff]
      %v268 = vld [vmem:[%s169 + $0x280] sm:$0xf]
      %v269 = vld [vmem:[%s169 + $0x284] sm:$0xff]
      %v270 = vld [vmem:[%s169 + $0x28c] sm:$0xff]
      %v271 = vld [vmem:[%s169 + $0x294] sm:$0xff]
      %v272 = vld [vmem:[%s169 + $0x29c] sm:$0xf]
      %v273 = vld [vmem:[%s169 + $0x2a0] sm:$0xff]
      %v274 = vld [vmem:[%s169 + $0x2a8] sm:$0xff]
      %v275 = vld [vmem:[%s169 + $0x2b0] sm:$0xff]
      %v276 = vld [vmem:[%s169 + $0x2b8] sm:$0xf]
      %v277 = vld [vmem:[%s1] sm:$0xf]
      %v278 = vld [vmem:[%s1 + $0x4] sm:$0xf]
      %v279 = vld [vmem:[%s1 + $0x8] sm:$0xf]
      %v280 = vld [vmem:[%s1 + $0xc] sm:$0xf]
      %v281 = vld [vmem:[%s1 + $0x10] sm:$0xf]
      %v282 = vld [vmem:[%s1 + $0x14] sm:$0xf]
      %v283 = vld [vmem:[%s1 + $0x18] sm:$0xf]
      %v284 = vld [vmem:[%s1 + $0x1c] sm:$0xf]
      %v285 = vld [vmem:[%s1 + $0x20] sm:$0xf]
      %v286 = vld [vmem:[%s1 + $0x24] sm:$0xf]
      %v287 = vld [vmem:[%s1 + $0x28] sm:$0xf]
      %v288 = vld [vmem:[%s1 + $0x2c] sm:$0xf]
      %v289 = vld [vmem:[%s1 + $0x30] sm:$0xf]
      %v290 = vld [vmem:[%s1 + $0x34] sm:$0xf]
      %v291 = vld [vmem:[%s1 + $0x38] sm:$0xf]
      %v292 = vld [vmem:[%s1 + $0x3c] sm:$0xf]
      %v293 = vld [vmem:[%s1 + $0x40] sm:$0xf]
      %v294 = vld [vmem:[%s1 + $0x44] sm:$0xf]
      %v295 = vld [vmem:[%s1 + $0x48] sm:$0xf]
      %v296 = vld [vmem:[%s1 + $0x4c] sm:$0xf]
      %v297 = vld [vmem:[%s1 + $0x50] sm:$0xf]
      %v298 = vld [vmem:[%s1 + $0x54] sm:$0xf]
      %v299 = vld [vmem:[%s1 + $0x58] sm:$0xf]
      %v300 = vld [vmem:[%s1 + $0x5c] sm:$0xf]
      %v301 = vld [vmem:[%s1 + $0x60] sm:$0xf]
      %v302 = vld [vmem:[%s1 + $0x64] sm:$0xf]
      %v303 = vld [vmem:[%s1 + $0x68] sm:$0xf]
      %v304 = vld [vmem:[%s1 + $0x6c] sm:$0xf]
      %v305 = vld [vmem:[%s1 + $0x70] sm:$0xf]
      %v306 = vld [vmem:[%s1 + $0x74] sm:$0xf]
      %v307 = vld [vmem:[%s1 + $0x78] sm:$0xf]
      %v308 = vld [vmem:[%s1 + $0x7c] sm:$0xf]
      %v309 = vld [vmem:[%s1 + $0x80] sm:$0xf]
      %v310 = vld [vmem:[%s1 + $0x84] sm:$0xf]
      %v311 = vld [vmem:[%s1 + $0x88] sm:$0xf]
      %v312 = vld [vmem:[%s1 + $0x8c] sm:$0xf]
      %v313 = vld [vmem:[%s1 + $0x90] sm:$0xf]
      %v314 = vld [vmem:[%s1 + $0x94] sm:$0xf]
      %v315 = vld [vmem:[%s1 + $0x98] sm:$0xf]
      %v316 = vld [vmem:[%s1 + $0x9c] sm:$0xf]
      %v317 = vld [vmem:[%s1 + $0xa0] sm:$0xf]
      %v318 = vld [vmem:[%s1 + $0xa4] sm:$0xf]
      %v319 = vld [vmem:[%s1 + $0xa8] sm:$0xf]
      %v320 = vld [vmem:[%s1 + $0xac] sm:$0xf]
      %v321 = vld [vmem:[%s1 + $0xb0] sm:$0xf]
      %v322 = vld [vmem:[%s1 + $0xb4] sm:$0xf]
      %v323 = vld [vmem:[%s1 + $0xb8] sm:$0xf]
      %v324 = vld [vmem:[%s1 + $0xbc] sm:$0xf]
      %v325 = vld [vmem:[%s1 + $0xc0] sm:$0xf]
      %v326 = vld [vmem:[%s1 + $0xc4] sm:$0xf]
      %v327 = vld [vmem:[%s1 + $0xc8] sm:$0xf]
      %v328 = vld [vmem:[%s1 + $0xcc] sm:$0xf]
      %v329 = vld [vmem:[%s1 + $0xd0] sm:$0xf]
      %v330 = vld [vmem:[%s1 + $0xd4] sm:$0xf]
      %v331 = vld [vmem:[%s1 + $0xd8] sm:$0xf]
      %v332 = vld [vmem:[%s1 + $0xdc] sm:$0xf]
      %v333 = vld [vmem:[%s1 + $0xe0] sm:$0xf]
      %v334 = vld [vmem:[%s1 + $0xe4] sm:$0xf]
      %v335 = vld [vmem:[%s1 + $0xe8] sm:$0xf]
      %v336 = vld [vmem:[%s1 + $0xec] sm:$0xf]
      %v337 = vld [vmem:[%s1 + $0xf0] sm:$0xf]
      %v338 = vld [vmem:[%s1 + $0xf4] sm:$0xf]
      %v339 = vld [vmem:[%s1 + $0xf8] sm:$0xf]
      %v340 = vld [vmem:[%s1 + $0xfc] sm:$0xf]
      %v341 = vld [vmem:[%s1 + $0x100] sm:$0xf]
      %v342 = vld [vmem:[%s1 + $0x104] sm:$0xf]
      %v343 = vld [vmem:[%s1 + $0x108] sm:$0xf]
      %v344 = vld [vmem:[%s1 + $0x10c] sm:$0xf]
      %v345 = vld [vmem:[%s1 + $0x110] sm:$0xf]
      %v346 = vld [vmem:[%s1 + $0x114] sm:$0xf]
      %v347 = vld [vmem:[%s1 + $0x118] sm:$0xf]
      %v348 = vld [vmem:[%s1 + $0x11c] sm:$0xf]
      %v349 = vld [vmem:[%s1 + $0x120] sm:$0xf]
      %v350 = vld [vmem:[%s1 + $0x124] sm:$0xf]
      %v351 = vld [vmem:[%s1 + $0x128] sm:$0xf]
      %v352 = vld [vmem:[%s1 + $0x12c] sm:$0xf]
      %v353 = vld [vmem:[%s1 + $0x130] sm:$0xf]
      %v354 = vld [vmem:[%s1 + $0x134] sm:$0xf]
      %v355 = vld [vmem:[%s1 + $0x138] sm:$0xf]
      %v356 = vld [vmem:[%s1 + $0x13c] sm:$0xf]
      %v357 = vld [vmem:[%s1 + $0x140] sm:$0xf]
      %v358 = vld [vmem:[%s1 + $0x144] sm:$0xf]
      %v359 = vld [vmem:[%s1 + $0x148] sm:$0xf]
      %v360 = vld [vmem:[%s1 + $0x14c] sm:$0xf]
      %v361 = vld [vmem:[%s1 + $0x150] sm:$0xf]
      %v362 = vld [vmem:[%s1 + $0x154] sm:$0xf]
      %v363 = vld [vmem:[%s1 + $0x158] sm:$0xf]
      %v364 = vld [vmem:[%s1 + $0x15c] sm:$0xf]
      %v365 = vld [vmem:[%s1 + $0x160] sm:$0xf]
      %v366 = vld [vmem:[%s1 + $0x164] sm:$0xf]
      %v367 = vld [vmem:[%s1 + $0x168] sm:$0xf]
      %v368 = vld [vmem:[%s1 + $0x16c] sm:$0xf]
      %v369 = vld [vmem:[%s1 + $0x170] sm:$0xf]
      %v370 = vld [vmem:[%s1 + $0x174] sm:$0xf]
      %v371 = vld [vmem:[%s1 + $0x178] sm:$0xf]
      %v372 = vld [vmem:[%s1 + $0x17c] sm:$0xf]
      %v373 = vld [vmem:[%s1 + $0x180] sm:$0xf]
      %v374 = vld [vmem:[%s1 + $0x184] sm:$0xf]
      %v375 = vld [vmem:[%s1 + $0x188] sm:$0xf]
      %v376 = vld [vmem:[%s1 + $0x18c] sm:$0xf]
      %v477 = vunpack.c.l.b16 %v177
      %v478 = vunpack.c.h.b16 %v177
      %v479 = vunpack.c.l.b16 %v178
      %v480 = vunpack.c.h.b16 %v178
      %v481 = vunpack.c.l.b16 %v179
      %v482 = vunpack.c.h.b16 %v179
      %v483 = vunpack.c.l.b16 %v180
      %v484 = vunpack.c.l.b16 %v181
      %v485 = vunpack.c.h.b16 %v181
      %v486 = vunpack.c.l.b16 %v182
      %v487 = vunpack.c.h.b16 %v182
      %v488 = vunpack.c.l.b16 %v183
      %v489 = vunpack.c.h.b16 %v183
      %v490 = vunpack.c.l.b16 %v184
      %v491 = vunpack.c.l.b16 %v185
      %v492 = vunpack.c.h.b16 %v185
      %v493 = vunpack.c.l.b16 %v186
      %v494 = vunpack.c.h.b16 %v186
      %v495 = vunpack.c.l.b16 %v187
      %v496 = vunpack.c.h.b16 %v187
      %v497 = vunpack.c.l.b16 %v188
      %v498 = vunpack.c.l.b16 %v189
      %v499 = vunpack.c.h.b16 %v189
      %v500 = vunpack.c.l.b16 %v190
      %v501 = vunpack.c.h.b16 %v190
      %v502 = vunpack.c.l.b16 %v191
      %v503 = vunpack.c.h.b16 %v191
      %v504 = vunpack.c.l.b16 %v192
      %v505 = vunpack.c.l.b16 %v193
      %v506 = vunpack.c.h.b16 %v193
      %v507 = vunpack.c.l.b16 %v194
      %v508 = vunpack.c.h.b16 %v194
      %v509 = vunpack.c.l.b16 %v195
      %v510 = vunpack.c.h.b16 %v195
      %v511 = vunpack.c.l.b16 %v196
      %v512 = vunpack.c.l.b16 %v197
      %v513 = vunpack.c.h.b16 %v197
      %v514 = vunpack.c.l.b16 %v198
      %v515 = vunpack.c.h.b16 %v198
      %v516 = vunpack.c.l.b16 %v199
      %v517 = vunpack.c.h.b16 %v199
      %v518 = vunpack.c.l.b16 %v200
      %v519 = vunpack.c.l.b16 %v201
      %v520 = vunpack.c.h.b16 %v201
      %v521 = vunpack.c.l.b16 %v202
      %v522 = vunpack.c.h.b16 %v202
      %v523 = vunpack.c.l.b16 %v203
      %v524 = vunpack.c.h.b16 %v203
      %v525 = vunpack.c.l.b16 %v204
      %v526 = vunpack.c.l.b16 %v205
      %v527 = vunpack.c.h.b16 %v205
      %v528 = vunpack.c.l.b16 %v206
      %v529 = vunpack.c.h.b16 %v206
      %v530 = vunpack.c.l.b16 %v207
      %v531 = vunpack.c.h.b16 %v207
      %v532 = vunpack.c.l.b16 %v208
      %v533 = vunpack.c.l.b16 %v209
      %v534 = vunpack.c.h.b16 %v209
      %v535 = vunpack.c.l.b16 %v210
      %v536 = vunpack.c.h.b16 %v210
      %v537 = vunpack.c.l.b16 %v211
      %v538 = vunpack.c.h.b16 %v211
      %v539 = vunpack.c.l.b16 %v212
      %v540 = vunpack.c.l.b16 %v213
      %v541 = vunpack.c.h.b16 %v213
      %v542 = vunpack.c.l.b16 %v214
      %v543 = vunpack.c.h.b16 %v214
      %v544 = vunpack.c.l.b16 %v215
      %v545 = vunpack.c.h.b16 %v215
      %v546 = vunpack.c.l.b16 %v216
      %v547 = vunpack.c.l.b16 %v217
      %v548 = vunpack.c.h.b16 %v217
      %v549 = vunpack.c.l.b16 %v218
      %v550 = vunpack.c.h.b16 %v218
      %v551 = vunpack.c.l.b16 %v219
      %v552 = vunpack.c.h.b16 %v219
      %v553 = vunpack.c.l.b16 %v220
      %v554 = vunpack.c.l.b16 %v221
      %v555 = vunpack.c.h.b16 %v221
      %v556 = vunpack.c.l.b16 %v222
      %v557 = vunpack.c.h.b16 %v222
      %v558 = vunpack.c.l.b16 %v223
      %v559 = vunpack.c.h.b16 %v223
      %v560 = vunpack.c.l.b16 %v224
      %v561 = vunpack.c.l.b16 %v225
      %v562 = vunpack.c.h.b16 %v225
      %v563 = vunpack.c.l.b16 %v226
      %v564 = vunpack.c.h.b16 %v226
      %v565 = vunpack.c.l.b16 %v227
      %v566 = vunpack.c.h.b16 %v227
      %v567 = vunpack.c.l.b16 %v228
      %v568 = vunpack.c.l.b16 %v229
      %v569 = vunpack.c.h.b16 %v229
      %v570 = vunpack.c.l.b16 %v230
      %v571 = vunpack.c.h.b16 %v230
      %v572 = vunpack.c.l.b16 %v231
      %v573 = vunpack.c.h.b16 %v231
      %v574 = vunpack.c.l.b16 %v232
      %v575 = vunpack.c.l.b16 %v233
      %v576 = vunpack.c.h.b16 %v233
      %v577 = vunpack.c.l.b16 %v234
      %v578 = vunpack.c.h.b16 %v234
      %v579 = vunpack.c.l.b16 %v235
      %v580 = vunpack.c.h.b16 %v235
      %v581 = vunpack.c.l.b16 %v236
      %v582 = vunpack.c.l.b16 %v237
      %v583 = vunpack.c.h.b16 %v237
      %v584 = vunpack.c.l.b16 %v238
      %v585 = vunpack.c.h.b16 %v238
      %v586 = vunpack.c.l.b16 %v239
      %v587 = vunpack.c.h.b16 %v239
      %v588 = vunpack.c.l.b16 %v240
      %v589 = vunpack.c.l.b16 %v241
      %v590 = vunpack.c.h.b16 %v241
      %v591 = vunpack.c.l.b16 %v242
      %v592 = vunpack.c.h.b16 %v242
      %v593 = vunpack.c.l.b16 %v243
      %v594 = vunpack.c.h.b16 %v243
      %v595 = vunpack.c.l.b16 %v244
      %v596 = vunpack.c.l.b16 %v245
      %v597 = vunpack.c.h.b16 %v245
      %v598 = vunpack.c.l.b16 %v246
      %v599 = vunpack.c.h.b16 %v246
      %v600 = vunpack.c.l.b16 %v247
      %v601 = vunpack.c.h.b16 %v247
      %v602 = vunpack.c.l.b16 %v248
      %v603 = vunpack.c.l.b16 %v249
      %v604 = vunpack.c.h.b16 %v249
      %v605 = vunpack.c.l.b16 %v250
      %v606 = vunpack.c.h.b16 %v250
      %v607 = vunpack.c.l.b16 %v251
      %v608 = vunpack.c.h.b16 %v251
      %v609 = vunpack.c.l.b16 %v252
      %v610 = vunpack.c.l.b16 %v253
      %v611 = vunpack.c.h.b16 %v253
      %v612 = vunpack.c.l.b16 %v254
      %v613 = vunpack.c.h.b16 %v254
      %v614 = vunpack.c.l.b16 %v255
      %v615 = vunpack.c.h.b16 %v255
      %v616 = vunpack.c.l.b16 %v256
      %v617 = vunpack.c.l.b16 %v257
      %v618 = vunpack.c.h.b16 %v257
      %v619 = vunpack.c.l.b16 %v258
      %v620 = vunpack.c.h.b16 %v258
      %v621 = vunpack.c.l.b16 %v259
      %v622 = vunpack.c.h.b16 %v259
      %v623 = vunpack.c.l.b16 %v260
      %v624 = vunpack.c.l.b16 %v261
      %v625 = vunpack.c.h.b16 %v261
      %v626 = vunpack.c.l.b16 %v262
      %v627 = vunpack.c.h.b16 %v262
      %v628 = vunpack.c.l.b16 %v263
      %v629 = vunpack.c.h.b16 %v263
      %v630 = vunpack.c.l.b16 %v264
      %v631 = vunpack.c.l.b16 %v265
      %v632 = vunpack.c.h.b16 %v265
      %v633 = vunpack.c.l.b16 %v266
      %v634 = vunpack.c.h.b16 %v266
      %v635 = vunpack.c.l.b16 %v267
      %v636 = vunpack.c.h.b16 %v267
      %v637 = vunpack.c.l.b16 %v268
      %v638 = vunpack.c.l.b16 %v269
      %v639 = vunpack.c.h.b16 %v269
      %v640 = vunpack.c.l.b16 %v270
      %v641 = vunpack.c.h.b16 %v270
      %v642 = vunpack.c.l.b16 %v271
      %v643 = vunpack.c.h.b16 %v271
      %v644 = vunpack.c.l.b16 %v272
      %v645 = vunpack.c.l.b16 %v273
      %v646 = vunpack.c.h.b16 %v273
      %v647 = vunpack.c.l.b16 %v274
      %v648 = vunpack.c.h.b16 %v274
      %v649 = vunpack.c.l.b16 %v275
      %v650 = vunpack.c.h.b16 %v275
      %v651 = vunpack.c.l.b16 %v276
      %v652 = vpack.c.b16 %v484, %v477
      %v653 = vpack.c.b16 %v485, %v478
      %v654 = vpack.c.b16 %v486, %v479
      %v655 = vpack.c.b16 %v487, %v480
      %v656 = vpack.c.b16 %v488, %v481
      %v657 = vpack.c.b16 %v489, %v482
      %v658 = vpack.c.b16 %v490, %v483
      %v659 = vpack.c.b16 %v498, %v491
      %v660 = vpack.c.b16 %v499, %v492
      %v661 = vpack.c.b16 %v500, %v493
      %v662 = vpack.c.b16 %v501, %v494
      %v663 = vpack.c.b16 %v502, %v495
      %v664 = vpack.c.b16 %v503, %v496
      %v665 = vpack.c.b16 %v504, %v497
      %v666 = vpack.c.b16 %v512, %v505
      %v667 = vpack.c.b16 %v513, %v506
      %v668 = vpack.c.b16 %v514, %v507
      %v669 = vpack.c.b16 %v515, %v508
      %v670 = vpack.c.b16 %v516, %v509
      %v671 = vpack.c.b16 %v517, %v510
      %v672 = vpack.c.b16 %v518, %v511
      %v673 = vpack.c.b16 %v526, %v519
      %v674 = vpack.c.b16 %v527, %v520
      %v675 = vpack.c.b16 %v528, %v521
      %v676 = vpack.c.b16 %v529, %v522
      %v677 = vpack.c.b16 %v530, %v523
      %v678 = vpack.c.b16 %v531, %v524
      %v679 = vpack.c.b16 %v532, %v525
      %v680 = vpack.c.b16 %v540, %v533
      %v681 = vpack.c.b16 %v541, %v534
      %v682 = vpack.c.b16 %v542, %v535
      %v683 = vpack.c.b16 %v543, %v536
      %v684 = vpack.c.b16 %v544, %v537
      %v685 = vpack.c.b16 %v545, %v538
      %v686 = vpack.c.b16 %v546, %v539
      %v687 = vpack.c.b16 %v554, %v547
      %v688 = vpack.c.b16 %v555, %v548
      %v689 = vpack.c.b16 %v556, %v549
      %v690 = vpack.c.b16 %v557, %v550
      %v691 = vpack.c.b16 %v558, %v551
      %v692 = vpack.c.b16 %v559, %v552
      %v693 = vpack.c.b16 %v560, %v553
      %v694 = vpack.c.b16 %v568, %v561
      %v695 = vpack.c.b16 %v569, %v562
      %v696 = vpack.c.b16 %v570, %v563
      %v697 = vpack.c.b16 %v571, %v564
      %v698 = vpack.c.b16 %v572, %v565
      %v699 = vpack.c.b16 %v573, %v566
      %v700 = vpack.c.b16 %v574, %v567
      %v701 = vpack.c.b16 %v582, %v575
      %v702 = vpack.c.b16 %v583, %v576
      %v703 = vpack.c.b16 %v584, %v577
      %v704 = vpack.c.b16 %v585, %v578
      %v705 = vpack.c.b16 %v586, %v579
      %v706 = vpack.c.b16 %v587, %v580
      %v707 = vpack.c.b16 %v588, %v581
      %v708 = vpack.c.b16 %v596, %v589
      %v709 = vpack.c.b16 %v597, %v590
      %v710 = vpack.c.b16 %v598, %v591
      %v711 = vpack.c.b16 %v599, %v592
      %v712 = vpack.c.b16 %v600, %v593
      %v713 = vpack.c.b16 %v601, %v594
      %v714 = vpack.c.b16 %v602, %v595
      %v715 = vpack.c.b16 %v610, %v603
      %v716 = vpack.c.b16 %v611, %v604
      %v717 = vpack.c.b16 %v612, %v605
      %v718 = vpack.c.b16 %v613, %v606
      %v719 = vpack.c.b16 %v614, %v607
      %v720 = vpack.c.b16 %v615, %v608
      %v721 = vpack.c.b16 %v616, %v609
      %v722 = vpack.c.b16 %v624, %v617
      %v723 = vpack.c.b16 %v625, %v618
      %v724 = vpack.c.b16 %v626, %v619
      %v725 = vpack.c.b16 %v627, %v620
      %v726 = vpack.c.b16 %v628, %v621
      %v727 = vpack.c.b16 %v629, %v622
      %v728 = vpack.c.b16 %v630, %v623
      %v729 = vpack.c.b16 %v638, %v631
      %v730 = vpack.c.b16 %v639, %v632
      %v731 = vpack.c.b16 %v640, %v633
      %v732 = vpack.c.b16 %v641, %v634
      %v733 = vpack.c.b16 %v642, %v635
      %v734 = vpack.c.b16 %v643, %v636
      %v735 = vpack.c.b16 %v644, %v637
      %v736 = vpack.c.b16 %v645, %v645
      %v737 = vpack.c.b16 %v646, %v646
      %v738 = vpack.c.b16 %v647, %v647
      %v739 = vpack.c.b16 %v648, %v648
      %v740 = vpack.c.b16 %v649, %v649
      %v741 = vpack.c.b16 %v650, %v650
      %v742 = vpack.c.b16 %v651, %v651
      %v921 = vunpack.c.l.b16 %v277
      %v922 = vunpack.c.l.b16 %v278
      %v923 = vunpack.c.l.b16 %v279
      %v924 = vunpack.c.l.b16 %v280
      %v925 = vunpack.c.l.b16 %v281
      %v926 = vunpack.c.l.b16 %v282
      %v927 = vunpack.c.l.b16 %v283
      %v928 = vunpack.c.l.b16 %v284
      %v929 = vunpack.c.l.b16 %v285
      %v930 = vunpack.c.l.b16 %v286
      %v931 = vunpack.c.l.b16 %v287
      %v932 = vunpack.c.l.b16 %v288
      %v933 = vunpack.c.l.b16 %v289
      %v934 = vunpack.c.l.b16 %v290
      %v935 = vunpack.c.l.b16 %v291
      %v936 = vunpack.c.l.b16 %v292
      %v937 = vunpack.c.l.b16 %v293
      %v938 = vunpack.c.l.b16 %v294
      %v939 = vunpack.c.l.b16 %v295
      %v940 = vunpack.c.l.b16 %v296
      %v941 = vunpack.c.l.b16 %v297
      %v942 = vunpack.c.l.b16 %v298
      %v943 = vunpack.c.l.b16 %v299
      %v944 = vunpack.c.l.b16 %v300
      %v945 = vunpack.c.l.b16 %v301
      %v946 = vunpack.c.l.b16 %v302
      %v947 = vunpack.c.l.b16 %v303
      %v948 = vunpack.c.l.b16 %v304
      %v949 = vunpack.c.l.b16 %v305
      %v950 = vunpack.c.l.b16 %v306
      %v951 = vunpack.c.l.b16 %v307
      %v952 = vunpack.c.l.b16 %v308
      %v953 = vunpack.c.l.b16 %v309
      %v954 = vunpack.c.l.b16 %v310
      %v955 = vunpack.c.l.b16 %v311
      %v956 = vunpack.c.l.b16 %v312
      %v957 = vunpack.c.l.b16 %v313
      %v958 = vunpack.c.l.b16 %v314
      %v959 = vunpack.c.l.b16 %v315
      %v960 = vunpack.c.l.b16 %v316
      %v961 = vunpack.c.l.b16 %v317
      %v962 = vunpack.c.l.b16 %v318
      %v963 = vunpack.c.l.b16 %v319
      %v964 = vunpack.c.l.b16 %v320
      %v965 = vunpack.c.l.b16 %v321
      %v966 = vunpack.c.l.b16 %v322
      %v967 = vunpack.c.l.b16 %v323
      %v968 = vunpack.c.l.b16 %v324
      %v969 = vunpack.c.l.b16 %v325
      %v970 = vunpack.c.l.b16 %v326
      %v971 = vunpack.c.l.b16 %v327
      %v972 = vunpack.c.l.b16 %v328
      %v973 = vunpack.c.l.b16 %v329
      %v974 = vunpack.c.l.b16 %v330
      %v975 = vunpack.c.l.b16 %v331
      %v976 = vunpack.c.l.b16 %v332
      %v977 = vunpack.c.l.b16 %v333
      %v978 = vunpack.c.l.b16 %v334
      %v979 = vunpack.c.l.b16 %v335
      %v980 = vunpack.c.l.b16 %v336
      %v981 = vunpack.c.l.b16 %v337
      %v982 = vunpack.c.l.b16 %v338
      %v983 = vunpack.c.l.b16 %v339
      %v984 = vunpack.c.l.b16 %v340
      %v985 = vunpack.c.l.b16 %v341
      %v986 = vunpack.c.l.b16 %v342
      %v987 = vunpack.c.l.b16 %v343
      %v988 = vunpack.c.l.b16 %v344
      %v989 = vunpack.c.l.b16 %v345
      %v990 = vunpack.c.l.b16 %v346
      %v991 = vunpack.c.l.b16 %v347
      %v992 = vunpack.c.l.b16 %v348
      %v993 = vunpack.c.l.b16 %v349
      %v994 = vunpack.c.l.b16 %v350
      %v995 = vunpack.c.l.b16 %v351
      %v996 = vunpack.c.l.b16 %v352
      %v997 = vunpack.c.l.b16 %v353
      %v998 = vunpack.c.l.b16 %v354
      %v999 = vunpack.c.l.b16 %v355
      %v1000 = vunpack.c.l.b16 %v356
      %v1001 = vunpack.c.l.b16 %v357
      %v1002 = vunpack.c.l.b16 %v358
      %v1003 = vunpack.c.l.b16 %v359
      %v1004 = vunpack.c.l.b16 %v360
      %v1005 = vunpack.c.l.b16 %v361
      %v1006 = vunpack.c.l.b16 %v362
      %v1007 = vunpack.c.l.b16 %v363
      %v1008 = vunpack.c.l.b16 %v364
      %v1009 = vunpack.c.l.b16 %v365
      %v1010 = vunpack.c.l.b16 %v366
      %v1011 = vunpack.c.l.b16 %v367
      %v1012 = vunpack.c.l.b16 %v368
      %v1013 = vunpack.c.l.b16 %v369
      %v1014 = vunpack.c.l.b16 %v370
      %v1015 = vunpack.c.l.b16 %v371
      %v1016 = vunpack.c.l.b16 %v372
      %v1017 = vunpack.c.l.b16 %v373
      %v1018 = vunpack.c.l.b16 %v374
      %v1019 = vunpack.c.l.b16 %v375
      %v1020 = vunpack.c.l.b16 %v376
      %v1021 = vpack.c.b16 %v922, %v921
      %v1022 = vpack.c.b16 %v924, %v923
      %v1023 = vpack.c.b16 %v926, %v925
      %v1024 = vpack.c.b16 %v928, %v927
      %v1025 = vpack.c.b16 %v930, %v929
      %v1026 = vpack.c.b16 %v932, %v931
      %v1027 = vpack.c.b16 %v934, %v933
      %v1028 = vpack.c.b16 %v936, %v935
      %v1029 = vpack.c.b16 %v938, %v937
      %v1030 = vpack.c.b16 %v940, %v939
      %v1031 = vpack.c.b16 %v942, %v941
      %v1032 = vpack.c.b16 %v944, %v943
      %v1033 = vpack.c.b16 %v946, %v945
      %v1034 = vpack.c.b16 %v948, %v947
      %v1035 = vpack.c.b16 %v950, %v949
      %v1036 = vpack.c.b16 %v952, %v951
      %v1037 = vpack.c.b16 %v954, %v953
      %v1038 = vpack.c.b16 %v956, %v955
      %v1039 = vpack.c.b16 %v958, %v957
      %v1040 = vpack.c.b16 %v960, %v959
      %v1041 = vpack.c.b16 %v962, %v961
      %v1042 = vpack.c.b16 %v964, %v963
      %v1043 = vpack.c.b16 %v966, %v965
      %v1044 = vpack.c.b16 %v968, %v967
      %v1045 = vpack.c.b16 %v970, %v969
      %v1046 = vpack.c.b16 %v972, %v971
      %v1047 = vpack.c.b16 %v974, %v973
      %v1048 = vpack.c.b16 %v976, %v975
      %v1049 = vpack.c.b16 %v978, %v977
      %v1050 = vpack.c.b16 %v980, %v979
      %v1051 = vpack.c.b16 %v982, %v981
      %v1052 = vpack.c.b16 %v984, %v983
      %v1053 = vpack.c.b16 %v986, %v985
      %v1054 = vpack.c.b16 %v988, %v987
      %v1055 = vpack.c.b16 %v990, %v989
      %v1056 = vpack.c.b16 %v992, %v991
      %v1057 = vpack.c.b16 %v994, %v993
      %v1058 = vpack.c.b16 %v996, %v995
      %v1059 = vpack.c.b16 %v998, %v997
      %v1060 = vpack.c.b16 %v1000, %v999
      %v1061 = vpack.c.b16 %v1002, %v1001
      %v1062 = vpack.c.b16 %v1004, %v1003
      %v1063 = vpack.c.b16 %v1006, %v1005
      %v1064 = vpack.c.b16 %v1008, %v1007
      %v1065 = vpack.c.b16 %v1010, %v1009
      %v1066 = vpack.c.b16 %v1012, %v1011
      %v1067 = vpack.c.b16 %v1014, %v1013
      %v1068 = vpack.c.b16 %v1016, %v1015
      %v1069 = vpack.c.b16 %v1018, %v1017
      %v1070 = vpack.c.b16 %v1020, %v1019
      %vm1121 = vcmask 261120
      %v1123 = vsel %vm1121, %v658, 0
      %v1126 = vsel %vm1121, %v665, 0
      %v1129 = vsel %vm1121, %v672, 0
      %v1132 = vsel %vm1121, %v679, 0
      %v1135 = vsel %vm1121, %v686, 0
      %v1138 = vsel %vm1121, %v693, 0
      %v1141 = vsel %vm1121, %v700, 0
      %v1144 = vsel %vm1121, %v707, 0
      %v1147 = vsel %vm1121, %v714, 0
      %v1150 = vsel %vm1121, %v721, 0
      %v1153 = vsel %vm1121, %v728, 0
      %v1156 = vsel %vm1121, %v735, 0
      %v1159 = vsel %vm1121, %v742, 0
      %1161 = vmatprep.subr.bf16.mxu0 0
      %1162 = vmatpush1.bf16.msra.mxu0 %v1021
      %1163 = vmatprep.subr.bf16.mxu0 0
      %1164 = vmatpush1.bf16.msra.mxu0 %v1022
      %1165 = vmatprep.subr.bf16.mxu0 0
      %1166 = vmatpush1.bf16.msra.mxu0 %v1023
      %1167 = vmatprep.subr.bf16.mxu0 0
      %1168 = vmatpush1.bf16.msra.mxu0 %v1024
      %1169 = vmatprep.subr.bf16.mxu0 0
      %1170 = vmatpush1.bf16.msra.mxu0 %v1025
      %1171 = vmatprep.subr.bf16.mxu0 0
      %1172 = vmatpush1.bf16.msra.mxu0 %v1026
      %1173 = vmatprep.subr.bf16.mxu0 0
      %1174 = vmatpush1.bf16.msra.mxu0 %v1027
      %1175 = vmatprep.subr.bf16.mxu0 0
      %1176 = vmatpush1.bf16.msra.mxu0 %v1028
      %1177 = vmatprep.subr.bf16.mxu0 0
      %1178 = vmatpush1.bf16.msra.mxu0 %v1029
      %1179 = vmatprep.subr.bf16.mxu0 0
      %1180 = vmatpush1.bf16.msra.mxu0 %v1030
      %1181 = vmatprep.subr.bf16.mxu0 0
      %1182 = vmatpush1.bf16.msra.mxu0 %v1031
      %1183 = vmatprep.subr.bf16.mxu0 0
      %1184 = vmatpush1.bf16.msra.mxu0 %v1032
      %1185 = vmatprep.subr.bf16.mxu0 0
      %1186 = vmatpush1.bf16.msra.mxu0 %v1033
      %1187 = vmatprep.subr.bf16.mxu0 0
      %1188 = vmatpush1.bf16.msra.mxu0 %v1034
      %1189 = vmatprep.subr.bf16.mxu0 0
      %1190 = vmatpush1.bf16.msra.mxu0 %v1035
      %1191 = vmatprep.subr.bf16.mxu0 0
      %1192 = vmatpush1.bf16.msra.mxu0 %v1036
      %1193 = vmatprep.mubr.bf16.mxu0 %v653
      %1194 = vmatmul.mubr.bf16.gmra.mrb[0].mxu0 %v652
      %v1195 = vpop.f32.mrb[0].mxu0
      %v1196 = vadd.f32 0.0, %v1195
      %v1197 = vpop.f32.mrb[0].mxu0
      %v1198 = vpop.f32.mrb[0].mxu0
      %v1199 = vadd.f32 0.0, %v1198
      %v1200 = vpop.f32.mrb[0].mxu0
      %1201 = vmatprep.mubr.bf16.mxu0 %v660
      %1202 = vmatmul.mubr.bf16.gmra.mrb[0].mxu0 %v659
      %v1203 = vpop.f32.mrb[0].mxu0
      %v1204 = vadd.f32 0.0, %v1203
      %v1205 = vpop.f32.mrb[0].mxu0
      %v1206 = vpop.f32.mrb[0].mxu0
      %v1207 = vadd.f32 0.0, %v1206
      %v1208 = vpop.f32.mrb[0].mxu0
      %1209 = vmatprep.mubr.bf16.mxu0 %v667
      %1210 = vmatmul.mubr.bf16.gmra.mrb[0].mxu0 %v666
      %v1211 = vpop.f32.mrb[0].mxu0
      %v1212 = vadd.f32 0.0, %v1211
      %v1213 = vpop.f32.mrb[0].mxu0
      %v1214 = vpop.f32.mrb[0].mxu0
      %v1215 = vadd.f32 0.0, %v1214
      %v1216 = vpop.f32.mrb[0].mxu0
      %1217 = vmatprep.mubr.bf16.mxu0 %v674
      %1218 = vmatmul.mubr.bf16.gmra.mrb[0].mxu0 %v673
      %v1219 = vpop.f32.mrb[0].mxu0
      %v1220 = vadd.f32 0.0, %v1219
      %v1221 = vpop.f32.mrb[0].mxu0
      %v1222 = vpop.f32.mrb[0].mxu0
      %v1223 = vadd.f32 0.0, %v1222
      %v1224 = vpop.f32.mrb[0].mxu0
      %1225 = vmatprep.mubr.bf16.mxu0 %v681
      %1226 = vmatmul.mubr.bf16.gmra.mrb[0].mxu0 %v680
      %v1227 = vpop.f32.mrb[0].mxu0
      %v1228 = vadd.f32 0.0, %v1227
      %v1229 = vpop.f32.mrb[0].mxu0
      %v1230 = vpop.f32.mrb[0].mxu0
      %v1231 = vadd.f32 0.0, %v1230
      %v1232 = vpop.f32.mrb[0].mxu0
      %1233 = vmatprep.mubr.bf16.mxu0 %v688
      %1234 = vmatmul.mubr.bf16.gmra.mrb[0].mxu0 %v687
      %v1235 = vpop.f32.mrb[0].mxu0
      %v1236 = vadd.f32 0.0, %v1235
      %v1237 = vpop.f32.mrb[0].mxu0
      %v1238 = vpop.f32.mrb[0].mxu0
      %v1239 = vadd.f32 0.0, %v1238
      %v1240 = vpop.f32.mrb[0].mxu0
      %1241 = vmatprep.mubr.bf16.mxu0 %v695
      %1242 = vmatmul.mubr.bf16.gmra.mrb[0].mxu0 %v694
      %v1243 = vpop.f32.mrb[0].mxu0
      %v1244 = vadd.f32 0.0, %v1243
      %v1245 = vpop.f32.mrb[0].mxu0
      %v1246 = vpop.f32.mrb[0].mxu0
      %v1247 = vadd.f32 0.0, %v1246
      %v1248 = vpop.f32.mrb[0].mxu0
      %1249 = vmatprep.mubr.bf16.mxu0 %v702
      %1250 = vmatmul.mubr.bf16.gmra.mrb[0].mxu0 %v701
      %v1251 = vpop.f32.mrb[0].mxu0
      %v1252 = vadd.f32 0.0, %v1251
      %v1253 = vpop.f32.mrb[0].mxu0
      %v1254 = vpop.f32.mrb[0].mxu0
      %v1255 = vadd.f32 0.0, %v1254
      %v1256 = vpop.f32.mrb[0].mxu0
      %1257 = vmatprep.mubr.bf16.mxu0 %v709
      %1258 = vmatmul.mubr.bf16.gmra.mrb[0].mxu0 %v708
      %v1259 = vpop.f32.mrb[0].mxu0
      %v1260 = vadd.f32 0.0, %v1259
      %v1261 = vpop.f32.mrb[0].mxu0
      %v1262 = vpop.f32.mrb[0].mxu0
      %v1263 = vadd.f32 0.0, %v1262
      %v1264 = vpop.f32.mrb[0].mxu0
      %1265 = vmatprep.mubr.bf16.mxu0 %v716
      %1266 = vmatmul.mubr.bf16.gmra.mrb[0].mxu0 %v715
      %v1267 = vpop.f32.mrb[0].mxu0
      %v1268 = vadd.f32 0.0, %v1267
      %v1269 = vpop.f32.mrb[0].mxu0
      %v1270 = vpop.f32.mrb[0].mxu0
      %v1271 = vadd.f32 0.0, %v1270
      %v1272 = vpop.f32.mrb[0].mxu0
      %1273 = vmatprep.mubr.bf16.mxu0 %v723
      %1274 = vmatmul.mubr.bf16.gmra.mrb[0].mxu0 %v722
      %v1275 = vpop.f32.mrb[0].mxu0
      %v1276 = vadd.f32 0.0, %v1275
      %v1277 = vpop.f32.mrb[0].mxu0
      %v1278 = vpop.f32.mrb[0].mxu0
      %v1279 = vadd.f32 0.0, %v1278
      %v1280 = vpop.f32.mrb[0].mxu0
      %1281 = vmatprep.mubr.bf16.mxu0 %v730
      %1282 = vmatmul.mubr.bf16.gmra.mrb[0].mxu0 %v729
      %v1283 = vpop.f32.mrb[0].mxu0
      %v1284 = vadd.f32 0.0, %v1283
      %v1285 = vpop.f32.mrb[0].mxu0
      %v1286 = vpop.f32.mrb[0].mxu0
      %v1287 = vadd.f32 0.0, %v1286
      %v1288 = vpop.f32.mrb[0].mxu0
      %1289 = vmatprep.mubr.bf16.mxu0 %v737
      %1290 = vmatmul.mubr.bf16.gmra.mrb[0].mxu0 %v736
      %v1291 = vpop.f32.mrb[0].mxu0
      %v1292 = vadd.f32 0.0, %v1291
      %v1293 = vpop.f32.mrb[0].mxu0
      %v1294 = vpop.f32.mrb[0].mxu0
      %v1295 = vpop.f32.mrb[0].mxu0
      %1296 = vdwg.mxu0
      %1297 = vmatprep.subr.bf16.mxu0 0
      %1298 = vmatpush1.bf16.msra.mxu0 %v1037
      %1299 = vmatprep.subr.bf16.mxu0 0
      %1300 = vmatpush1.bf16.msra.mxu0 %v1038
      %1301 = vmatprep.subr.bf16.mxu0 0
      %1302 = vmatpush1.bf16.msra.mxu0 %v1039
      %1303 = vmatprep.subr.bf16.mxu0 0
      %1304 = vmatpush1.bf16.msra.mxu0 %v1040
      %1305 = vmatprep.subr.bf16.mxu0 0
      %1306 = vmatpush1.bf16.msra.mxu0 %v1041
      %1307 = vmatprep.subr.bf16.mxu0 0
      %1308 = vmatpush1.bf16.msra.mxu0 %v1042
      %1309 = vmatprep.subr.bf16.mxu0 0
      %1310 = vmatpush1.bf16.msra.mxu0 %v1043
      %1311 = vmatprep.subr.bf16.mxu0 0
      %1312 = vmatpush1.bf16.msra.mxu0 %v1044
      %1313 = vmatprep.subr.bf16.mxu0 0
      %1314 = vmatpush1.bf16.msra.mxu0 %v1045
      %1315 = vmatprep.subr.bf16.mxu0 0
      %1316 = vmatpush1.bf16.msra.mxu0 %v1046
      %1317 = vmatprep.subr.bf16.mxu0 0
      %1318 = vmatpush1.bf16.msra.mxu0 %v1047
      %1319 = vmatprep.subr.bf16.mxu0 0
      %1320 = vmatpush1.bf16.msra.mxu0 %v1048
      %1321 = vmatprep.subr.bf16.mxu0 0
      %1322 = vmatpush1.bf16.msra.mxu0 %v1049
      %1323 = vmatprep.subr.bf16.mxu0 0
      %1324 = vmatpush1.bf16.msra.mxu0 %v1050
      %1325 = vmatprep.subr.bf16.mxu0 0
      %1326 = vmatpush1.bf16.msra.mxu0 %v1051
      %1327 = vmatprep.subr.bf16.mxu0 0
      %1328 = vmatpush1.bf16.msra.mxu0 %v1052
      %1329 = vmatprep.mubr.bf16.mxu0 %v655
      %1330 = vmatmul.mubr.bf16.gmra.mrb[0].mxu0 %v654
      %v1331 = vpop.f32.mrb[0].mxu0
      %v1332 = vadd.f32 %v1196, %v1331
      %v1333 = vpop.f32.mrb[0].mxu0
      %v1334 = vpop.f32.mrb[0].mxu0
      %v1335 = vadd.f32 %v1199, %v1334
      %v1336 = vpop.f32.mrb[0].mxu0
      %1337 = vmatprep.mubr.bf16.mxu0 %v662
      %1338 = vmatmul.mubr.bf16.gmra.mrb[0].mxu0 %v661
      %v1339 = vpop.f32.mrb[0].mxu0
      %v1340 = vadd.f32 %v1204, %v1339
      %v1341 = vpop.f32.mrb[0].mxu0
      %v1342 = vpop.f32.mrb[0].mxu0
      %v1343 = vadd.f32 %v1207, %v1342
      %v1344 = vpop.f32.mrb[0].mxu0
      %1345 = vmatprep.mubr.bf16.mxu0 %v669
      %1346 = vmatmul.mubr.bf16.gmra.mrb[0].mxu0 %v668
      %v1347 = vpop.f32.mrb[0].mxu0
      %v1348 = vadd.f32 %v1212, %v1347
      %v1349 = vpop.f32.mrb[0].mxu0
      %v1350 = vpop.f32.mrb[0].mxu0
      %v1351 = vadd.f32 %v1215, %v1350
      %v1352 = vpop.f32.mrb[0].mxu0
      %1353 = vmatprep.mubr.bf16.mxu0 %v676
      %1354 = vmatmul.mubr.bf16.gmra.mrb[0].mxu0 %v675
      %v1355 = vpop.f32.mrb[0].mxu0
      %v1356 = vadd.f32 %v1220, %v1355
      %v1357 = vpop.f32.mrb[0].mxu0
      %v1358 = vpop.f32.mrb[0].mxu0
      %v1359 = vadd.f32 %v1223, %v1358
      %v1360 = vpop.f32.mrb[0].mxu0
      %1361 = vmatprep.mubr.bf16.mxu0 %v683
      %1362 = vmatmul.mubr.bf16.gmra.mrb[0].mxu0 %v682
      %v1363 = vpop.f32.mrb[0].mxu0
      %v1364 = vadd.f32 %v1228, %v1363
      %v1365 = vpop.f32.mrb[0].mxu0
      %v1366 = vpop.f32.mrb[0].mxu0
      %v1367 = vadd.f32 %v1231, %v1366
      %v1368 = vpop.f32.mrb[0].mxu0
      %1369 = vmatprep.mubr.bf16.mxu0 %v690
      %1370 = vmatmul.mubr.bf16.gmra.mrb[0].mxu0 %v689
      %v1371 = vpop.f32.mrb[0].mxu0
      %v1372 = vadd.f32 %v1236, %v1371
      %v1373 = vpop.f32.mrb[0].mxu0
      %v1374 = vpop.f32.mrb[0].mxu0
      %v1375 = vadd.f32 %v1239, %v1374
      %v1376 = vpop.f32.mrb[0].mxu0
      %1377 = vmatprep.mubr.bf16.mxu0 %v697
      %1378 = vmatmul.mubr.bf16.gmra.mrb[0].mxu0 %v696
      %v1379 = vpop.f32.mrb[0].mxu0
      %v1380 = vadd.f32 %v1244, %v1379
      %v1381 = vpop.f32.mrb[0].mxu0
      %v1382 = vpop.f32.mrb[0].mxu0
      %v1383 = vadd.f32 %v1247, %v1382
      %v1384 = vpop.f32.mrb[0].mxu0
      %1385 = vmatprep.mubr.bf16.mxu0 %v704
      %1386 = vmatmul.mubr.bf16.gmra.mrb[0].mxu0 %v703
      %v1387 = vpop.f32.mrb[0].mxu0
      %v1388 = vadd.f32 %v1252, %v1387
      %v1389 = vpop.f32.mrb[0].mxu0
      %v1390 = vpop.f32.mrb[0].mxu0
      %v1391 = vadd.f32 %v1255, %v1390
      %v1392 = vpop.f32.mrb[0].mxu0
      %1393 = vmatprep.mubr.bf16.mxu0 %v711
      %1394 = vmatmul.mubr.bf16.gmra.mrb[0].mxu0 %v710
      %v1395 = vpop.f32.mrb[0].mxu0
      %v1396 = vadd.f32 %v1260, %v1395
      %v1397 = vpop.f32.mrb[0].mxu0
      %v1398 = vpop.f32.mrb[0].mxu0
      %v1399 = vadd.f32 %v1263, %v1398
      %v1400 = vpop.f32.mrb[0].mxu0
      %1401 = vmatprep.mubr.bf16.mxu0 %v718
      %1402 = vmatmul.mubr.bf16.gmra.mrb[0].mxu0 %v717
      %v1403 = vpop.f32.mrb[0].mxu0
      %v1404 = vadd.f32 %v1268, %v1403
      %v1405 = vpop.f32.mrb[0].mxu0
      %v1406 = vpop.f32.mrb[0].mxu0
      %v1407 = vadd.f32 %v1271, %v1406
      %v1408 = vpop.f32.mrb[0].mxu0
      %1409 = vmatprep.mubr.bf16.mxu0 %v725
      %1410 = vmatmul.mubr.bf16.gmra.mrb[0].mxu0 %v724
      %v1411 = vpop.f32.mrb[0].mxu0
      %v1412 = vadd.f32 %v1276, %v1411
      %v1413 = vpop.f32.mrb[0].mxu0
      %v1414 = vpop.f32.mrb[0].mxu0
      %v1415 = vadd.f32 %v1279, %v1414
      %v1416 = vpop.f32.mrb[0].mxu0
      %1417 = vmatprep.mubr.bf16.mxu0 %v732
      %1418 = vmatmul.mubr.bf16.gmra.mrb[0].mxu0 %v731
      %v1419 = vpop.f32.mrb[0].mxu0
      %v1420 = vadd.f32 %v1284, %v1419
      %v1421 = vpop.f32.mrb[0].mxu0
      %v1422 = vpop.f32.mrb[0].mxu0
      %v1423 = vadd.f32 %v1287, %v1422
      %v1424 = vpop.f32.mrb[0].mxu0
      %1425 = vmatprep.mubr.bf16.mxu0 %v739
      %1426 = vmatmul.mubr.bf16.gmra.mrb[0].mxu0 %v738
      %v1427 = vpop.f32.mrb[0].mxu0
      %v1428 = vadd.f32 %v1292, %v1427
      %v1429 = vpop.f32.mrb[0].mxu0
      %v1430 = vpop.f32.mrb[0].mxu0
      %v1431 = vpop.f32.mrb[0].mxu0
      %1432 = vdwg.mxu0
      %1433 = vmatprep.subr.bf16.mxu0 0
      %1434 = vmatpush1.bf16.msra.mxu0 %v1053
      %1435 = vmatprep.subr.bf16.mxu0 0
      %1436 = vmatpush1.bf16.msra.mxu0 %v1054
      %1437 = vmatprep.subr.bf16.mxu0 0
      %1438 = vmatpush1.bf16.msra.mxu0 %v1055
      %1439 = vmatprep.subr.bf16.mxu0 0
      %1440 = vmatpush1.bf16.msra.mxu0 %v1056
      %1441 = vmatprep.subr.bf16.mxu0 0
      %1442 = vmatpush1.bf16.msra.mxu0 %v1057
      %1443 = vmatprep.subr.bf16.mxu0 0
      %1444 = vmatpush1.bf16.msra.mxu0 %v1058
      %1445 = vmatprep.subr.bf16.mxu0 0
      %1446 = vmatpush1.bf16.msra.mxu0 %v1059
      %1447 = vmatprep.subr.bf16.mxu0 0
      %1448 = vmatpush1.bf16.msra.mxu0 %v1060
      %1449 = vmatprep.subr.bf16.mxu0 0
      %1450 = vmatpush1.bf16.msra.mxu0 %v1061
      %1451 = vmatprep.subr.bf16.mxu0 0
      %1452 = vmatpush1.bf16.msra.mxu0 %v1062
      %1453 = vmatprep.subr.bf16.mxu0 0
      %1454 = vmatpush1.bf16.msra.mxu0 %v1063
      %1455 = vmatprep.subr.bf16.mxu0 0
      %1456 = vmatpush1.bf16.msra.mxu0 %v1064
      %1457 = vmatprep.subr.bf16.mxu0 0
      %1458 = vmatpush1.bf16.msra.mxu0 %v1065
      %1459 = vmatprep.subr.bf16.mxu0 0
      %1460 = vmatpush1.bf16.msra.mxu0 %v1066
      %1461 = vmatprep.subr.bf16.mxu0 0
      %1462 = vmatpush1.bf16.msra.mxu0 %v1067
      %1463 = vmatprep.subr.bf16.mxu0 0
      %1464 = vmatpush1.bf16.msra.mxu0 %v1068
      %1465 = vmatprep.mubr.bf16.mxu0 %v657
      %1466 = vmatmul.mubr.bf16.gmra.mrb[0].mxu0 %v656
      %v1467 = vpop.f32.mrb[0].mxu0
      %v1468 = vadd.f32 %v1332, %v1467
      %v1469 = vpop.f32.mrb[0].mxu0
      %v1470 = vpop.f32.mrb[0].mxu0
      %v1471 = vadd.f32 %v1335, %v1470
      %v1472 = vpop.f32.mrb[0].mxu0
      %1473 = vmatprep.mubr.bf16.mxu0 %v664
      %1474 = vmatmul.mubr.bf16.gmra.mrb[0].mxu0 %v663
      %v1475 = vpop.f32.mrb[0].mxu0
      %v1476 = vadd.f32 %v1340, %v1475
      %v1477 = vpop.f32.mrb[0].mxu0
      %v1478 = vpop.f32.mrb[0].mxu0
      %v1479 = vadd.f32 %v1343, %v1478
      %v1480 = vpop.f32.mrb[0].mxu0
      %1481 = vmatprep.mubr.bf16.mxu0 %v671
      %1482 = vmatmul.mubr.bf16.gmra.mrb[0].mxu0 %v670
      %v1483 = vpop.f32.mrb[0].mxu0
      %v1484 = vadd.f32 %v1348, %v1483
      %v1485 = vpop.f32.mrb[0].mxu0
      %v1486 = vpop.f32.mrb[0].mxu0
      %v1487 = vadd.f32 %v1351, %v1486
      %v1488 = vpop.f32.mrb[0].mxu0
      %1489 = vmatprep.mubr.bf16.mxu0 %v678
      %1490 = vmatmul.mubr.bf16.gmra.mrb[0].mxu0 %v677
      %v1491 = vpop.f32.mrb[0].mxu0
      %v1492 = vadd.f32 %v1356, %v1491
      %v1493 = vpop.f32.mrb[0].mxu0
      %v1494 = vpop.f32.mrb[0].mxu0
      %v1495 = vadd.f32 %v1359, %v1494
      %v1496 = vpop.f32.mrb[0].mxu0
      %1497 = vmatprep.mubr.bf16.mxu0 %v685
      %1498 = vmatmul.mubr.bf16.gmra.mrb[0].mxu0 %v684
      %v1499 = vpop.f32.mrb[0].mxu0
      %v1500 = vadd.f32 %v1364, %v1499
      %v1501 = vpop.f32.mrb[0].mxu0
      %v1502 = vpop.f32.mrb[0].mxu0
      %v1503 = vadd.f32 %v1367, %v1502
      %v1504 = vpop.f32.mrb[0].mxu0
      %1505 = vmatprep.mubr.bf16.mxu0 %v692
      %1506 = vmatmul.mubr.bf16.gmra.mrb[0].mxu0 %v691
      %v1507 = vpop.f32.mrb[0].mxu0
      %v1508 = vadd.f32 %v1372, %v1507
      %v1509 = vpop.f32.mrb[0].mxu0
      %v1510 = vpop.f32.mrb[0].mxu0
      %v1511 = vadd.f32 %v1375, %v1510
      %v1512 = vpop.f32.mrb[0].mxu0
      %1513 = vmatprep.mubr.bf16.mxu0 %v699
      %1514 = vmatmul.mubr.bf16.gmra.mrb[0].mxu0 %v698
      %v1515 = vpop.f32.mrb[0].mxu0
      %v1516 = vadd.f32 %v1380, %v1515
      %v1517 = vpop.f32.mrb[0].mxu0
      %v1518 = vpop.f32.mrb[0].mxu0
      %v1519 = vadd.f32 %v1383, %v1518
      %v1520 = vpop.f32.mrb[0].mxu0
      %1521 = vmatprep.mubr.bf16.mxu0 %v706
      %1522 = vmatmul.mubr.bf16.gmra.mrb[0].mxu0 %v705
      %v1523 = vpop.f32.mrb[0].mxu0
      %v1524 = vadd.f32 %v1388, %v1523
      %v1525 = vpop.f32.mrb[0].mxu0
      %v1526 = vpop.f32.mrb[0].mxu0
      %v1527 = vadd.f32 %v1391, %v1526
      %v1528 = vpop.f32.mrb[0].mxu0
      %1529 = vmatprep.mubr.bf16.mxu0 %v713
      %1530 = vmatmul.mubr.bf16.gmra.mrb[0].mxu0 %v712
      %v1531 = vpop.f32.mrb[0].mxu0
      %v1532 = vadd.f32 %v1396, %v1531
      %v1533 = vpop.f32.mrb[0].mxu0
      %v1534 = vpop.f32.mrb[0].mxu0
      %v1535 = vadd.f32 %v1399, %v1534
      %v1536 = vpop.f32.mrb[0].mxu0
      %1537 = vmatprep.mubr.bf16.mxu0 %v720
      %1538 = vmatmul.mubr.bf16.gmra.mrb[0].mxu0 %v719
      %v1539 = vpop.f32.mrb[0].mxu0
      %v1540 = vadd.f32 %v1404, %v1539
      %v1541 = vpop.f32.mrb[0].mxu0
      %v1542 = vpop.f32.mrb[0].mxu0
      %v1543 = vadd.f32 %v1407, %v1542
      %v1544 = vpop.f32.mrb[0].mxu0
      %1545 = vmatprep.mubr.bf16.mxu0 %v727
      %1546 = vmatmul.mubr.bf16.gmra.mrb[0].mxu0 %v726
      %v1547 = vpop.f32.mrb[0].mxu0
      %v1548 = vadd.f32 %v1412, %v1547
      %v1549 = vpop.f32.mrb[0].mxu0
      %v1550 = vpop.f32.mrb[0].mxu0
      %v1551 = vadd.f32 %v1415, %v1550
      %v1552 = vpop.f32.mrb[0].mxu0
      %1553 = vmatprep.mubr.bf16.mxu0 %v734
      %1554 = vmatmul.mubr.bf16.gmra.mrb[0].mxu0 %v733
      %v1555 = vpop.f32.mrb[0].mxu0
      %v1556 = vadd.f32 %v1420, %v1555
      %v1557 = vpop.f32.mrb[0].mxu0
      %v1558 = vpop.f32.mrb[0].mxu0
      %v1559 = vadd.f32 %v1423, %v1558
      %v1560 = vpop.f32.mrb[0].mxu0
      %1561 = vmatprep.mubr.bf16.mxu0 %v741
      %1562 = vmatmul.mubr.bf16.gmra.mrb[0].mxu0 %v740
      %v1563 = vpop.f32.mrb[0].mxu0
      %v1564 = vadd.f32 %v1428, %v1563
      %v1565 = vpop.f32.mrb[0].mxu0
      %v1566 = vpop.f32.mrb[0].mxu0
      %v1567 = vpop.f32.mrb[0].mxu0
      %1568 = vdwg.mxu0
      %1569 = vmatprep.subr.bf16.mxu0 0
      %1570 = vmatpush1.bf16.msra.mxu0 %v1069
      %1571 = vmatprep.subr.bf16.mxu0 0
      %1572 = vmatpush1.bf16.msra.mxu0 %v1070
      %1573 = vmatprep.subr.bf16.mxu0 0
      %1574 = vmatpush1.bf16.msra.mxu0 0
      %1575 = vmatprep.subr.bf16.mxu0 0
      %1576 = vmatpush1.bf16.msra.mxu0 0
      %1577 = vmatprep.subr.bf16.mxu0 0
      %1578 = vmatpush1.bf16.msra.mxu0 0
      %1579 = vmatprep.subr.bf16.mxu0 0
      %1580 = vmatpush1.bf16.msra.mxu0 0
      %1581 = vmatprep.subr.bf16.mxu0 0
      %1582 = vmatpush1.bf16.msra.mxu0 0
      %1583 = vmatprep.subr.bf16.mxu0 0
      %1584 = vmatpush1.bf16.msra.mxu0 0
      %1585 = vmatprep.subr.bf16.mxu0 0
      %1586 = vmatpush1.bf16.msra.mxu0 0
      %1587 = vmatprep.subr.bf16.mxu0 0
      %1588 = vmatpush1.bf16.msra.mxu0 0
      %1589 = vmatprep.subr.bf16.mxu0 0
      %1590 = vmatpush1.bf16.msra.mxu0 0
      %1591 = vmatprep.subr.bf16.mxu0 0
      %1592 = vmatpush1.bf16.msra.mxu0 0
      %1593 = vmatprep.subr.bf16.mxu0 0
      %1594 = vmatpush1.bf16.msra.mxu0 0
      %1595 = vmatprep.subr.bf16.mxu0 0
      %1596 = vmatpush1.bf16.msra.mxu0 0
      %1597 = vmatprep.subr.bf16.mxu0 0
      %1598 = vmatpush1.bf16.msra.mxu0 0
      %1599 = vmatprep.subr.bf16.mxu0 0
      %1600 = vmatpush1.bf16.msra.mxu0 0
      %1601 = vmatprep.mubr.bf16.mxu0 0
      %1602 = vmatmul.mubr.bf16.gmra.mrb[0].mxu0 %v1123
      %v1603 = vpop.f32.mrb[0].mxu0
      %v1604 = vadd.f32 %v1468, %v1603
      %v1605 = vpop.f32.mrb[0].mxu0
      %v1606 = vpop.f32.mrb[0].mxu0
      %v1607 = vadd.f32 %v1471, %v1606
      %v1608 = vpop.f32.mrb[0].mxu0
      %1609 = vmatprep.mubr.bf16.mxu0 0
      %1610 = vmatmul.mubr.bf16.gmra.mrb[0].mxu0 %v1126
      %v1611 = vpop.f32.mrb[0].mxu0
      %v1612 = vadd.f32 %v1476, %v1611
      %v1613 = vpop.f32.mrb[0].mxu0
      %v1614 = vpop.f32.mrb[0].mxu0
      %v1615 = vadd.f32 %v1479, %v1614
      %v1616 = vpop.f32.mrb[0].mxu0
      %1617 = vmatprep.mubr.bf16.mxu0 0
      %1618 = vmatmul.mubr.bf16.gmra.mrb[0].mxu0 %v1129
      %v1619 = vpop.f32.mrb[0].mxu0
      %v1620 = vadd.f32 %v1484, %v1619
      %v1621 = vpop.f32.mrb[0].mxu0
      %v1622 = vpop.f32.mrb[0].mxu0
      %v1623 = vadd.f32 %v1487, %v1622
      %v1624 = vpop.f32.mrb[0].mxu0
      %1625 = vmatprep.mubr.bf16.mxu0 0
      %1626 = vmatmul.mubr.bf16.gmra.mrb[0].mxu0 %v1132
      %v1627 = vpop.f32.mrb[0].mxu0
      %v1628 = vadd.f32 %v1492, %v1627
      %v1629 = vpop.f32.mrb[0].mxu0
      %v1630 = vpop.f32.mrb[0].mxu0
      %v1631 = vadd.f32 %v1495, %v1630
      %v1632 = vpop.f32.mrb[0].mxu0
      %1633 = vmatprep.mubr.bf16.mxu0 0
      %1634 = vmatmul.mubr.bf16.gmra.mrb[0].mxu0 %v1135
      %v1635 = vpop.f32.mrb[0].mxu0
      %v1636 = vadd.f32 %v1500, %v1635
      %v1637 = vpop.f32.mrb[0].mxu0
      %v1638 = vpop.f32.mrb[0].mxu0
      %v1639 = vadd.f32 %v1503, %v1638
      %v1640 = vpop.f32.mrb[0].mxu0
      %1641 = vmatprep.mubr.bf16.mxu0 0
      %1642 = vmatmul.mubr.bf16.gmra.mrb[0].mxu0 %v1138
      %v1643 = vpop.f32.mrb[0].mxu0
      %v1644 = vadd.f32 %v1508, %v1643
      %v1645 = vpop.f32.mrb[0].mxu0
      %v1646 = vpop.f32.mrb[0].mxu0
      %v1647 = vadd.f32 %v1511, %v1646
      %v1648 = vpop.f32.mrb[0].mxu0
      %1649 = vmatprep.mubr.bf16.mxu0 0
      %1650 = vmatmul.mubr.bf16.gmra.mrb[0].mxu0 %v1141
      %v1651 = vpop.f32.mrb[0].mxu0
      %v1652 = vadd.f32 %v1516, %v1651
      %v1653 = vpop.f32.mrb[0].mxu0
      %v1654 = vpop.f32.mrb[0].mxu0
      %v1655 = vadd.f32 %v1519, %v1654
      %v1656 = vpop.f32.mrb[0].mxu0
      %1657 = vmatprep.mubr.bf16.mxu0 0
      %1658 = vmatmul.mubr.bf16.gmra.mrb[0].mxu0 %v1144
      %v1659 = vpop.f32.mrb[0].mxu0
      %v1660 = vadd.f32 %v1524, %v1659
      %v1661 = vpop.f32.mrb[0].mxu0
      %v1662 = vpop.f32.mrb[0].mxu0
      %v1663 = vadd.f32 %v1527, %v1662
      %v1664 = vpop.f32.mrb[0].mxu0
      %1665 = vmatprep.mubr.bf16.mxu0 0
      %1666 = vmatmul.mubr.bf16.gmra.mrb[0].mxu0 %v1147
      %v1667 = vpop.f32.mrb[0].mxu0
      %v1668 = vadd.f32 %v1532, %v1667
      %v1669 = vpop.f32.mrb[0].mxu0
      %v1670 = vpop.f32.mrb[0].mxu0
      %v1671 = vadd.f32 %v1535, %v1670
      %v1672 = vpop.f32.mrb[0].mxu0
      %1673 = vmatprep.mubr.bf16.mxu0 0
      %1674 = vmatmul.mubr.bf16.gmra.mrb[0].mxu0 %v1150
      %v1675 = vpop.f32.mrb[0].mxu0
      %v1676 = vadd.f32 %v1540, %v1675
      %v1677 = vpop.f32.mrb[0].mxu0
      %v1678 = vpop.f32.mrb[0].mxu0
      %v1679 = vadd.f32 %v1543, %v1678
      %v1680 = vpop.f32.mrb[0].mxu0
      %1681 = vmatprep.mubr.bf16.mxu0 0
      %1682 = vmatmul.mubr.bf16.gmra.mrb[0].mxu0 %v1153
      %v1683 = vpop.f32.mrb[0].mxu0
      %v1684 = vadd.f32 %v1548, %v1683
      %v1685 = vpop.f32.mrb[0].mxu0
      %v1686 = vpop.f32.mrb[0].mxu0
      %v1687 = vadd.f32 %v1551, %v1686
      %v1688 = vpop.f32.mrb[0].mxu0
      %1689 = vmatprep.mubr.bf16.mxu0 0
      %1690 = vmatmul.mubr.bf16.gmra.mrb[0].mxu0 %v1156
      %v1691 = vpop.f32.mrb[0].mxu0
      %v1692 = vadd.f32 %v1556, %v1691
      %v1693 = vpop.f32.mrb[0].mxu0
      %v1694 = vpop.f32.mrb[0].mxu0
      %v1695 = vadd.f32 %v1559, %v1694
      %v1696 = vpop.f32.mrb[0].mxu0
      %1697 = vmatprep.mubr.bf16.mxu0 0
      %1698 = vmatmul.mubr.bf16.gmra.mrb[0].mxu0 %v1159
      %v1699 = vpop.f32.mrb[0].mxu0
      %v1700 = vadd.f32 %v1564, %v1699
      %v1701 = vpop.f32.mrb[0].mxu0
      %v1702 = vpop.f32.mrb[0].mxu0
      %v1703 = vpop.f32.mrb[0].mxu0
      %1704 = vdwg.mxu0
      %vm1705 = vcmask 523264
      %1706 = vst.msk [vmem:[#allocation2] sm:$0xff] %vm1705, %v1604
      %1707 = vst.msk [vmem:[#allocation2 + $0x8] sm:$0xff] %vm1705, %v1607
      %1708 = vst.msk [vmem:[#allocation2 + $0x10] sm:$0xff] %vm1705, %v1612
      %1709 = vst.msk [vmem:[#allocation2 + $0x18] sm:$0xff] %vm1705, %v1615
      %1710 = vst.msk [vmem:[#allocation2 + $0x20] sm:$0xff] %vm1705, %v1620
      %1711 = vst.msk [vmem:[#allocation2 + $0x28] sm:$0xff] %vm1705, %v1623
      %1712 = vst.msk [vmem:[#allocation2 + $0x30] sm:$0xff] %vm1705, %v1628
      %1713 = vst.msk [vmem:[#allocation2 + $0x38] sm:$0xff] %vm1705, %v1631
      %1714 = vst.msk [vmem:[#allocation2 + $0x40] sm:$0xff] %vm1705, %v1636
      %1715 = vst.msk [vmem:[#allocation2 + $0x48] sm:$0xff] %vm1705, %v1639
      %1716 = vst.msk [vmem:[#allocation2 + $0x50] sm:$0xff] %vm1705, %v1644
      %1717 = vst.msk [vmem:[#allocation2 + $0x58] sm:$0xff] %vm1705, %v1647
      %1718 = vst.msk [vmem:[#allocation2 + $0x60] sm:$0xff] %vm1705, %v1652
      %1719 = vst.msk [vmem:[#allocation2 + $0x68] sm:$0xff] %vm1705, %v1655
      %1720 = vst.msk [vmem:[#allocation2 + $0x70] sm:$0xff] %vm1705, %v1660
      %1721 = vst.msk [vmem:[#allocation2 + $0x78] sm:$0xff] %vm1705, %v1663
      %1722 = vst.msk [vmem:[#allocation2 + $0x80] sm:$0xff] %vm1705, %v1668
      %1723 = vst.msk [vmem:[#allocation2 + $0x88] sm:$0xff] %vm1705, %v1671
      %1724 = vst.msk [vmem:[#allocation2 + $0x90] sm:$0xff] %vm1705, %v1676
      %1725 = vst.msk [vmem:[#allocation2 + $0x98] sm:$0xff] %vm1705, %v1679
      %1726 = vst.msk [vmem:[#allocation2 + $0xa0] sm:$0xff] %vm1705, %v1684
      %1727 = vst.msk [vmem:[#allocation2 + $0xa8] sm:$0xff] %vm1705, %v1687
      %1728 = vst.msk [vmem:[#allocation2 + $0xb0] sm:$0xff] %vm1705, %v1692
      %1729 = vst.msk [vmem:[#allocation2 + $0xb8] sm:$0xff] %vm1705, %v1695
      %1730 = vst.msk [vmem:[#allocation2 + $0xc0] sm:$0xff] %vm1705, %v1700
      %v1731 = vld [vmem:[%s2] sm:$0x1]
      %v1732 = vld [vmem:[#allocation2] ss:$2 sm:$0xff]
      %s1733 = scalar_lea.vmem [#allocation2], 16
      %v1734 = vld [vmem:[%s1733] ss:$2 sm:$0xff]
      %s1735 = scalar_lea.vmem [#allocation2], 32
      %v1736 = vld [vmem:[%s1735] ss:$2 sm:$0xff]
      %s1737 = scalar_lea.vmem [#allocation2], 48
      %v1738 = vld [vmem:[%s1737] ss:$2 sm:$0xff]
      %s1739 = scalar_lea.vmem [#allocation2], 64
      %v1740 = vld [vmem:[%s1739] ss:$2 sm:$0xff]
      %s1741 = scalar_lea.vmem [#allocation2], 80
      %v1742 = vld [vmem:[%s1741] ss:$2 sm:$0xff]
      %s1743 = scalar_lea.vmem [#allocation2], 96
      %v1744 = vld [vmem:[%s1743] ss:$2 sm:$0xff]
      %s1745 = scalar_lea.vmem [#allocation2], 112
      %v1746 = vld [vmem:[%s1745] ss:$2 sm:$0xff]
      %s1747 = scalar_lea.vmem [#allocation2], 128
      %v1748 = vld [vmem:[%s1747] ss:$2 sm:$0xff]
      %s1749 = scalar_lea.vmem [#allocation2], 144
      %v1750 = vld [vmem:[%s1749] ss:$2 sm:$0xff]
      %s1751 = scalar_lea.vmem [#allocation2], 160
      %v1752 = vld [vmem:[%s1751] ss:$2 sm:$0xff]
      %s1753 = scalar_lea.vmem [#allocation2], 176
      %v1754 = vld [vmem:[%s1753] ss:$2 sm:$0xff]
      %s1755 = scalar_lea.vmem [#allocation2], 192
      %v1756 = vld [vmem:[%s1755] ss:$2 sm:$0x3]
      %s1757 = scalar_lea.vmem [#allocation2], 1
      %v1758 = vld [vmem:[%s1757] ss:$2 sm:$0xff]
      %s1759 = scalar_lea.vmem [#allocation2], 17
      %v1760 = vld [vmem:[%s1759] ss:$2 sm:$0xff]
      %s1761 = scalar_lea.vmem [#allocation2], 33
      %v1762 = vld [vmem:[%s1761] ss:$2 sm:$0xff]
      %s1763 = scalar_lea.vmem [#allocation2], 49
      %v1764 = vld [vmem:[%s1763] ss:$2 sm:$0xff]
      %s1765 = scalar_lea.vmem [#allocation2], 65
      %v1766 = vld [vmem:[%s1765] ss:$2 sm:$0xff]
      %s1767 = scalar_lea.vmem [#allocation2], 81
      %v1768 = vld [vmem:[%s1767] ss:$2 sm:$0xff]
      %s1769 = scalar_lea.vmem [#allocation2], 97
      %v1770 = vld [vmem:[%s1769] ss:$2 sm:$0xff]
      %s1771 = scalar_lea.vmem [#allocation2], 113
      %v1772 = vld [vmem:[%s1771] ss:$2 sm:$0xff]
      %s1773 = scalar_lea.vmem [#allocation2], 129
      %v1774 = vld [vmem:[%s1773] ss:$2 sm:$0xff]
      %s1775 = scalar_lea.vmem [#allocation2], 145
      %v1776 = vld [vmem:[%s1775] ss:$2 sm:$0xff]
      %s1777 = scalar_lea.vmem [#allocation2], 161
      %v1778 = vld [vmem:[%s1777] ss:$2 sm:$0xff]
      %s1779 = scalar_lea.vmem [#allocation2], 177
      %v1780 = vld [vmem:[%s1779] ss:$2 sm:$0xff]
      %s1781 = scalar_lea.vmem [#allocation2], 193
      %v1782 = vld [vmem:[%s1781] ss:$2 sm:$0x3]
      %v1783 = vmax.f32 %v1732, %v1758
      %v1784 = vmax.f32 %v1734, %v1760
      %v1785 = vmax.f32 %v1736, %v1762
      %v1786 = vmax.f32 %v1738, %v1764
      %v1787 = vmax.f32 %v1740, %v1766
      %v1788 = vmax.f32 %v1742, %v1768
      %v1789 = vmax.f32 %v1744, %v1770
      %v1790 = vmax.f32 %v1746, %v1772
      %v1791 = vmax.f32 %v1748, %v1774
      %v1792 = vmax.f32 %v1750, %v1776
      %v1793 = vmax.f32 %v1752, %v1778
      %v1794 = vmax.f32 %v1754, %v1780
      %v1795 = vmax.f32 %v1756, %v1782
      %1796 = vst.msk [vmem:[#allocation3] sm:$0xff] %vm1705, %v1783
      %1797 = vst.msk [vmem:[#allocation3 + $0x8] sm:$0xff] %vm1705, %v1784
      %1798 = vst.msk [vmem:[#allocation3 + $0x10] sm:$0xff] %vm1705, %v1785
      %1799 = vst.msk [vmem:[#allocation3 + $0x18] sm:$0xff] %vm1705, %v1786
      %1800 = vst.msk [vmem:[#allocation3 + $0x20] sm:$0xff] %vm1705, %v1787
      %1801 = vst.msk [vmem:[#allocation3 + $0x28] sm:$0xff] %vm1705, %v1788
      %1802 = vst.msk [vmem:[#allocation3 + $0x30] sm:$0xff] %vm1705, %v1789
      %1803 = vst.msk [vmem:[#allocation3 + $0x38] sm:$0xff] %vm1705, %v1790
      %1804 = vst.msk [vmem:[#allocation3 + $0x40] sm:$0xff] %vm1705, %v1791
      %1805 = vst.msk [vmem:[#allocation3 + $0x48] sm:$0xff] %vm1705, %v1792
      %1806 = vst.msk [vmem:[#allocation3 + $0x50] sm:$0xff] %vm1705, %v1793
      %1807 = vst.msk [vmem:[#allocation3 + $0x58] sm:$0xff] %vm1705, %v1794
      %vm1808 = vcmask 517120
      %1809 = vst.msk [vmem:[#allocation3 + $0x60] sm:$0x3] %vm1808, %v1795
      %v1810 = vld [vmem:[#allocation3] sm:$0x7f]
      %v1811 = vld [vmem:[#allocation3 + $0x7] sm:$0x7f]
      %v1812 = vmax.f32 %v1810, %v1811
      %v1814 = vlaneseq
      %v1815 = vshrl.u32 %v1814, 7
      %v1816 = vsub.s32 0, %v1815
      %v1817 = vrot.slane %v1731, %v1816
      %v1819 = vadd.f32 %v1812, %v1817
      %v1820 = vmax.f32 %v1819, 0.0
      %vm1821 = vcmask 522240
      %1822 = vst.msk [vmem:[%s175] sm:$0x7f] %vm1821, %v1820
      %v1823 = vld [vmem:[#allocation3 + $0xe] sm:$0x7f]
      %v1824 = vld [vmem:[#allocation3 + $0x15] sm:$0x7f]
      %v1825 = vmax.f32 %v1823, %v1824
      %v1826 = vadd.f32 %v1825, %v1817
      %v1827 = vmax.f32 %v1826, 0.0
      %1828 = vst.msk [vmem:[%s175 + $0x7] sm:$0x7f] %vm1821, %v1827
      %v1829 = vld [vmem:[#allocation3 + $0x1c] sm:$0x7f]
      %v1830 = vld [vmem:[#allocation3 + $0x23] sm:$0x7f]
      %v1831 = vmax.f32 %v1829, %v1830
      %v1832 = vadd.f32 %v1831, %v1817
      %v1833 = vmax.f32 %v1832, 0.0
      %1834 = vst.msk [vmem:[%s175 + $0xe] sm:$0x7f] %vm1821, %v1833
      %v1835 = vld [vmem:[#allocation3 + $0x2a] sm:$0x7f]
      %v1836 = vld [vmem:[#allocation3 + $0x31] sm:$0x7f]
      %v1837 = vmax.f32 %v1835, %v1836
      %v1838 = vadd.f32 %v1837, %v1817
      %v1839 = vmax.f32 %v1838, 0.0
      %1840 = vst.msk [vmem:[%s175 + $0x15] sm:$0x7f] %vm1821, %v1839
      %v1841 = vld [vmem:[#allocation3 + $0x38] sm:$0x7f]
      %v1842 = vld [vmem:[#allocation3 + $0x3f] sm:$0x7f]
      %v1843 = vmax.f32 %v1841, %v1842
      %v1844 = vadd.f32 %v1843, %v1817
      %v1845 = vmax.f32 %v1844, 0.0
      %1846 = vst.msk [vmem:[%s175 + $0x1c] sm:$0x7f] %vm1821, %v1845
      %v1847 = vld [vmem:[#allocation3 + $0x46] sm:$0x7f]
      %v1848 = vld [vmem:[#allocation3 + $0x4d] sm:$0x7f]
      %v1849 = vmax.f32 %v1847, %v1848
      %v1850 = vadd.f32 %v1849, %v1817
      %v1851 = vmax.f32 %v1850, 0.0
      %1852 = vst.msk [vmem:[%s175 + $0x23] sm:$0x7f] %vm1821, %v1851
      %v1853 = vld [vmem:[#allocation3 + $0x54] sm:$0x7f]
      %v1854 = vld [vmem:[#allocation3 + $0x5b] sm:$0x7f]
      %v1855 = vmax.f32 %v1853, %v1854
      %v1856 = vadd.f32 %v1855, %v1817
      %v1857 = vmax.f32 %v1856, 0.0
      %1858 = vst.msk [vmem:[%s175 + $0x2a] sm:$0x7f] %vm1821, %v1857
      %p1859 = scmp.lt.s32.totalorder %s14, 1
      %s1860 = scalar_select %p1859, %s14, 1
      %s1861 = smul.addr %s1860, 7
      %s1862 = smul.addr %s1861, 8
      %s1863 = scalar_lea.vmem %s3, %s1862
      // Predicated region
      $region33: #{_lambda_.4} parent=31 // pred_check
        %p1864 = pneg %p100
      $region34: #{_lambda_.4} parent=31 // pred_check_branch
        %1866 = sbr.rel (%p1864) target = $region36
      $region35: #{_lambda_.4} parent=31 // pred_region
        _
      $region36: #{_lambda_.4} parent=31 // pred_fallthru
        _
    $region32: #{_lambda_.4} parent=5 // pred_fallthru
      _
    %p1867 = scmp.le.s32.totalorder 2, %s9
    // Predicated region
    $region37: #{_lambda_.4} parent=5 // pred_check
      %p1868 = pneg %p1867
    $region38: #{_lambda_.4} parent=5 // pred_check_branch
      %1870 = sbr.rel (%p1868) target = $region40
    $region39: #{_lambda_.4} parent=5 // pred_region
      %s1871 = ssub.s32 %s9, 2
      // Predicated region
      $region41: #{_lambda_.4} parent=39 // pred_check
        %p1872 = pneg %p106
      $region42: #{_lambda_.4} parent=39 // pred_check_branch
        %1874 = sbr.rel (%p1872) target = $region44
      $region43: #{_lambda_.4} parent=39 // pred_region
        %p1875 = scmp.lt.s32.totalorder %s15, 1
        %s1876 = scalar_select %p1875, %s15, 1
        %s1877 = smul.addr %s1876, 7
        %s1878 = smul.addr %s1877, 8
        %s1879 = scalar_lea.vmem %s3, %s1878
      $region44: #{_lambda_.4} parent=39 // pred_fallthru
        _
    $region40: #{_lambda_.4} parent=5 // pred_fallthru
      _
  $region6: #{_lambda_.4} parent=0 // loop_footer
    %s13 = sadd.s32 1, %s9
  $region7: #{_lambda_.4} parent=0 // loop_footer_branch
    %8 = sbr.rel target = $region3
  $region8: #{_lambda_.4} parent=0 // loop_exit
    _

// kernel: _lambda_.5
$region0: #{_lambda_.5}
  #allocation0 [shape = 'u32[]', space=smem, size = 0x4, offset = 0x4, fixed_abs, tag = 'smem constant byte address 0x4 - core index']
  #allocation1 [shape = 'u32[144,128]{1,0:T(1,128)}', space=vmem, size = 0x12000, scoped, tag = 'internal scratch']
  %s0 = inlined_call_operand.vmem [shape: bf16[2,3136], index: 0, kind: input, shape index: {}]
  %s1 = inlined_call_operand.vmem [shape: bf16[3136,512], index: 1, kind: input, shape index: {}]
  %s2 = inlined_call_operand.vmem [shape: f32[1,512], index: 2, kind: input, shape index: {}]
  %s3 = inlined_call_operand.vmem [shape: bf16[512,10], index: 3, kind: input, shape index: {}]
  %s4 = inlined_call_operand.vmem [shape: f32[1,10], index: 4, kind: input, shape index: {}]
  %s5 = inlined_call_operand.hbm [shape: f32[2,10], index: 5, kind: output, shape index: {}]
  %s6 = sld [smem:[#allocation0]]
  $region30: #{_lambda_.5} parent=0
    _
  %s8 = ssub.s32 1, %s6
  %s9 = scalar_select 0, %s8, %s6
  $region1: #{_lambda_.5} parent=0
    #allocation2 [shape = 'u8[1024]{0}', space=vmem, size = 0x400, scoped, tag = 'output window, operand 0, single buffered']
    #allocation3 [shape = 's32[1]{0}', space=sflag, size = 0x4, scoped, tag = 'scoped memory for _lambda_.5']
    %10 = vsyncpa [#allocation3], 0
    // Predicated region
    $region2: #{_lambda_.5} parent=1 // pred_check
      _
    $region3: #{_lambda_.5} parent=1 // pred_check_branch
      %12 = sbr.rel (0) target = $region5
    $region4: #{_lambda_.5} parent=1 // pred_region
      _
    $region5: #{_lambda_.5} parent=1 // pred_fallthru
      _
    // Predicated region
    $region6: #{_lambda_.5} parent=1 // pred_check
      _
    $region7: #{_lambda_.5} parent=1 // pred_check_branch
      %14 = sbr.rel (0) target = $region9
    $region8: #{_lambda_.5} parent=1 // pred_region
      _
    $region9: #{_lambda_.5} parent=1 // pred_fallthru
      _
    // Predicated region
    $region10: #{_lambda_.5} parent=1 // pred_check
      _
    $region11: #{_lambda_.5} parent=1 // pred_check_branch
      %16 = sbr.rel (0) target = $region13
    $region12: #{_lambda_.5} parent=1 // pred_region
      _
    $region13: #{_lambda_.5} parent=1 // pred_fallthru
      _
    // Predicated region
    $region14: #{_lambda_.5} parent=1 // pred_check
      _
    $region15: #{_lambda_.5} parent=1 // pred_check_branch
      %18 = sbr.rel (0) target = $region17
    $region16: #{_lambda_.5} parent=1 // pred_region
      _
    $region17: #{_lambda_.5} parent=1 // pred_fallthru
      _
    // Predicated region
    $region18: #{_lambda_.5} parent=1 // pred_check
      _
    $region19: #{_lambda_.5} parent=1 // pred_check_branch
      %20 = sbr.rel (0) target = $region21
    $region20: #{_lambda_.5} parent=1 // pred_region
      _
    $region21: #{_lambda_.5} parent=1 // pred_fallthru
      _
    %v22 = vld [vmem:[%s0] sm:$0xff]
    %v23 = vld [vmem:[%s0 + $0x8] sm:$0xff]
    %v24 = vld [vmem:[%s0 + $0x10] sm:$0xff]
    %v25 = vld [vmem:[%s0 + $0x18] sm:$0x1]
    %v26 = vld [vmem:[%s1] sm:$0xff]
    %v27 = vld [vmem:[%s1 + $0x8] sm:$0xff]
    %v28 = vld [vmem:[%s1 + $0x10] sm:$0xff]
    %v29 = vld [vmem:[%s1 + $0x18] sm:$0xff]
    %v30 = vld [vmem:[%s1 + $0x20] sm:$0xff]
    %v31 = vld [vmem:[%s1 + $0x28] sm:$0xff]
    %v32 = vld [vmem:[%s1 + $0x30] sm:$0xff]
    %v33 = vld [vmem:[%s1 + $0x38] sm:$0xff]
    %v34 = vld [vmem:[%s1 + $0x40] sm:$0xff]
    %v35 = vld [vmem:[%s1 + $0x48] sm:$0xff]
    %v36 = vld [vmem:[%s1 + $0x50] sm:$0xff]
    %v37 = vld [vmem:[%s1 + $0x58] sm:$0xff]
    %v38 = vld [vmem:[%s1 + $0x60] sm:$0xff]
    %v39 = vld [vmem:[%s1 + $0x68] sm:$0xff]
    %v40 = vld [vmem:[%s1 + $0x70] sm:$0xff]
    %v41 = vld [vmem:[%s1 + $0x78] sm:$0xff]
    %v42 = vld [vmem:[%s1 + $0x80] sm:$0xff]
    %v43 = vld [vmem:[%s1 + $0x88] sm:$0xff]
    %v44 = vld [vmem:[%s1 + $0x90] sm:$0xff]
    %v45 = vld [vmem:[%s1 + $0x98] sm:$0xff]
    %v46 = vld [vmem:[%s1 + $0xa0] sm:$0xff]
    %v47 = vld [vmem:[%s1 + $0xa8] sm:$0xff]
    %v48 = vld [vmem:[%s1 + $0xb0] sm:$0xff]
    %v49 = vld [vmem:[%s1 + $0xb8] sm:$0xff]
    %v50 = vld [vmem:[%s1 + $0xc0] sm:$0xff]
    %v51 = vld [vmem:[%s1 + $0xc8] sm:$0xff]
    %v52 = vld [vmem:[%s1 + $0xd0] sm:$0xff]
    %v53 = vld [vmem:[%s1 + $0xd8] sm:$0xff]
    %v54 = vld [vmem:[%s1 + $0xe0] sm:$0xff]
    %v55 = vld [vmem:[%s1 + $0xe8] sm:$0xff]
    %v56 = vld [vmem:[%s1 + $0xf0] sm:$0xff]
    %v57 = vld [vmem:[%s1 + $0xf8] sm:$0xff]
    %v58 = vld [vmem:[%s1 + $0x100] sm:$0xff]
    %v59 = vld [vmem:[%s1 + $0x108] sm:$0xff]
    %v60 = vld [vmem:[%s1 + $0x110] sm:$0xff]
    %v61 = vld [vmem:[%s1 + $0x118] sm:$0xff]
    %v62 = vld [vmem:[%s1 + $0x120] sm:$0xff]
    %v63 = vld [vmem:[%s1 + $0x128] sm:$0xff]
    %v64 = vld [vmem:[%s1 + $0x130] sm:$0xff]
    %v65 = vld [vmem:[%s1 + $0x138] sm:$0xff]
    %v66 = vld [vmem:[%s1 + $0x140] sm:$0xff]
    %v67 = vld [vmem:[%s1 + $0x148] sm:$0xff]
    %v68 = vld [vmem:[%s1 + $0x150] sm:$0xff]
    %v69 = vld [vmem:[%s1 + $0x158] sm:$0xff]
    %v70 = vld [vmem:[%s1 + $0x160] sm:$0xff]
    %v71 = vld [vmem:[%s1 + $0x168] sm:$0xff]
    %v72 = vld [vmem:[%s1 + $0x170] sm:$0xff]
    %v73 = vld [vmem:[%s1 + $0x178] sm:$0xff]
    %v74 = vld [vmem:[%s1 + $0x180] sm:$0xff]
    %v75 = vld [vmem:[%s1 + $0x188] sm:$0xff]
    %v76 = vld [vmem:[%s1 + $0x190] sm:$0xff]
    %v77 = vld [vmem:[%s1 + $0x198] sm:$0xff]
    %v78 = vld [vmem:[%s1 + $0x1a0] sm:$0xff]
    %v79 = vld [vmem:[%s1 + $0x1a8] sm:$0xff]
    %v80 = vld [vmem:[%s1 + $0x1b0] sm:$0xff]
    %v81 = vld [vmem:[%s1 + $0x1b8] sm:$0xff]
    %v82 = vld [vmem:[%s1 + $0x1c0] sm:$0xff]
    %v83 = vld [vmem:[%s1 + $0x1c8] sm:$0xff]
    %v84 = vld [vmem:[%s1 + $0x1d0] sm:$0xff]
    %v85 = vld [vmem:[%s1 + $0x1d8] sm:$0xff]
    %v86 = vld [vmem:[%s1 + $0x1e0] sm:$0xff]
    %v87 = vld [vmem:[%s1 + $0x1e8] sm:$0xff]
    %v88 = vld [vmem:[%s1 + $0x1f0] sm:$0xff]
    %v89 = vld [vmem:[%s1 + $0x1f8] sm:$0xff]
    %v90 = vld [vmem:[%s1 + $0x200] sm:$0xff]
    %v91 = vld [vmem:[%s1 + $0x208] sm:$0xff]
    %v92 = vld [vmem:[%s1 + $0x210] sm:$0xff]
    %v93 = vld [vmem:[%s1 + $0x218] sm:$0xff]
    %v94 = vld [vmem:[%s1 + $0x220] sm:$0xff]
    %v95 = vld [vmem:[%s1 + $0x228] sm:$0xff]
    %v96 = vld [vmem:[%s1 + $0x230] sm:$0xff]
    %v97 = vld [vmem:[%s1 + $0x238] sm:$0xff]
    %v98 = vld [vmem:[%s1 + $0x240] sm:$0xff]
    %v99 = vld [vmem:[%s1 + $0x248] sm:$0xff]
    %v100 = vld [vmem:[%s1 + $0x250] sm:$0xff]
    %v101 = vld [vmem:[%s1 + $0x258] sm:$0xff]
    %v102 = vld [vmem:[%s1 + $0x260] sm:$0xff]
    %v103 = vld [vmem:[%s1 + $0x268] sm:$0xff]
    %v104 = vld [vmem:[%s1 + $0x270] sm:$0xff]
    %v105 = vld [vmem:[%s1 + $0x278] sm:$0xff]
    %v106 = vld [vmem:[%s1 + $0x280] sm:$0xff]
    %v107 = vld [vmem:[%s1 + $0x288] sm:$0xff]
    %v108 = vld [vmem:[%s1 + $0x290] sm:$0xff]
    %v109 = vld [vmem:[%s1 + $0x298] sm:$0xff]
    %v110 = vld [vmem:[%s1 + $0x2a0] sm:$0xff]
    %v111 = vld [vmem:[%s1 + $0x2a8] sm:$0xff]
    %v112 = vld [vmem:[%s1 + $0x2b0] sm:$0xff]
    %v113 = vld [vmem:[%s1 + $0x2b8] sm:$0xff]
    %v114 = vld [vmem:[%s1 + $0x2c0] sm:$0xff]
    %v115 = vld [vmem:[%s1 + $0x2c8] sm:$0xff]
    %v116 = vld [vmem:[%s1 + $0x2d0] sm:$0xff]
    %v117 = vld [vmem:[%s1 + $0x2d8] sm:$0xff]
    %v118 = vld [vmem:[%s1 + $0x2e0] sm:$0xff]
    %v119 = vld [vmem:[%s1 + $0x2e8] sm:$0xff]
    %v120 = vld [vmem:[%s1 + $0x2f0] sm:$0xff]
    %v121 = vld [vmem:[%s1 + $0x2f8] sm:$0xff]
    %v122 = vld [vmem:[%s1 + $0x300] sm:$0xff]
    %v123 = vld [vmem:[%s1 + $0x308] sm:$0xff]
    %v124 = vld [vmem:[%s1 + $0x310] sm:$0xff]
    %v125 = vld [vmem:[%s1 + $0x318] sm:$0xff]
    %v126 = vld [vmem:[%s1 + $0x320] sm:$0xff]
    %v127 = vld [vmem:[%s1 + $0x328] sm:$0xff]
    %v128 = vld [vmem:[%s1 + $0x330] sm:$0xff]
    %v129 = vld [vmem:[%s1 + $0x338] sm:$0xff]
    %v130 = vld [vmem:[%s1 + $0x340] sm:$0xff]
    %v131 = vld [vmem:[%s1 + $0x348] sm:$0xff]
    %v132 = vld [vmem:[%s1 + $0x350] sm:$0xff]
    %v133 = vld [vmem:[%s1 + $0x358] sm:$0xff]
    %v134 = vld [vmem:[%s1 + $0x360] sm:$0xff]
    %v135 = vld [vmem:[%s1 + $0x368] sm:$0xff]
    %v136 = vld [vmem:[%s1 + $0x370] sm:$0xff]
    %v137 = vld [vmem:[%s1 + $0x378] sm:$0xff]
    %v138 = vld [vmem:[%s1 + $0x380] sm:$0xff]
    %v139 = vld [vmem:[%s1 + $0x388] sm:$0xff]
    %v140 = vld [vmem:[%s1 + $0x390] sm:$0xff]
    %v141 = vld [vmem:[%s1 + $0x398] sm:$0xff]
    %v142 = vld [vmem:[%s1 + $0x3a0] sm:$0xff]
    %v143 = vld [vmem:[%s1 + $0x3a8] sm:$0xff]
    %v144 = vld [vmem:[%s1 + $0x3b0] sm:$0xff]
    %v145 = vld [vmem:[%s1 + $0x3b8] sm:$0xff]
    %v146 = vld [vmem:[%s1 + $0x3c0] sm:$0xff]
    %v147 = vld [vmem:[%s1 + $0x3c8] sm:$0xff]
    %v148 = vld [vmem:[%s1 + $0x3d0] sm:$0xff]
    %v149 = vld [vmem:[%s1 + $0x3d8] sm:$0xff]
    %v150 = vld [vmem:[%s1 + $0x3e0] sm:$0xff]
    %v151 = vld [vmem:[%s1 + $0x3e8] sm:$0xff]
    %v152 = vld [vmem:[%s1 + $0x3f0] sm:$0xff]
    %v153 = vld [vmem:[%s1 + $0x3f8] sm:$0xff]
    %v154 = vld [vmem:[%s1 + $0x400] sm:$0xff]
    %v155 = vld [vmem:[%s1 + $0x408] sm:$0xff]
    %v156 = vld [vmem:[%s1 + $0x410] sm:$0xff]
    %v157 = vld [vmem:[%s1 + $0x418] sm:$0xff]
    %v158 = vld [vmem:[%s1 + $0x420] sm:$0xff]
    %v159 = vld [vmem:[%s1 + $0x428] sm:$0xff]
    %v160 = vld [vmem:[%s1 + $0x430] sm:$0xff]
    %v161 = vld [vmem:[%s1 + $0x438] sm:$0xff]
    %v162 = vld [vmem:[%s1 + $0x440] sm:$0xff]
    %v163 = vld [vmem:[%s1 + $0x448] sm:$0xff]
    %v164 = vld [vmem:[%s1 + $0x450] sm:$0xff]
    %v165 = vld [vmem:[%s1 + $0x458] sm:$0xff]
    %v166 = vld [vmem:[%s1 + $0x460] sm:$0xff]
    %v167 = vld [vmem:[%s1 + $0x468] sm:$0xff]
    %v168 = vld [vmem:[%s1 + $0x470] sm:$0xff]
    %v169 = vld [vmem:[%s1 + $0x478] sm:$0xff]
    %v170 = vld [vmem:[%s1 + $0x480] sm:$0xff]
    %v171 = vld [vmem:[%s1 + $0x488] sm:$0xff]
    %v172 = vld [vmem:[%s1 + $0x490] sm:$0xff]
    %v173 = vld [vmem:[%s1 + $0x498] sm:$0xff]
    %v174 = vld [vmem:[%s1 + $0x4a0] sm:$0xff]
    %v175 = vld [vmem:[%s1 + $0x4a8] sm:$0xff]
    %v176 = vld [vmem:[%s1 + $0x4b0] sm:$0xff]
    %v177 = vld [vmem:[%s1 + $0x4b8] sm:$0xff]
    %v178 = vld [vmem:[%s1 + $0x4c0] sm:$0xff]
    %v179 = vld [vmem:[%s1 + $0x4c8] sm:$0xff]
    %v180 = vld [vmem:[%s1 + $0x4d0] sm:$0xff]
    %v181 = vld [vmem:[%s1 + $0x4d8] sm:$0xff]
    %v182 = vld [vmem:[%s1 + $0x4e0] sm:$0xff]
    %v183 = vld [vmem:[%s1 + $0x4e8] sm:$0xff]
    %v184 = vld [vmem:[%s1 + $0x4f0] sm:$0xff]
    %v185 = vld [vmem:[%s1 + $0x4f8] sm:$0xff]
    %v186 = vld [vmem:[%s1 + $0x500] sm:$0xff]
    %v187 = vld [vmem:[%s1 + $0x508] sm:$0xff]
    %v188 = vld [vmem:[%s1 + $0x510] sm:$0xff]
    %v189 = vld [vmem:[%s1 + $0x518] sm:$0xff]
    %v190 = vld [vmem:[%s1 + $0x520] sm:$0xff]
    %v191 = vld [vmem:[%s1 + $0x528] sm:$0xff]
    %v192 = vld [vmem:[%s1 + $0x530] sm:$0xff]
    %v193 = vld [vmem:[%s1 + $0x538] sm:$0xff]
    %v194 = vld [vmem:[%s1 + $0x540] sm:$0xff]
    %v195 = vld [vmem:[%s1 + $0x548] sm:$0xff]
    %v196 = vld [vmem:[%s1 + $0x550] sm:$0xff]
    %v197 = vld [vmem:[%s1 + $0x558] sm:$0xff]
    %v198 = vld [vmem:[%s1 + $0x560] sm:$0xff]
    %v199 = vld [vmem:[%s1 + $0x568] sm:$0xff]
    %v200 = vld [vmem:[%s1 + $0x570] sm:$0xff]
    %v201 = vld [vmem:[%s1 + $0x578] sm:$0xff]
    %v202 = vld [vmem:[%s1 + $0x580] sm:$0xff]
    %v203 = vld [vmem:[%s1 + $0x588] sm:$0xff]
    %v204 = vld [vmem:[%s1 + $0x590] sm:$0xff]
    %v205 = vld [vmem:[%s1 + $0x598] sm:$0xff]
    %v206 = vld [vmem:[%s1 + $0x5a0] sm:$0xff]
    %v207 = vld [vmem:[%s1 + $0x5a8] sm:$0xff]
    %v208 = vld [vmem:[%s1 + $0x5b0] sm:$0xff]
    %v209 = vld [vmem:[%s1 + $0x5b8] sm:$0xff]
    %v210 = vld [vmem:[%s1 + $0x5c0] sm:$0xff]
    %v211 = vld [vmem:[%s1 + $0x5c8] sm:$0xff]
    %v212 = vld [vmem:[%s1 + $0x5d0] sm:$0xff]
    %v213 = vld [vmem:[%s1 + $0x5d8] sm:$0xff]
    %v214 = vld [vmem:[%s1 + $0x5e0] sm:$0xff]
    %v215 = vld [vmem:[%s1 + $0x5e8] sm:$0xff]
    %v216 = vld [vmem:[%s1 + $0x5f0] sm:$0xff]
    %v217 = vld [vmem:[%s1 + $0x5f8] sm:$0xff]
    %v218 = vld [vmem:[%s1 + $0x600] sm:$0xff]
    %v219 = vld [vmem:[%s1 + $0x608] sm:$0xff]
    %v220 = vld [vmem:[%s1 + $0x610] sm:$0xff]
    %v221 = vld [vmem:[%s1 + $0x618] sm:$0xff]
    %v222 = vld [vmem:[%s1 + $0x620] sm:$0xff]
    %v223 = vld [vmem:[%s1 + $0x628] sm:$0xff]
    %v224 = vld [vmem:[%s1 + $0x630] sm:$0xff]
    %v225 = vld [vmem:[%s1 + $0x638] sm:$0xff]
    %v226 = vld [vmem:[%s1 + $0x640] sm:$0xff]
    %v227 = vld [vmem:[%s1 + $0x648] sm:$0xff]
    %v228 = vld [vmem:[%s1 + $0x650] sm:$0xff]
    %v229 = vld [vmem:[%s1 + $0x658] sm:$0xff]
    %v230 = vld [vmem:[%s1 + $0x660] sm:$0xff]
    %v231 = vld [vmem:[%s1 + $0x668] sm:$0xff]
    %v232 = vld [vmem:[%s1 + $0x670] sm:$0xff]
    %v233 = vld [vmem:[%s1 + $0x678] sm:$0xff]
    %v234 = vld [vmem:[%s1 + $0x680] sm:$0xff]
    %v235 = vld [vmem:[%s1 + $0x688] sm:$0xff]
    %v236 = vld [vmem:[%s1 + $0x690] sm:$0xff]
    %v237 = vld [vmem:[%s1 + $0x698] sm:$0xff]
    %v238 = vld [vmem:[%s1 + $0x6a0] sm:$0xff]
    %v239 = vld [vmem:[%s1 + $0x6a8] sm:$0xff]
    %v240 = vld [vmem:[%s1 + $0x6b0] sm:$0xff]
    %v241 = vld [vmem:[%s1 + $0x6b8] sm:$0xff]
    %v242 = vld [vmem:[%s1 + $0x6c0] sm:$0xff]
    %v243 = vld [vmem:[%s1 + $0x6c8] sm:$0xff]
    %v244 = vld [vmem:[%s1 + $0x6d0] sm:$0xff]
    %v245 = vld [vmem:[%s1 + $0x6d8] sm:$0xff]
    %v246 = vld [vmem:[%s1 + $0x6e0] sm:$0xff]
    %v247 = vld [vmem:[%s1 + $0x6e8] sm:$0xff]
    %v248 = vld [vmem:[%s1 + $0x6f0] sm:$0xff]
    %v249 = vld [vmem:[%s1 + $0x6f8] sm:$0xff]
    %v250 = vld [vmem:[%s1 + $0x700] sm:$0xff]
    %v251 = vld [vmem:[%s1 + $0x708] sm:$0xff]
    %v252 = vld [vmem:[%s1 + $0x710] sm:$0xff]
    %v253 = vld [vmem:[%s1 + $0x718] sm:$0xff]
    %v254 = vld [vmem:[%s1 + $0x720] sm:$0xff]
    %v255 = vld [vmem:[%s1 + $0x728] sm:$0xff]
    %v256 = vld [vmem:[%s1 + $0x730] sm:$0xff]
    %v257 = vld [vmem:[%s1 + $0x738] sm:$0xff]
    %v258 = vld [vmem:[%s1 + $0x740] sm:$0xff]
    %v259 = vld [vmem:[%s1 + $0x748] sm:$0xff]
    %v260 = vld [vmem:[%s1 + $0x750] sm:$0xff]
    %v261 = vld [vmem:[%s1 + $0x758] sm:$0xff]
    %v262 = vld [vmem:[%s1 + $0x760] sm:$0xff]
    %v263 = vld [vmem:[%s1 + $0x768] sm:$0xff]
    %v264 = vld [vmem:[%s1 + $0x770] sm:$0xff]
    %v265 = vld [vmem:[%s1 + $0x778] sm:$0xff]
    %v266 = vld [vmem:[%s1 + $0x780] sm:$0xff]
    %v267 = vld [vmem:[%s1 + $0x788] sm:$0xff]
    %v268 = vld [vmem:[%s1 + $0x790] sm:$0xff]
    %v269 = vld [vmem:[%s1 + $0x798] sm:$0xff]
    %v270 = vld [vmem:[%s1 + $0x7a0] sm:$0xff]
    %v271 = vld [vmem:[%s1 + $0x7a8] sm:$0xff]
    %v272 = vld [vmem:[%s1 + $0x7b0] sm:$0xff]
    %v273 = vld [vmem:[%s1 + $0x7b8] sm:$0xff]
    %v274 = vld [vmem:[%s1 + $0x7c0] sm:$0xff]
    %v275 = vld [vmem:[%s1 + $0x7c8] sm:$0xff]
    %v276 = vld [vmem:[%s1 + $0x7d0] sm:$0xff]
    %v277 = vld [vmem:[%s1 + $0x7d8] sm:$0xff]
    %v278 = vld [vmem:[%s1 + $0x7e0] sm:$0xff]
    %v279 = vld [vmem:[%s1 + $0x7e8] sm:$0xff]
    %v280 = vld [vmem:[%s1 + $0x7f0] sm:$0xff]
    %v281 = vld [vmem:[%s1 + $0x7f8] sm:$0xff]
    %v282 = vld [vmem:[%s1 + $0x800] sm:$0xff]
    %v283 = vld [vmem:[%s1 + $0x808] sm:$0xff]
    %v284 = vld [vmem:[%s1 + $0x810] sm:$0xff]
    %v285 = vld [vmem:[%s1 + $0x818] sm:$0xff]
    %v286 = vld [vmem:[%s1 + $0x820] sm:$0xff]
    %v287 = vld [vmem:[%s1 + $0x828] sm:$0xff]
    %v288 = vld [vmem:[%s1 + $0x830] sm:$0xff]
    %v289 = vld [vmem:[%s1 + $0x838] sm:$0xff]
    %v290 = vld [vmem:[%s1 + $0x840] sm:$0xff]
    %v291 = vld [vmem:[%s1 + $0x848] sm:$0xff]
    %v292 = vld [vmem:[%s1 + $0x850] sm:$0xff]
    %v293 = vld [vmem:[%s1 + $0x858] sm:$0xff]
    %v294 = vld [vmem:[%s1 + $0x860] sm:$0xff]
    %v295 = vld [vmem:[%s1 + $0x868] sm:$0xff]
    %v296 = vld [vmem:[%s1 + $0x870] sm:$0xff]
    %v297 = vld [vmem:[%s1 + $0x878] sm:$0xff]
    %v298 = vld [vmem:[%s1 + $0x880] sm:$0xff]
    %v299 = vld [vmem:[%s1 + $0x888] sm:$0xff]
    %v300 = vld [vmem:[%s1 + $0x890] sm:$0xff]
    %v301 = vld [vmem:[%s1 + $0x898] sm:$0xff]
    %v302 = vld [vmem:[%s1 + $0x8a0] sm:$0xff]
    %v303 = vld [vmem:[%s1 + $0x8a8] sm:$0xff]
    %v304 = vld [vmem:[%s1 + $0x8b0] sm:$0xff]
    %v305 = vld [vmem:[%s1 + $0x8b8] sm:$0xff]
    %v306 = vld [vmem:[%s1 + $0x8c0] sm:$0xff]
    %v307 = vld [vmem:[%s1 + $0x8c8] sm:$0xff]
    %v308 = vld [vmem:[%s1 + $0x8d0] sm:$0xff]
    %v309 = vld [vmem:[%s1 + $0x8d8] sm:$0xff]
    %v310 = vld [vmem:[%s1 + $0x8e0] sm:$0xff]
    %v311 = vld [vmem:[%s1 + $0x8e8] sm:$0xff]
    %v312 = vld [vmem:[%s1 + $0x8f0] sm:$0xff]
    %v313 = vld [vmem:[%s1 + $0x8f8] sm:$0xff]
    %v314 = vld [vmem:[%s1 + $0x900] sm:$0xff]
    %v315 = vld [vmem:[%s1 + $0x908] sm:$0xff]
    %v316 = vld [vmem:[%s1 + $0x910] sm:$0xff]
    %v317 = vld [vmem:[%s1 + $0x918] sm:$0xff]
    %v318 = vld [vmem:[%s1 + $0x920] sm:$0xff]
    %v319 = vld [vmem:[%s1 + $0x928] sm:$0xff]
    %v320 = vld [vmem:[%s1 + $0x930] sm:$0xff]
    %v321 = vld [vmem:[%s1 + $0x938] sm:$0xff]
    %v322 = vld [vmem:[%s1 + $0x940] sm:$0xff]
    %v323 = vld [vmem:[%s1 + $0x948] sm:$0xff]
    %v324 = vld [vmem:[%s1 + $0x950] sm:$0xff]
    %v325 = vld [vmem:[%s1 + $0x958] sm:$0xff]
    %v326 = vld [vmem:[%s1 + $0x960] sm:$0xff]
    %v327 = vld [vmem:[%s1 + $0x968] sm:$0xff]
    %v328 = vld [vmem:[%s1 + $0x970] sm:$0xff]
    %v329 = vld [vmem:[%s1 + $0x978] sm:$0xff]
    %v330 = vld [vmem:[%s1 + $0x980] sm:$0xff]
    %v331 = vld [vmem:[%s1 + $0x988] sm:$0xff]
    %v332 = vld [vmem:[%s1 + $0x990] sm:$0xff]
    %v333 = vld [vmem:[%s1 + $0x998] sm:$0xff]
    %v334 = vld [vmem:[%s1 + $0x9a0] sm:$0xff]
    %v335 = vld [vmem:[%s1 + $0x9a8] sm:$0xff]
    %v336 = vld [vmem:[%s1 + $0x9b0] sm:$0xff]
    %v337 = vld [vmem:[%s1 + $0x9b8] sm:$0xff]
    %v338 = vld [vmem:[%s1 + $0x9c0] sm:$0xff]
    %v339 = vld [vmem:[%s1 + $0x9c8] sm:$0xff]
    %v340 = vld [vmem:[%s1 + $0x9d0] sm:$0xff]
    %v341 = vld [vmem:[%s1 + $0x9d8] sm:$0xff]
    %v342 = vld [vmem:[%s1 + $0x9e0] sm:$0xff]
    %v343 = vld [vmem:[%s1 + $0x9e8] sm:$0xff]
    %v344 = vld [vmem:[%s1 + $0x9f0] sm:$0xff]
    %v345 = vld [vmem:[%s1 + $0x9f8] sm:$0xff]
    %v346 = vld [vmem:[%s1 + $0xa00] sm:$0xff]
    %v347 = vld [vmem:[%s1 + $0xa08] sm:$0xff]
    %v348 = vld [vmem:[%s1 + $0xa10] sm:$0xff]
    %v349 = vld [vmem:[%s1 + $0xa18] sm:$0xff]
    %v350 = vld [vmem:[%s1 + $0xa20] sm:$0xff]
    %v351 = vld [vmem:[%s1 + $0xa28] sm:$0xff]
    %v352 = vld [vmem:[%s1 + $0xa30] sm:$0xff]
    %v353 = vld [vmem:[%s1 + $0xa38] sm:$0xff]
    %v354 = vld [vmem:[%s1 + $0xa40] sm:$0xff]
    %v355 = vld [vmem:[%s1 + $0xa48] sm:$0xff]
    %v356 = vld [vmem:[%s1 + $0xa50] sm:$0xff]
    %v357 = vld [vmem:[%s1 + $0xa58] sm:$0xff]
    %v358 = vld [vmem:[%s1 + $0xa60] sm:$0xff]
    %v359 = vld [vmem:[%s1 + $0xa68] sm:$0xff]
    %v360 = vld [vmem:[%s1 + $0xa70] sm:$0xff]
    %v361 = vld [vmem:[%s1 + $0xa78] sm:$0xff]
    %v362 = vld [vmem:[%s1 + $0xa80] sm:$0xff]
    %v363 = vld [vmem:[%s1 + $0xa88] sm:$0xff]
    %v364 = vld [vmem:[%s1 + $0xa90] sm:$0xff]
    %v365 = vld [vmem:[%s1 + $0xa98] sm:$0xff]
    %v366 = vld [vmem:[%s1 + $0xaa0] sm:$0xff]
    %v367 = vld [vmem:[%s1 + $0xaa8] sm:$0xff]
    %v368 = vld [vmem:[%s1 + $0xab0] sm:$0xff]
    %v369 = vld [vmem:[%s1 + $0xab8] sm:$0xff]
    %v370 = vld [vmem:[%s1 + $0xac0] sm:$0xff]
    %v371 = vld [vmem:[%s1 + $0xac8] sm:$0xff]
    %v372 = vld [vmem:[%s1 + $0xad0] sm:$0xff]
    %v373 = vld [vmem:[%s1 + $0xad8] sm:$0xff]
    %v374 = vld [vmem:[%s1 + $0xae0] sm:$0xff]
    %v375 = vld [vmem:[%s1 + $0xae8] sm:$0xff]
    %v376 = vld [vmem:[%s1 + $0xaf0] sm:$0xff]
    %v377 = vld [vmem:[%s1 + $0xaf8] sm:$0xff]
    %v378 = vld [vmem:[%s1 + $0xb00] sm:$0xff]
    %v379 = vld [vmem:[%s1 + $0xb08] sm:$0xff]
    %v380 = vld [vmem:[%s1 + $0xb10] sm:$0xff]
    %v381 = vld [vmem:[%s1 + $0xb18] sm:$0xff]
    %v382 = vld [vmem:[%s1 + $0xb20] sm:$0xff]
    %v383 = vld [vmem:[%s1 + $0xb28] sm:$0xff]
    %v384 = vld [vmem:[%s1 + $0xb30] sm:$0xff]
    %v385 = vld [vmem:[%s1 + $0xb38] sm:$0xff]
    %v386 = vld [vmem:[%s1 + $0xb40] sm:$0xff]
    %v387 = vld [vmem:[%s1 + $0xb48] sm:$0xff]
    %v388 = vld [vmem:[%s1 + $0xb50] sm:$0xff]
    %v389 = vld [vmem:[%s1 + $0xb58] sm:$0xff]
    %v390 = vld [vmem:[%s1 + $0xb60] sm:$0xff]
    %v391 = vld [vmem:[%s1 + $0xb68] sm:$0xff]
    %v392 = vld [vmem:[%s1 + $0xb70] sm:$0xff]
    %v393 = vld [vmem:[%s1 + $0xb78] sm:$0xff]
    %v394 = vld [vmem:[%s1 + $0xb80] sm:$0xff]
    %v395 = vld [vmem:[%s1 + $0xb88] sm:$0xff]
    %v396 = vld [vmem:[%s1 + $0xb90] sm:$0xff]
    %v397 = vld [vmem:[%s1 + $0xb98] sm:$0xff]
    %v398 = vld [vmem:[%s1 + $0xba0] sm:$0xff]
    %v399 = vld [vmem:[%s1 + $0xba8] sm:$0xff]
    %v400 = vld [vmem:[%s1 + $0xbb0] sm:$0xff]
    %v401 = vld [vmem:[%s1 + $0xbb8] sm:$0xff]
    %v402 = vld [vmem:[%s1 + $0xbc0] sm:$0xff]
    %v403 = vld [vmem:[%s1 + $0xbc8] sm:$0xff]
    %v404 = vld [vmem:[%s1 + $0xbd0] sm:$0xff]
    %v405 = vld [vmem:[%s1 + $0xbd8] sm:$0xff]
    %v406 = vld [vmem:[%s1 + $0xbe0] sm:$0xff]
    %v407 = vld [vmem:[%s1 + $0xbe8] sm:$0xff]
    %v408 = vld [vmem:[%s1 + $0xbf0] sm:$0xff]
    %v409 = vld [vmem:[%s1 + $0xbf8] sm:$0xff]
    %v410 = vld [vmem:[%s1 + $0xc00] sm:$0xff]
    %v411 = vld [vmem:[%s1 + $0xc08] sm:$0xff]
    %v412 = vld [vmem:[%s1 + $0xc10] sm:$0xff]
    %v413 = vld [vmem:[%s1 + $0xc18] sm:$0xff]
    %v414 = vld [vmem:[%s1 + $0xc20] sm:$0xff]
    %v415 = vld [vmem:[%s1 + $0xc28] sm:$0xff]
    %v416 = vld [vmem:[%s1 + $0xc30] sm:$0xff]
    %v417 = vld [vmem:[%s1 + $0xc38] sm:$0xff]
    %v418 = vld [vmem:[%s1 + $0xc40] sm:$0xff]
    %v419 = vld [vmem:[%s1 + $0xc48] sm:$0xff]
    %v420 = vld [vmem:[%s1 + $0xc50] sm:$0xff]
    %v421 = vld [vmem:[%s1 + $0xc58] sm:$0xff]
    %v422 = vld [vmem:[%s1 + $0xc60] sm:$0xff]
    %v423 = vld [vmem:[%s1 + $0xc68] sm:$0xff]
    %v424 = vld [vmem:[%s1 + $0xc70] sm:$0xff]
    %v425 = vld [vmem:[%s1 + $0xc78] sm:$0xff]
    %v426 = vld [vmem:[%s1 + $0xc80] sm:$0xff]
    %v427 = vld [vmem:[%s1 + $0xc88] sm:$0xff]
    %v428 = vld [vmem:[%s1 + $0xc90] sm:$0xff]
    %v429 = vld [vmem:[%s1 + $0xc98] sm:$0xff]
    %v430 = vld [vmem:[%s1 + $0xca0] sm:$0xff]
    %v431 = vld [vmem:[%s1 + $0xca8] sm:$0xff]
    %v432 = vld [vmem:[%s1 + $0xcb0] sm:$0xff]
    %v433 = vld [vmem:[%s1 + $0xcb8] sm:$0xff]
    %v434 = vld [vmem:[%s1 + $0xcc0] sm:$0xff]
    %v435 = vld [vmem:[%s1 + $0xcc8] sm:$0xff]
    %v436 = vld [vmem:[%s1 + $0xcd0] sm:$0xff]
    %v437 = vld [vmem:[%s1 + $0xcd8] sm:$0xff]
    %v438 = vld [vmem:[%s1 + $0xce0] sm:$0xff]
    %v439 = vld [vmem:[%s1 + $0xce8] sm:$0xff]
    %v440 = vld [vmem:[%s1 + $0xcf0] sm:$0xff]
    %v441 = vld [vmem:[%s1 + $0xcf8] sm:$0xff]
    %v442 = vld [vmem:[%s1 + $0xd00] sm:$0xff]
    %v443 = vld [vmem:[%s1 + $0xd08] sm:$0xff]
    %v444 = vld [vmem:[%s1 + $0xd10] sm:$0xff]
    %v445 = vld [vmem:[%s1 + $0xd18] sm:$0xff]
    %v446 = vld [vmem:[%s1 + $0xd20] sm:$0xff]
    %v447 = vld [vmem:[%s1 + $0xd28] sm:$0xff]
    %v448 = vld [vmem:[%s1 + $0xd30] sm:$0xff]
    %v449 = vld [vmem:[%s1 + $0xd38] sm:$0xff]
    %v450 = vld [vmem:[%s1 + $0xd40] sm:$0xff]
    %v451 = vld [vmem:[%s1 + $0xd48] sm:$0xff]
    %v452 = vld [vmem:[%s1 + $0xd50] sm:$0xff]
    %v453 = vld [vmem:[%s1 + $0xd58] sm:$0xff]
    %v454 = vld [vmem:[%s1 + $0xd60] sm:$0xff]
    %v455 = vld [vmem:[%s1 + $0xd68] sm:$0xff]
    %v456 = vld [vmem:[%s1 + $0xd70] sm:$0xff]
    %v457 = vld [vmem:[%s1 + $0xd78] sm:$0xff]
    %v458 = vld [vmem:[%s1 + $0xd80] sm:$0xff]
    %v459 = vld [vmem:[%s1 + $0xd88] sm:$0xff]
    %v460 = vld [vmem:[%s1 + $0xd90] sm:$0xff]
    %v461 = vld [vmem:[%s1 + $0xd98] sm:$0xff]
    %v462 = vld [vmem:[%s1 + $0xda0] sm:$0xff]
    %v463 = vld [vmem:[%s1 + $0xda8] sm:$0xff]
    %v464 = vld [vmem:[%s1 + $0xdb0] sm:$0xff]
    %v465 = vld [vmem:[%s1 + $0xdb8] sm:$0xff]
    %v466 = vld [vmem:[%s1 + $0xdc0] sm:$0xff]
    %v467 = vld [vmem:[%s1 + $0xdc8] sm:$0xff]
    %v468 = vld [vmem:[%s1 + $0xdd0] sm:$0xff]
    %v469 = vld [vmem:[%s1 + $0xdd8] sm:$0xff]
    %v470 = vld [vmem:[%s1 + $0xde0] sm:$0xff]
    %v471 = vld [vmem:[%s1 + $0xde8] sm:$0xff]
    %v472 = vld [vmem:[%s1 + $0xdf0] sm:$0xff]
    %v473 = vld [vmem:[%s1 + $0xdf8] sm:$0xff]
    %v474 = vld [vmem:[%s1 + $0xe00] sm:$0xff]
    %v475 = vld [vmem:[%s1 + $0xe08] sm:$0xff]
    %v476 = vld [vmem:[%s1 + $0xe10] sm:$0xff]
    %v477 = vld [vmem:[%s1 + $0xe18] sm:$0xff]
    %v478 = vld [vmem:[%s1 + $0xe20] sm:$0xff]
    %v479 = vld [vmem:[%s1 + $0xe28] sm:$0xff]
    %v480 = vld [vmem:[%s1 + $0xe30] sm:$0xff]
    %v481 = vld [vmem:[%s1 + $0xe38] sm:$0xff]
    %v482 = vld [vmem:[%s1 + $0xe40] sm:$0xff]
    %v483 = vld [vmem:[%s1 + $0xe48] sm:$0xff]
    %v484 = vld [vmem:[%s1 + $0xe50] sm:$0xff]
    %v485 = vld [vmem:[%s1 + $0xe58] sm:$0xff]
    %v486 = vld [vmem:[%s1 + $0xe60] sm:$0xff]
    %v487 = vld [vmem:[%s1 + $0xe68] sm:$0xff]
    %v488 = vld [vmem:[%s1 + $0xe70] sm:$0xff]
    %v489 = vld [vmem:[%s1 + $0xe78] sm:$0xff]
    %v490 = vld [vmem:[%s1 + $0xe80] sm:$0xff]
    %v491 = vld [vmem:[%s1 + $0xe88] sm:$0xff]
    %v492 = vld [vmem:[%s1 + $0xe90] sm:$0xff]
    %v493 = vld [vmem:[%s1 + $0xe98] sm:$0xff]
    %v494 = vld [vmem:[%s1 + $0xea0] sm:$0xff]
    %v495 = vld [vmem:[%s1 + $0xea8] sm:$0xff]
    %v496 = vld [vmem:[%s1 + $0xeb0] sm:$0xff]
    %v497 = vld [vmem:[%s1 + $0xeb8] sm:$0xff]
    %v498 = vld [vmem:[%s1 + $0xec0] sm:$0xff]
    %v499 = vld [vmem:[%s1 + $0xec8] sm:$0xff]
    %v500 = vld [vmem:[%s1 + $0xed0] sm:$0xff]
    %v501 = vld [vmem:[%s1 + $0xed8] sm:$0xff]
    %v502 = vld [vmem:[%s1 + $0xee0] sm:$0xff]
    %v503 = vld [vmem:[%s1 + $0xee8] sm:$0xff]
    %v504 = vld [vmem:[%s1 + $0xef0] sm:$0xff]
    %v505 = vld [vmem:[%s1 + $0xef8] sm:$0xff]
    %v506 = vld [vmem:[%s1 + $0xf00] sm:$0xff]
    %v507 = vld [vmem:[%s1 + $0xf08] sm:$0xff]
    %v508 = vld [vmem:[%s1 + $0xf10] sm:$0xff]
    %v509 = vld [vmem:[%s1 + $0xf18] sm:$0xff]
    %v510 = vld [vmem:[%s1 + $0xf20] sm:$0xff]
    %v511 = vld [vmem:[%s1 + $0xf28] sm:$0xff]
    %v512 = vld [vmem:[%s1 + $0xf30] sm:$0xff]
    %v513 = vld [vmem:[%s1 + $0xf38] sm:$0xff]
    %v514 = vld [vmem:[%s1 + $0xf40] sm:$0xff]
    %v515 = vld [vmem:[%s1 + $0xf48] sm:$0xff]
    %v516 = vld [vmem:[%s1 + $0xf50] sm:$0xff]
    %v517 = vld [vmem:[%s1 + $0xf58] sm:$0xff]
    %v518 = vld [vmem:[%s1 + $0xf60] sm:$0xff]
    %v519 = vld [vmem:[%s1 + $0xf68] sm:$0xff]
    %v520 = vld [vmem:[%s1 + $0xf70] sm:$0xff]
    %v521 = vld [vmem:[%s1 + $0xf78] sm:$0xff]
    %v522 = vld [vmem:[%s1 + $0xf80] sm:$0xff]
    %v523 = vld [vmem:[%s1 + $0xf88] sm:$0xff]
    %v524 = vld [vmem:[%s1 + $0xf90] sm:$0xff]
    %v525 = vld [vmem:[%s1 + $0xf98] sm:$0xff]
    %v526 = vld [vmem:[%s1 + $0xfa0] sm:$0xff]
    %v527 = vld [vmem:[%s1 + $0xfa8] sm:$0xff]
    %v528 = vld [vmem:[%s1 + $0xfb0] sm:$0xff]
    %v529 = vld [vmem:[%s1 + $0xfb8] sm:$0xff]
    %v530 = vld [vmem:[%s1 + $0xfc0] sm:$0xff]
    %v531 = vld [vmem:[%s1 + $0xfc8] sm:$0xff]
    %v532 = vld [vmem:[%s1 + $0xfd0] sm:$0xff]
    %v533 = vld [vmem:[%s1 + $0xfd8] sm:$0xff]
    %v534 = vld [vmem:[%s1 + $0xfe0] sm:$0xff]
    %v535 = vld [vmem:[%s1 + $0xfe8] sm:$0xff]
    %v536 = vld [vmem:[%s1 + $0xff0] sm:$0xff]
    %v537 = vld [vmem:[%s1 + $0xff8] sm:$0xff]
    %v538 = vld [vmem:[%s1 + $0x1000] sm:$0xff]
    %v539 = vld [vmem:[%s1 + $0x1008] sm:$0xff]
    %v540 = vld [vmem:[%s1 + $0x1010] sm:$0xff]
    %v541 = vld [vmem:[%s1 + $0x1018] sm:$0xff]
    %v542 = vld [vmem:[%s1 + $0x1020] sm:$0xff]
    %v543 = vld [vmem:[%s1 + $0x1028] sm:$0xff]
    %v544 = vld [vmem:[%s1 + $0x1030] sm:$0xff]
    %v545 = vld [vmem:[%s1 + $0x1038] sm:$0xff]
    %v546 = vld [vmem:[%s1 + $0x1040] sm:$0xff]
    %v547 = vld [vmem:[%s1 + $0x1048] sm:$0xff]
    %v548 = vld [vmem:[%s1 + $0x1050] sm:$0xff]
    %v549 = vld [vmem:[%s1 + $0x1058] sm:$0xff]
    %v550 = vld [vmem:[%s1 + $0x1060] sm:$0xff]
    %v551 = vld [vmem:[%s1 + $0x1068] sm:$0xff]
    %v552 = vld [vmem:[%s1 + $0x1070] sm:$0xff]
    %v553 = vld [vmem:[%s1 + $0x1078] sm:$0xff]
    %v554 = vld [vmem:[%s1 + $0x1080] sm:$0xff]
    %v555 = vld [vmem:[%s1 + $0x1088] sm:$0xff]
    %v556 = vld [vmem:[%s1 + $0x1090] sm:$0xff]
    %v557 = vld [vmem:[%s1 + $0x1098] sm:$0xff]
    %v558 = vld [vmem:[%s1 + $0x10a0] sm:$0xff]
    %v559 = vld [vmem:[%s1 + $0x10a8] sm:$0xff]
    %v560 = vld [vmem:[%s1 + $0x10b0] sm:$0xff]
    %v561 = vld [vmem:[%s1 + $0x10b8] sm:$0xff]
    %v562 = vld [vmem:[%s1 + $0x10c0] sm:$0xff]
    %v563 = vld [vmem:[%s1 + $0x10c8] sm:$0xff]
    %v564 = vld [vmem:[%s1 + $0x10d0] sm:$0xff]
    %v565 = vld [vmem:[%s1 + $0x10d8] sm:$0xff]
    %v566 = vld [vmem:[%s1 + $0x10e0] sm:$0xff]
    %v567 = vld [vmem:[%s1 + $0x10e8] sm:$0xff]
    %v568 = vld [vmem:[%s1 + $0x10f0] sm:$0xff]
    %v569 = vld [vmem:[%s1 + $0x10f8] sm:$0xff]
    %v570 = vld [vmem:[%s1 + $0x1100] sm:$0xff]
    %v571 = vld [vmem:[%s1 + $0x1108] sm:$0xff]
    %v572 = vld [vmem:[%s1 + $0x1110] sm:$0xff]
    %v573 = vld [vmem:[%s1 + $0x1118] sm:$0xff]
    %v574 = vld [vmem:[%s1 + $0x1120] sm:$0xff]
    %v575 = vld [vmem:[%s1 + $0x1128] sm:$0xff]
    %v576 = vld [vmem:[%s1 + $0x1130] sm:$0xff]
    %v577 = vld [vmem:[%s1 + $0x1138] sm:$0xff]
    %v578 = vld [vmem:[%s1 + $0x1140] sm:$0xff]
    %v579 = vld [vmem:[%s1 + $0x1148] sm:$0xff]
    %v580 = vld [vmem:[%s1 + $0x1150] sm:$0xff]
    %v581 = vld [vmem:[%s1 + $0x1158] sm:$0xff]
    %v582 = vld [vmem:[%s1 + $0x1160] sm:$0xff]
    %v583 = vld [vmem:[%s1 + $0x1168] sm:$0xff]
    %v584 = vld [vmem:[%s1 + $0x1170] sm:$0xff]
    %v585 = vld [vmem:[%s1 + $0x1178] sm:$0xff]
    %v586 = vld [vmem:[%s1 + $0x1180] sm:$0xff]
    %v587 = vld [vmem:[%s1 + $0x1188] sm:$0xff]
    %v588 = vld [vmem:[%s1 + $0x1190] sm:$0xff]
    %v589 = vld [vmem:[%s1 + $0x1198] sm:$0xff]
    %v590 = vld [vmem:[%s1 + $0x11a0] sm:$0xff]
    %v591 = vld [vmem:[%s1 + $0x11a8] sm:$0xff]
    %v592 = vld [vmem:[%s1 + $0x11b0] sm:$0xff]
    %v593 = vld [vmem:[%s1 + $0x11b8] sm:$0xff]
    %v594 = vld [vmem:[%s1 + $0x11c0] sm:$0xff]
    %v595 = vld [vmem:[%s1 + $0x11c8] sm:$0xff]
    %v596 = vld [vmem:[%s1 + $0x11d0] sm:$0xff]
    %v597 = vld [vmem:[%s1 + $0x11d8] sm:$0xff]
    %v598 = vld [vmem:[%s1 + $0x11e0] sm:$0xff]
    %v599 = vld [vmem:[%s1 + $0x11e8] sm:$0xff]
    %v600 = vld [vmem:[%s1 + $0x11f0] sm:$0xff]
    %v601 = vld [vmem:[%s1 + $0x11f8] sm:$0xff]
    %v602 = vld [vmem:[%s1 + $0x1200] sm:$0xff]
    %v603 = vld [vmem:[%s1 + $0x1208] sm:$0xff]
    %v604 = vld [vmem:[%s1 + $0x1210] sm:$0xff]
    %v605 = vld [vmem:[%s1 + $0x1218] sm:$0xff]
    %v606 = vld [vmem:[%s1 + $0x1220] sm:$0xff]
    %v607 = vld [vmem:[%s1 + $0x1228] sm:$0xff]
    %v608 = vld [vmem:[%s1 + $0x1230] sm:$0xff]
    %v609 = vld [vmem:[%s1 + $0x1238] sm:$0xff]
    %v610 = vld [vmem:[%s1 + $0x1240] sm:$0xff]
    %v611 = vld [vmem:[%s1 + $0x1248] sm:$0xff]
    %v612 = vld [vmem:[%s1 + $0x1250] sm:$0xff]
    %v613 = vld [vmem:[%s1 + $0x1258] sm:$0xff]
    %v614 = vld [vmem:[%s1 + $0x1260] sm:$0xff]
    %v615 = vld [vmem:[%s1 + $0x1268] sm:$0xff]
    %v616 = vld [vmem:[%s1 + $0x1270] sm:$0xff]
    %v617 = vld [vmem:[%s1 + $0x1278] sm:$0xff]
    %v618 = vld [vmem:[%s1 + $0x1280] sm:$0xff]
    %v619 = vld [vmem:[%s1 + $0x1288] sm:$0xff]
    %v620 = vld [vmem:[%s1 + $0x1290] sm:$0xff]
    %v621 = vld [vmem:[%s1 + $0x1298] sm:$0xff]
    %v622 = vld [vmem:[%s1 + $0x12a0] sm:$0xff]
    %v623 = vld [vmem:[%s1 + $0x12a8] sm:$0xff]
    %v624 = vld [vmem:[%s1 + $0x12b0] sm:$0xff]
    %v625 = vld [vmem:[%s1 + $0x12b8] sm:$0xff]
    %v626 = vld [vmem:[%s1 + $0x12c0] sm:$0xff]
    %v627 = vld [vmem:[%s1 + $0x12c8] sm:$0xff]
    %v628 = vld [vmem:[%s1 + $0x12d0] sm:$0xff]
    %v629 = vld [vmem:[%s1 + $0x12d8] sm:$0xff]
    %v630 = vld [vmem:[%s1 + $0x12e0] sm:$0xff]
    %v631 = vld [vmem:[%s1 + $0x12e8] sm:$0xff]
    %v632 = vld [vmem:[%s1 + $0x12f0] sm:$0xff]
    %v633 = vld [vmem:[%s1 + $0x12f8] sm:$0xff]
    %v634 = vld [vmem:[%s1 + $0x1300] sm:$0xff]
    %v635 = vld [vmem:[%s1 + $0x1308] sm:$0xff]
    %v636 = vld [vmem:[%s1 + $0x1310] sm:$0xff]
    %v637 = vld [vmem:[%s1 + $0x1318] sm:$0xff]
    %v638 = vld [vmem:[%s1 + $0x1320] sm:$0xff]
    %v639 = vld [vmem:[%s1 + $0x1328] sm:$0xff]
    %v640 = vld [vmem:[%s1 + $0x1330] sm:$0xff]
    %v641 = vld [vmem:[%s1 + $0x1338] sm:$0xff]
    %v642 = vld [vmem:[%s1 + $0x1340] sm:$0xff]
    %v643 = vld [vmem:[%s1 + $0x1348] sm:$0xff]
    %v644 = vld [vmem:[%s1 + $0x1350] sm:$0xff]
    %v645 = vld [vmem:[%s1 + $0x1358] sm:$0xff]
    %v646 = vld [vmem:[%s1 + $0x1360] sm:$0xff]
    %v647 = vld [vmem:[%s1 + $0x1368] sm:$0xff]
    %v648 = vld [vmem:[%s1 + $0x1370] sm:$0xff]
    %v649 = vld [vmem:[%s1 + $0x1378] sm:$0xff]
    %v650 = vld [vmem:[%s1 + $0x1380] sm:$0xff]
    %v651 = vld [vmem:[%s1 + $0x1388] sm:$0xff]
    %v652 = vld [vmem:[%s1 + $0x1390] sm:$0xff]
    %v653 = vld [vmem:[%s1 + $0x1398] sm:$0xff]
    %v654 = vld [vmem:[%s1 + $0x13a0] sm:$0xff]
    %v655 = vld [vmem:[%s1 + $0x13a8] sm:$0xff]
    %v656 = vld [vmem:[%s1 + $0x13b0] sm:$0xff]
    %v657 = vld [vmem:[%s1 + $0x13b8] sm:$0xff]
    %v658 = vld [vmem:[%s1 + $0x13c0] sm:$0xff]
    %v659 = vld [vmem:[%s1 + $0x13c8] sm:$0xff]
    %v660 = vld [vmem:[%s1 + $0x13d0] sm:$0xff]
    %v661 = vld [vmem:[%s1 + $0x13d8] sm:$0xff]
    %v662 = vld [vmem:[%s1 + $0x13e0] sm:$0xff]
    %v663 = vld [vmem:[%s1 + $0x13e8] sm:$0xff]
    %v664 = vld [vmem:[%s1 + $0x13f0] sm:$0xff]
    %v665 = vld [vmem:[%s1 + $0x13f8] sm:$0xff]
    %v666 = vld [vmem:[%s1 + $0x1400] sm:$0xff]
    %v667 = vld [vmem:[%s1 + $0x1408] sm:$0xff]
    %v668 = vld [vmem:[%s1 + $0x1410] sm:$0xff]
    %v669 = vld [vmem:[%s1 + $0x1418] sm:$0xff]
    %v670 = vld [vmem:[%s1 + $0x1420] sm:$0xff]
    %v671 = vld [vmem:[%s1 + $0x1428] sm:$0xff]
    %v672 = vld [vmem:[%s1 + $0x1430] sm:$0xff]
    %v673 = vld [vmem:[%s1 + $0x1438] sm:$0xff]
    %v674 = vld [vmem:[%s1 + $0x1440] sm:$0xff]
    %v675 = vld [vmem:[%s1 + $0x1448] sm:$0xff]
    %v676 = vld [vmem:[%s1 + $0x1450] sm:$0xff]
    %v677 = vld [vmem:[%s1 + $0x1458] sm:$0xff]
    %v678 = vld [vmem:[%s1 + $0x1460] sm:$0xff]
    %v679 = vld [vmem:[%s1 + $0x1468] sm:$0xff]
    %v680 = vld [vmem:[%s1 + $0x1470] sm:$0xff]
    %v681 = vld [vmem:[%s1 + $0x1478] sm:$0xff]
    %v682 = vld [vmem:[%s1 + $0x1480] sm:$0xff]
    %v683 = vld [vmem:[%s1 + $0x1488] sm:$0xff]
    %v684 = vld [vmem:[%s1 + $0x1490] sm:$0xff]
    %v685 = vld [vmem:[%s1 + $0x1498] sm:$0xff]
    %v686 = vld [vmem:[%s1 + $0x14a0] sm:$0xff]
    %v687 = vld [vmem:[%s1 + $0x14a8] sm:$0xff]
    %v688 = vld [vmem:[%s1 + $0x14b0] sm:$0xff]
    %v689 = vld [vmem:[%s1 + $0x14b8] sm:$0xff]
    %v690 = vld [vmem:[%s1 + $0x14c0] sm:$0xff]
    %v691 = vld [vmem:[%s1 + $0x14c8] sm:$0xff]
    %v692 = vld [vmem:[%s1 + $0x14d0] sm:$0xff]
    %v693 = vld [vmem:[%s1 + $0x14d8] sm:$0xff]
    %v694 = vld [vmem:[%s1 + $0x14e0] sm:$0xff]
    %v695 = vld [vmem:[%s1 + $0x14e8] sm:$0xff]
    %v696 = vld [vmem:[%s1 + $0x14f0] sm:$0xff]
    %v697 = vld [vmem:[%s1 + $0x14f8] sm:$0xff]
    %v698 = vld [vmem:[%s1 + $0x1500] sm:$0xff]
    %v699 = vld [vmem:[%s1 + $0x1508] sm:$0xff]
    %v700 = vld [vmem:[%s1 + $0x1510] sm:$0xff]
    %v701 = vld [vmem:[%s1 + $0x1518] sm:$0xff]
    %v702 = vld [vmem:[%s1 + $0x1520] sm:$0xff]
    %v703 = vld [vmem:[%s1 + $0x1528] sm:$0xff]
    %v704 = vld [vmem:[%s1 + $0x1530] sm:$0xff]
    %v705 = vld [vmem:[%s1 + $0x1538] sm:$0xff]
    %v706 = vld [vmem:[%s1 + $0x1540] sm:$0xff]
    %v707 = vld [vmem:[%s1 + $0x1548] sm:$0xff]
    %v708 = vld [vmem:[%s1 + $0x1550] sm:$0xff]
    %v709 = vld [vmem:[%s1 + $0x1558] sm:$0xff]
    %v710 = vld [vmem:[%s1 + $0x1560] sm:$0xff]
    %v711 = vld [vmem:[%s1 + $0x1568] sm:$0xff]
    %v712 = vld [vmem:[%s1 + $0x1570] sm:$0xff]
    %v713 = vld [vmem:[%s1 + $0x1578] sm:$0xff]
    %v714 = vld [vmem:[%s1 + $0x1580] sm:$0xff]
    %v715 = vld [vmem:[%s1 + $0x1588] sm:$0xff]
    %v716 = vld [vmem:[%s1 + $0x1590] sm:$0xff]
    %v717 = vld [vmem:[%s1 + $0x1598] sm:$0xff]
    %v718 = vld [vmem:[%s1 + $0x15a0] sm:$0xff]
    %v719 = vld [vmem:[%s1 + $0x15a8] sm:$0xff]
    %v720 = vld [vmem:[%s1 + $0x15b0] sm:$0xff]
    %v721 = vld [vmem:[%s1 + $0x15b8] sm:$0xff]
    %v722 = vld [vmem:[%s1 + $0x15c0] sm:$0xff]
    %v723 = vld [vmem:[%s1 + $0x15c8] sm:$0xff]
    %v724 = vld [vmem:[%s1 + $0x15d0] sm:$0xff]
    %v725 = vld [vmem:[%s1 + $0x15d8] sm:$0xff]
    %v726 = vld [vmem:[%s1 + $0x15e0] sm:$0xff]
    %v727 = vld [vmem:[%s1 + $0x15e8] sm:$0xff]
    %v728 = vld [vmem:[%s1 + $0x15f0] sm:$0xff]
    %v729 = vld [vmem:[%s1 + $0x15f8] sm:$0xff]
    %v730 = vld [vmem:[%s1 + $0x1600] sm:$0xff]
    %v731 = vld [vmem:[%s1 + $0x1608] sm:$0xff]
    %v732 = vld [vmem:[%s1 + $0x1610] sm:$0xff]
    %v733 = vld [vmem:[%s1 + $0x1618] sm:$0xff]
    %v734 = vld [vmem:[%s1 + $0x1620] sm:$0xff]
    %v735 = vld [vmem:[%s1 + $0x1628] sm:$0xff]
    %v736 = vld [vmem:[%s1 + $0x1630] sm:$0xff]
    %v737 = vld [vmem:[%s1 + $0x1638] sm:$0xff]
    %v738 = vld [vmem:[%s1 + $0x1640] sm:$0xff]
    %v739 = vld [vmem:[%s1 + $0x1648] sm:$0xff]
    %v740 = vld [vmem:[%s1 + $0x1650] sm:$0xff]
    %v741 = vld [vmem:[%s1 + $0x1658] sm:$0xff]
    %v742 = vld [vmem:[%s1 + $0x1660] sm:$0xff]
    %v743 = vld [vmem:[%s1 + $0x1668] sm:$0xff]
    %v744 = vld [vmem:[%s1 + $0x1670] sm:$0xff]
    %v745 = vld [vmem:[%s1 + $0x1678] sm:$0xff]
    %v746 = vld [vmem:[%s1 + $0x1680] sm:$0xff]
    %v747 = vld [vmem:[%s1 + $0x1688] sm:$0xff]
    %v748 = vld [vmem:[%s1 + $0x1690] sm:$0xff]
    %v749 = vld [vmem:[%s1 + $0x1698] sm:$0xff]
    %v750 = vld [vmem:[%s1 + $0x16a0] sm:$0xff]
    %v751 = vld [vmem:[%s1 + $0x16a8] sm:$0xff]
    %v752 = vld [vmem:[%s1 + $0x16b0] sm:$0xff]
    %v753 = vld [vmem:[%s1 + $0x16b8] sm:$0xff]
    %v754 = vld [vmem:[%s1 + $0x16c0] sm:$0xff]
    %v755 = vld [vmem:[%s1 + $0x16c8] sm:$0xff]
    %v756 = vld [vmem:[%s1 + $0x16d0] sm:$0xff]
    %v757 = vld [vmem:[%s1 + $0x16d8] sm:$0xff]
    %v758 = vld [vmem:[%s1 + $0x16e0] sm:$0xff]
    %v759 = vld [vmem:[%s1 + $0x16e8] sm:$0xff]
    %v760 = vld [vmem:[%s1 + $0x16f0] sm:$0xff]
    %v761 = vld [vmem:[%s1 + $0x16f8] sm:$0xff]
    %v762 = vld [vmem:[%s1 + $0x1700] sm:$0xff]
    %v763 = vld [vmem:[%s1 + $0x1708] sm:$0xff]
    %v764 = vld [vmem:[%s1 + $0x1710] sm:$0xff]
    %v765 = vld [vmem:[%s1 + $0x1718] sm:$0xff]
    %v766 = vld [vmem:[%s1 + $0x1720] sm:$0xff]
    %v767 = vld [vmem:[%s1 + $0x1728] sm:$0xff]
    %v768 = vld [vmem:[%s1 + $0x1730] sm:$0xff]
    %v769 = vld [vmem:[%s1 + $0x1738] sm:$0xff]
    %v770 = vld [vmem:[%s1 + $0x1740] sm:$0xff]
    %v771 = vld [vmem:[%s1 + $0x1748] sm:$0xff]
    %v772 = vld [vmem:[%s1 + $0x1750] sm:$0xff]
    %v773 = vld [vmem:[%s1 + $0x1758] sm:$0xff]
    %v774 = vld [vmem:[%s1 + $0x1760] sm:$0xff]
    %v775 = vld [vmem:[%s1 + $0x1768] sm:$0xff]
    %v776 = vld [vmem:[%s1 + $0x1770] sm:$0xff]
    %v777 = vld [vmem:[%s1 + $0x1778] sm:$0xff]
    %v778 = vld [vmem:[%s1 + $0x1780] sm:$0xff]
    %v779 = vld [vmem:[%s1 + $0x1788] sm:$0xff]
    %v780 = vld [vmem:[%s1 + $0x1790] sm:$0xff]
    %v781 = vld [vmem:[%s1 + $0x1798] sm:$0xff]
    %v782 = vld [vmem:[%s1 + $0x17a0] sm:$0xff]
    %v783 = vld [vmem:[%s1 + $0x17a8] sm:$0xff]
    %v784 = vld [vmem:[%s1 + $0x17b0] sm:$0xff]
    %v785 = vld [vmem:[%s1 + $0x17b8] sm:$0xff]
    %v786 = vld [vmem:[%s1 + $0x17c0] sm:$0xff]
    %v787 = vld [vmem:[%s1 + $0x17c8] sm:$0xff]
    %v788 = vld [vmem:[%s1 + $0x17d0] sm:$0xff]
    %v789 = vld [vmem:[%s1 + $0x17d8] sm:$0xff]
    %v790 = vld [vmem:[%s1 + $0x17e0] sm:$0xff]
    %v791 = vld [vmem:[%s1 + $0x17e8] sm:$0xff]
    %v792 = vld [vmem:[%s1 + $0x17f0] sm:$0xff]
    %v793 = vld [vmem:[%s1 + $0x17f8] sm:$0xff]
    %v794 = vld [vmem:[%s1 + $0x1800] sm:$0xff]
    %v795 = vld [vmem:[%s1 + $0x1808] sm:$0xff]
    %v796 = vld [vmem:[%s1 + $0x1810] sm:$0xff]
    %v797 = vld [vmem:[%s1 + $0x1818] sm:$0xff]
    %v798 = vld [vmem:[%s1 + $0x1820] sm:$0xff]
    %v799 = vld [vmem:[%s1 + $0x1828] sm:$0xff]
    %v800 = vld [vmem:[%s1 + $0x1830] sm:$0xff]
    %v801 = vld [vmem:[%s1 + $0x1838] sm:$0xff]
    %v802 = vld [vmem:[%s1 + $0x1840] sm:$0xff]
    %v803 = vld [vmem:[%s1 + $0x1848] sm:$0xff]
    %v804 = vld [vmem:[%s1 + $0x1850] sm:$0xff]
    %v805 = vld [vmem:[%s1 + $0x1858] sm:$0xff]
    %v806 = vld [vmem:[%s1 + $0x1860] sm:$0xff]
    %v807 = vld [vmem:[%s1 + $0x1868] sm:$0xff]
    %v808 = vld [vmem:[%s1 + $0x1870] sm:$0xff]
    %v809 = vld [vmem:[%s1 + $0x1878] sm:$0xff]
    %v810 = vld [vmem:[%s2] sm:$0xf]
    %v812 = vlaneseq
    %v813 = vshrl.u32 %v812, 7
    %v814 = vsub.s32 0, %v813
    %v815 = vrot.slane %v810, %v814
    %v816 = vlaneseq
    %v817 = vshrl.u32 %v816, 7
    %v818 = vsub.s32 1, %v817
    %v819 = vrot.slane %v810, %v818
    %v820 = vlaneseq
    %v821 = vshrl.u32 %v820, 7
    %v822 = vsub.s32 2, %v821
    %v823 = vrot.slane %v810, %v822
    %v824 = vlaneseq
    %v825 = vshrl.u32 %v824, 7
    %v826 = vsub.s32 3, %v825
    %v827 = vrot.slane %v810, %v826
    %v836 = vcombine.high %v22, %v22
    %v838 = vunpack.c.l.s4 1966171168
    %v839 = vunpack.c.0.s8 %v838
    %v840 = vlaneseq
    %v841 = vshrl.u32 %v840, 7
    %v842 = vsub.s32 %v839, %v841
    %v843 = vrot.slane %v22, %v842
    %v845 = vunpack.c.l.s4 1966171168
    %v846 = vunpack.c.0.s8 %v845
    %v847 = vlaneseq
    %v848 = vshrl.u32 %v847, 7
    %v849 = vsub.s32 %v846, %v848
    %v850 = vrot.slane %v836, %v849
    %v851 = vcombine.high %v843, %v843
    %v852 = vcombine.high %v850, %v850
    %v854 = vunpack.c.l.s4 1966171168
    %v855 = vunpack.c.0.s8 %v854
    %v856 = vlaneseq
    %v857 = vshrl.u32 %v856, 7
    %v858 = vsub.s32 %v855, %v857
    %v859 = vrot.slane %v843, %v858
    %v861 = vunpack.c.l.s4 1966171168
    %v862 = vunpack.c.0.s8 %v861
    %v863 = vlaneseq
    %v864 = vshrl.u32 %v863, 7
    %v865 = vsub.s32 %v862, %v864
    %v866 = vrot.slane %v850, %v865
    %v868 = vunpack.c.l.s4 1966171168
    %v869 = vunpack.c.0.s8 %v868
    %v870 = vlaneseq
    %v871 = vshrl.u32 %v870, 7
    %v872 = vsub.s32 %v869, %v871
    %v873 = vrot.slane %v851, %v872
    %v875 = vunpack.c.l.s4 1966171168
    %v876 = vunpack.c.0.s8 %v875
    %v877 = vlaneseq
    %v878 = vshrl.u32 %v877, 7
    %v879 = vsub.s32 %v876, %v878
    %v880 = vrot.slane %v852, %v879
    %v881 = vcombine.high %v859, %v859
    %v882 = vcombine.high %v866, %v866
    %v883 = vcombine.high %v873, %v873
    %v884 = vcombine.high %v880, %v880
    %v885 = vcombine.high %v23, %v23
    %v887 = vunpack.c.l.s4 1966171168
    %v888 = vunpack.c.0.s8 %v887
    %v889 = vlaneseq
    %v890 = vshrl.u32 %v889, 7
    %v891 = vsub.s32 %v888, %v890
    %v892 = vrot.slane %v23, %v891
    %v894 = vunpack.c.l.s4 1966171168
    %v895 = vunpack.c.0.s8 %v894
    %v896 = vlaneseq
    %v897 = vshrl.u32 %v896, 7
    %v898 = vsub.s32 %v895, %v897
    %v899 = vrot.slane %v885, %v898
    %v900 = vcombine.high %v892, %v892
    %v901 = vcombine.high %v899, %v899
    %v903 = vunpack.c.l.s4 1966171168
    %v904 = vunpack.c.0.s8 %v903
    %v905 = vlaneseq
    %v906 = vshrl.u32 %v905, 7
    %v907 = vsub.s32 %v904, %v906
    %v908 = vrot.slane %v892, %v907
    %v910 = vunpack.c.l.s4 1966171168
    %v911 = vunpack.c.0.s8 %v910
    %v912 = vlaneseq
    %v913 = vshrl.u32 %v912, 7
    %v914 = vsub.s32 %v911, %v913
    %v915 = vrot.slane %v899, %v914
    %v917 = vunpack.c.l.s4 1966171168
    %v918 = vunpack.c.0.s8 %v917
    %v919 = vlaneseq
    %v920 = vshrl.u32 %v919, 7
    %v921 = vsub.s32 %v918, %v920
    %v922 = vrot.slane %v900, %v921
    %v924 = vunpack.c.l.s4 1966171168
    %v925 = vunpack.c.0.s8 %v924
    %v926 = vlaneseq
    %v927 = vshrl.u32 %v926, 7
    %v928 = vsub.s32 %v925, %v927
    %v929 = vrot.slane %v901, %v928
    %v930 = vcombine.high %v908, %v908
    %v931 = vcombine.high %v915, %v915
    %v932 = vcombine.high %v922, %v922
    %v933 = vcombine.high %v929, %v929
    %v934 = vcombine.high %v24, %v24
    %v936 = vunpack.c.l.s4 1966171168
    %v937 = vunpack.c.0.s8 %v936
    %v938 = vlaneseq
    %v939 = vshrl.u32 %v938, 7
    %v940 = vsub.s32 %v937, %v939
    %v941 = vrot.slane %v24, %v940
    %v943 = vunpack.c.l.s4 1966171168
    %v944 = vunpack.c.0.s8 %v943
    %v945 = vlaneseq
    %v946 = vshrl.u32 %v945, 7
    %v947 = vsub.s32 %v944, %v946
    %v948 = vrot.slane %v934, %v947
    %v949 = vcombine.high %v941, %v941
    %v950 = vcombine.high %v948, %v948
    %v952 = vunpack.c.l.s4 1966171168
    %v953 = vunpack.c.0.s8 %v952
    %v954 = vlaneseq
    %v955 = vshrl.u32 %v954, 7
    %v956 = vsub.s32 %v953, %v955
    %v957 = vrot.slane %v941, %v956
    %v959 = vunpack.c.l.s4 1966171168
    %v960 = vunpack.c.0.s8 %v959
    %v961 = vlaneseq
    %v962 = vshrl.u32 %v961, 7
    %v963 = vsub.s32 %v960, %v962
    %v964 = vrot.slane %v948, %v963
    %v966 = vunpack.c.l.s4 1966171168
    %v967 = vunpack.c.0.s8 %v966
    %v968 = vlaneseq
    %v969 = vshrl.u32 %v968, 7
    %v970 = vsub.s32 %v967, %v969
    %v971 = vrot.slane %v949, %v970
    %v973 = vunpack.c.l.s4 1966171168
    %v974 = vunpack.c.0.s8 %v973
    %v975 = vlaneseq
    %v976 = vshrl.u32 %v975, 7
    %v977 = vsub.s32 %v974, %v976
    %v978 = vrot.slane %v950, %v977
    %v979 = vcombine.high %v957, %v957
    %v980 = vcombine.high %v964, %v964
    %v981 = vcombine.high %v971, %v971
    %v982 = vcombine.high %v978, %v978
    %v984 = vunpack.c.l.s4 1966171168
    %v985 = vunpack.c.0.s8 %v984
    %v986 = vlaneseq
    %v987 = vshrl.u32 %v986, 7
    %v988 = vsub.s32 %v985, %v987
    %v989 = vrot.slane %v25, %v988
    %v991 = vunpack.c.l.s4 1966171168
    %v992 = vunpack.c.0.s8 %v991
    %v993 = vlaneseq
    %v994 = vshrl.u32 %v993, 7
    %v995 = vsub.s32 %v992, %v994
    %v996 = vrot.slane %v989, %v995
    %v1805 = vunpack.c.l.b16 %v26
    %v1806 = vunpack.c.h.b16 %v26
    %v1807 = vunpack.c.l.b16 %v27
    %v1808 = vunpack.c.h.b16 %v27
    %v1809 = vunpack.c.l.b16 %v28
    %v1810 = vunpack.c.h.b16 %v28
    %v1811 = vunpack.c.l.b16 %v29
    %v1812 = vunpack.c.h.b16 %v29
    %v1813 = vunpack.c.l.b16 %v30
    %v1814 = vunpack.c.h.b16 %v30
    %v1815 = vunpack.c.l.b16 %v31
    %v1816 = vunpack.c.h.b16 %v31
    %v1817 = vunpack.c.l.b16 %v32
    %v1818 = vunpack.c.h.b16 %v32
    %v1819 = vunpack.c.l.b16 %v33
    %v1820 = vunpack.c.h.b16 %v33
    %v1821 = vunpack.c.l.b16 %v34
    %v1822 = vunpack.c.h.b16 %v34
    %v1823 = vunpack.c.l.b16 %v35
    %v1824 = vunpack.c.h.b16 %v35
    %v1825 = vunpack.c.l.b16 %v36
    %v1826 = vunpack.c.h.b16 %v36
    %v1827 = vunpack.c.l.b16 %v37
    %v1828 = vunpack.c.h.b16 %v37
    %v1829 = vunpack.c.l.b16 %v38
    %v1830 = vunpack.c.h.b16 %v38
    %v1831 = vunpack.c.l.b16 %v39
    %v1832 = vunpack.c.h.b16 %v39
    %v1833 = vunpack.c.l.b16 %v40
    %v1834 = vunpack.c.h.b16 %v40
    %v1835 = vunpack.c.l.b16 %v41
    %v1836 = vunpack.c.h.b16 %v41
    %v1837 = vunpack.c.l.b16 %v42
    %v1838 = vunpack.c.h.b16 %v42
    %v1839 = vunpack.c.l.b16 %v43
    %v1840 = vunpack.c.h.b16 %v43
    %v1841 = vunpack.c.l.b16 %v44
    %v1842 = vunpack.c.h.b16 %v44
    %v1843 = vunpack.c.l.b16 %v45
    %v1844 = vunpack.c.h.b16 %v45
    %v1845 = vunpack.c.l.b16 %v46
    %v1846 = vunpack.c.h.b16 %v46
    %v1847 = vunpack.c.l.b16 %v47
    %v1848 = vunpack.c.h.b16 %v47
    %v1849 = vunpack.c.l.b16 %v48
    %v1850 = vunpack.c.h.b16 %v48
    %v1851 = vunpack.c.l.b16 %v49
    %v1852 = vunpack.c.h.b16 %v49
    %v1853 = vunpack.c.l.b16 %v50
    %v1854 = vunpack.c.h.b16 %v50
    %v1855 = vunpack.c.l.b16 %v51
    %v1856 = vunpack.c.h.b16 %v51
    %v1857 = vunpack.c.l.b16 %v52
    %v1858 = vunpack.c.h.b16 %v52
    %v1859 = vunpack.c.l.b16 %v53
    %v1860 = vunpack.c.h.b16 %v53
    %v1861 = vunpack.c.l.b16 %v54
    %v1862 = vunpack.c.h.b16 %v54
    %v1863 = vunpack.c.l.b16 %v55
    %v1864 = vunpack.c.h.b16 %v55
    %v1865 = vunpack.c.l.b16 %v56
    %v1866 = vunpack.c.h.b16 %v56
    %v1867 = vunpack.c.l.b16 %v57
    %v1868 = vunpack.c.h.b16 %v57
    %v1869 = vunpack.c.l.b16 %v58
    %v1870 = vunpack.c.h.b16 %v58
    %v1871 = vunpack.c.l.b16 %v59
    %v1872 = vunpack.c.h.b16 %v59
    %v1873 = vunpack.c.l.b16 %v60
    %v1874 = vunpack.c.h.b16 %v60
    %v1875 = vunpack.c.l.b16 %v61
    %v1876 = vunpack.c.h.b16 %v61
    %v1877 = vunpack.c.l.b16 %v62
    %v1878 = vunpack.c.h.b16 %v62
    %v1879 = vunpack.c.l.b16 %v63
    %v1880 = vunpack.c.h.b16 %v63
    %v1881 = vunpack.c.l.b16 %v64
    %v1882 = vunpack.c.h.b16 %v64
    %v1883 = vunpack.c.l.b16 %v65
    %v1884 = vunpack.c.h.b16 %v65
    %v1885 = vunpack.c.l.b16 %v66
    %v1886 = vunpack.c.h.b16 %v66
    %v1887 = vunpack.c.l.b16 %v67
    %v1888 = vunpack.c.h.b16 %v67
    %v1889 = vunpack.c.l.b16 %v68
    %v1890 = vunpack.c.h.b16 %v68
    %v1891 = vunpack.c.l.b16 %v69
    %v1892 = vunpack.c.h.b16 %v69
    %v1893 = vunpack.c.l.b16 %v70
    %v1894 = vunpack.c.h.b16 %v70
    %v1895 = vunpack.c.l.b16 %v71
    %v1896 = vunpack.c.h.b16 %v71
    %v1897 = vunpack.c.l.b16 %v72
    %v1898 = vunpack.c.h.b16 %v72
    %v1899 = vunpack.c.l.b16 %v73
    %v1900 = vunpack.c.h.b16 %v73
    %v1901 = vunpack.c.l.b16 %v74
    %v1902 = vunpack.c.h.b16 %v74
    %v1903 = vunpack.c.l.b16 %v75
    %v1904 = vunpack.c.h.b16 %v75
    %v1905 = vunpack.c.l.b16 %v76
    %v1906 = vunpack.c.h.b16 %v76
    %v1907 = vunpack.c.l.b16 %v77
    %v1908 = vunpack.c.h.b16 %v77
    %v1909 = vunpack.c.l.b16 %v78
    %v1910 = vunpack.c.h.b16 %v78
    %v1911 = vunpack.c.l.b16 %v79
    %v1912 = vunpack.c.h.b16 %v79
    %v1913 = vunpack.c.l.b16 %v80
    %v1914 = vunpack.c.h.b16 %v80
    %v1915 = vunpack.c.l.b16 %v81
    %v1916 = vunpack.c.h.b16 %v81
    %v1917 = vunpack.c.l.b16 %v82
    %v1918 = vunpack.c.h.b16 %v82
    %v1919 = vunpack.c.l.b16 %v83
    %v1920 = vunpack.c.h.b16 %v83
    %v1921 = vunpack.c.l.b16 %v84
    %v1922 = vunpack.c.h.b16 %v84
    %v1923 = vunpack.c.l.b16 %v85
    %v1924 = vunpack.c.h.b16 %v85
    %v1925 = vunpack.c.l.b16 %v86
    %v1926 = vunpack.c.h.b16 %v86
    %v1927 = vunpack.c.l.b16 %v87
    %v1928 = vunpack.c.h.b16 %v87
    %v1929 = vunpack.c.l.b16 %v88
    %v1930 = vunpack.c.h.b16 %v88
    %v1931 = vunpack.c.l.b16 %v89
    %v1932 = vunpack.c.h.b16 %v89
    %v1933 = vunpack.c.l.b16 %v90
    %v1934 = vunpack.c.h.b16 %v90
    %v1935 = vunpack.c.l.b16 %v91
    %v1936 = vunpack.c.h.b16 %v91
    %v1937 = vunpack.c.l.b16 %v92
    %v1938 = vunpack.c.h.b16 %v92
    %v1939 = vunpack.c.l.b16 %v93
    %v1940 = vunpack.c.h.b16 %v93
    %v1941 = vunpack.c.l.b16 %v94
    %v1942 = vunpack.c.h.b16 %v94
    %v1943 = vunpack.c.l.b16 %v95
    %v1944 = vunpack.c.h.b16 %v95
    %v1945 = vunpack.c.l.b16 %v96
    %v1946 = vunpack.c.h.b16 %v96
    %v1947 = vunpack.c.l.b16 %v97
    %v1948 = vunpack.c.h.b16 %v97
    %v1949 = vunpack.c.l.b16 %v98
    %v1950 = vunpack.c.h.b16 %v98
    %v1951 = vunpack.c.l.b16 %v99
    %v1952 = vunpack.c.h.b16 %v99
    %v1953 = vunpack.c.l.b16 %v100
    %v1954 = vunpack.c.h.b16 %v100
    %v1955 = vunpack.c.l.b16 %v101
    %v1956 = vunpack.c.h.b16 %v101
    %v1957 = vunpack.c.l.b16 %v102
    %v1958 = vunpack.c.h.b16 %v102
    %v1959 = vunpack.c.l.b16 %v103
    %v1960 = vunpack.c.h.b16 %v103
    %v1961 = vunpack.c.l.b16 %v104
    %v1962 = vunpack.c.h.b16 %v104
    %v1963 = vunpack.c.l.b16 %v105
    %v1964 = vunpack.c.h.b16 %v105
    %v1965 = vunpack.c.l.b16 %v106
    %v1966 = vunpack.c.h.b16 %v106
    %v1967 = vunpack.c.l.b16 %v107
    %v1968 = vunpack.c.h.b16 %v107
    %v1969 = vunpack.c.l.b16 %v108
    %v1970 = vunpack.c.h.b16 %v108
    %v1971 = vunpack.c.l.b16 %v109
    %v1972 = vunpack.c.h.b16 %v109
    %v1973 = vunpack.c.l.b16 %v110
    %v1974 = vunpack.c.h.b16 %v110
    %v1975 = vunpack.c.l.b16 %v111
    %v1976 = vunpack.c.h.b16 %v111
    %v1977 = vunpack.c.l.b16 %v112
    %v1978 = vunpack.c.h.b16 %v112
    %v1979 = vunpack.c.l.b16 %v113
    %v1980 = vunpack.c.h.b16 %v113
    %v1981 = vunpack.c.l.b16 %v114
    %v1982 = vunpack.c.h.b16 %v114
    %v1983 = vunpack.c.l.b16 %v115
    %v1984 = vunpack.c.h.b16 %v115
    %v1985 = vunpack.c.l.b16 %v116
    %v1986 = vunpack.c.h.b16 %v116
    %v1987 = vunpack.c.l.b16 %v117
    %v1988 = vunpack.c.h.b16 %v117
    %v1989 = vunpack.c.l.b16 %v118
    %v1990 = vunpack.c.h.b16 %v118
    %v1991 = vunpack.c.l.b16 %v119
    %v1992 = vunpack.c.h.b16 %v119
    %v1993 = vunpack.c.l.b16 %v120
    %v1994 = vunpack.c.h.b16 %v120
    %v1995 = vunpack.c.l.b16 %v121
    %v1996 = vunpack.c.h.b16 %v121
    %v1997 = vunpack.c.l.b16 %v122
    %v1998 = vunpack.c.h.b16 %v122
    %v1999 = vunpack.c.l.b16 %v123
    %v2000 = vunpack.c.h.b16 %v123
    %v2001 = vunpack.c.l.b16 %v124
    %v2002 = vunpack.c.h.b16 %v124
    %v2003 = vunpack.c.l.b16 %v125
    %v2004 = vunpack.c.h.b16 %v125
    %v2005 = vunpack.c.l.b16 %v126
    %v2006 = vunpack.c.h.b16 %v126
    %v2007 = vunpack.c.l.b16 %v127
    %v2008 = vunpack.c.h.b16 %v127
    %v2009 = vunpack.c.l.b16 %v128
    %v2010 = vunpack.c.h.b16 %v128
    %v2011 = vunpack.c.l.b16 %v129
    %v2012 = vunpack.c.h.b16 %v129
    %v2013 = vunpack.c.l.b16 %v130
    %v2014 = vunpack.c.h.b16 %v130
    %v2015 = vunpack.c.l.b16 %v131
    %v2016 = vunpack.c.h.b16 %v131
    %v2017 = vunpack.c.l.b16 %v132
    %v2018 = vunpack.c.h.b16 %v132
    %v2019 = vunpack.c.l.b16 %v133
    %v2020 = vunpack.c.h.b16 %v133
    %v2021 = vunpack.c.l.b16 %v134
    %v2022 = vunpack.c.h.b16 %v134
    %v2023 = vunpack.c.l.b16 %v135
    %v2024 = vunpack.c.h.b16 %v135
    %v2025 = vunpack.c.l.b16 %v136
    %v2026 = vunpack.c.h.b16 %v136
    %v2027 = vunpack.c.l.b16 %v137
    %v2028 = vunpack.c.h.b16 %v137
    %v2029 = vunpack.c.l.b16 %v138
    %v2030 = vunpack.c.h.b16 %v138
    %v2031 = vunpack.c.l.b16 %v139
    %v2032 = vunpack.c.h.b16 %v139
    %v2033 = vunpack.c.l.b16 %v140
    %v2034 = vunpack.c.h.b16 %v140
    %v2035 = vunpack.c.l.b16 %v141
    %v2036 = vunpack.c.h.b16 %v141
    %v2037 = vunpack.c.l.b16 %v142
    %v2038 = vunpack.c.h.b16 %v142
    %v2039 = vunpack.c.l.b16 %v143
    %v2040 = vunpack.c.h.b16 %v143
    %v2041 = vunpack.c.l.b16 %v144
    %v2042 = vunpack.c.h.b16 %v144
    %v2043 = vunpack.c.l.b16 %v145
    %v2044 = vunpack.c.h.b16 %v145
    %v2045 = vunpack.c.l.b16 %v146
    %v2046 = vunpack.c.h.b16 %v146
    %v2047 = vunpack.c.l.b16 %v147
    %v2048 = vunpack.c.h.b16 %v147
    %v2049 = vunpack.c.l.b16 %v148
    %v2050 = vunpack.c.h.b16 %v148
    %v2051 = vunpack.c.l.b16 %v149
    %v2052 = vunpack.c.h.b16 %v149
    %v2053 = vunpack.c.l.b16 %v150
    %v2054 = vunpack.c.h.b16 %v150
    %v2055 = vunpack.c.l.b16 %v151
    %v2056 = vunpack.c.h.b16 %v151
    %v2057 = vunpack.c.l.b16 %v152
    %v2058 = vunpack.c.h.b16 %v152
    %v2059 = vunpack.c.l.b16 %v153
    %v2060 = vunpack.c.h.b16 %v153
    %v2061 = vunpack.c.l.b16 %v154
    %v2062 = vunpack.c.h.b16 %v154
    %v2063 = vunpack.c.l.b16 %v155
    %v2064 = vunpack.c.h.b16 %v155
    %v2065 = vunpack.c.l.b16 %v156
    %v2066 = vunpack.c.h.b16 %v156
    %v2067 = vunpack.c.l.b16 %v157
    %v2068 = vunpack.c.h.b16 %v157
    %v2069 = vunpack.c.l.b16 %v158
    %v2070 = vunpack.c.h.b16 %v158
    %v2071 = vunpack.c.l.b16 %v159
    %v2072 = vunpack.c.h.b16 %v159
    %v2073 = vunpack.c.l.b16 %v160
    %v2074 = vunpack.c.h.b16 %v160
    %v2075 = vunpack.c.l.b16 %v161
    %v2076 = vunpack.c.h.b16 %v161
    %v2077 = vunpack.c.l.b16 %v162
    %v2078 = vunpack.c.h.b16 %v162
    %v2079 = vunpack.c.l.b16 %v163
    %v2080 = vunpack.c.h.b16 %v163
    %v2081 = vunpack.c.l.b16 %v164
    %v2082 = vunpack.c.h.b16 %v164
    %v2083 = vunpack.c.l.b16 %v165
    %v2084 = vunpack.c.h.b16 %v165
    %v2085 = vunpack.c.l.b16 %v166
    %v2086 = vunpack.c.h.b16 %v166
    %v2087 = vunpack.c.l.b16 %v167
    %v2088 = vunpack.c.h.b16 %v167
    %v2089 = vunpack.c.l.b16 %v168
    %v2090 = vunpack.c.h.b16 %v168
    %v2091 = vunpack.c.l.b16 %v169
    %v2092 = vunpack.c.h.b16 %v169
    %v2093 = vunpack.c.l.b16 %v170
    %v2094 = vunpack.c.h.b16 %v170
    %v2095 = vunpack.c.l.b16 %v171
    %v2096 = vunpack.c.h.b16 %v171
    %v2097 = vunpack.c.l.b16 %v172
    %v2098 = vunpack.c.h.b16 %v172
    %v2099 = vunpack.c.l.b16 %v173
    %v2100 = vunpack.c.h.b16 %v173
    %v2101 = vunpack.c.l.b16 %v174
    %v2102 = vunpack.c.h.b16 %v174
    %v2103 = vunpack.c.l.b16 %v175
    %v2104 = vunpack.c.h.b16 %v175
    %v2105 = vunpack.c.l.b16 %v176
    %v2106 = vunpack.c.h.b16 %v176
    %v2107 = vunpack.c.l.b16 %v177
    %v2108 = vunpack.c.h.b16 %v177
    %v2109 = vunpack.c.l.b16 %v178
    %v2110 = vunpack.c.h.b16 %v178
    %v2111 = vunpack.c.l.b16 %v179
    %v2112 = vunpack.c.h.b16 %v179
    %v2113 = vunpack.c.l.b16 %v180
    %v2114 = vunpack.c.h.b16 %v180
    %v2115 = vunpack.c.l.b16 %v181
    %v2116 = vunpack.c.h.b16 %v181
    %v2117 = vunpack.c.l.b16 %v182
    %v2118 = vunpack.c.h.b16 %v182
    %v2119 = vunpack.c.l.b16 %v183
    %v2120 = vunpack.c.h.b16 %v183
    %v2121 = vunpack.c.l.b16 %v184
    %v2122 = vunpack.c.h.b16 %v184
    %v2123 = vunpack.c.l.b16 %v185
    %v2124 = vunpack.c.h.b16 %v185
    %v2125 = vunpack.c.l.b16 %v186
    %v2126 = vunpack.c.h.b16 %v186
    %v2127 = vunpack.c.l.b16 %v187
    %v2128 = vunpack.c.h.b16 %v187
    %v2129 = vunpack.c.l.b16 %v188
    %v2130 = vunpack.c.h.b16 %v188
    %v2131 = vunpack.c.l.b16 %v189
    %v2132 = vunpack.c.h.b16 %v189
    %v2133 = vunpack.c.l.b16 %v190
    %v2134 = vunpack.c.h.b16 %v190
    %v2135 = vunpack.c.l.b16 %v191
    %v2136 = vunpack.c.h.b16 %v191
    %v2137 = vunpack.c.l.b16 %v192
    %v2138 = vunpack.c.h.b16 %v192
    %v2139 = vunpack.c.l.b16 %v193
    %v2140 = vunpack.c.h.b16 %v193
    %v2141 = vunpack.c.l.b16 %v194
    %v2142 = vunpack.c.h.b16 %v194
    %v2143 = vunpack.c.l.b16 %v195
    %v2144 = vunpack.c.h.b16 %v195
    %v2145 = vunpack.c.l.b16 %v196
    %v2146 = vunpack.c.h.b16 %v196
    %v2147 = vunpack.c.l.b16 %v197
    %v2148 = vunpack.c.h.b16 %v197
    %v2149 = vunpack.c.l.b16 %v198
    %v2150 = vunpack.c.h.b16 %v198
    %v2151 = vunpack.c.l.b16 %v199
    %v2152 = vunpack.c.h.b16 %v199
    %v2153 = vunpack.c.l.b16 %v200
    %v2154 = vunpack.c.h.b16 %v200
    %v2155 = vunpack.c.l.b16 %v201
    %v2156 = vunpack.c.h.b16 %v201
    %v2157 = vunpack.c.l.b16 %v202
    %v2158 = vunpack.c.h.b16 %v202
    %v2159 = vunpack.c.l.b16 %v203
    %v2160 = vunpack.c.h.b16 %v203
    %v2161 = vunpack.c.l.b16 %v204
    %v2162 = vunpack.c.h.b16 %v204
    %v2163 = vunpack.c.l.b16 %v205
    %v2164 = vunpack.c.h.b16 %v205
    %v2165 = vunpack.c.l.b16 %v206
    %v2166 = vunpack.c.h.b16 %v206
    %v2167 = vunpack.c.l.b16 %v207
    %v2168 = vunpack.c.h.b16 %v207
    %v2169 = vunpack.c.l.b16 %v208
    %v2170 = vunpack.c.h.b16 %v208
    %v2171 = vunpack.c.l.b16 %v209
    %v2172 = vunpack.c.h.b16 %v209
    %v2173 = vunpack.c.l.b16 %v210
    %v2174 = vunpack.c.h.b16 %v210
    %v2175 = vunpack.c.l.b16 %v211
    %v2176 = vunpack.c.h.b16 %v211
    %v2177 = vunpack.c.l.b16 %v212
    %v2178 = vunpack.c.h.b16 %v212
    %v2179 = vunpack.c.l.b16 %v213
    %v2180 = vunpack.c.h.b16 %v213
    %v2181 = vunpack.c.l.b16 %v214
    %v2182 = vunpack.c.h.b16 %v214
    %v2183 = vunpack.c.l.b16 %v215
    %v2184 = vunpack.c.h.b16 %v215
    %v2185 = vunpack.c.l.b16 %v216
    %v2186 = vunpack.c.h.b16 %v216
    %v2187 = vunpack.c.l.b16 %v217
    %v2188 = vunpack.c.h.b16 %v217
    %v2189 = vunpack.c.l.b16 %v218
    %v2190 = vunpack.c.h.b16 %v218
    %v2191 = vunpack.c.l.b16 %v219
    %v2192 = vunpack.c.h.b16 %v219
    %v2193 = vunpack.c.l.b16 %v220
    %v2194 = vunpack.c.h.b16 %v220
    %v2195 = vunpack.c.l.b16 %v221
    %v2196 = vunpack.c.h.b16 %v221
    %v2197 = vunpack.c.l.b16 %v222
    %v2198 = vunpack.c.h.b16 %v222
    %v2199 = vunpack.c.l.b16 %v223
    %v2200 = vunpack.c.h.b16 %v223
    %v2201 = vunpack.c.l.b16 %v224
    %v2202 = vunpack.c.h.b16 %v224
    %v2203 = vunpack.c.l.b16 %v225
    %v2204 = vunpack.c.h.b16 %v225
    %v2205 = vunpack.c.l.b16 %v226
    %v2206 = vunpack.c.h.b16 %v226
    %v2207 = vunpack.c.l.b16 %v227
    %v2208 = vunpack.c.h.b16 %v227
    %v2209 = vunpack.c.l.b16 %v228
    %v2210 = vunpack.c.h.b16 %v228
    %v2211 = vunpack.c.l.b16 %v229
    %v2212 = vunpack.c.h.b16 %v229
    %v2213 = vunpack.c.l.b16 %v230
    %v2214 = vunpack.c.h.b16 %v230
    %v2215 = vunpack.c.l.b16 %v231
    %v2216 = vunpack.c.h.b16 %v231
    %v2217 = vunpack.c.l.b16 %v232
    %v2218 = vunpack.c.h.b16 %v232
    %v2219 = vunpack.c.l.b16 %v233
    %v2220 = vunpack.c.h.b16 %v233
    %v2221 = vunpack.c.l.b16 %v234
    %v2222 = vunpack.c.h.b16 %v234
    %v2223 = vunpack.c.l.b16 %v235
    %v2224 = vunpack.c.h.b16 %v235
    %v2225 = vunpack.c.l.b16 %v236
    %v2226 = vunpack.c.h.b16 %v236
    %v2227 = vunpack.c.l.b16 %v237
    %v2228 = vunpack.c.h.b16 %v237
    %v2229 = vunpack.c.l.b16 %v238
    %v2230 = vunpack.c.h.b16 %v238
    %v2231 = vunpack.c.l.b16 %v239
    %v2232 = vunpack.c.h.b16 %v239
    %v2233 = vunpack.c.l.b16 %v240
    %v2234 = vunpack.c.h.b16 %v240
    %v2235 = vunpack.c.l.b16 %v241
    %v2236 = vunpack.c.h.b16 %v241
    %v2237 = vunpack.c.l.b16 %v242
    %v2238 = vunpack.c.h.b16 %v242
    %v2239 = vunpack.c.l.b16 %v243
    %v2240 = vunpack.c.h.b16 %v243
    %v2241 = vunpack.c.l.b16 %v244
    %v2242 = vunpack.c.h.b16 %v244
    %v2243 = vunpack.c.l.b16 %v245
    %v2244 = vunpack.c.h.b16 %v245
    %v2245 = vunpack.c.l.b16 %v246
    %v2246 = vunpack.c.h.b16 %v246
    %v2247 = vunpack.c.l.b16 %v247
    %v2248 = vunpack.c.h.b16 %v247
    %v2249 = vunpack.c.l.b16 %v248
    %v2250 = vunpack.c.h.b16 %v248
    %v2251 = vunpack.c.l.b16 %v249
    %v2252 = vunpack.c.h.b16 %v249
    %v2253 = vunpack.c.l.b16 %v250
    %v2254 = vunpack.c.h.b16 %v250
    %v2255 = vunpack.c.l.b16 %v251
    %v2256 = vunpack.c.h.b16 %v251
    %v2257 = vunpack.c.l.b16 %v252
    %v2258 = vunpack.c.h.b16 %v252
    %v2259 = vunpack.c.l.b16 %v253
    %v2260 = vunpack.c.h.b16 %v253
    %v2261 = vunpack.c.l.b16 %v254
    %v2262 = vunpack.c.h.b16 %v254
    %v2263 = vunpack.c.l.b16 %v255
    %v2264 = vunpack.c.h.b16 %v255
    %v2265 = vunpack.c.l.b16 %v256
    %v2266 = vunpack.c.h.b16 %v256
    %v2267 = vunpack.c.l.b16 %v257
    %v2268 = vunpack.c.h.b16 %v257
    %v2269 = vunpack.c.l.b16 %v258
    %v2270 = vunpack.c.h.b16 %v258
    %v2271 = vunpack.c.l.b16 %v259
    %v2272 = vunpack.c.h.b16 %v259
    %v2273 = vunpack.c.l.b16 %v260
    %v2274 = vunpack.c.h.b16 %v260
    %v2275 = vunpack.c.l.b16 %v261
    %v2276 = vunpack.c.h.b16 %v261
    %v2277 = vunpack.c.l.b16 %v262
    %v2278 = vunpack.c.h.b16 %v262
    %v2279 = vunpack.c.l.b16 %v263
    %v2280 = vunpack.c.h.b16 %v263
    %v2281 = vunpack.c.l.b16 %v264
    %v2282 = vunpack.c.h.b16 %v264
    %v2283 = vunpack.c.l.b16 %v265
    %v2284 = vunpack.c.h.b16 %v265
    %v2285 = vunpack.c.l.b16 %v266
    %v2286 = vunpack.c.h.b16 %v266
    %v2287 = vunpack.c.l.b16 %v267
    %v2288 = vunpack.c.h.b16 %v267
    %v2289 = vunpack.c.l.b16 %v268
    %v2290 = vunpack.c.h.b16 %v268
    %v2291 = vunpack.c.l.b16 %v269
    %v2292 = vunpack.c.h.b16 %v269
    %v2293 = vunpack.c.l.b16 %v270
    %v2294 = vunpack.c.h.b16 %v270
    %v2295 = vunpack.c.l.b16 %v271
    %v2296 = vunpack.c.h.b16 %v271
    %v2297 = vunpack.c.l.b16 %v272
    %v2298 = vunpack.c.h.b16 %v272
    %v2299 = vunpack.c.l.b16 %v273
    %v2300 = vunpack.c.h.b16 %v273
    %v2301 = vunpack.c.l.b16 %v274
    %v2302 = vunpack.c.h.b16 %v274
    %v2303 = vunpack.c.l.b16 %v275
    %v2304 = vunpack.c.h.b16 %v275
    %v2305 = vunpack.c.l.b16 %v276
    %v2306 = vunpack.c.h.b16 %v276
    %v2307 = vunpack.c.l.b16 %v277
    %v2308 = vunpack.c.h.b16 %v277
    %v2309 = vunpack.c.l.b16 %v278
    %v2310 = vunpack.c.h.b16 %v278
    %v2311 = vunpack.c.l.b16 %v279
    %v2312 = vunpack.c.h.b16 %v279
    %v2313 = vunpack.c.l.b16 %v280
    %v2314 = vunpack.c.h.b16 %v280
    %v2315 = vunpack.c.l.b16 %v281
    %v2316 = vunpack.c.h.b16 %v281
    %v2317 = vunpack.c.l.b16 %v282
    %v2318 = vunpack.c.h.b16 %v282
    %v2319 = vunpack.c.l.b16 %v283
    %v2320 = vunpack.c.h.b16 %v283
    %v2321 = vunpack.c.l.b16 %v284
    %v2322 = vunpack.c.h.b16 %v284
    %v2323 = vunpack.c.l.b16 %v285
    %v2324 = vunpack.c.h.b16 %v285
    %v2325 = vunpack.c.l.b16 %v286
    %v2326 = vunpack.c.h.b16 %v286
    %v2327 = vunpack.c.l.b16 %v287
    %v2328 = vunpack.c.h.b16 %v287
    %v2329 = vunpack.c.l.b16 %v288
    %v2330 = vunpack.c.h.b16 %v288
    %v2331 = vunpack.c.l.b16 %v289
    %v2332 = vunpack.c.h.b16 %v289
    %v2333 = vunpack.c.l.b16 %v290
    %v2334 = vunpack.c.h.b16 %v290
    %v2335 = vunpack.c.l.b16 %v291
    %v2336 = vunpack.c.h.b16 %v291
    %v2337 = vunpack.c.l.b16 %v292
    %v2338 = vunpack.c.h.b16 %v292
    %v2339 = vunpack.c.l.b16 %v293
    %v2340 = vunpack.c.h.b16 %v293
    %v2341 = vunpack.c.l.b16 %v294
    %v2342 = vunpack.c.h.b16 %v294
    %v2343 = vunpack.c.l.b16 %v295
    %v2344 = vunpack.c.h.b16 %v295
    %v2345 = vunpack.c.l.b16 %v296
    %v2346 = vunpack.c.h.b16 %v296
    %v2347 = vunpack.c.l.b16 %v297
    %v2348 = vunpack.c.h.b16 %v297
    %v2349 = vunpack.c.l.b16 %v298
    %v2350 = vunpack.c.h.b16 %v298
    %v2351 = vunpack.c.l.b16 %v299
    %v2352 = vunpack.c.h.b16 %v299
    %v2353 = vunpack.c.l.b16 %v300
    %v2354 = vunpack.c.h.b16 %v300
    %v2355 = vunpack.c.l.b16 %v301
    %v2356 = vunpack.c.h.b16 %v301
    %v2357 = vunpack.c.l.b16 %v302
    %v2358 = vunpack.c.h.b16 %v302
    %v2359 = vunpack.c.l.b16 %v303
    %v2360 = vunpack.c.h.b16 %v303
    %v2361 = vunpack.c.l.b16 %v304
    %v2362 = vunpack.c.h.b16 %v304
    %v2363 = vunpack.c.l.b16 %v305
    %v2364 = vunpack.c.h.b16 %v305
    %v2365 = vunpack.c.l.b16 %v306
    %v2366 = vunpack.c.h.b16 %v306
    %v2367 = vunpack.c.l.b16 %v307
    %v2368 = vunpack.c.h.b16 %v307
    %v2369 = vunpack.c.l.b16 %v308
    %v2370 = vunpack.c.h.b16 %v308
    %v2371 = vunpack.c.l.b16 %v309
    %v2372 = vunpack.c.h.b16 %v309
    %v2373 = vunpack.c.l.b16 %v310
    %v2374 = vunpack.c.h.b16 %v310
    %v2375 = vunpack.c.l.b16 %v311
    %v2376 = vunpack.c.h.b16 %v311
    %v2377 = vunpack.c.l.b16 %v312
    %v2378 = vunpack.c.h.b16 %v312
    %v2379 = vunpack.c.l.b16 %v313
    %v2380 = vunpack.c.h.b16 %v313
    %v2381 = vunpack.c.l.b16 %v314
    %v2382 = vunpack.c.h.b16 %v314
    %v2383 = vunpack.c.l.b16 %v315
    %v2384 = vunpack.c.h.b16 %v315
    %v2385 = vunpack.c.l.b16 %v316
    %v2386 = vunpack.c.h.b16 %v316
    %v2387 = vunpack.c.l.b16 %v317
    %v2388 = vunpack.c.h.b16 %v317
    %v2389 = vunpack.c.l.b16 %v318
    %v2390 = vunpack.c.h.b16 %v318
    %v2391 = vunpack.c.l.b16 %v319
    %v2392 = vunpack.c.h.b16 %v319
    %v2393 = vunpack.c.l.b16 %v320
    %v2394 = vunpack.c.h.b16 %v320
    %v2395 = vunpack.c.l.b16 %v321
    %v2396 = vunpack.c.h.b16 %v321
    %v2397 = vunpack.c.l.b16 %v322
    %v2398 = vunpack.c.h.b16 %v322
    %v2399 = vunpack.c.l.b16 %v323
    %v2400 = vunpack.c.h.b16 %v323
    %v2401 = vunpack.c.l.b16 %v324
    %v2402 = vunpack.c.h.b16 %v324
    %v2403 = vunpack.c.l.b16 %v325
    %v2404 = vunpack.c.h.b16 %v325
    %v2405 = vunpack.c.l.b16 %v326
    %v2406 = vunpack.c.h.b16 %v326
    %v2407 = vunpack.c.l.b16 %v327
    %v2408 = vunpack.c.h.b16 %v327
    %v2409 = vunpack.c.l.b16 %v328
    %v2410 = vunpack.c.h.b16 %v328
    %v2411 = vunpack.c.l.b16 %v329
    %v2412 = vunpack.c.h.b16 %v329
    %v2413 = vunpack.c.l.b16 %v330
    %v2414 = vunpack.c.h.b16 %v330
    %v2415 = vunpack.c.l.b16 %v331
    %v2416 = vunpack.c.h.b16 %v331
    %v2417 = vunpack.c.l.b16 %v332
    %v2418 = vunpack.c.h.b16 %v332
    %v2419 = vunpack.c.l.b16 %v333
    %v2420 = vunpack.c.h.b16 %v333
    %v2421 = vunpack.c.l.b16 %v334
    %v2422 = vunpack.c.h.b16 %v334
    %v2423 = vunpack.c.l.b16 %v335
    %v2424 = vunpack.c.h.b16 %v335
    %v2425 = vunpack.c.l.b16 %v336
    %v2426 = vunpack.c.h.b16 %v336
    %v2427 = vunpack.c.l.b16 %v337
    %v2428 = vunpack.c.h.b16 %v337
    %v2429 = vunpack.c.l.b16 %v338
    %v2430 = vunpack.c.h.b16 %v338
    %v2431 = vunpack.c.l.b16 %v339
    %v2432 = vunpack.c.h.b16 %v339
    %v2433 = vunpack.c.l.b16 %v340
    %v2434 = vunpack.c.h.b16 %v340
    %v2435 = vunpack.c.l.b16 %v341
    %v2436 = vunpack.c.h.b16 %v341
    %v2437 = vunpack.c.l.b16 %v342
    %v2438 = vunpack.c.h.b16 %v342
    %v2439 = vunpack.c.l.b16 %v343
    %v2440 = vunpack.c.h.b16 %v343
    %v2441 = vunpack.c.l.b16 %v344
    %v2442 = vunpack.c.h.b16 %v344
    %v2443 = vunpack.c.l.b16 %v345
    %v2444 = vunpack.c.h.b16 %v345
    %v2445 = vunpack.c.l.b16 %v346
    %v2446 = vunpack.c.h.b16 %v346
    %v2447 = vunpack.c.l.b16 %v347
    %v2448 = vunpack.c.h.b16 %v347
    %v2449 = vunpack.c.l.b16 %v348
    %v2450 = vunpack.c.h.b16 %v348
    %v2451 = vunpack.c.l.b16 %v349
    %v2452 = vunpack.c.h.b16 %v349
    %v2453 = vunpack.c.l.b16 %v350
    %v2454 = vunpack.c.h.b16 %v350
    %v2455 = vunpack.c.l.b16 %v351
    %v2456 = vunpack.c.h.b16 %v351
    %v2457 = vunpack.c.l.b16 %v352
    %v2458 = vunpack.c.h.b16 %v352
    %v2459 = vunpack.c.l.b16 %v353
    %v2460 = vunpack.c.h.b16 %v353
    %v2461 = vunpack.c.l.b16 %v354
    %v2462 = vunpack.c.h.b16 %v354
    %v2463 = vunpack.c.l.b16 %v355
    %v2464 = vunpack.c.h.b16 %v355
    %v2465 = vunpack.c.l.b16 %v356
    %v2466 = vunpack.c.h.b16 %v356
    %v2467 = vunpack.c.l.b16 %v357
    %v2468 = vunpack.c.h.b16 %v357
    %v2469 = vunpack.c.l.b16 %v358
    %v2470 = vunpack.c.h.b16 %v358
    %v2471 = vunpack.c.l.b16 %v359
    %v2472 = vunpack.c.h.b16 %v359
    %v2473 = vunpack.c.l.b16 %v360
    %v2474 = vunpack.c.h.b16 %v360
    %v2475 = vunpack.c.l.b16 %v361
    %v2476 = vunpack.c.h.b16 %v361
    %v2477 = vunpack.c.l.b16 %v362
    %v2478 = vunpack.c.h.b16 %v362
    %v2479 = vunpack.c.l.b16 %v363
    %v2480 = vunpack.c.h.b16 %v363
    %v2481 = vunpack.c.l.b16 %v364
    %v2482 = vunpack.c.h.b16 %v364
    %v2483 = vunpack.c.l.b16 %v365
    %v2484 = vunpack.c.h.b16 %v365
    %v2485 = vunpack.c.l.b16 %v366
    %v2486 = vunpack.c.h.b16 %v366
    %v2487 = vunpack.c.l.b16 %v367
    %v2488 = vunpack.c.h.b16 %v367
    %v2489 = vunpack.c.l.b16 %v368
    %v2490 = vunpack.c.h.b16 %v368
    %v2491 = vunpack.c.l.b16 %v369
    %v2492 = vunpack.c.h.b16 %v369
    %v2493 = vunpack.c.l.b16 %v370
    %v2494 = vunpack.c.h.b16 %v370
    %v2495 = vunpack.c.l.b16 %v371
    %v2496 = vunpack.c.h.b16 %v371
    %v2497 = vunpack.c.l.b16 %v372
    %v2498 = vunpack.c.h.b16 %v372
    %v2499 = vunpack.c.l.b16 %v373
    %v2500 = vunpack.c.h.b16 %v373
    %v2501 = vunpack.c.l.b16 %v374
    %v2502 = vunpack.c.h.b16 %v374
    %v2503 = vunpack.c.l.b16 %v375
    %v2504 = vunpack.c.h.b16 %v375
    %v2505 = vunpack.c.l.b16 %v376
    %v2506 = vunpack.c.h.b16 %v376
    %v2507 = vunpack.c.l.b16 %v377
    %v2508 = vunpack.c.h.b16 %v377
    %v2509 = vunpack.c.l.b16 %v378
    %v2510 = vunpack.c.h.b16 %v378
    %v2511 = vunpack.c.l.b16 %v379
    %v2512 = vunpack.c.h.b16 %v379
    %v2513 = vunpack.c.l.b16 %v380
    %v2514 = vunpack.c.h.b16 %v380
    %v2515 = vunpack.c.l.b16 %v381
    %v2516 = vunpack.c.h.b16 %v381
    %v2517 = vunpack.c.l.b16 %v382
    %v2518 = vunpack.c.h.b16 %v382
    %v2519 = vunpack.c.l.b16 %v383
    %v2520 = vunpack.c.h.b16 %v383
    %v2521 = vunpack.c.l.b16 %v384
    %v2522 = vunpack.c.h.b16 %v384
    %v2523 = vunpack.c.l.b16 %v385
    %v2524 = vunpack.c.h.b16 %v385
    %v2525 = vunpack.c.l.b16 %v386
    %v2526 = vunpack.c.h.b16 %v386
    %v2527 = vunpack.c.l.b16 %v387
    %v2528 = vunpack.c.h.b16 %v387
    %v2529 = vunpack.c.l.b16 %v388
    %v2530 = vunpack.c.h.b16 %v388
    %v2531 = vunpack.c.l.b16 %v389
    %v2532 = vunpack.c.h.b16 %v389
    %v2533 = vunpack.c.l.b16 %v390
    %v2534 = vunpack.c.h.b16 %v390
    %v2535 = vunpack.c.l.b16 %v391
    %v2536 = vunpack.c.h.b16 %v391
    %v2537 = vunpack.c.l.b16 %v392
    %v2538 = vunpack.c.h.b16 %v392
    %v2539 = vunpack.c.l.b16 %v393
    %v2540 = vunpack.c.h.b16 %v393
    %v2541 = vunpack.c.l.b16 %v394
    %v2542 = vunpack.c.h.b16 %v394
    %v2543 = vunpack.c.l.b16 %v395
    %v2544 = vunpack.c.h.b16 %v395
    %v2545 = vunpack.c.l.b16 %v396
    %v2546 = vunpack.c.h.b16 %v396
    %v2547 = vunpack.c.l.b16 %v397
    %v2548 = vunpack.c.h.b16 %v397
    %v2549 = vunpack.c.l.b16 %v398
    %v2550 = vunpack.c.h.b16 %v398
    %v2551 = vunpack.c.l.b16 %v399
    %v2552 = vunpack.c.h.b16 %v399
    %v2553 = vunpack.c.l.b16 %v400
    %v2554 = vunpack.c.h.b16 %v400
    %v2555 = vunpack.c.l.b16 %v401
    %v2556 = vunpack.c.h.b16 %v401
    %v2557 = vunpack.c.l.b16 %v402
    %v2558 = vunpack.c.h.b16 %v402
    %v2559 = vunpack.c.l.b16 %v403
    %v2560 = vunpack.c.h.b16 %v403
    %v2561 = vunpack.c.l.b16 %v404
    %v2562 = vunpack.c.h.b16 %v404
    %v2563 = vunpack.c.l.b16 %v405
    %v2564 = vunpack.c.h.b16 %v405
    %v2565 = vunpack.c.l.b16 %v406
    %v2566 = vunpack.c.h.b16 %v406
    %v2567 = vunpack.c.l.b16 %v407
    %v2568 = vunpack.c.h.b16 %v407
    %v2569 = vunpack.c.l.b16 %v408
    %v2570 = vunpack.c.h.b16 %v408
    %v2571 = vunpack.c.l.b16 %v409
    %v2572 = vunpack.c.h.b16 %v409
    %v2573 = vunpack.c.l.b16 %v410
    %v2574 = vunpack.c.h.b16 %v410
    %v2575 = vunpack.c.l.b16 %v411
    %v2576 = vunpack.c.h.b16 %v411
    %v2577 = vunpack.c.l.b16 %v412
    %v2578 = vunpack.c.h.b16 %v412
    %v2579 = vunpack.c.l.b16 %v413
    %v2580 = vunpack.c.h.b16 %v413
    %v2581 = vunpack.c.l.b16 %v414
    %v2582 = vunpack.c.h.b16 %v414
    %v2583 = vunpack.c.l.b16 %v415
    %v2584 = vunpack.c.h.b16 %v415
    %v2585 = vunpack.c.l.b16 %v416
    %v2586 = vunpack.c.h.b16 %v416
    %v2587 = vunpack.c.l.b16 %v417
    %v2588 = vunpack.c.h.b16 %v417
    %v2589 = vunpack.c.l.b16 %v418
    %v2590 = vunpack.c.h.b16 %v418
    %v2591 = vunpack.c.l.b16 %v419
    %v2592 = vunpack.c.h.b16 %v419
    %v2593 = vunpack.c.l.b16 %v420
    %v2594 = vunpack.c.h.b16 %v420
    %v2595 = vunpack.c.l.b16 %v421
    %v2596 = vunpack.c.h.b16 %v421
    %v2597 = vunpack.c.l.b16 %v422
    %v2598 = vunpack.c.h.b16 %v422
    %v2599 = vunpack.c.l.b16 %v423
    %v2600 = vunpack.c.h.b16 %v423
    %v2601 = vunpack.c.l.b16 %v424
    %v2602 = vunpack.c.h.b16 %v424
    %v2603 = vunpack.c.l.b16 %v425
    %v2604 = vunpack.c.h.b16 %v425
    %v2605 = vunpack.c.l.b16 %v426
    %v2606 = vunpack.c.h.b16 %v426
    %v2607 = vunpack.c.l.b16 %v427
    %v2608 = vunpack.c.h.b16 %v427
    %v2609 = vunpack.c.l.b16 %v428
    %v2610 = vunpack.c.h.b16 %v428
    %v2611 = vunpack.c.l.b16 %v429
    %v2612 = vunpack.c.h.b16 %v429
    %v2613 = vunpack.c.l.b16 %v430
    %v2614 = vunpack.c.h.b16 %v430
    %v2615 = vunpack.c.l.b16 %v431
    %v2616 = vunpack.c.h.b16 %v431
    %v2617 = vunpack.c.l.b16 %v432
    %v2618 = vunpack.c.h.b16 %v432
    %v2619 = vunpack.c.l.b16 %v433
    %v2620 = vunpack.c.h.b16 %v433
    %v2621 = vunpack.c.l.b16 %v434
    %v2622 = vunpack.c.h.b16 %v434
    %v2623 = vunpack.c.l.b16 %v435
    %v2624 = vunpack.c.h.b16 %v435
    %v2625 = vunpack.c.l.b16 %v436
    %v2626 = vunpack.c.h.b16 %v436
    %v2627 = vunpack.c.l.b16 %v437
    %v2628 = vunpack.c.h.b16 %v437
    %v2629 = vunpack.c.l.b16 %v438
    %v2630 = vunpack.c.h.b16 %v438
    %v2631 = vunpack.c.l.b16 %v439
    %v2632 = vunpack.c.h.b16 %v439
    %v2633 = vunpack.c.l.b16 %v440
    %v2634 = vunpack.c.h.b16 %v440
    %v2635 = vunpack.c.l.b16 %v441
    %v2636 = vunpack.c.h.b16 %v441
    %v2637 = vunpack.c.l.b16 %v442
    %v2638 = vunpack.c.h.b16 %v442
    %v2639 = vunpack.c.l.b16 %v443
    %v2640 = vunpack.c.h.b16 %v443
    %v2641 = vunpack.c.l.b16 %v444
    %v2642 = vunpack.c.h.b16 %v444
    %v2643 = vunpack.c.l.b16 %v445
    %v2644 = vunpack.c.h.b16 %v445
    %v2645 = vunpack.c.l.b16 %v446
    %v2646 = vunpack.c.h.b16 %v446
    %v2647 = vunpack.c.l.b16 %v447
    %v2648 = vunpack.c.h.b16 %v447
    %v2649 = vunpack.c.l.b16 %v448
    %v2650 = vunpack.c.h.b16 %v448
    %v2651 = vunpack.c.l.b16 %v449
    %v2652 = vunpack.c.h.b16 %v449
    %v2653 = vunpack.c.l.b16 %v450
    %v2654 = vunpack.c.h.b16 %v450
    %v2655 = vunpack.c.l.b16 %v451
    %v2656 = vunpack.c.h.b16 %v451
    %v2657 = vunpack.c.l.b16 %v452
    %v2658 = vunpack.c.h.b16 %v452
    %v2659 = vunpack.c.l.b16 %v453
    %v2660 = vunpack.c.h.b16 %v453
    %v2661 = vunpack.c.l.b16 %v454
    %v2662 = vunpack.c.h.b16 %v454
    %v2663 = vunpack.c.l.b16 %v455
    %v2664 = vunpack.c.h.b16 %v455
    %v2665 = vunpack.c.l.b16 %v456
    %v2666 = vunpack.c.h.b16 %v456
    %v2667 = vunpack.c.l.b16 %v457
    %v2668 = vunpack.c.h.b16 %v457
    %v2669 = vunpack.c.l.b16 %v458
    %v2670 = vunpack.c.h.b16 %v458
    %v2671 = vunpack.c.l.b16 %v459
    %v2672 = vunpack.c.h.b16 %v459
    %v2673 = vunpack.c.l.b16 %v460
    %v2674 = vunpack.c.h.b16 %v460
    %v2675 = vunpack.c.l.b16 %v461
    %v2676 = vunpack.c.h.b16 %v461
    %v2677 = vunpack.c.l.b16 %v462
    %v2678 = vunpack.c.h.b16 %v462
    %v2679 = vunpack.c.l.b16 %v463
    %v2680 = vunpack.c.h.b16 %v463
    %v2681 = vunpack.c.l.b16 %v464
    %v2682 = vunpack.c.h.b16 %v464
    %v2683 = vunpack.c.l.b16 %v465
    %v2684 = vunpack.c.h.b16 %v465
    %v2685 = vunpack.c.l.b16 %v466
    %v2686 = vunpack.c.h.b16 %v466
    %v2687 = vunpack.c.l.b16 %v467
    %v2688 = vunpack.c.h.b16 %v467
    %v2689 = vunpack.c.l.b16 %v468
    %v2690 = vunpack.c.h.b16 %v468
    %v2691 = vunpack.c.l.b16 %v469
    %v2692 = vunpack.c.h.b16 %v469
    %v2693 = vunpack.c.l.b16 %v470
    %v2694 = vunpack.c.h.b16 %v470
    %v2695 = vunpack.c.l.b16 %v471
    %v2696 = vunpack.c.h.b16 %v471
    %v2697 = vunpack.c.l.b16 %v472
    %v2698 = vunpack.c.h.b16 %v472
    %v2699 = vunpack.c.l.b16 %v473
    %v2700 = vunpack.c.h.b16 %v473
    %v2701 = vunpack.c.l.b16 %v474
    %v2702 = vunpack.c.h.b16 %v474
    %v2703 = vunpack.c.l.b16 %v475
    %v2704 = vunpack.c.h.b16 %v475
    %v2705 = vunpack.c.l.b16 %v476
    %v2706 = vunpack.c.h.b16 %v476
    %v2707 = vunpack.c.l.b16 %v477
    %v2708 = vunpack.c.h.b16 %v477
    %v2709 = vunpack.c.l.b16 %v478
    %v2710 = vunpack.c.h.b16 %v478
    %v2711 = vunpack.c.l.b16 %v479
    %v2712 = vunpack.c.h.b16 %v479
    %v2713 = vunpack.c.l.b16 %v480
    %v2714 = vunpack.c.h.b16 %v480
    %v2715 = vunpack.c.l.b16 %v481
    %v2716 = vunpack.c.h.b16 %v481
    %v2717 = vunpack.c.l.b16 %v482
    %v2718 = vunpack.c.h.b16 %v482
    %v2719 = vunpack.c.l.b16 %v483
    %v2720 = vunpack.c.h.b16 %v483
    %v2721 = vunpack.c.l.b16 %v484
    %v2722 = vunpack.c.h.b16 %v484
    %v2723 = vunpack.c.l.b16 %v485
    %v2724 = vunpack.c.h.b16 %v485
    %v2725 = vunpack.c.l.b16 %v486
    %v2726 = vunpack.c.h.b16 %v486
    %v2727 = vunpack.c.l.b16 %v487
    %v2728 = vunpack.c.h.b16 %v487
    %v2729 = vunpack.c.l.b16 %v488
    %v2730 = vunpack.c.h.b16 %v488
    %v2731 = vunpack.c.l.b16 %v489
    %v2732 = vunpack.c.h.b16 %v489
    %v2733 = vunpack.c.l.b16 %v490
    %v2734 = vunpack.c.h.b16 %v490
    %v2735 = vunpack.c.l.b16 %v491
    %v2736 = vunpack.c.h.b16 %v491
    %v2737 = vunpack.c.l.b16 %v492
    %v2738 = vunpack.c.h.b16 %v492
    %v2739 = vunpack.c.l.b16 %v493
    %v2740 = vunpack.c.h.b16 %v493
    %v2741 = vunpack.c.l.b16 %v494
    %v2742 = vunpack.c.h.b16 %v494
    %v2743 = vunpack.c.l.b16 %v495
    %v2744 = vunpack.c.h.b16 %v495
    %v2745 = vunpack.c.l.b16 %v496
    %v2746 = vunpack.c.h.b16 %v496
    %v2747 = vunpack.c.l.b16 %v497
    %v2748 = vunpack.c.h.b16 %v497
    %v2749 = vunpack.c.l.b16 %v498
    %v2750 = vunpack.c.h.b16 %v498
    %v2751 = vunpack.c.l.b16 %v499
    %v2752 = vunpack.c.h.b16 %v499
    %v2753 = vunpack.c.l.b16 %v500
    %v2754 = vunpack.c.h.b16 %v500
    %v2755 = vunpack.c.l.b16 %v501
    %v2756 = vunpack.c.h.b16 %v501
    %v2757 = vunpack.c.l.b16 %v502
    %v2758 = vunpack.c.h.b16 %v502
    %v2759 = vunpack.c.l.b16 %v503
    %v2760 = vunpack.c.h.b16 %v503
    %v2761 = vunpack.c.l.b16 %v504
    %v2762 = vunpack.c.h.b16 %v504
    %v2763 = vunpack.c.l.b16 %v505
    %v2764 = vunpack.c.h.b16 %v505
    %v2765 = vunpack.c.l.b16 %v506
    %v2766 = vunpack.c.h.b16 %v506
    %v2767 = vunpack.c.l.b16 %v507
    %v2768 = vunpack.c.h.b16 %v507
    %v2769 = vunpack.c.l.b16 %v508
    %v2770 = vunpack.c.h.b16 %v508
    %v2771 = vunpack.c.l.b16 %v509
    %v2772 = vunpack.c.h.b16 %v509
    %v2773 = vunpack.c.l.b16 %v510
    %v2774 = vunpack.c.h.b16 %v510
    %v2775 = vunpack.c.l.b16 %v511
    %v2776 = vunpack.c.h.b16 %v511
    %v2777 = vunpack.c.l.b16 %v512
    %v2778 = vunpack.c.h.b16 %v512
    %v2779 = vunpack.c.l.b16 %v513
    %v2780 = vunpack.c.h.b16 %v513
    %v2781 = vunpack.c.l.b16 %v514
    %v2782 = vunpack.c.h.b16 %v514
    %v2783 = vunpack.c.l.b16 %v515
    %v2784 = vunpack.c.h.b16 %v515
    %v2785 = vunpack.c.l.b16 %v516
    %v2786 = vunpack.c.h.b16 %v516
    %v2787 = vunpack.c.l.b16 %v517
    %v2788 = vunpack.c.h.b16 %v517
    %v2789 = vunpack.c.l.b16 %v518
    %v2790 = vunpack.c.h.b16 %v518
    %v2791 = vunpack.c.l.b16 %v519
    %v2792 = vunpack.c.h.b16 %v519
    %v2793 = vunpack.c.l.b16 %v520
    %v2794 = vunpack.c.h.b16 %v520
    %v2795 = vunpack.c.l.b16 %v521
    %v2796 = vunpack.c.h.b16 %v521
    %v2797 = vunpack.c.l.b16 %v522
    %v2798 = vunpack.c.h.b16 %v522
    %v2799 = vunpack.c.l.b16 %v523
    %v2800 = vunpack.c.h.b16 %v523
    %v2801 = vunpack.c.l.b16 %v524
    %v2802 = vunpack.c.h.b16 %v524
    %v2803 = vunpack.c.l.b16 %v525
    %v2804 = vunpack.c.h.b16 %v525
    %v2805 = vunpack.c.l.b16 %v526
    %v2806 = vunpack.c.h.b16 %v526
    %v2807 = vunpack.c.l.b16 %v527
    %v2808 = vunpack.c.h.b16 %v527
    %v2809 = vunpack.c.l.b16 %v528
    %v2810 = vunpack.c.h.b16 %v528
    %v2811 = vunpack.c.l.b16 %v529
    %v2812 = vunpack.c.h.b16 %v529
    %v2813 = vunpack.c.l.b16 %v530
    %v2814 = vunpack.c.h.b16 %v530
    %v2815 = vunpack.c.l.b16 %v531
    %v2816 = vunpack.c.h.b16 %v531
    %v2817 = vunpack.c.l.b16 %v532
    %v2818 = vunpack.c.h.b16 %v532
    %v2819 = vunpack.c.l.b16 %v533
    %v2820 = vunpack.c.h.b16 %v533
    %v2821 = vunpack.c.l.b16 %v534
    %v2822 = vunpack.c.h.b16 %v534
    %v2823 = vunpack.c.l.b16 %v535
    %v2824 = vunpack.c.h.b16 %v535
    %v2825 = vunpack.c.l.b16 %v536
    %v2826 = vunpack.c.h.b16 %v536
    %v2827 = vunpack.c.l.b16 %v537
    %v2828 = vunpack.c.h.b16 %v537
    %v2829 = vunpack.c.l.b16 %v538
    %v2830 = vunpack.c.h.b16 %v538
    %v2831 = vunpack.c.l.b16 %v539
    %v2832 = vunpack.c.h.b16 %v539
    %v2833 = vunpack.c.l.b16 %v540
    %v2834 = vunpack.c.h.b16 %v540
    %v2835 = vunpack.c.l.b16 %v541
    %v2836 = vunpack.c.h.b16 %v541
    %v2837 = vunpack.c.l.b16 %v542
    %v2838 = vunpack.c.h.b16 %v542
    %v2839 = vunpack.c.l.b16 %v543
    %v2840 = vunpack.c.h.b16 %v543
    %v2841 = vunpack.c.l.b16 %v544
    %v2842 = vunpack.c.h.b16 %v544
    %v2843 = vunpack.c.l.b16 %v545
    %v2844 = vunpack.c.h.b16 %v545
    %v2845 = vunpack.c.l.b16 %v546
    %v2846 = vunpack.c.h.b16 %v546
    %v2847 = vunpack.c.l.b16 %v547
    %v2848 = vunpack.c.h.b16 %v547
    %v2849 = vunpack.c.l.b16 %v548
    %v2850 = vunpack.c.h.b16 %v548
    %v2851 = vunpack.c.l.b16 %v549
    %v2852 = vunpack.c.h.b16 %v549
    %v2853 = vunpack.c.l.b16 %v550
    %v2854 = vunpack.c.h.b16 %v550
    %v2855 = vunpack.c.l.b16 %v551
    %v2856 = vunpack.c.h.b16 %v551
    %v2857 = vunpack.c.l.b16 %v552
    %v2858 = vunpack.c.h.b16 %v552
    %v2859 = vunpack.c.l.b16 %v553
    %v2860 = vunpack.c.h.b16 %v553
    %v2861 = vunpack.c.l.b16 %v554
    %v2862 = vunpack.c.h.b16 %v554
    %v2863 = vunpack.c.l.b16 %v555
    %v2864 = vunpack.c.h.b16 %v555
    %v2865 = vunpack.c.l.b16 %v556
    %v2866 = vunpack.c.h.b16 %v556
    %v2867 = vunpack.c.l.b16 %v557
    %v2868 = vunpack.c.h.b16 %v557
    %v2869 = vunpack.c.l.b16 %v558
    %v2870 = vunpack.c.h.b16 %v558
    %v2871 = vunpack.c.l.b16 %v559
    %v2872 = vunpack.c.h.b16 %v559
    %v2873 = vunpack.c.l.b16 %v560
    %v2874 = vunpack.c.h.b16 %v560
    %v2875 = vunpack.c.l.b16 %v561
    %v2876 = vunpack.c.h.b16 %v561
    %v2877 = vunpack.c.l.b16 %v562
    %v2878 = vunpack.c.h.b16 %v562
    %v2879 = vunpack.c.l.b16 %v563
    %v2880 = vunpack.c.h.b16 %v563
    %v2881 = vunpack.c.l.b16 %v564
    %v2882 = vunpack.c.h.b16 %v564
    %v2883 = vunpack.c.l.b16 %v565
    %v2884 = vunpack.c.h.b16 %v565
    %v2885 = vunpack.c.l.b16 %v566
    %v2886 = vunpack.c.h.b16 %v566
    %v2887 = vunpack.c.l.b16 %v567
    %v2888 = vunpack.c.h.b16 %v567
    %v2889 = vunpack.c.l.b16 %v568
    %v2890 = vunpack.c.h.b16 %v568
    %v2891 = vunpack.c.l.b16 %v569
    %v2892 = vunpack.c.h.b16 %v569
    %v2893 = vunpack.c.l.b16 %v570
    %v2894 = vunpack.c.h.b16 %v570
    %v2895 = vunpack.c.l.b16 %v571
    %v2896 = vunpack.c.h.b16 %v571
    %v2897 = vunpack.c.l.b16 %v572
    %v2898 = vunpack.c.h.b16 %v572
    %v2899 = vunpack.c.l.b16 %v573
    %v2900 = vunpack.c.h.b16 %v573
    %v2901 = vunpack.c.l.b16 %v574
    %v2902 = vunpack.c.h.b16 %v574
    %v2903 = vunpack.c.l.b16 %v575
    %v2904 = vunpack.c.h.b16 %v575
    %v2905 = vunpack.c.l.b16 %v576
    %v2906 = vunpack.c.h.b16 %v576
    %v2907 = vunpack.c.l.b16 %v577
    %v2908 = vunpack.c.h.b16 %v577
    %v2909 = vunpack.c.l.b16 %v578
    %v2910 = vunpack.c.h.b16 %v578
    %v2911 = vunpack.c.l.b16 %v579
    %v2912 = vunpack.c.h.b16 %v579
    %v2913 = vunpack.c.l.b16 %v580
    %v2914 = vunpack.c.h.b16 %v580
    %v2915 = vunpack.c.l.b16 %v581
    %v2916 = vunpack.c.h.b16 %v581
    %v2917 = vunpack.c.l.b16 %v582
    %v2918 = vunpack.c.h.b16 %v582
    %v2919 = vunpack.c.l.b16 %v583
    %v2920 = vunpack.c.h.b16 %v583
    %v2921 = vunpack.c.l.b16 %v584
    %v2922 = vunpack.c.h.b16 %v584
    %v2923 = vunpack.c.l.b16 %v585
    %v2924 = vunpack.c.h.b16 %v585
    %v2925 = vunpack.c.l.b16 %v586
    %v2926 = vunpack.c.h.b16 %v586
    %v2927 = vunpack.c.l.b16 %v587
    %v2928 = vunpack.c.h.b16 %v587
    %v2929 = vunpack.c.l.b16 %v588
    %v2930 = vunpack.c.h.b16 %v588
    %v2931 = vunpack.c.l.b16 %v589
    %v2932 = vunpack.c.h.b16 %v589
    %v2933 = vunpack.c.l.b16 %v590
    %v2934 = vunpack.c.h.b16 %v590
    %v2935 = vunpack.c.l.b16 %v591
    %v2936 = vunpack.c.h.b16 %v591
    %v2937 = vunpack.c.l.b16 %v592
    %v2938 = vunpack.c.h.b16 %v592
    %v2939 = vunpack.c.l.b16 %v593
    %v2940 = vunpack.c.h.b16 %v593
    %v2941 = vunpack.c.l.b16 %v594
    %v2942 = vunpack.c.h.b16 %v594
    %v2943 = vunpack.c.l.b16 %v595
    %v2944 = vunpack.c.h.b16 %v595
    %v2945 = vunpack.c.l.b16 %v596
    %v2946 = vunpack.c.h.b16 %v596
    %v2947 = vunpack.c.l.b16 %v597
    %v2948 = vunpack.c.h.b16 %v597
    %v2949 = vunpack.c.l.b16 %v598
    %v2950 = vunpack.c.h.b16 %v598
    %v2951 = vunpack.c.l.b16 %v599
    %v2952 = vunpack.c.h.b16 %v599
    %v2953 = vunpack.c.l.b16 %v600
    %v2954 = vunpack.c.h.b16 %v600
    %v2955 = vunpack.c.l.b16 %v601
    %v2956 = vunpack.c.h.b16 %v601
    %v2957 = vunpack.c.l.b16 %v602
    %v2958 = vunpack.c.h.b16 %v602
    %v2959 = vunpack.c.l.b16 %v603
    %v2960 = vunpack.c.h.b16 %v603
    %v2961 = vunpack.c.l.b16 %v604
    %v2962 = vunpack.c.h.b16 %v604
    %v2963 = vunpack.c.l.b16 %v605
    %v2964 = vunpack.c.h.b16 %v605
    %v2965 = vunpack.c.l.b16 %v606
    %v2966 = vunpack.c.h.b16 %v606
    %v2967 = vunpack.c.l.b16 %v607
    %v2968 = vunpack.c.h.b16 %v607
    %v2969 = vunpack.c.l.b16 %v608
    %v2970 = vunpack.c.h.b16 %v608
    %v2971 = vunpack.c.l.b16 %v609
    %v2972 = vunpack.c.h.b16 %v609
    %v2973 = vunpack.c.l.b16 %v610
    %v2974 = vunpack.c.h.b16 %v610
    %v2975 = vunpack.c.l.b16 %v611
    %v2976 = vunpack.c.h.b16 %v611
    %v2977 = vunpack.c.l.b16 %v612
    %v2978 = vunpack.c.h.b16 %v612
    %v2979 = vunpack.c.l.b16 %v613
    %v2980 = vunpack.c.h.b16 %v613
    %v2981 = vunpack.c.l.b16 %v614
    %v2982 = vunpack.c.h.b16 %v614
    %v2983 = vunpack.c.l.b16 %v615
    %v2984 = vunpack.c.h.b16 %v615
    %v2985 = vunpack.c.l.b16 %v616
    %v2986 = vunpack.c.h.b16 %v616
    %v2987 = vunpack.c.l.b16 %v617
    %v2988 = vunpack.c.h.b16 %v617
    %v2989 = vunpack.c.l.b16 %v618
    %v2990 = vunpack.c.h.b16 %v618
    %v2991 = vunpack.c.l.b16 %v619
    %v2992 = vunpack.c.h.b16 %v619
    %v2993 = vunpack.c.l.b16 %v620
    %v2994 = vunpack.c.h.b16 %v620
    %v2995 = vunpack.c.l.b16 %v621
    %v2996 = vunpack.c.h.b16 %v621
    %v2997 = vunpack.c.l.b16 %v622
    %v2998 = vunpack.c.h.b16 %v622
    %v2999 = vunpack.c.l.b16 %v623
    %v3000 = vunpack.c.h.b16 %v623
    %v3001 = vunpack.c.l.b16 %v624
    %v3002 = vunpack.c.h.b16 %v624
    %v3003 = vunpack.c.l.b16 %v625
    %v3004 = vunpack.c.h.b16 %v625
    %v3005 = vunpack.c.l.b16 %v626
    %v3006 = vunpack.c.h.b16 %v626
    %v3007 = vunpack.c.l.b16 %v627
    %v3008 = vunpack.c.h.b16 %v627
    %v3009 = vunpack.c.l.b16 %v628
    %v3010 = vunpack.c.h.b16 %v628
    %v3011 = vunpack.c.l.b16 %v629
    %v3012 = vunpack.c.h.b16 %v629
    %v3013 = vunpack.c.l.b16 %v630
    %v3014 = vunpack.c.h.b16 %v630
    %v3015 = vunpack.c.l.b16 %v631
    %v3016 = vunpack.c.h.b16 %v631
    %v3017 = vunpack.c.l.b16 %v632
    %v3018 = vunpack.c.h.b16 %v632
    %v3019 = vunpack.c.l.b16 %v633
    %v3020 = vunpack.c.h.b16 %v633
    %v3021 = vunpack.c.l.b16 %v634
    %v3022 = vunpack.c.h.b16 %v634
    %v3023 = vunpack.c.l.b16 %v635
    %v3024 = vunpack.c.h.b16 %v635
    %v3025 = vunpack.c.l.b16 %v636
    %v3026 = vunpack.c.h.b16 %v636
    %v3027 = vunpack.c.l.b16 %v637
    %v3028 = vunpack.c.h.b16 %v637
    %v3029 = vunpack.c.l.b16 %v638
    %v3030 = vunpack.c.h.b16 %v638
    %v3031 = vunpack.c.l.b16 %v639
    %v3032 = vunpack.c.h.b16 %v639
    %v3033 = vunpack.c.l.b16 %v640
    %v3034 = vunpack.c.h.b16 %v640
    %v3035 = vunpack.c.l.b16 %v641
    %v3036 = vunpack.c.h.b16 %v641
    %v3037 = vunpack.c.l.b16 %v642
    %v3038 = vunpack.c.h.b16 %v642
    %v3039 = vunpack.c.l.b16 %v643
    %v3040 = vunpack.c.h.b16 %v643
    %v3041 = vunpack.c.l.b16 %v644
    %v3042 = vunpack.c.h.b16 %v644
    %v3043 = vunpack.c.l.b16 %v645
    %v3044 = vunpack.c.h.b16 %v645
    %v3045 = vunpack.c.l.b16 %v646
    %v3046 = vunpack.c.h.b16 %v646
    %v3047 = vunpack.c.l.b16 %v647
    %v3048 = vunpack.c.h.b16 %v647
    %v3049 = vunpack.c.l.b16 %v648
    %v3050 = vunpack.c.h.b16 %v648
    %v3051 = vunpack.c.l.b16 %v649
    %v3052 = vunpack.c.h.b16 %v649
    %v3053 = vunpack.c.l.b16 %v650
    %v3054 = vunpack.c.h.b16 %v650
    %v3055 = vunpack.c.l.b16 %v651
    %v3056 = vunpack.c.h.b16 %v651
    %v3057 = vunpack.c.l.b16 %v652
    %v3058 = vunpack.c.h.b16 %v652
    %v3059 = vunpack.c.l.b16 %v653
    %v3060 = vunpack.c.h.b16 %v653
    %v3061 = vunpack.c.l.b16 %v654
    %v3062 = vunpack.c.h.b16 %v654
    %v3063 = vunpack.c.l.b16 %v655
    %v3064 = vunpack.c.h.b16 %v655
    %v3065 = vunpack.c.l.b16 %v656
    %v3066 = vunpack.c.h.b16 %v656
    %v3067 = vunpack.c.l.b16 %v657
    %v3068 = vunpack.c.h.b16 %v657
    %v3069 = vunpack.c.l.b16 %v658
    %v3070 = vunpack.c.h.b16 %v658
    %v3071 = vunpack.c.l.b16 %v659
    %v3072 = vunpack.c.h.b16 %v659
    %v3073 = vunpack.c.l.b16 %v660
    %v3074 = vunpack.c.h.b16 %v660
    %v3075 = vunpack.c.l.b16 %v661
    %v3076 = vunpack.c.h.b16 %v661
    %v3077 = vunpack.c.l.b16 %v662
    %v3078 = vunpack.c.h.b16 %v662
    %v3079 = vunpack.c.l.b16 %v663
    %v3080 = vunpack.c.h.b16 %v663
    %v3081 = vunpack.c.l.b16 %v664
    %v3082 = vunpack.c.h.b16 %v664
    %v3083 = vunpack.c.l.b16 %v665
    %v3084 = vunpack.c.h.b16 %v665
    %v3085 = vunpack.c.l.b16 %v666
    %v3086 = vunpack.c.h.b16 %v666
    %v3087 = vunpack.c.l.b16 %v667
    %v3088 = vunpack.c.h.b16 %v667
    %v3089 = vunpack.c.l.b16 %v668
    %v3090 = vunpack.c.h.b16 %v668
    %v3091 = vunpack.c.l.b16 %v669
    %v3092 = vunpack.c.h.b16 %v669
    %v3093 = vunpack.c.l.b16 %v670
    %v3094 = vunpack.c.h.b16 %v670
    %v3095 = vunpack.c.l.b16 %v671
    %v3096 = vunpack.c.h.b16 %v671
    %v3097 = vunpack.c.l.b16 %v672
    %v3098 = vunpack.c.h.b16 %v672
    %v3099 = vunpack.c.l.b16 %v673
    %v3100 = vunpack.c.h.b16 %v673
    %v3101 = vunpack.c.l.b16 %v674
    %v3102 = vunpack.c.h.b16 %v674
    %v3103 = vunpack.c.l.b16 %v675
    %v3104 = vunpack.c.h.b16 %v675
    %v3105 = vunpack.c.l.b16 %v676
    %v3106 = vunpack.c.h.b16 %v676
    %v3107 = vunpack.c.l.b16 %v677
    %v3108 = vunpack.c.h.b16 %v677
    %v3109 = vunpack.c.l.b16 %v678
    %v3110 = vunpack.c.h.b16 %v678
    %v3111 = vunpack.c.l.b16 %v679
    %v3112 = vunpack.c.h.b16 %v679
    %v3113 = vunpack.c.l.b16 %v680
    %v3114 = vunpack.c.h.b16 %v680
    %v3115 = vunpack.c.l.b16 %v681
    %v3116 = vunpack.c.h.b16 %v681
    %v3117 = vunpack.c.l.b16 %v682
    %v3118 = vunpack.c.h.b16 %v682
    %v3119 = vunpack.c.l.b16 %v683
    %v3120 = vunpack.c.h.b16 %v683
    %v3121 = vunpack.c.l.b16 %v684
    %v3122 = vunpack.c.h.b16 %v684
    %v3123 = vunpack.c.l.b16 %v685
    %v3124 = vunpack.c.h.b16 %v685
    %v3125 = vunpack.c.l.b16 %v686
    %v3126 = vunpack.c.h.b16 %v686
    %v3127 = vunpack.c.l.b16 %v687
    %v3128 = vunpack.c.h.b16 %v687
    %v3129 = vunpack.c.l.b16 %v688
    %v3130 = vunpack.c.h.b16 %v688
    %v3131 = vunpack.c.l.b16 %v689
    %v3132 = vunpack.c.h.b16 %v689
    %v3133 = vunpack.c.l.b16 %v690
    %v3134 = vunpack.c.h.b16 %v690
    %v3135 = vunpack.c.l.b16 %v691
    %v3136 = vunpack.c.h.b16 %v691
    %v3137 = vunpack.c.l.b16 %v692
    %v3138 = vunpack.c.h.b16 %v692
    %v3139 = vunpack.c.l.b16 %v693
    %v3140 = vunpack.c.h.b16 %v693
    %v3141 = vunpack.c.l.b16 %v694
    %v3142 = vunpack.c.h.b16 %v694
    %v3143 = vunpack.c.l.b16 %v695
    %v3144 = vunpack.c.h.b16 %v695
    %v3145 = vunpack.c.l.b16 %v696
    %v3146 = vunpack.c.h.b16 %v696
    %v3147 = vunpack.c.l.b16 %v697
    %v3148 = vunpack.c.h.b16 %v697
    %v3149 = vunpack.c.l.b16 %v698
    %v3150 = vunpack.c.h.b16 %v698
    %v3151 = vunpack.c.l.b16 %v699
    %v3152 = vunpack.c.h.b16 %v699
    %v3153 = vunpack.c.l.b16 %v700
    %v3154 = vunpack.c.h.b16 %v700
    %v3155 = vunpack.c.l.b16 %v701
    %v3156 = vunpack.c.h.b16 %v701
    %v3157 = vunpack.c.l.b16 %v702
    %v3158 = vunpack.c.h.b16 %v702
    %v3159 = vunpack.c.l.b16 %v703
    %v3160 = vunpack.c.h.b16 %v703
    %v3161 = vunpack.c.l.b16 %v704
    %v3162 = vunpack.c.h.b16 %v704
    %v3163 = vunpack.c.l.b16 %v705
    %v3164 = vunpack.c.h.b16 %v705
    %v3165 = vunpack.c.l.b16 %v706
    %v3166 = vunpack.c.h.b16 %v706
    %v3167 = vunpack.c.l.b16 %v707
    %v3168 = vunpack.c.h.b16 %v707
    %v3169 = vunpack.c.l.b16 %v708
    %v3170 = vunpack.c.h.b16 %v708
    %v3171 = vunpack.c.l.b16 %v709
    %v3172 = vunpack.c.h.b16 %v709
    %v3173 = vunpack.c.l.b16 %v710
    %v3174 = vunpack.c.h.b16 %v710
    %v3175 = vunpack.c.l.b16 %v711
    %v3176 = vunpack.c.h.b16 %v711
    %v3177 = vunpack.c.l.b16 %v712
    %v3178 = vunpack.c.h.b16 %v712
    %v3179 = vunpack.c.l.b16 %v713
    %v3180 = vunpack.c.h.b16 %v713
    %v3181 = vunpack.c.l.b16 %v714
    %v3182 = vunpack.c.h.b16 %v714
    %v3183 = vunpack.c.l.b16 %v715
    %v3184 = vunpack.c.h.b16 %v715
    %v3185 = vunpack.c.l.b16 %v716
    %v3186 = vunpack.c.h.b16 %v716
    %v3187 = vunpack.c.l.b16 %v717
    %v3188 = vunpack.c.h.b16 %v717
    %v3189 = vunpack.c.l.b16 %v718
    %v3190 = vunpack.c.h.b16 %v718
    %v3191 = vunpack.c.l.b16 %v719
    %v3192 = vunpack.c.h.b16 %v719
    %v3193 = vunpack.c.l.b16 %v720
    %v3194 = vunpack.c.h.b16 %v720
    %v3195 = vunpack.c.l.b16 %v721
    %v3196 = vunpack.c.h.b16 %v721
    %v3197 = vunpack.c.l.b16 %v722
    %v3198 = vunpack.c.h.b16 %v722
    %v3199 = vunpack.c.l.b16 %v723
    %v3200 = vunpack.c.h.b16 %v723
    %v3201 = vunpack.c.l.b16 %v724
    %v3202 = vunpack.c.h.b16 %v724
    %v3203 = vunpack.c.l.b16 %v725
    %v3204 = vunpack.c.h.b16 %v725
    %v3205 = vunpack.c.l.b16 %v726
    %v3206 = vunpack.c.h.b16 %v726
    %v3207 = vunpack.c.l.b16 %v727
    %v3208 = vunpack.c.h.b16 %v727
    %v3209 = vunpack.c.l.b16 %v728
    %v3210 = vunpack.c.h.b16 %v728
    %v3211 = vunpack.c.l.b16 %v729
    %v3212 = vunpack.c.h.b16 %v729
    %v3213 = vunpack.c.l.b16 %v730
    %v3214 = vunpack.c.h.b16 %v730
    %v3215 = vunpack.c.l.b16 %v731
    %v3216 = vunpack.c.h.b16 %v731
    %v3217 = vunpack.c.l.b16 %v732
    %v3218 = vunpack.c.h.b16 %v732
    %v3219 = vunpack.c.l.b16 %v733
    %v3220 = vunpack.c.h.b16 %v733
    %v3221 = vunpack.c.l.b16 %v734
    %v3222 = vunpack.c.h.b16 %v734
    %v3223 = vunpack.c.l.b16 %v735
    %v3224 = vunpack.c.h.b16 %v735
    %v3225 = vunpack.c.l.b16 %v736
    %v3226 = vunpack.c.h.b16 %v736
    %v3227 = vunpack.c.l.b16 %v737
    %v3228 = vunpack.c.h.b16 %v737
    %v3229 = vunpack.c.l.b16 %v738
    %v3230 = vunpack.c.h.b16 %v738
    %v3231 = vunpack.c.l.b16 %v739
    %v3232 = vunpack.c.h.b16 %v739
    %v3233 = vunpack.c.l.b16 %v740
    %v3234 = vunpack.c.h.b16 %v740
    %v3235 = vunpack.c.l.b16 %v741
    %v3236 = vunpack.c.h.b16 %v741
    %v3237 = vunpack.c.l.b16 %v742
    %v3238 = vunpack.c.h.b16 %v742
    %v3239 = vunpack.c.l.b16 %v743
    %v3240 = vunpack.c.h.b16 %v743
    %v3241 = vunpack.c.l.b16 %v744
    %v3242 = vunpack.c.h.b16 %v744
    %v3243 = vunpack.c.l.b16 %v745
    %v3244 = vunpack.c.h.b16 %v745
    %v3245 = vunpack.c.l.b16 %v746
    %v3246 = vunpack.c.h.b16 %v746
    %v3247 = vunpack.c.l.b16 %v747
    %v3248 = vunpack.c.h.b16 %v747
    %v3249 = vunpack.c.l.b16 %v748
    %v3250 = vunpack.c.h.b16 %v748
    %v3251 = vunpack.c.l.b16 %v749
    %v3252 = vunpack.c.h.b16 %v749
    %v3253 = vunpack.c.l.b16 %v750
    %v3254 = vunpack.c.h.b16 %v750
    %v3255 = vunpack.c.l.b16 %v751
    %v3256 = vunpack.c.h.b16 %v751
    %v3257 = vunpack.c.l.b16 %v752
    %v3258 = vunpack.c.h.b16 %v752
    %v3259 = vunpack.c.l.b16 %v753
    %v3260 = vunpack.c.h.b16 %v753
    %v3261 = vunpack.c.l.b16 %v754
    %v3262 = vunpack.c.h.b16 %v754
    %v3263 = vunpack.c.l.b16 %v755
    %v3264 = vunpack.c.h.b16 %v755
    %v3265 = vunpack.c.l.b16 %v756
    %v3266 = vunpack.c.h.b16 %v756
    %v3267 = vunpack.c.l.b16 %v757
    %v3268 = vunpack.c.h.b16 %v757
    %v3269 = vunpack.c.l.b16 %v758
    %v3270 = vunpack.c.h.b16 %v758
    %v3271 = vunpack.c.l.b16 %v759
    %v3272 = vunpack.c.h.b16 %v759
    %v3273 = vunpack.c.l.b16 %v760
    %v3274 = vunpack.c.h.b16 %v760
    %v3275 = vunpack.c.l.b16 %v761
    %v3276 = vunpack.c.h.b16 %v761
    %v3277 = vunpack.c.l.b16 %v762
    %v3278 = vunpack.c.h.b16 %v762
    %v3279 = vunpack.c.l.b16 %v763
    %v3280 = vunpack.c.h.b16 %v763
    %v3281 = vunpack.c.l.b16 %v764
    %v3282 = vunpack.c.h.b16 %v764
    %v3283 = vunpack.c.l.b16 %v765
    %v3284 = vunpack.c.h.b16 %v765
    %v3285 = vunpack.c.l.b16 %v766
    %v3286 = vunpack.c.h.b16 %v766
    %v3287 = vunpack.c.l.b16 %v767
    %v3288 = vunpack.c.h.b16 %v767
    %v3289 = vunpack.c.l.b16 %v768
    %v3290 = vunpack.c.h.b16 %v768
    %v3291 = vunpack.c.l.b16 %v769
    %v3292 = vunpack.c.h.b16 %v769
    %v3293 = vunpack.c.l.b16 %v770
    %v3294 = vunpack.c.h.b16 %v770
    %v3295 = vunpack.c.l.b16 %v771
    %v3296 = vunpack.c.h.b16 %v771
    %v3297 = vunpack.c.l.b16 %v772
    %v3298 = vunpack.c.h.b16 %v772
    %v3299 = vunpack.c.l.b16 %v773
    %v3300 = vunpack.c.h.b16 %v773
    %v3301 = vunpack.c.l.b16 %v774
    %v3302 = vunpack.c.h.b16 %v774
    %v3303 = vunpack.c.l.b16 %v775
    %v3304 = vunpack.c.h.b16 %v775
    %v3305 = vunpack.c.l.b16 %v776
    %v3306 = vunpack.c.h.b16 %v776
    %v3307 = vunpack.c.l.b16 %v777
    %v3308 = vunpack.c.h.b16 %v777
    %v3309 = vunpack.c.l.b16 %v778
    %v3310 = vunpack.c.h.b16 %v778
    %v3311 = vunpack.c.l.b16 %v779
    %v3312 = vunpack.c.h.b16 %v779
    %v3313 = vunpack.c.l.b16 %v780
    %v3314 = vunpack.c.h.b16 %v780
    %v3315 = vunpack.c.l.b16 %v781
    %v3316 = vunpack.c.h.b16 %v781
    %v3317 = vunpack.c.l.b16 %v782
    %v3318 = vunpack.c.h.b16 %v782
    %v3319 = vunpack.c.l.b16 %v783
    %v3320 = vunpack.c.h.b16 %v783
    %v3321 = vunpack.c.l.b16 %v784
    %v3322 = vunpack.c.h.b16 %v784
    %v3323 = vunpack.c.l.b16 %v785
    %v3324 = vunpack.c.h.b16 %v785
    %v3325 = vunpack.c.l.b16 %v786
    %v3326 = vunpack.c.h.b16 %v786
    %v3327 = vunpack.c.l.b16 %v787
    %v3328 = vunpack.c.h.b16 %v787
    %v3329 = vunpack.c.l.b16 %v788
    %v3330 = vunpack.c.h.b16 %v788
    %v3331 = vunpack.c.l.b16 %v789
    %v3332 = vunpack.c.h.b16 %v789
    %v3333 = vunpack.c.l.b16 %v790
    %v3334 = vunpack.c.h.b16 %v790
    %v3335 = vunpack.c.l.b16 %v791
    %v3336 = vunpack.c.h.b16 %v791
    %v3337 = vunpack.c.l.b16 %v792
    %v3338 = vunpack.c.h.b16 %v792
    %v3339 = vunpack.c.l.b16 %v793
    %v3340 = vunpack.c.h.b16 %v793
    %v3341 = vunpack.c.l.b16 %v794
    %v3342 = vunpack.c.h.b16 %v794
    %v3343 = vunpack.c.l.b16 %v795
    %v3344 = vunpack.c.h.b16 %v795
    %v3345 = vunpack.c.l.b16 %v796
    %v3346 = vunpack.c.h.b16 %v796
    %v3347 = vunpack.c.l.b16 %v797
    %v3348 = vunpack.c.h.b16 %v797
    %v3349 = vunpack.c.l.b16 %v798
    %v3350 = vunpack.c.h.b16 %v798
    %v3351 = vunpack.c.l.b16 %v799
    %v3352 = vunpack.c.h.b16 %v799
    %v3353 = vunpack.c.l.b16 %v800
    %v3354 = vunpack.c.h.b16 %v800
    %v3355 = vunpack.c.l.b16 %v801
    %v3356 = vunpack.c.h.b16 %v801
    %v3357 = vunpack.c.l.b16 %v802
    %v3358 = vunpack.c.h.b16 %v802
    %v3359 = vunpack.c.l.b16 %v803
    %v3360 = vunpack.c.h.b16 %v803
    %v3361 = vunpack.c.l.b16 %v804
    %v3362 = vunpack.c.h.b16 %v804
    %v3363 = vunpack.c.l.b16 %v805
    %v3364 = vunpack.c.h.b16 %v805
    %v3365 = vunpack.c.l.b16 %v806
    %v3366 = vunpack.c.h.b16 %v806
    %v3367 = vunpack.c.l.b16 %v807
    %v3368 = vunpack.c.h.b16 %v807
    %v3369 = vunpack.c.l.b16 %v808
    %v3370 = vunpack.c.h.b16 %v808
    %v3371 = vunpack.c.l.b16 %v809
    %v3372 = vunpack.c.h.b16 %v809
    %v3373 = vpack.c.b16 %v1809, %v1805
    %v3374 = vpack.c.b16 %v1810, %v1806
    %v3375 = vpack.c.b16 %v1811, %v1807
    %v3376 = vpack.c.b16 %v1812, %v1808
    %v3377 = vpack.c.b16 %v1817, %v1813
    %v3378 = vpack.c.b16 %v1818, %v1814
    %v3379 = vpack.c.b16 %v1819, %v1815
    %v3380 = vpack.c.b16 %v1820, %v1816
    %v3381 = vpack.c.b16 %v1825, %v1821
    %v3382 = vpack.c.b16 %v1826, %v1822
    %v3383 = vpack.c.b16 %v1827, %v1823
    %v3384 = vpack.c.b16 %v1828, %v1824
    %v3385 = vpack.c.b16 %v1833, %v1829
    %v3386 = vpack.c.b16 %v1834, %v1830
    %v3387 = vpack.c.b16 %v1835, %v1831
    %v3388 = vpack.c.b16 %v1836, %v1832
    %v3389 = vpack.c.b16 %v1841, %v1837
    %v3390 = vpack.c.b16 %v1842, %v1838
    %v3391 = vpack.c.b16 %v1843, %v1839
    %v3392 = vpack.c.b16 %v1844, %v1840
    %v3393 = vpack.c.b16 %v1849, %v1845
    %v3394 = vpack.c.b16 %v1850, %v1846
    %v3395 = vpack.c.b16 %v1851, %v1847
    %v3396 = vpack.c.b16 %v1852, %v1848
    %v3397 = vpack.c.b16 %v1857, %v1853
    %v3398 = vpack.c.b16 %v1858, %v1854
    %v3399 = vpack.c.b16 %v1859, %v1855
    %v3400 = vpack.c.b16 %v1860, %v1856
    %v3401 = vpack.c.b16 %v1865, %v1861
    %v3402 = vpack.c.b16 %v1866, %v1862
    %v3403 = vpack.c.b16 %v1867, %v1863
    %v3404 = vpack.c.b16 %v1868, %v1864
    %v3405 = vpack.c.b16 %v1873, %v1869
    %v3406 = vpack.c.b16 %v1874, %v1870
    %v3407 = vpack.c.b16 %v1875, %v1871
    %v3408 = vpack.c.b16 %v1876, %v1872
    %v3409 = vpack.c.b16 %v1881, %v1877
    %v3410 = vpack.c.b16 %v1882, %v1878
    %v3411 = vpack.c.b16 %v1883, %v1879
    %v3412 = vpack.c.b16 %v1884, %v1880
    %v3413 = vpack.c.b16 %v1889, %v1885
    %v3414 = vpack.c.b16 %v1890, %v1886
    %v3415 = vpack.c.b16 %v1891, %v1887
    %v3416 = vpack.c.b16 %v1892, %v1888
    %v3417 = vpack.c.b16 %v1897, %v1893
    %v3418 = vpack.c.b16 %v1898, %v1894
    %v3419 = vpack.c.b16 %v1899, %v1895
    %v3420 = vpack.c.b16 %v1900, %v1896
    %v3421 = vpack.c.b16 %v1905, %v1901
    %v3422 = vpack.c.b16 %v1906, %v1902
    %v3423 = vpack.c.b16 %v1907, %v1903
    %v3424 = vpack.c.b16 %v1908, %v1904
    %v3425 = vpack.c.b16 %v1913, %v1909
    %v3426 = vpack.c.b16 %v1914, %v1910
    %v3427 = vpack.c.b16 %v1915, %v1911
    %v3428 = vpack.c.b16 %v1916, %v1912
    %v3429 = vpack.c.b16 %v1921, %v1917
    %v3430 = vpack.c.b16 %v1922, %v1918
    %v3431 = vpack.c.b16 %v1923, %v1919
    %v3432 = vpack.c.b16 %v1924, %v1920
    %v3433 = vpack.c.b16 %v1929, %v1925
    %v3434 = vpack.c.b16 %v1930, %v1926
    %v3435 = vpack.c.b16 %v1931, %v1927
    %v3436 = vpack.c.b16 %v1932, %v1928
    %v3437 = vpack.c.b16 %v1937, %v1933
    %v3438 = vpack.c.b16 %v1938, %v1934
    %v3439 = vpack.c.b16 %v1939, %v1935
    %v3440 = vpack.c.b16 %v1940, %v1936
    %v3441 = vpack.c.b16 %v1945, %v1941
    %v3442 = vpack.c.b16 %v1946, %v1942
    %v3443 = vpack.c.b16 %v1947, %v1943
    %v3444 = vpack.c.b16 %v1948, %v1944
    %v3445 = vpack.c.b16 %v1953, %v1949
    %v3446 = vpack.c.b16 %v1954, %v1950
    %v3447 = vpack.c.b16 %v1955, %v1951
    %v3448 = vpack.c.b16 %v1956, %v1952
    %v3449 = vpack.c.b16 %v1961, %v1957
    %v3450 = vpack.c.b16 %v1962, %v1958
    %v3451 = vpack.c.b16 %v1963, %v1959
    %v3452 = vpack.c.b16 %v1964, %v1960
    %v3453 = vpack.c.b16 %v1969, %v1965
    %v3454 = vpack.c.b16 %v1970, %v1966
    %v3455 = vpack.c.b16 %v1971, %v1967
    %v3456 = vpack.c.b16 %v1972, %v1968
    %v3457 = vpack.c.b16 %v1977, %v1973
    %v3458 = vpack.c.b16 %v1978, %v1974
    %v3459 = vpack.c.b16 %v1979, %v1975
    %v3460 = vpack.c.b16 %v1980, %v1976
    %v3461 = vpack.c.b16 %v1985, %v1981
    %v3462 = vpack.c.b16 %v1986, %v1982
    %v3463 = vpack.c.b16 %v1987, %v1983
    %v3464 = vpack.c.b16 %v1988, %v1984
    %v3465 = vpack.c.b16 %v1993, %v1989
    %v3466 = vpack.c.b16 %v1994, %v1990
    %v3467 = vpack.c.b16 %v1995, %v1991
    %v3468 = vpack.c.b16 %v1996, %v1992
    %v3469 = vpack.c.b16 %v2001, %v1997
    %v3470 = vpack.c.b16 %v2002, %v1998
    %v3471 = vpack.c.b16 %v2003, %v1999
    %v3472 = vpack.c.b16 %v2004, %v2000
    %v3473 = vpack.c.b16 %v2009, %v2005
    %v3474 = vpack.c.b16 %v2010, %v2006
    %v3475 = vpack.c.b16 %v2011, %v2007
    %v3476 = vpack.c.b16 %v2012, %v2008
    %v3477 = vpack.c.b16 %v2017, %v2013
    %v3478 = vpack.c.b16 %v2018, %v2014
    %v3479 = vpack.c.b16 %v2019, %v2015
    %v3480 = vpack.c.b16 %v2020, %v2016
    %v3481 = vpack.c.b16 %v2025, %v2021
    %v3482 = vpack.c.b16 %v2026, %v2022
    %v3483 = vpack.c.b16 %v2027, %v2023
    %v3484 = vpack.c.b16 %v2028, %v2024
    %v3485 = vpack.c.b16 %v2033, %v2029
    %v3486 = vpack.c.b16 %v2034, %v2030
    %v3487 = vpack.c.b16 %v2035, %v2031
    %v3488 = vpack.c.b16 %v2036, %v2032
    %v3489 = vpack.c.b16 %v2041, %v2037
    %v3490 = vpack.c.b16 %v2042, %v2038
    %v3491 = vpack.c.b16 %v2043, %v2039
    %v3492 = vpack.c.b16 %v2044, %v2040
    %v3493 = vpack.c.b16 %v2049, %v2045
    %v3494 = vpack.c.b16 %v2050, %v2046
    %v3495 = vpack.c.b16 %v2051, %v2047
    %v3496 = vpack.c.b16 %v2052, %v2048
    %v3497 = vpack.c.b16 %v2057, %v2053
    %v3498 = vpack.c.b16 %v2058, %v2054
    %v3499 = vpack.c.b16 %v2059, %v2055
    %v3500 = vpack.c.b16 %v2060, %v2056
    %v3501 = vpack.c.b16 %v2065, %v2061
    %v3502 = vpack.c.b16 %v2066, %v2062
    %v3503 = vpack.c.b16 %v2067, %v2063
    %v3504 = vpack.c.b16 %v2068, %v2064
    %v3505 = vpack.c.b16 %v2073, %v2069
    %v3506 = vpack.c.b16 %v2074, %v2070
    %v3507 = vpack.c.b16 %v2075, %v2071
    %v3508 = vpack.c.b16 %v2076, %v2072
    %v3509 = vpack.c.b16 %v2081, %v2077
    %v3510 = vpack.c.b16 %v2082, %v2078
    %v3511 = vpack.c.b16 %v2083, %v2079
    %v3512 = vpack.c.b16 %v2084, %v2080
    %v3513 = vpack.c.b16 %v2089, %v2085
    %v3514 = vpack.c.b16 %v2090, %v2086
    %v3515 = vpack.c.b16 %v2091, %v2087
    %v3516 = vpack.c.b16 %v2092, %v2088
    %v3517 = vpack.c.b16 %v2097, %v2093
    %v3518 = vpack.c.b16 %v2098, %v2094
    %v3519 = vpack.c.b16 %v2099, %v2095
    %v3520 = vpack.c.b16 %v2100, %v2096
    %v3521 = vpack.c.b16 %v2105, %v2101
    %v3522 = vpack.c.b16 %v2106, %v2102
    %v3523 = vpack.c.b16 %v2107, %v2103
    %v3524 = vpack.c.b16 %v2108, %v2104
    %v3525 = vpack.c.b16 %v2113, %v2109
    %v3526 = vpack.c.b16 %v2114, %v2110
    %v3527 = vpack.c.b16 %v2115, %v2111
    %v3528 = vpack.c.b16 %v2116, %v2112
    %v3529 = vpack.c.b16 %v2121, %v2117
    %v3530 = vpack.c.b16 %v2122, %v2118
    %v3531 = vpack.c.b16 %v2123, %v2119
    %v3532 = vpack.c.b16 %v2124, %v2120
    %v3533 = vpack.c.b16 %v2129, %v2125
    %v3534 = vpack.c.b16 %v2130, %v2126
    %v3535 = vpack.c.b16 %v2131, %v2127
    %v3536 = vpack.c.b16 %v2132, %v2128
    %v3537 = vpack.c.b16 %v2137, %v2133
    %v3538 = vpack.c.b16 %v2138, %v2134
    %v3539 = vpack.c.b16 %v2139, %v2135
    %v3540 = vpack.c.b16 %v2140, %v2136
    %v3541 = vpack.c.b16 %v2145, %v2141
    %v3542 = vpack.c.b16 %v2146, %v2142
    %v3543 = vpack.c.b16 %v2147, %v2143
    %v3544 = vpack.c.b16 %v2148, %v2144
    %v3545 = vpack.c.b16 %v2153, %v2149
    %v3546 = vpack.c.b16 %v2154, %v2150
    %v3547 = vpack.c.b16 %v2155, %v2151
    %v3548 = vpack.c.b16 %v2156, %v2152
    %v3549 = vpack.c.b16 %v2161, %v2157
    %v3550 = vpack.c.b16 %v2162, %v2158
    %v3551 = vpack.c.b16 %v2163, %v2159
    %v3552 = vpack.c.b16 %v2164, %v2160
    %v3553 = vpack.c.b16 %v2169, %v2165
    %v3554 = vpack.c.b16 %v2170, %v2166
    %v3555 = vpack.c.b16 %v2171, %v2167
    %v3556 = vpack.c.b16 %v2172, %v2168
    %v3557 = vpack.c.b16 %v2177, %v2173
    %v3558 = vpack.c.b16 %v2178, %v2174
    %v3559 = vpack.c.b16 %v2179, %v2175
    %v3560 = vpack.c.b16 %v2180, %v2176
    %v3561 = vpack.c.b16 %v2185, %v2181
    %v3562 = vpack.c.b16 %v2186, %v2182
    %v3563 = vpack.c.b16 %v2187, %v2183
    %v3564 = vpack.c.b16 %v2188, %v2184
    %v3565 = vpack.c.b16 %v2193, %v2189
    %v3566 = vpack.c.b16 %v2194, %v2190
    %v3567 = vpack.c.b16 %v2195, %v2191
    %v3568 = vpack.c.b16 %v2196, %v2192
    %v3569 = vpack.c.b16 %v2201, %v2197
    %v3570 = vpack.c.b16 %v2202, %v2198
    %v3571 = vpack.c.b16 %v2203, %v2199
    %v3572 = vpack.c.b16 %v2204, %v2200
    %v3573 = vpack.c.b16 %v2209, %v2205
    %v3574 = vpack.c.b16 %v2210, %v2206
    %v3575 = vpack.c.b16 %v2211, %v2207
    %v3576 = vpack.c.b16 %v2212, %v2208
    %v3577 = vpack.c.b16 %v2217, %v2213
    %v3578 = vpack.c.b16 %v2218, %v2214
    %v3579 = vpack.c.b16 %v2219, %v2215
    %v3580 = vpack.c.b16 %v2220, %v2216
    %v3581 = vpack.c.b16 %v2225, %v2221
    %v3582 = vpack.c.b16 %v2226, %v2222
    %v3583 = vpack.c.b16 %v2227, %v2223
    %v3584 = vpack.c.b16 %v2228, %v2224
    %v3585 = vpack.c.b16 %v2233, %v2229
    %v3586 = vpack.c.b16 %v2234, %v2230
    %v3587 = vpack.c.b16 %v2235, %v2231
    %v3588 = vpack.c.b16 %v2236, %v2232
    %v3589 = vpack.c.b16 %v2241, %v2237
    %v3590 = vpack.c.b16 %v2242, %v2238
    %v3591 = vpack.c.b16 %v2243, %v2239
    %v3592 = vpack.c.b16 %v2244, %v2240
    %v3593 = vpack.c.b16 %v2249, %v2245
    %v3594 = vpack.c.b16 %v2250, %v2246
    %v3595 = vpack.c.b16 %v2251, %v2247
    %v3596 = vpack.c.b16 %v2252, %v2248
    %v3597 = vpack.c.b16 %v2257, %v2253
    %v3598 = vpack.c.b16 %v2258, %v2254
    %v3599 = vpack.c.b16 %v2259, %v2255
    %v3600 = vpack.c.b16 %v2260, %v2256
    %v3601 = vpack.c.b16 %v2265, %v2261
    %v3602 = vpack.c.b16 %v2266, %v2262
    %v3603 = vpack.c.b16 %v2267, %v2263
    %v3604 = vpack.c.b16 %v2268, %v2264
    %v3605 = vpack.c.b16 %v2273, %v2269
    %v3606 = vpack.c.b16 %v2274, %v2270
    %v3607 = vpack.c.b16 %v2275, %v2271
    %v3608 = vpack.c.b16 %v2276, %v2272
    %v3609 = vpack.c.b16 %v2281, %v2277
    %v3610 = vpack.c.b16 %v2282, %v2278
    %v3611 = vpack.c.b16 %v2283, %v2279
    %v3612 = vpack.c.b16 %v2284, %v2280
    %v3613 = vpack.c.b16 %v2289, %v2285
    %v3614 = vpack.c.b16 %v2290, %v2286
    %v3615 = vpack.c.b16 %v2291, %v2287
    %v3616 = vpack.c.b16 %v2292, %v2288
    %v3617 = vpack.c.b16 %v2297, %v2293
    %v3618 = vpack.c.b16 %v2298, %v2294
    %v3619 = vpack.c.b16 %v2299, %v2295
    %v3620 = vpack.c.b16 %v2300, %v2296
    %v3621 = vpack.c.b16 %v2305, %v2301
    %v3622 = vpack.c.b16 %v2306, %v2302
    %v3623 = vpack.c.b16 %v2307, %v2303
    %v3624 = vpack.c.b16 %v2308, %v2304
    %v3625 = vpack.c.b16 %v2313, %v2309
    %v3626 = vpack.c.b16 %v2314, %v2310
    %v3627 = vpack.c.b16 %v2315, %v2311
    %v3628 = vpack.c.b16 %v2316, %v2312
    %v3629 = vpack.c.b16 %v2321, %v2317
    %v3630 = vpack.c.b16 %v2322, %v2318
    %v3631 = vpack.c.b16 %v2323, %v2319
    %v3632 = vpack.c.b16 %v2324, %v2320
    %v3633 = vpack.c.b16 %v2329, %v2325
    %v3634 = vpack.c.b16 %v2330, %v2326
    %v3635 = vpack.c.b16 %v2331, %v2327
    %v3636 = vpack.c.b16 %v2332, %v2328
    %v3637 = vpack.c.b16 %v2337, %v2333
    %v3638 = vpack.c.b16 %v2338, %v2334
    %v3639 = vpack.c.b16 %v2339, %v2335
    %v3640 = vpack.c.b16 %v2340, %v2336
    %v3641 = vpack.c.b16 %v2345, %v2341
    %v3642 = vpack.c.b16 %v2346, %v2342
    %v3643 = vpack.c.b16 %v2347, %v2343
    %v3644 = vpack.c.b16 %v2348, %v2344
    %v3645 = vpack.c.b16 %v2353, %v2349
    %v3646 = vpack.c.b16 %v2354, %v2350
    %v3647 = vpack.c.b16 %v2355, %v2351
    %v3648 = vpack.c.b16 %v2356, %v2352
    %v3649 = vpack.c.b16 %v2361, %v2357
    %v3650 = vpack.c.b16 %v2362, %v2358
    %v3651 = vpack.c.b16 %v2363, %v2359
    %v3652 = vpack.c.b16 %v2364, %v2360
    %v3653 = vpack.c.b16 %v2369, %v2365
    %v3654 = vpack.c.b16 %v2370, %v2366
    %v3655 = vpack.c.b16 %v2371, %v2367
    %v3656 = vpack.c.b16 %v2372, %v2368
    %v3657 = vpack.c.b16 %v2377, %v2373
    %v3658 = vpack.c.b16 %v2378, %v2374
    %v3659 = vpack.c.b16 %v2379, %v2375
    %v3660 = vpack.c.b16 %v2380, %v2376
    %v3661 = vpack.c.b16 %v2385, %v2381
    %v3662 = vpack.c.b16 %v2386, %v2382
    %v3663 = vpack.c.b16 %v2387, %v2383
    %v3664 = vpack.c.b16 %v2388, %v2384
    %v3665 = vpack.c.b16 %v2393, %v2389
    %v3666 = vpack.c.b16 %v2394, %v2390
    %v3667 = vpack.c.b16 %v2395, %v2391
    %v3668 = vpack.c.b16 %v2396, %v2392
    %v3669 = vpack.c.b16 %v2401, %v2397
    %v3670 = vpack.c.b16 %v2402, %v2398
    %v3671 = vpack.c.b16 %v2403, %v2399
    %v3672 = vpack.c.b16 %v2404, %v2400
    %v3673 = vpack.c.b16 %v2409, %v2405
    %v3674 = vpack.c.b16 %v2410, %v2406
    %v3675 = vpack.c.b16 %v2411, %v2407
    %v3676 = vpack.c.b16 %v2412, %v2408
    %v3677 = vpack.c.b16 %v2417, %v2413
    %v3678 = vpack.c.b16 %v2418, %v2414
    %v3679 = vpack.c.b16 %v2419, %v2415
    %v3680 = vpack.c.b16 %v2420, %v2416
    %v3681 = vpack.c.b16 %v2425, %v2421
    %v3682 = vpack.c.b16 %v2426, %v2422
    %v3683 = vpack.c.b16 %v2427, %v2423
    %v3684 = vpack.c.b16 %v2428, %v2424
    %v3685 = vpack.c.b16 %v2433, %v2429
    %v3686 = vpack.c.b16 %v2434, %v2430
    %v3687 = vpack.c.b16 %v2435, %v2431
    %v3688 = vpack.c.b16 %v2436, %v2432
    %v3689 = vpack.c.b16 %v2441, %v2437
    %v3690 = vpack.c.b16 %v2442, %v2438
    %v3691 = vpack.c.b16 %v2443, %v2439
    %v3692 = vpack.c.b16 %v2444, %v2440
    %v3693 = vpack.c.b16 %v2449, %v2445
    %v3694 = vpack.c.b16 %v2450, %v2446
    %v3695 = vpack.c.b16 %v2451, %v2447
    %v3696 = vpack.c.b16 %v2452, %v2448
    %v3697 = vpack.c.b16 %v2457, %v2453
    %v3698 = vpack.c.b16 %v2458, %v2454
    %v3699 = vpack.c.b16 %v2459, %v2455
    %v3700 = vpack.c.b16 %v2460, %v2456
    %v3701 = vpack.c.b16 %v2465, %v2461
    %v3702 = vpack.c.b16 %v2466, %v2462
    %v3703 = vpack.c.b16 %v2467, %v2463
    %v3704 = vpack.c.b16 %v2468, %v2464
    %v3705 = vpack.c.b16 %v2473, %v2469
    %v3706 = vpack.c.b16 %v2474, %v2470
    %v3707 = vpack.c.b16 %v2475, %v2471
    %v3708 = vpack.c.b16 %v2476, %v2472
    %v3709 = vpack.c.b16 %v2481, %v2477
    %v3710 = vpack.c.b16 %v2482, %v2478
    %v3711 = vpack.c.b16 %v2483, %v2479
    %v3712 = vpack.c.b16 %v2484, %v2480
    %v3713 = vpack.c.b16 %v2489, %v2485
    %v3714 = vpack.c.b16 %v2490, %v2486
    %v3715 = vpack.c.b16 %v2491, %v2487
    %v3716 = vpack.c.b16 %v2492, %v2488
    %v3717 = vpack.c.b16 %v2497, %v2493
    %v3718 = vpack.c.b16 %v2498, %v2494
    %v3719 = vpack.c.b16 %v2499, %v2495
    %v3720 = vpack.c.b16 %v2500, %v2496
    %v3721 = vpack.c.b16 %v2505, %v2501
    %v3722 = vpack.c.b16 %v2506, %v2502
    %v3723 = vpack.c.b16 %v2507, %v2503
    %v3724 = vpack.c.b16 %v2508, %v2504
    %v3725 = vpack.c.b16 %v2513, %v2509
    %v3726 = vpack.c.b16 %v2514, %v2510
    %v3727 = vpack.c.b16 %v2515, %v2511
    %v3728 = vpack.c.b16 %v2516, %v2512
    %v3729 = vpack.c.b16 %v2521, %v2517
    %v3730 = vpack.c.b16 %v2522, %v2518
    %v3731 = vpack.c.b16 %v2523, %v2519
    %v3732 = vpack.c.b16 %v2524, %v2520
    %v3733 = vpack.c.b16 %v2529, %v2525
    %v3734 = vpack.c.b16 %v2530, %v2526
    %v3735 = vpack.c.b16 %v2531, %v2527
    %v3736 = vpack.c.b16 %v2532, %v2528
    %v3737 = vpack.c.b16 %v2537, %v2533
    %v3738 = vpack.c.b16 %v2538, %v2534
    %v3739 = vpack.c.b16 %v2539, %v2535
    %v3740 = vpack.c.b16 %v2540, %v2536
    %v3741 = vpack.c.b16 %v2545, %v2541
    %v3742 = vpack.c.b16 %v2546, %v2542
    %v3743 = vpack.c.b16 %v2547, %v2543
    %v3744 = vpack.c.b16 %v2548, %v2544
    %v3745 = vpack.c.b16 %v2553, %v2549
    %v3746 = vpack.c.b16 %v2554, %v2550
    %v3747 = vpack.c.b16 %v2555, %v2551
    %v3748 = vpack.c.b16 %v2556, %v2552
    %v3749 = vpack.c.b16 %v2561, %v2557
    %v3750 = vpack.c.b16 %v2562, %v2558
    %v3751 = vpack.c.b16 %v2563, %v2559
    %v3752 = vpack.c.b16 %v2564, %v2560
    %v3753 = vpack.c.b16 %v2569, %v2565
    %v3754 = vpack.c.b16 %v2570, %v2566
    %v3755 = vpack.c.b16 %v2571, %v2567
    %v3756 = vpack.c.b16 %v2572, %v2568
    %v3757 = vpack.c.b16 %v2577, %v2573
    %v3758 = vpack.c.b16 %v2578, %v2574
    %v3759 = vpack.c.b16 %v2579, %v2575
    %v3760 = vpack.c.b16 %v2580, %v2576
    %v3761 = vpack.c.b16 %v2585, %v2581
    %v3762 = vpack.c.b16 %v2586, %v2582
    %v3763 = vpack.c.b16 %v2587, %v2583
    %v3764 = vpack.c.b16 %v2588, %v2584
    %v3765 = vpack.c.b16 %v2593, %v2589
    %v3766 = vpack.c.b16 %v2594, %v2590
    %v3767 = vpack.c.b16 %v2595, %v2591
    %v3768 = vpack.c.b16 %v2596, %v2592
    %v3769 = vpack.c.b16 %v2601, %v2597
    %v3770 = vpack.c.b16 %v2602, %v2598
    %v3771 = vpack.c.b16 %v2603, %v2599
    %v3772 = vpack.c.b16 %v2604, %v2600
    %v3773 = vpack.c.b16 %v2609, %v2605
    %v3774 = vpack.c.b16 %v2610, %v2606
    %v3775 = vpack.c.b16 %v2611, %v2607
    %v3776 = vpack.c.b16 %v2612, %v2608
    %v3777 = vpack.c.b16 %v2617, %v2613
    %v3778 = vpack.c.b16 %v2618, %v2614
    %v3779 = vpack.c.b16 %v2619, %v2615
    %v3780 = vpack.c.b16 %v2620, %v2616
    %v3781 = vpack.c.b16 %v2625, %v2621
    %v3782 = vpack.c.b16 %v2626, %v2622
    %v3783 = vpack.c.b16 %v2627, %v2623
    %v3784 = vpack.c.b16 %v2628, %v2624
    %v3785 = vpack.c.b16 %v2633, %v2629
    %v3786 = vpack.c.b16 %v2634, %v2630
    %v3787 = vpack.c.b16 %v2635, %v2631
    %v3788 = vpack.c.b16 %v2636, %v2632
    %v3789 = vpack.c.b16 %v2641, %v2637
    %v3790 = vpack.c.b16 %v2642, %v2638
    %v3791 = vpack.c.b16 %v2643, %v2639
    %v3792 = vpack.c.b16 %v2644, %v2640
    %v3793 = vpack.c.b16 %v2649, %v2645
    %v3794 = vpack.c.b16 %v2650, %v2646
    %v3795 = vpack.c.b16 %v2651, %v2647
    %v3796 = vpack.c.b16 %v2652, %v2648
    %v3797 = vpack.c.b16 %v2657, %v2653
    %v3798 = vpack.c.b16 %v2658, %v2654
    %v3799 = vpack.c.b16 %v2659, %v2655
    %v3800 = vpack.c.b16 %v2660, %v2656
    %v3801 = vpack.c.b16 %v2665, %v2661
    %v3802 = vpack.c.b16 %v2666, %v2662
    %v3803 = vpack.c.b16 %v2667, %v2663
    %v3804 = vpack.c.b16 %v2668, %v2664
    %v3805 = vpack.c.b16 %v2673, %v2669
    %v3806 = vpack.c.b16 %v2674, %v2670
    %v3807 = vpack.c.b16 %v2675, %v2671
    %v3808 = vpack.c.b16 %v2676, %v2672
    %v3809 = vpack.c.b16 %v2681, %v2677
    %v3810 = vpack.c.b16 %v2682, %v2678
    %v3811 = vpack.c.b16 %v2683, %v2679
    %v3812 = vpack.c.b16 %v2684, %v2680
    %v3813 = vpack.c.b16 %v2689, %v2685
    %v3814 = vpack.c.b16 %v2690, %v2686
    %v3815 = vpack.c.b16 %v2691, %v2687
    %v3816 = vpack.c.b16 %v2692, %v2688
    %v3817 = vpack.c.b16 %v2697, %v2693
    %v3818 = vpack.c.b16 %v2698, %v2694
    %v3819 = vpack.c.b16 %v2699, %v2695
    %v3820 = vpack.c.b16 %v2700, %v2696
    %v3821 = vpack.c.b16 %v2705, %v2701
    %v3822 = vpack.c.b16 %v2706, %v2702
    %v3823 = vpack.c.b16 %v2707, %v2703
    %v3824 = vpack.c.b16 %v2708, %v2704
    %v3825 = vpack.c.b16 %v2713, %v2709
    %v3826 = vpack.c.b16 %v2714, %v2710
    %v3827 = vpack.c.b16 %v2715, %v2711
    %v3828 = vpack.c.b16 %v2716, %v2712
    %v3829 = vpack.c.b16 %v2721, %v2717
    %v3830 = vpack.c.b16 %v2722, %v2718
    %v3831 = vpack.c.b16 %v2723, %v2719
    %v3832 = vpack.c.b16 %v2724, %v2720
    %v3833 = vpack.c.b16 %v2729, %v2725
    %v3834 = vpack.c.b16 %v2730, %v2726
    %v3835 = vpack.c.b16 %v2731, %v2727
    %v3836 = vpack.c.b16 %v2732, %v2728
    %v3837 = vpack.c.b16 %v2737, %v2733
    %v3838 = vpack.c.b16 %v2738, %v2734
    %v3839 = vpack.c.b16 %v2739, %v2735
    %v3840 = vpack.c.b16 %v2740, %v2736
    %v3841 = vpack.c.b16 %v2745, %v2741
    %v3842 = vpack.c.b16 %v2746, %v2742
    %v3843 = vpack.c.b16 %v2747, %v2743
    %v3844 = vpack.c.b16 %v2748, %v2744
    %v3845 = vpack.c.b16 %v2753, %v2749
    %v3846 = vpack.c.b16 %v2754, %v2750
    %v3847 = vpack.c.b16 %v2755, %v2751
    %v3848 = vpack.c.b16 %v2756, %v2752
    %v3849 = vpack.c.b16 %v2761, %v2757
    %v3850 = vpack.c.b16 %v2762, %v2758
    %v3851 = vpack.c.b16 %v2763, %v2759
    %v3852 = vpack.c.b16 %v2764, %v2760
    %v3853 = vpack.c.b16 %v2769, %v2765
    %v3854 = vpack.c.b16 %v2770, %v2766
    %v3855 = vpack.c.b16 %v2771, %v2767
    %v3856 = vpack.c.b16 %v2772, %v2768
    %v3857 = vpack.c.b16 %v2777, %v2773
    %v3858 = vpack.c.b16 %v2778, %v2774
    %v3859 = vpack.c.b16 %v2779, %v2775
    %v3860 = vpack.c.b16 %v2780, %v2776
    %v3861 = vpack.c.b16 %v2785, %v2781
    %v3862 = vpack.c.b16 %v2786, %v2782
    %v3863 = vpack.c.b16 %v2787, %v2783
    %v3864 = vpack.c.b16 %v2788, %v2784
    %v3865 = vpack.c.b16 %v2793, %v2789
    %v3866 = vpack.c.b16 %v2794, %v2790
    %v3867 = vpack.c.b16 %v2795, %v2791
    %v3868 = vpack.c.b16 %v2796, %v2792
    %v3869 = vpack.c.b16 %v2801, %v2797
    %v3870 = vpack.c.b16 %v2802, %v2798
    %v3871 = vpack.c.b16 %v2803, %v2799
    %v3872 = vpack.c.b16 %v2804, %v2800
    %v3873 = vpack.c.b16 %v2809, %v2805
    %v3874 = vpack.c.b16 %v2810, %v2806
    %v3875 = vpack.c.b16 %v2811, %v2807
    %v3876 = vpack.c.b16 %v2812, %v2808
    %v3877 = vpack.c.b16 %v2817, %v2813
    %v3878 = vpack.c.b16 %v2818, %v2814
    %v3879 = vpack.c.b16 %v2819, %v2815
    %v3880 = vpack.c.b16 %v2820, %v2816
    %v3881 = vpack.c.b16 %v2825, %v2821
    %v3882 = vpack.c.b16 %v2826, %v2822
    %v3883 = vpack.c.b16 %v2827, %v2823
    %v3884 = vpack.c.b16 %v2828, %v2824
    %v3885 = vpack.c.b16 %v2833, %v2829
    %v3886 = vpack.c.b16 %v2834, %v2830
    %v3887 = vpack.c.b16 %v2835, %v2831
    %v3888 = vpack.c.b16 %v2836, %v2832
    %v3889 = vpack.c.b16 %v2841, %v2837
    %v3890 = vpack.c.b16 %v2842, %v2838
    %v3891 = vpack.c.b16 %v2843, %v2839
    %v3892 = vpack.c.b16 %v2844, %v2840
    %v3893 = vpack.c.b16 %v2849, %v2845
    %v3894 = vpack.c.b16 %v2850, %v2846
    %v3895 = vpack.c.b16 %v2851, %v2847
    %v3896 = vpack.c.b16 %v2852, %v2848
    %v3897 = vpack.c.b16 %v2857, %v2853
    %v3898 = vpack.c.b16 %v2858, %v2854
    %v3899 = vpack.c.b16 %v2859, %v2855
    %v3900 = vpack.c.b16 %v2860, %v2856
    %v3901 = vpack.c.b16 %v2865, %v2861
    %v3902 = vpack.c.b16 %v2866, %v2862
    %v3903 = vpack.c.b16 %v2867, %v2863
    %v3904 = vpack.c.b16 %v2868, %v2864
    %v3905 = vpack.c.b16 %v2873, %v2869
    %v3906 = vpack.c.b16 %v2874, %v2870
    %v3907 = vpack.c.b16 %v2875, %v2871
    %v3908 = vpack.c.b16 %v2876, %v2872
    %v3909 = vpack.c.b16 %v2881, %v2877
    %v3910 = vpack.c.b16 %v2882, %v2878
    %v3911 = vpack.c.b16 %v2883, %v2879
    %v3912 = vpack.c.b16 %v2884, %v2880
    %v3913 = vpack.c.b16 %v2889, %v2885
    %v3914 = vpack.c.b16 %v2890, %v2886
    %v3915 = vpack.c.b16 %v2891, %v2887
    %v3916 = vpack.c.b16 %v2892, %v2888
    %v3917 = vpack.c.b16 %v2897, %v2893
    %v3918 = vpack.c.b16 %v2898, %v2894
    %v3919 = vpack.c.b16 %v2899, %v2895
    %v3920 = vpack.c.b16 %v2900, %v2896
    %v3921 = vpack.c.b16 %v2905, %v2901
    %v3922 = vpack.c.b16 %v2906, %v2902
    %v3923 = vpack.c.b16 %v2907, %v2903
    %v3924 = vpack.c.b16 %v2908, %v2904
    %v3925 = vpack.c.b16 %v2913, %v2909
    %v3926 = vpack.c.b16 %v2914, %v2910
    %v3927 = vpack.c.b16 %v2915, %v2911
    %v3928 = vpack.c.b16 %v2916, %v2912
    %v3929 = vpack.c.b16 %v2921, %v2917
    %v3930 = vpack.c.b16 %v2922, %v2918
    %v3931 = vpack.c.b16 %v2923, %v2919
    %v3932 = vpack.c.b16 %v2924, %v2920
    %v3933 = vpack.c.b16 %v2929, %v2925
    %v3934 = vpack.c.b16 %v2930, %v2926
    %v3935 = vpack.c.b16 %v2931, %v2927
    %v3936 = vpack.c.b16 %v2932, %v2928
    %v3937 = vpack.c.b16 %v2937, %v2933
    %v3938 = vpack.c.b16 %v2938, %v2934
    %v3939 = vpack.c.b16 %v2939, %v2935
    %v3940 = vpack.c.b16 %v2940, %v2936
    %v3941 = vpack.c.b16 %v2945, %v2941
    %v3942 = vpack.c.b16 %v2946, %v2942
    %v3943 = vpack.c.b16 %v2947, %v2943
    %v3944 = vpack.c.b16 %v2948, %v2944
    %v3945 = vpack.c.b16 %v2953, %v2949
    %v3946 = vpack.c.b16 %v2954, %v2950
    %v3947 = vpack.c.b16 %v2955, %v2951
    %v3948 = vpack.c.b16 %v2956, %v2952
    %v3949 = vpack.c.b16 %v2961, %v2957
    %v3950 = vpack.c.b16 %v2962, %v2958
    %v3951 = vpack.c.b16 %v2963, %v2959
    %v3952 = vpack.c.b16 %v2964, %v2960
    %v3953 = vpack.c.b16 %v2969, %v2965
    %v3954 = vpack.c.b16 %v2970, %v2966
    %v3955 = vpack.c.b16 %v2971, %v2967
    %v3956 = vpack.c.b16 %v2972, %v2968
    %v3957 = vpack.c.b16 %v2977, %v2973
    %v3958 = vpack.c.b16 %v2978, %v2974
    %v3959 = vpack.c.b16 %v2979, %v2975
    %v3960 = vpack.c.b16 %v2980, %v2976
    %v3961 = vpack.c.b16 %v2985, %v2981
    %v3962 = vpack.c.b16 %v2986, %v2982
    %v3963 = vpack.c.b16 %v2987, %v2983
    %v3964 = vpack.c.b16 %v2988, %v2984
    %v3965 = vpack.c.b16 %v2993, %v2989
    %v3966 = vpack.c.b16 %v2994, %v2990
    %v3967 = vpack.c.b16 %v2995, %v2991
    %v3968 = vpack.c.b16 %v2996, %v2992
    %v3969 = vpack.c.b16 %v3001, %v2997
    %v3970 = vpack.c.b16 %v3002, %v2998
    %v3971 = vpack.c.b16 %v3003, %v2999
    %v3972 = vpack.c.b16 %v3004, %v3000
    %v3973 = vpack.c.b16 %v3009, %v3005
    %v3974 = vpack.c.b16 %v3010, %v3006
    %v3975 = vpack.c.b16 %v3011, %v3007
    %v3976 = vpack.c.b16 %v3012, %v3008
    %v3977 = vpack.c.b16 %v3017, %v3013
    %v3978 = vpack.c.b16 %v3018, %v3014
    %v3979 = vpack.c.b16 %v3019, %v3015
    %v3980 = vpack.c.b16 %v3020, %v3016
    %v3981 = vpack.c.b16 %v3025, %v3021
    %v3982 = vpack.c.b16 %v3026, %v3022
    %v3983 = vpack.c.b16 %v3027, %v3023
    %v3984 = vpack.c.b16 %v3028, %v3024
    %v3985 = vpack.c.b16 %v3033, %v3029
    %v3986 = vpack.c.b16 %v3034, %v3030
    %v3987 = vpack.c.b16 %v3035, %v3031
    %v3988 = vpack.c.b16 %v3036, %v3032
    %v3989 = vpack.c.b16 %v3041, %v3037
    %v3990 = vpack.c.b16 %v3042, %v3038
    %v3991 = vpack.c.b16 %v3043, %v3039
    %v3992 = vpack.c.b16 %v3044, %v3040
    %v3993 = vpack.c.b16 %v3049, %v3045
    %v3994 = vpack.c.b16 %v3050, %v3046
    %v3995 = vpack.c.b16 %v3051, %v3047
    %v3996 = vpack.c.b16 %v3052, %v3048
    %v3997 = vpack.c.b16 %v3057, %v3053
    %v3998 = vpack.c.b16 %v3058, %v3054
    %v3999 = vpack.c.b16 %v3059, %v3055
    %v4000 = vpack.c.b16 %v3060, %v3056
    %v4001 = vpack.c.b16 %v3065, %v3061
    %v4002 = vpack.c.b16 %v3066, %v3062
    %v4003 = vpack.c.b16 %v3067, %v3063
    %v4004 = vpack.c.b16 %v3068, %v3064
    %v4005 = vpack.c.b16 %v3073, %v3069
    %v4006 = vpack.c.b16 %v3074, %v3070
    %v4007 = vpack.c.b16 %v3075, %v3071
    %v4008 = vpack.c.b16 %v3076, %v3072
    %v4009 = vpack.c.b16 %v3081, %v3077
    %v4010 = vpack.c.b16 %v3082, %v3078
    %v4011 = vpack.c.b16 %v3083, %v3079
    %v4012 = vpack.c.b16 %v3084, %v3080
    %v4013 = vpack.c.b16 %v3089, %v3085
    %v4014 = vpack.c.b16 %v3090, %v3086
    %v4015 = vpack.c.b16 %v3091, %v3087
    %v4016 = vpack.c.b16 %v3092, %v3088
    %v4017 = vpack.c.b16 %v3097, %v3093
    %v4018 = vpack.c.b16 %v3098, %v3094
    %v4019 = vpack.c.b16 %v3099, %v3095
    %v4020 = vpack.c.b16 %v3100, %v3096
    %v4021 = vpack.c.b16 %v3105, %v3101
    %v4022 = vpack.c.b16 %v3106, %v3102
    %v4023 = vpack.c.b16 %v3107, %v3103
    %v4024 = vpack.c.b16 %v3108, %v3104
    %v4025 = vpack.c.b16 %v3113, %v3109
    %v4026 = vpack.c.b16 %v3114, %v3110
    %v4027 = vpack.c.b16 %v3115, %v3111
    %v4028 = vpack.c.b16 %v3116, %v3112
    %v4029 = vpack.c.b16 %v3121, %v3117
    %v4030 = vpack.c.b16 %v3122, %v3118
    %v4031 = vpack.c.b16 %v3123, %v3119
    %v4032 = vpack.c.b16 %v3124, %v3120
    %v4033 = vpack.c.b16 %v3129, %v3125
    %v4034 = vpack.c.b16 %v3130, %v3126
    %v4035 = vpack.c.b16 %v3131, %v3127
    %v4036 = vpack.c.b16 %v3132, %v3128
    %v4037 = vpack.c.b16 %v3137, %v3133
    %v4038 = vpack.c.b16 %v3138, %v3134
    %v4039 = vpack.c.b16 %v3139, %v3135
    %v4040 = vpack.c.b16 %v3140, %v3136
    %v4041 = vpack.c.b16 %v3145, %v3141
    %v4042 = vpack.c.b16 %v3146, %v3142
    %v4043 = vpack.c.b16 %v3147, %v3143
    %v4044 = vpack.c.b16 %v3148, %v3144
    %v4045 = vpack.c.b16 %v3153, %v3149
    %v4046 = vpack.c.b16 %v3154, %v3150
    %v4047 = vpack.c.b16 %v3155, %v3151
    %v4048 = vpack.c.b16 %v3156, %v3152
    %v4049 = vpack.c.b16 %v3161, %v3157
    %v4050 = vpack.c.b16 %v3162, %v3158
    %v4051 = vpack.c.b16 %v3163, %v3159
    %v4052 = vpack.c.b16 %v3164, %v3160
    %v4053 = vpack.c.b16 %v3169, %v3165
    %v4054 = vpack.c.b16 %v3170, %v3166
    %v4055 = vpack.c.b16 %v3171, %v3167
    %v4056 = vpack.c.b16 %v3172, %v3168
    %v4057 = vpack.c.b16 %v3177, %v3173
    %v4058 = vpack.c.b16 %v3178, %v3174
    %v4059 = vpack.c.b16 %v3179, %v3175
    %v4060 = vpack.c.b16 %v3180, %v3176
    %v4061 = vpack.c.b16 %v3185, %v3181
    %v4062 = vpack.c.b16 %v3186, %v3182
    %v4063 = vpack.c.b16 %v3187, %v3183
    %v4064 = vpack.c.b16 %v3188, %v3184
    %v4065 = vpack.c.b16 %v3193, %v3189
    %v4066 = vpack.c.b16 %v3194, %v3190
    %v4067 = vpack.c.b16 %v3195, %v3191
    %v4068 = vpack.c.b16 %v3196, %v3192
    %v4069 = vpack.c.b16 %v3201, %v3197
    %v4070 = vpack.c.b16 %v3202, %v3198
    %v4071 = vpack.c.b16 %v3203, %v3199
    %v4072 = vpack.c.b16 %v3204, %v3200
    %v4073 = vpack.c.b16 %v3209, %v3205
    %v4074 = vpack.c.b16 %v3210, %v3206
    %v4075 = vpack.c.b16 %v3211, %v3207
    %v4076 = vpack.c.b16 %v3212, %v3208
    %v4077 = vpack.c.b16 %v3217, %v3213
    %v4078 = vpack.c.b16 %v3218, %v3214
    %v4079 = vpack.c.b16 %v3219, %v3215
    %v4080 = vpack.c.b16 %v3220, %v3216
    %v4081 = vpack.c.b16 %v3225, %v3221
    %v4082 = vpack.c.b16 %v3226, %v3222
    %v4083 = vpack.c.b16 %v3227, %v3223
    %v4084 = vpack.c.b16 %v3228, %v3224
    %v4085 = vpack.c.b16 %v3233, %v3229
    %v4086 = vpack.c.b16 %v3234, %v3230
    %v4087 = vpack.c.b16 %v3235, %v3231
    %v4088 = vpack.c.b16 %v3236, %v3232
    %v4089 = vpack.c.b16 %v3241, %v3237
    %v4090 = vpack.c.b16 %v3242, %v3238
    %v4091 = vpack.c.b16 %v3243, %v3239
    %v4092 = vpack.c.b16 %v3244, %v3240
    %v4093 = vpack.c.b16 %v3249, %v3245
    %v4094 = vpack.c.b16 %v3250, %v3246
    %v4095 = vpack.c.b16 %v3251, %v3247
    %v4096 = vpack.c.b16 %v3252, %v3248
    %v4097 = vpack.c.b16 %v3257, %v3253
    %v4098 = vpack.c.b16 %v3258, %v3254
    %v4099 = vpack.c.b16 %v3259, %v3255
    %v4100 = vpack.c.b16 %v3260, %v3256
    %v4101 = vpack.c.b16 %v3265, %v3261
    %v4102 = vpack.c.b16 %v3266, %v3262
    %v4103 = vpack.c.b16 %v3267, %v3263
    %v4104 = vpack.c.b16 %v3268, %v3264
    %v4105 = vpack.c.b16 %v3273, %v3269
    %v4106 = vpack.c.b16 %v3274, %v3270
    %v4107 = vpack.c.b16 %v3275, %v3271
    %v4108 = vpack.c.b16 %v3276, %v3272
    %v4109 = vpack.c.b16 %v3281, %v3277
    %v4110 = vpack.c.b16 %v3282, %v3278
    %v4111 = vpack.c.b16 %v3283, %v3279
    %v4112 = vpack.c.b16 %v3284, %v3280
    %v4113 = vpack.c.b16 %v3289, %v3285
    %v4114 = vpack.c.b16 %v3290, %v3286
    %v4115 = vpack.c.b16 %v3291, %v3287
    %v4116 = vpack.c.b16 %v3292, %v3288
    %v4117 = vpack.c.b16 %v3297, %v3293
    %v4118 = vpack.c.b16 %v3298, %v3294
    %v4119 = vpack.c.b16 %v3299, %v3295
    %v4120 = vpack.c.b16 %v3300, %v3296
    %v4121 = vpack.c.b16 %v3305, %v3301
    %v4122 = vpack.c.b16 %v3306, %v3302
    %v4123 = vpack.c.b16 %v3307, %v3303
    %v4124 = vpack.c.b16 %v3308, %v3304
    %v4125 = vpack.c.b16 %v3313, %v3309
    %v4126 = vpack.c.b16 %v3314, %v3310
    %v4127 = vpack.c.b16 %v3315, %v3311
    %v4128 = vpack.c.b16 %v3316, %v3312
    %v4129 = vpack.c.b16 %v3321, %v3317
    %v4130 = vpack.c.b16 %v3322, %v3318
    %v4131 = vpack.c.b16 %v3323, %v3319
    %v4132 = vpack.c.b16 %v3324, %v3320
    %v4133 = vpack.c.b16 %v3329, %v3325
    %v4134 = vpack.c.b16 %v3330, %v3326
    %v4135 = vpack.c.b16 %v3331, %v3327
    %v4136 = vpack.c.b16 %v3332, %v3328
    %v4137 = vpack.c.b16 %v3337, %v3333
    %v4138 = vpack.c.b16 %v3338, %v3334
    %v4139 = vpack.c.b16 %v3339, %v3335
    %v4140 = vpack.c.b16 %v3340, %v3336
    %v4141 = vpack.c.b16 %v3345, %v3341
    %v4142 = vpack.c.b16 %v3346, %v3342
    %v4143 = vpack.c.b16 %v3347, %v3343
    %v4144 = vpack.c.b16 %v3348, %v3344
    %v4145 = vpack.c.b16 %v3353, %v3349
    %v4146 = vpack.c.b16 %v3354, %v3350
    %v4147 = vpack.c.b16 %v3355, %v3351
    %v4148 = vpack.c.b16 %v3356, %v3352
    %v4149 = vpack.c.b16 %v3361, %v3357
    %v4150 = vpack.c.b16 %v3362, %v3358
    %v4151 = vpack.c.b16 %v3363, %v3359
    %v4152 = vpack.c.b16 %v3364, %v3360
    %v4153 = vpack.c.b16 %v3369, %v3365
    %v4154 = vpack.c.b16 %v3370, %v3366
    %v4155 = vpack.c.b16 %v3371, %v3367
    %v4156 = vpack.c.b16 %v3372, %v3368
    %vm4941 = vcmask 523264
    %v4943 = vsel %vm4941, %v996, 0
    %4945 = vmatprep.subr.bf16.mxu0 %v3374
    %4946 = vmatpush1.bf16.msra.mxu0 %v3373
    %4947 = vmatprep.subr.bf16.mxu0 %v3378
    %4948 = vmatpush1.bf16.msra.mxu0 %v3377
    %4949 = vmatprep.subr.bf16.mxu0 %v3382
    %4950 = vmatpush1.bf16.msra.mxu0 %v3381
    %4951 = vmatprep.subr.bf16.mxu0 %v3386
    %4952 = vmatpush1.bf16.msra.mxu0 %v3385
    %4953 = vmatprep.subr.bf16.mxu0 %v3390
    %4954 = vmatpush1.bf16.msra.mxu0 %v3389
    %4955 = vmatprep.subr.bf16.mxu0 %v3394
    %4956 = vmatpush1.bf16.msra.mxu0 %v3393
    %4957 = vmatprep.subr.bf16.mxu0 %v3398
    %4958 = vmatpush1.bf16.msra.mxu0 %v3397
    %4959 = vmatprep.subr.bf16.mxu0 %v3402
    %4960 = vmatpush1.bf16.msra.mxu0 %v3401
    %4961 = vmatprep.subr.bf16.mxu0 %v3406
    %4962 = vmatpush1.bf16.msra.mxu0 %v3405
    %4963 = vmatprep.subr.bf16.mxu0 %v3410
    %4964 = vmatpush1.bf16.msra.mxu0 %v3409
    %4965 = vmatprep.subr.bf16.mxu0 %v3414
    %4966 = vmatpush1.bf16.msra.mxu0 %v3413
    %4967 = vmatprep.subr.bf16.mxu0 %v3418
    %4968 = vmatpush1.bf16.msra.mxu0 %v3417
    %4969 = vmatprep.subr.bf16.mxu0 %v3422
    %4970 = vmatpush1.bf16.msra.mxu0 %v3421
    %4971 = vmatprep.subr.bf16.mxu0 %v3426
    %4972 = vmatpush1.bf16.msra.mxu0 %v3425
    %4973 = vmatprep.subr.bf16.mxu0 %v3430
    %4974 = vmatpush1.bf16.msra.mxu0 %v3429
    %4975 = vmatprep.subr.bf16.mxu0 %v3434
    %4976 = vmatpush1.bf16.msra.mxu0 %v3433
    %4977 = vmatprep.mubr.bf16.mxu0 %v873
    %4978 = vmatmul.mubr.bf16.gmra.mrb[0].mxu0 %v859
    %v4979 = vpop.f32.mrb[0].mxu0
    %v4980 = vadd.f32 %v815, %v4979
    %v4981 = vpop.f32.mrb[0].mxu0
    %v4982 = vadd.f32 %v819, %v4981
    %v4983 = vpop.f32.mrb[0].mxu0
    %v4984 = vpop.f32.mrb[0].mxu0
    %4985 = vdwg.mxu0
    %4986 = vmatprep.subr.bf16.mxu0 %v3438
    %4987 = vmatpush1.bf16.msra.mxu0 %v3437
    %4988 = vmatprep.subr.bf16.mxu0 %v3442
    %4989 = vmatpush1.bf16.msra.mxu0 %v3441
    %4990 = vmatprep.subr.bf16.mxu0 %v3446
    %4991 = vmatpush1.bf16.msra.mxu0 %v3445
    %4992 = vmatprep.subr.bf16.mxu0 %v3450
    %4993 = vmatpush1.bf16.msra.mxu0 %v3449
    %4994 = vmatprep.subr.bf16.mxu0 %v3454
    %4995 = vmatpush1.bf16.msra.mxu0 %v3453
    %4996 = vmatprep.subr.bf16.mxu0 %v3458
    %4997 = vmatpush1.bf16.msra.mxu0 %v3457
    %4998 = vmatprep.subr.bf16.mxu0 %v3462
    %4999 = vmatpush1.bf16.msra.mxu0 %v3461
    %5000 = vmatprep.subr.bf16.mxu0 %v3466
    %5001 = vmatpush1.bf16.msra.mxu0 %v3465
    %5002 = vmatprep.subr.bf16.mxu0 %v3470
    %5003 = vmatpush1.bf16.msra.mxu0 %v3469
    %5004 = vmatprep.subr.bf16.mxu0 %v3474
    %5005 = vmatpush1.bf16.msra.mxu0 %v3473
    %5006 = vmatprep.subr.bf16.mxu0 %v3478
    %5007 = vmatpush1.bf16.msra.mxu0 %v3477
    %5008 = vmatprep.subr.bf16.mxu0 %v3482
    %5009 = vmatpush1.bf16.msra.mxu0 %v3481
    %5010 = vmatprep.subr.bf16.mxu0 %v3486
    %5011 = vmatpush1.bf16.msra.mxu0 %v3485
    %5012 = vmatprep.subr.bf16.mxu0 %v3490
    %5013 = vmatpush1.bf16.msra.mxu0 %v3489
    %5014 = vmatprep.subr.bf16.mxu0 %v3494
    %5015 = vmatpush1.bf16.msra.mxu0 %v3493
    %5016 = vmatprep.subr.bf16.mxu0 %v3498
    %5017 = vmatpush1.bf16.msra.mxu0 %v3497
    %5018 = vmatprep.mubr.bf16.mxu0 %v883
    %5019 = vmatmul.mubr.bf16.gmra.mrb[0].mxu0 %v881
    %v5020 = vpop.f32.mrb[0].mxu0
    %v5021 = vadd.f32 %v4980, %v5020
    %v5022 = vpop.f32.mrb[0].mxu0
    %v5023 = vadd.f32 %v4982, %v5022
    %v5024 = vpop.f32.mrb[0].mxu0
    %v5025 = vpop.f32.mrb[0].mxu0
    %5026 = vdwg.mxu0
    %5027 = vmatprep.subr.bf16.mxu0 %v3502
    %5028 = vmatpush1.bf16.msra.mxu0 %v3501
    %5029 = vmatprep.subr.bf16.mxu0 %v3506
    %5030 = vmatpush1.bf16.msra.mxu0 %v3505
    %5031 = vmatprep.subr.bf16.mxu0 %v3510
    %5032 = vmatpush1.bf16.msra.mxu0 %v3509
    %5033 = vmatprep.subr.bf16.mxu0 %v3514
    %5034 = vmatpush1.bf16.msra.mxu0 %v3513
    %5035 = vmatprep.subr.bf16.mxu0 %v3518
    %5036 = vmatpush1.bf16.msra.mxu0 %v3517
    %5037 = vmatprep.subr.bf16.mxu0 %v3522
    %5038 = vmatpush1.bf16.msra.mxu0 %v3521
    %5039 = vmatprep.subr.bf16.mxu0 %v3526
    %5040 = vmatpush1.bf16.msra.mxu0 %v3525
    %5041 = vmatprep.subr.bf16.mxu0 %v3530
    %5042 = vmatpush1.bf16.msra.mxu0 %v3529
    %5043 = vmatprep.subr.bf16.mxu0 %v3534
    %5044 = vmatpush1.bf16.msra.mxu0 %v3533
    %5045 = vmatprep.subr.bf16.mxu0 %v3538
    %5046 = vmatpush1.bf16.msra.mxu0 %v3537
    %5047 = vmatprep.subr.bf16.mxu0 %v3542
    %5048 = vmatpush1.bf16.msra.mxu0 %v3541
    %5049 = vmatprep.subr.bf16.mxu0 %v3546
    %5050 = vmatpush1.bf16.msra.mxu0 %v3545
    %5051 = vmatprep.subr.bf16.mxu0 %v3550
    %5052 = vmatpush1.bf16.msra.mxu0 %v3549
    %5053 = vmatprep.subr.bf16.mxu0 %v3554
    %5054 = vmatpush1.bf16.msra.mxu0 %v3553
    %5055 = vmatprep.subr.bf16.mxu0 %v3558
    %5056 = vmatpush1.bf16.msra.mxu0 %v3557
    %5057 = vmatprep.subr.bf16.mxu0 %v3562
    %5058 = vmatpush1.bf16.msra.mxu0 %v3561
    %5059 = vmatprep.mubr.bf16.mxu0 %v880
    %5060 = vmatmul.mubr.bf16.gmra.mrb[0].mxu0 %v866
    %v5061 = vpop.f32.mrb[0].mxu0
    %v5062 = vadd.f32 %v5021, %v5061
    %v5063 = vpop.f32.mrb[0].mxu0
    %v5064 = vadd.f32 %v5023, %v5063
    %v5065 = vpop.f32.mrb[0].mxu0
    %v5066 = vpop.f32.mrb[0].mxu0
    %5067 = vdwg.mxu0
    %5068 = vmatprep.subr.bf16.mxu0 %v3566
    %5069 = vmatpush1.bf16.msra.mxu0 %v3565
    %5070 = vmatprep.subr.bf16.mxu0 %v3570
    %5071 = vmatpush1.bf16.msra.mxu0 %v3569
    %5072 = vmatprep.subr.bf16.mxu0 %v3574
    %5073 = vmatpush1.bf16.msra.mxu0 %v3573
    %5074 = vmatprep.subr.bf16.mxu0 %v3578
    %5075 = vmatpush1.bf16.msra.mxu0 %v3577
    %5076 = vmatprep.subr.bf16.mxu0 %v3582
    %5077 = vmatpush1.bf16.msra.mxu0 %v3581
    %5078 = vmatprep.subr.bf16.mxu0 %v3586
    %5079 = vmatpush1.bf16.msra.mxu0 %v3585
    %5080 = vmatprep.subr.bf16.mxu0 %v3590
    %5081 = vmatpush1.bf16.msra.mxu0 %v3589
    %5082 = vmatprep.subr.bf16.mxu0 %v3594
    %5083 = vmatpush1.bf16.msra.mxu0 %v3593
    %5084 = vmatprep.subr.bf16.mxu0 %v3598
    %5085 = vmatpush1.bf16.msra.mxu0 %v3597
    %5086 = vmatprep.subr.bf16.mxu0 %v3602
    %5087 = vmatpush1.bf16.msra.mxu0 %v3601
    %5088 = vmatprep.subr.bf16.mxu0 %v3606
    %5089 = vmatpush1.bf16.msra.mxu0 %v3605
    %5090 = vmatprep.subr.bf16.mxu0 %v3610
    %5091 = vmatpush1.bf16.msra.mxu0 %v3609
    %5092 = vmatprep.subr.bf16.mxu0 %v3614
    %5093 = vmatpush1.bf16.msra.mxu0 %v3613
    %5094 = vmatprep.subr.bf16.mxu0 %v3618
    %5095 = vmatpush1.bf16.msra.mxu0 %v3617
    %5096 = vmatprep.subr.bf16.mxu0 %v3622
    %5097 = vmatpush1.bf16.msra.mxu0 %v3621
    %5098 = vmatprep.subr.bf16.mxu0 %v3626
    %5099 = vmatpush1.bf16.msra.mxu0 %v3625
    %5100 = vmatprep.mubr.bf16.mxu0 %v884
    %5101 = vmatmul.mubr.bf16.gmra.mrb[0].mxu0 %v882
    %v5102 = vpop.f32.mrb[0].mxu0
    %v5103 = vadd.f32 %v5062, %v5102
    %v5104 = vpop.f32.mrb[0].mxu0
    %v5105 = vadd.f32 %v5064, %v5104
    %v5106 = vpop.f32.mrb[0].mxu0
    %v5107 = vpop.f32.mrb[0].mxu0
    %5108 = vdwg.mxu0
    %5109 = vmatprep.subr.bf16.mxu0 %v3630
    %5110 = vmatpush1.bf16.msra.mxu0 %v3629
    %5111 = vmatprep.subr.bf16.mxu0 %v3634
    %5112 = vmatpush1.bf16.msra.mxu0 %v3633
    %5113 = vmatprep.subr.bf16.mxu0 %v3638
    %5114 = vmatpush1.bf16.msra.mxu0 %v3637
    %5115 = vmatprep.subr.bf16.mxu0 %v3642
    %5116 = vmatpush1.bf16.msra.mxu0 %v3641
    %5117 = vmatprep.subr.bf16.mxu0 %v3646
    %5118 = vmatpush1.bf16.msra.mxu0 %v3645
    %5119 = vmatprep.subr.bf16.mxu0 %v3650
    %5120 = vmatpush1.bf16.msra.mxu0 %v3649
    %5121 = vmatprep.subr.bf16.mxu0 %v3654
    %5122 = vmatpush1.bf16.msra.mxu0 %v3653
    %5123 = vmatprep.subr.bf16.mxu0 %v3658
    %5124 = vmatpush1.bf16.msra.mxu0 %v3657
    %5125 = vmatprep.subr.bf16.mxu0 %v3662
    %5126 = vmatpush1.bf16.msra.mxu0 %v3661
    %5127 = vmatprep.subr.bf16.mxu0 %v3666
    %5128 = vmatpush1.bf16.msra.mxu0 %v3665
    %5129 = vmatprep.subr.bf16.mxu0 %v3670
    %5130 = vmatpush1.bf16.msra.mxu0 %v3669
    %5131 = vmatprep.subr.bf16.mxu0 %v3674
    %5132 = vmatpush1.bf16.msra.mxu0 %v3673
    %5133 = vmatprep.subr.bf16.mxu0 %v3678
    %5134 = vmatpush1.bf16.msra.mxu0 %v3677
    %5135 = vmatprep.subr.bf16.mxu0 %v3682
    %5136 = vmatpush1.bf16.msra.mxu0 %v3681
    %5137 = vmatprep.subr.bf16.mxu0 %v3686
    %5138 = vmatpush1.bf16.msra.mxu0 %v3685
    %5139 = vmatprep.subr.bf16.mxu0 %v3690
    %5140 = vmatpush1.bf16.msra.mxu0 %v3689
    %5141 = vmatprep.mubr.bf16.mxu0 %v922
    %5142 = vmatmul.mubr.bf16.gmra.mrb[0].mxu0 %v908
    %v5143 = vpop.f32.mrb[0].mxu0
    %v5144 = vadd.f32 %v5103, %v5143
    %v5145 = vpop.f32.mrb[0].mxu0
    %v5146 = vadd.f32 %v5105, %v5145
    %v5147 = vpop.f32.mrb[0].mxu0
    %v5148 = vpop.f32.mrb[0].mxu0
    %5149 = vdwg.mxu0
    %5150 = vmatprep.subr.bf16.mxu0 %v3694
    %5151 = vmatpush1.bf16.msra.mxu0 %v3693
    %5152 = vmatprep.subr.bf16.mxu0 %v3698
    %5153 = vmatpush1.bf16.msra.mxu0 %v3697
    %5154 = vmatprep.subr.bf16.mxu0 %v3702
    %5155 = vmatpush1.bf16.msra.mxu0 %v3701
    %5156 = vmatprep.subr.bf16.mxu0 %v3706
    %5157 = vmatpush1.bf16.msra.mxu0 %v3705
    %5158 = vmatprep.subr.bf16.mxu0 %v3710
    %5159 = vmatpush1.bf16.msra.mxu0 %v3709
    %5160 = vmatprep.subr.bf16.mxu0 %v3714
    %5161 = vmatpush1.bf16.msra.mxu0 %v3713
    %5162 = vmatprep.subr.bf16.mxu0 %v3718
    %5163 = vmatpush1.bf16.msra.mxu0 %v3717
    %5164 = vmatprep.subr.bf16.mxu0 %v3722
    %5165 = vmatpush1.bf16.msra.mxu0 %v3721
    %5166 = vmatprep.subr.bf16.mxu0 %v3726
    %5167 = vmatpush1.bf16.msra.mxu0 %v3725
    %5168 = vmatprep.subr.bf16.mxu0 %v3730
    %5169 = vmatpush1.bf16.msra.mxu0 %v3729
    %5170 = vmatprep.subr.bf16.mxu0 %v3734
    %5171 = vmatpush1.bf16.msra.mxu0 %v3733
    %5172 = vmatprep.subr.bf16.mxu0 %v3738
    %5173 = vmatpush1.bf16.msra.mxu0 %v3737
    %5174 = vmatprep.subr.bf16.mxu0 %v3742
    %5175 = vmatpush1.bf16.msra.mxu0 %v3741
    %5176 = vmatprep.subr.bf16.mxu0 %v3746
    %5177 = vmatpush1.bf16.msra.mxu0 %v3745
    %5178 = vmatprep.subr.bf16.mxu0 %v3750
    %5179 = vmatpush1.bf16.msra.mxu0 %v3749
    %5180 = vmatprep.subr.bf16.mxu0 %v3754
    %5181 = vmatpush1.bf16.msra.mxu0 %v3753
    %5182 = vmatprep.mubr.bf16.mxu0 %v932
    %5183 = vmatmul.mubr.bf16.gmra.mrb[0].mxu0 %v930
    %v5184 = vpop.f32.mrb[0].mxu0
    %v5185 = vadd.f32 %v5144, %v5184
    %v5186 = vpop.f32.mrb[0].mxu0
    %v5187 = vadd.f32 %v5146, %v5186
    %v5188 = vpop.f32.mrb[0].mxu0
    %v5189 = vpop.f32.mrb[0].mxu0
    %5190 = vdwg.mxu0
    %5191 = vmatprep.subr.bf16.mxu0 %v3758
    %5192 = vmatpush1.bf16.msra.mxu0 %v3757
    %5193 = vmatprep.subr.bf16.mxu0 %v3762
    %5194 = vmatpush1.bf16.msra.mxu0 %v3761
    %5195 = vmatprep.subr.bf16.mxu0 %v3766
    %5196 = vmatpush1.bf16.msra.mxu0 %v3765
    %5197 = vmatprep.subr.bf16.mxu0 %v3770
    %5198 = vmatpush1.bf16.msra.mxu0 %v3769
    %5199 = vmatprep.subr.bf16.mxu0 %v3774
    %5200 = vmatpush1.bf16.msra.mxu0 %v3773
    %5201 = vmatprep.subr.bf16.mxu0 %v3778
    %5202 = vmatpush1.bf16.msra.mxu0 %v3777
    %5203 = vmatprep.subr.bf16.mxu0 %v3782
    %5204 = vmatpush1.bf16.msra.mxu0 %v3781
    %5205 = vmatprep.subr.bf16.mxu0 %v3786
    %5206 = vmatpush1.bf16.msra.mxu0 %v3785
    %5207 = vmatprep.subr.bf16.mxu0 %v3790
    %5208 = vmatpush1.bf16.msra.mxu0 %v3789
    %5209 = vmatprep.subr.bf16.mxu0 %v3794
    %5210 = vmatpush1.bf16.msra.mxu0 %v3793
    %5211 = vmatprep.subr.bf16.mxu0 %v3798
    %5212 = vmatpush1.bf16.msra.mxu0 %v3797
    %5213 = vmatprep.subr.bf16.mxu0 %v3802
    %5214 = vmatpush1.bf16.msra.mxu0 %v3801
    %5215 = vmatprep.subr.bf16.mxu0 %v3806
    %5216 = vmatpush1.bf16.msra.mxu0 %v3805
    %5217 = vmatprep.subr.bf16.mxu0 %v3810
    %5218 = vmatpush1.bf16.msra.mxu0 %v3809
    %5219 = vmatprep.subr.bf16.mxu0 %v3814
    %5220 = vmatpush1.bf16.msra.mxu0 %v3813
    %5221 = vmatprep.subr.bf16.mxu0 %v3818
    %5222 = vmatpush1.bf16.msra.mxu0 %v3817
    %5223 = vmatprep.mubr.bf16.mxu0 %v929
    %5224 = vmatmul.mubr.bf16.gmra.mrb[0].mxu0 %v915
    %v5225 = vpop.f32.mrb[0].mxu0
    %v5226 = vadd.f32 %v5185, %v5225
    %v5227 = vpop.f32.mrb[0].mxu0
    %v5228 = vadd.f32 %v5187, %v5227
    %v5229 = vpop.f32.mrb[0].mxu0
    %v5230 = vpop.f32.mrb[0].mxu0
    %5231 = vdwg.mxu0
    %5232 = vmatprep.subr.bf16.mxu0 %v3822
    %5233 = vmatpush1.bf16.msra.mxu0 %v3821
    %5234 = vmatprep.subr.bf16.mxu0 %v3826
    %5235 = vmatpush1.bf16.msra.mxu0 %v3825
    %5236 = vmatprep.subr.bf16.mxu0 %v3830
    %5237 = vmatpush1.bf16.msra.mxu0 %v3829
    %5238 = vmatprep.subr.bf16.mxu0 %v3834
    %5239 = vmatpush1.bf16.msra.mxu0 %v3833
    %5240 = vmatprep.subr.bf16.mxu0 %v3838
    %5241 = vmatpush1.bf16.msra.mxu0 %v3837
    %5242 = vmatprep.subr.bf16.mxu0 %v3842
    %5243 = vmatpush1.bf16.msra.mxu0 %v3841
    %5244 = vmatprep.subr.bf16.mxu0 %v3846
    %5245 = vmatpush1.bf16.msra.mxu0 %v3845
    %5246 = vmatprep.subr.bf16.mxu0 %v3850
    %5247 = vmatpush1.bf16.msra.mxu0 %v3849
    %5248 = vmatprep.subr.bf16.mxu0 %v3854
    %5249 = vmatpush1.bf16.msra.mxu0 %v3853
    %5250 = vmatprep.subr.bf16.mxu0 %v3858
    %5251 = vmatpush1.bf16.msra.mxu0 %v3857
    %5252 = vmatprep.subr.bf16.mxu0 %v3862
    %5253 = vmatpush1.bf16.msra.mxu0 %v3861
    %5254 = vmatprep.subr.bf16.mxu0 %v3866
    %5255 = vmatpush1.bf16.msra.mxu0 %v3865
    %5256 = vmatprep.subr.bf16.mxu0 %v3870
    %5257 = vmatpush1.bf16.msra.mxu0 %v3869
    %5258 = vmatprep.subr.bf16.mxu0 %v3874
    %5259 = vmatpush1.bf16.msra.mxu0 %v3873
    %5260 = vmatprep.subr.bf16.mxu0 %v3878
    %5261 = vmatpush1.bf16.msra.mxu0 %v3877
    %5262 = vmatprep.subr.bf16.mxu0 %v3882
    %5263 = vmatpush1.bf16.msra.mxu0 %v3881
    %5264 = vmatprep.mubr.bf16.mxu0 %v933
    %5265 = vmatmul.mubr.bf16.gmra.mrb[0].mxu0 %v931
    %v5266 = vpop.f32.mrb[0].mxu0
    %v5267 = vadd.f32 %v5226, %v5266
    %v5268 = vpop.f32.mrb[0].mxu0
    %v5269 = vadd.f32 %v5228, %v5268
    %v5270 = vpop.f32.mrb[0].mxu0
    %v5271 = vpop.f32.mrb[0].mxu0
    %5272 = vdwg.mxu0
    %5273 = vmatprep.subr.bf16.mxu0 %v3886
    %5274 = vmatpush1.bf16.msra.mxu0 %v3885
    %5275 = vmatprep.subr.bf16.mxu0 %v3890
    %5276 = vmatpush1.bf16.msra.mxu0 %v3889
    %5277 = vmatprep.subr.bf16.mxu0 %v3894
    %5278 = vmatpush1.bf16.msra.mxu0 %v3893
    %5279 = vmatprep.subr.bf16.mxu0 %v3898
    %5280 = vmatpush1.bf16.msra.mxu0 %v3897
    %5281 = vmatprep.subr.bf16.mxu0 %v3902
    %5282 = vmatpush1.bf16.msra.mxu0 %v3901
    %5283 = vmatprep.subr.bf16.mxu0 %v3906
    %5284 = vmatpush1.bf16.msra.mxu0 %v3905
    %5285 = vmatprep.subr.bf16.mxu0 %v3910
    %5286 = vmatpush1.bf16.msra.mxu0 %v3909
    %5287 = vmatprep.subr.bf16.mxu0 %v3914
    %5288 = vmatpush1.bf16.msra.mxu0 %v3913
    %5289 = vmatprep.subr.bf16.mxu0 %v3918
    %5290 = vmatpush1.bf16.msra.mxu0 %v3917
    %5291 = vmatprep.subr.bf16.mxu0 %v3922
    %5292 = vmatpush1.bf16.msra.mxu0 %v3921
    %5293 = vmatprep.subr.bf16.mxu0 %v3926
    %5294 = vmatpush1.bf16.msra.mxu0 %v3925
    %5295 = vmatprep.subr.bf16.mxu0 %v3930
    %5296 = vmatpush1.bf16.msra.mxu0 %v3929
    %5297 = vmatprep.subr.bf16.mxu0 %v3934
    %5298 = vmatpush1.bf16.msra.mxu0 %v3933
    %5299 = vmatprep.subr.bf16.mxu0 %v3938
    %5300 = vmatpush1.bf16.msra.mxu0 %v3937
    %5301 = vmatprep.subr.bf16.mxu0 %v3942
    %5302 = vmatpush1.bf16.msra.mxu0 %v3941
    %5303 = vmatprep.subr.bf16.mxu0 %v3946
    %5304 = vmatpush1.bf16.msra.mxu0 %v3945
    %5305 = vmatprep.mubr.bf16.mxu0 %v971
    %5306 = vmatmul.mubr.bf16.gmra.mrb[0].mxu0 %v957
    %v5307 = vpop.f32.mrb[0].mxu0
    %v5308 = vadd.f32 %v5267, %v5307
    %v5309 = vpop.f32.mrb[0].mxu0
    %v5310 = vadd.f32 %v5269, %v5309
    %v5311 = vpop.f32.mrb[0].mxu0
    %v5312 = vpop.f32.mrb[0].mxu0
    %5313 = vdwg.mxu0
    %5314 = vmatprep.subr.bf16.mxu0 %v3950
    %5315 = vmatpush1.bf16.msra.mxu0 %v3949
    %5316 = vmatprep.subr.bf16.mxu0 %v3954
    %5317 = vmatpush1.bf16.msra.mxu0 %v3953
    %5318 = vmatprep.subr.bf16.mxu0 %v3958
    %5319 = vmatpush1.bf16.msra.mxu0 %v3957
    %5320 = vmatprep.subr.bf16.mxu0 %v3962
    %5321 = vmatpush1.bf16.msra.mxu0 %v3961
    %5322 = vmatprep.subr.bf16.mxu0 %v3966
    %5323 = vmatpush1.bf16.msra.mxu0 %v3965
    %5324 = vmatprep.subr.bf16.mxu0 %v3970
    %5325 = vmatpush1.bf16.msra.mxu0 %v3969
    %5326 = vmatprep.subr.bf16.mxu0 %v3974
    %5327 = vmatpush1.bf16.msra.mxu0 %v3973
    %5328 = vmatprep.subr.bf16.mxu0 %v3978
    %5329 = vmatpush1.bf16.msra.mxu0 %v3977
    %5330 = vmatprep.subr.bf16.mxu0 %v3982
    %5331 = vmatpush1.bf16.msra.mxu0 %v3981
    %5332 = vmatprep.subr.bf16.mxu0 %v3986
    %5333 = vmatpush1.bf16.msra.mxu0 %v3985
    %5334 = vmatprep.subr.bf16.mxu0 %v3990
    %5335 = vmatpush1.bf16.msra.mxu0 %v3989
    %5336 = vmatprep.subr.bf16.mxu0 %v3994
    %5337 = vmatpush1.bf16.msra.mxu0 %v3993
    %5338 = vmatprep.subr.bf16.mxu0 %v3998
    %5339 = vmatpush1.bf16.msra.mxu0 %v3997
    %5340 = vmatprep.subr.bf16.mxu0 %v4002
    %5341 = vmatpush1.bf16.msra.mxu0 %v4001
    %5342 = vmatprep.subr.bf16.mxu0 %v4006
    %5343 = vmatpush1.bf16.msra.mxu0 %v4005
    %5344 = vmatprep.subr.bf16.mxu0 %v4010
    %5345 = vmatpush1.bf16.msra.mxu0 %v4009
    %5346 = vmatprep.mubr.bf16.mxu0 %v981
    %5347 = vmatmul.mubr.bf16.gmra.mrb[0].mxu0 %v979
    %v5348 = vpop.f32.mrb[0].mxu0
    %v5349 = vadd.f32 %v5308, %v5348
    %v5350 = vpop.f32.mrb[0].mxu0
    %v5351 = vadd.f32 %v5310, %v5350
    %v5352 = vpop.f32.mrb[0].mxu0
    %v5353 = vpop.f32.mrb[0].mxu0
    %5354 = vdwg.mxu0
    %5355 = vmatprep.subr.bf16.mxu0 %v4014
    %5356 = vmatpush1.bf16.msra.mxu0 %v4013
    %5357 = vmatprep.subr.bf16.mxu0 %v4018
    %5358 = vmatpush1.bf16.msra.mxu0 %v4017
    %5359 = vmatprep.subr.bf16.mxu0 %v4022
    %5360 = vmatpush1.bf16.msra.mxu0 %v4021
    %5361 = vmatprep.subr.bf16.mxu0 %v4026
    %5362 = vmatpush1.bf16.msra.mxu0 %v4025
    %5363 = vmatprep.subr.bf16.mxu0 %v4030
    %5364 = vmatpush1.bf16.msra.mxu0 %v4029
    %5365 = vmatprep.subr.bf16.mxu0 %v4034
    %5366 = vmatpush1.bf16.msra.mxu0 %v4033
    %5367 = vmatprep.subr.bf16.mxu0 %v4038
    %5368 = vmatpush1.bf16.msra.mxu0 %v4037
    %5369 = vmatprep.subr.bf16.mxu0 %v4042
    %5370 = vmatpush1.bf16.msra.mxu0 %v4041
    %5371 = vmatprep.subr.bf16.mxu0 %v4046
    %5372 = vmatpush1.bf16.msra.mxu0 %v4045
    %5373 = vmatprep.subr.bf16.mxu0 %v4050
    %5374 = vmatpush1.bf16.msra.mxu0 %v4049
    %5375 = vmatprep.subr.bf16.mxu0 %v4054
    %5376 = vmatpush1.bf16.msra.mxu0 %v4053
    %5377 = vmatprep.subr.bf16.mxu0 %v4058
    %5378 = vmatpush1.bf16.msra.mxu0 %v4057
    %5379 = vmatprep.subr.bf16.mxu0 %v4062
    %5380 = vmatpush1.bf16.msra.mxu0 %v4061
    %5381 = vmatprep.subr.bf16.mxu0 %v4066
    %5382 = vmatpush1.bf16.msra.mxu0 %v4065
    %5383 = vmatprep.subr.bf16.mxu0 %v4070
    %5384 = vmatpush1.bf16.msra.mxu0 %v4069
    %5385 = vmatprep.subr.bf16.mxu0 %v4074
    %5386 = vmatpush1.bf16.msra.mxu0 %v4073
    %5387 = vmatprep.mubr.bf16.mxu0 %v978
    %5388 = vmatmul.mubr.bf16.gmra.mrb[0].mxu0 %v964
    %v5389 = vpop.f32.mrb[0].mxu0
    %v5390 = vadd.f32 %v5349, %v5389
    %v5391 = vpop.f32.mrb[0].mxu0
    %v5392 = vadd.f32 %v5351, %v5391
    %v5393 = vpop.f32.mrb[0].mxu0
    %v5394 = vpop.f32.mrb[0].mxu0
    %5395 = vdwg.mxu0
    %5396 = vmatprep.subr.bf16.mxu0 %v4078
    %5397 = vmatpush1.bf16.msra.mxu0 %v4077
    %5398 = vmatprep.subr.bf16.mxu0 %v4082
    %5399 = vmatpush1.bf16.msra.mxu0 %v4081
    %5400 = vmatprep.subr.bf16.mxu0 %v4086
    %5401 = vmatpush1.bf16.msra.mxu0 %v4085
    %5402 = vmatprep.subr.bf16.mxu0 %v4090
    %5403 = vmatpush1.bf16.msra.mxu0 %v4089
    %5404 = vmatprep.subr.bf16.mxu0 %v4094
    %5405 = vmatpush1.bf16.msra.mxu0 %v4093
    %5406 = vmatprep.subr.bf16.mxu0 %v4098
    %5407 = vmatpush1.bf16.msra.mxu0 %v4097
    %5408 = vmatprep.subr.bf16.mxu0 %v4102
    %5409 = vmatpush1.bf16.msra.mxu0 %v4101
    %5410 = vmatprep.subr.bf16.mxu0 %v4106
    %5411 = vmatpush1.bf16.msra.mxu0 %v4105
    %5412 = vmatprep.subr.bf16.mxu0 %v4110
    %5413 = vmatpush1.bf16.msra.mxu0 %v4109
    %5414 = vmatprep.subr.bf16.mxu0 %v4114
    %5415 = vmatpush1.bf16.msra.mxu0 %v4113
    %5416 = vmatprep.subr.bf16.mxu0 %v4118
    %5417 = vmatpush1.bf16.msra.mxu0 %v4117
    %5418 = vmatprep.subr.bf16.mxu0 %v4122
    %5419 = vmatpush1.bf16.msra.mxu0 %v4121
    %5420 = vmatprep.subr.bf16.mxu0 %v4126
    %5421 = vmatpush1.bf16.msra.mxu0 %v4125
    %5422 = vmatprep.subr.bf16.mxu0 %v4130
    %5423 = vmatpush1.bf16.msra.mxu0 %v4129
    %5424 = vmatprep.subr.bf16.mxu0 %v4134
    %5425 = vmatpush1.bf16.msra.mxu0 %v4133
    %5426 = vmatprep.subr.bf16.mxu0 %v4138
    %5427 = vmatpush1.bf16.msra.mxu0 %v4137
    %5428 = vmatprep.mubr.bf16.mxu0 %v982
    %5429 = vmatmul.mubr.bf16.gmra.mrb[0].mxu0 %v980
    %v5430 = vpop.f32.mrb[0].mxu0
    %v5431 = vadd.f32 %v5390, %v5430
    %v5432 = vpop.f32.mrb[0].mxu0
    %v5433 = vadd.f32 %v5392, %v5432
    %v5434 = vpop.f32.mrb[0].mxu0
    %v5435 = vpop.f32.mrb[0].mxu0
    %5436 = vdwg.mxu0
    %5437 = vmatprep.subr.bf16.mxu0 %v4142
    %5438 = vmatpush1.bf16.msra.mxu0 %v4141
    %5439 = vmatprep.subr.bf16.mxu0 %v4146
    %5440 = vmatpush1.bf16.msra.mxu0 %v4145
    %5441 = vmatprep.subr.bf16.mxu0 %v4150
    %5442 = vmatpush1.bf16.msra.mxu0 %v4149
    %5443 = vmatprep.subr.bf16.mxu0 %v4154
    %5444 = vmatpush1.bf16.msra.mxu0 %v4153
    %5445 = vmatprep.subr.bf16.mxu0 0
    %5446 = vmatpush1.bf16.msra.mxu0 0
    %5447 = vmatprep.subr.bf16.mxu0 0
    %5448 = vmatpush1.bf16.msra.mxu0 0
    %5449 = vmatprep.subr.bf16.mxu0 0
    %5450 = vmatpush1.bf16.msra.mxu0 0
    %5451 = vmatprep.subr.bf16.mxu0 0
    %5452 = vmatpush1.bf16.msra.mxu0 0
    %5453 = vmatprep.subr.bf16.mxu0 0
    %5454 = vmatpush1.bf16.msra.mxu0 0
    %5455 = vmatprep.subr.bf16.mxu0 0
    %5456 = vmatpush1.bf16.msra.mxu0 0
    %5457 = vmatprep.subr.bf16.mxu0 0
    %5458 = vmatpush1.bf16.msra.mxu0 0
    %5459 = vmatprep.subr.bf16.mxu0 0
    %5460 = vmatpush1.bf16.msra.mxu0 0
    %5461 = vmatprep.subr.bf16.mxu0 0
    %5462 = vmatpush1.bf16.msra.mxu0 0
    %5463 = vmatprep.subr.bf16.mxu0 0
    %5464 = vmatpush1.bf16.msra.mxu0 0
    %5465 = vmatprep.subr.bf16.mxu0 0
    %5466 = vmatpush1.bf16.msra.mxu0 0
    %5467 = vmatprep.subr.bf16.mxu0 0
    %5468 = vmatpush1.bf16.msra.mxu0 0
    %5469 = vmatprep.mubr.bf16.mxu0 0
    %5470 = vmatmul.mubr.bf16.gmra.mrb[0].mxu0 %v4943
    %v5471 = vpop.f32.mrb[0].mxu0
    %v5472 = vadd.f32 %v5431, %v5471
    %v5473 = vpop.f32.mrb[0].mxu0
    %v5474 = vadd.f32 %v5433, %v5473
    %v5475 = vpop.f32.mrb[0].mxu0
    %v5476 = vpop.f32.mrb[0].mxu0
    %5477 = vdwg.mxu0
    %5478 = vmatprep.subr.bf16.mxu0 %v3376
    %5479 = vmatpush1.bf16.msra.mxu0 %v3375
    %5480 = vmatprep.subr.bf16.mxu0 %v3380
    %5481 = vmatpush1.bf16.msra.mxu0 %v3379
    %5482 = vmatprep.subr.bf16.mxu0 %v3384
    %5483 = vmatpush1.bf16.msra.mxu0 %v3383
    %5484 = vmatprep.subr.bf16.mxu0 %v3388
    %5485 = vmatpush1.bf16.msra.mxu0 %v3387
    %5486 = vmatprep.subr.bf16.mxu0 %v3392
    %5487 = vmatpush1.bf16.msra.mxu0 %v3391
    %5488 = vmatprep.subr.bf16.mxu0 %v3396
    %5489 = vmatpush1.bf16.msra.mxu0 %v3395
    %5490 = vmatprep.subr.bf16.mxu0 %v3400
    %5491 = vmatpush1.bf16.msra.mxu0 %v3399
    %5492 = vmatprep.subr.bf16.mxu0 %v3404
    %5493 = vmatpush1.bf16.msra.mxu0 %v3403
    %5494 = vmatprep.subr.bf16.mxu0 %v3408
    %5495 = vmatpush1.bf16.msra.mxu0 %v3407
    %5496 = vmatprep.subr.bf16.mxu0 %v3412
    %5497 = vmatpush1.bf16.msra.mxu0 %v3411
    %5498 = vmatprep.subr.bf16.mxu0 %v3416
    %5499 = vmatpush1.bf16.msra.mxu0 %v3415
    %5500 = vmatprep.subr.bf16.mxu0 %v3420
    %5501 = vmatpush1.bf16.msra.mxu0 %v3419
    %5502 = vmatprep.subr.bf16.mxu0 %v3424
    %5503 = vmatpush1.bf16.msra.mxu0 %v3423
    %5504 = vmatprep.subr.bf16.mxu0 %v3428
    %5505 = vmatpush1.bf16.msra.mxu0 %v3427
    %5506 = vmatprep.subr.bf16.mxu0 %v3432
    %5507 = vmatpush1.bf16.msra.mxu0 %v3431
    %5508 = vmatprep.subr.bf16.mxu0 %v3436
    %5509 = vmatpush1.bf16.msra.mxu0 %v3435
    %5510 = vmatprep.mubr.bf16.mxu0 %v873
    %5511 = vmatmul.mubr.bf16.gmra.mrb[0].mxu0 %v859
    %v5512 = vpop.f32.mrb[0].mxu0
    %v5513 = vadd.f32 %v823, %v5512
    %v5514 = vpop.f32.mrb[0].mxu0
    %v5515 = vadd.f32 %v827, %v5514
    %v5516 = vpop.f32.mrb[0].mxu0
    %v5517 = vpop.f32.mrb[0].mxu0
    %5518 = vdwg.mxu0
    %5519 = vmatprep.subr.bf16.mxu0 %v3440
    %5520 = vmatpush1.bf16.msra.mxu0 %v3439
    %5521 = vmatprep.subr.bf16.mxu0 %v3444
    %5522 = vmatpush1.bf16.msra.mxu0 %v3443
    %5523 = vmatprep.subr.bf16.mxu0 %v3448
    %5524 = vmatpush1.bf16.msra.mxu0 %v3447
    %5525 = vmatprep.subr.bf16.mxu0 %v3452
    %5526 = vmatpush1.bf16.msra.mxu0 %v3451
    %5527 = vmatprep.subr.bf16.mxu0 %v3456
    %5528 = vmatpush1.bf16.msra.mxu0 %v3455
    %5529 = vmatprep.subr.bf16.mxu0 %v3460
    %5530 = vmatpush1.bf16.msra.mxu0 %v3459
    %5531 = vmatprep.subr.bf16.mxu0 %v3464
    %5532 = vmatpush1.bf16.msra.mxu0 %v3463
    %5533 = vmatprep.subr.bf16.mxu0 %v3468
    %5534 = vmatpush1.bf16.msra.mxu0 %v3467
    %5535 = vmatprep.subr.bf16.mxu0 %v3472
    %5536 = vmatpush1.bf16.msra.mxu0 %v3471
    %5537 = vmatprep.subr.bf16.mxu0 %v3476
    %5538 = vmatpush1.bf16.msra.mxu0 %v3475
    %5539 = vmatprep.subr.bf16.mxu0 %v3480
    %5540 = vmatpush1.bf16.msra.mxu0 %v3479
    %5541 = vmatprep.subr.bf16.mxu0 %v3484
    %5542 = vmatpush1.bf16.msra.mxu0 %v3483
    %5543 = vmatprep.subr.bf16.mxu0 %v3488
    %5544 = vmatpush1.bf16.msra.mxu0 %v3487
    %5545 = vmatprep.subr.bf16.mxu0 %v3492
    %5546 = vmatpush1.bf16.msra.mxu0 %v3491
    %5547 = vmatprep.subr.bf16.mxu0 %v3496
    %5548 = vmatpush1.bf16.msra.mxu0 %v3495
    %5549 = vmatprep.subr.bf16.mxu0 %v3500
    %5550 = vmatpush1.bf16.msra.mxu0 %v3499
    %5551 = vmatprep.mubr.bf16.mxu0 %v883
    %5552 = vmatmul.mubr.bf16.gmra.mrb[0].mxu0 %v881
    %v5553 = vpop.f32.mrb[0].mxu0
    %v5554 = vadd.f32 %v5513, %v5553
    %v5555 = vpop.f32.mrb[0].mxu0
    %v5556 = vadd.f32 %v5515, %v5555
    %v5557 = vpop.f32.mrb[0].mxu0
    %v5558 = vpop.f32.mrb[0].mxu0
    %5559 = vdwg.mxu0
    %5560 = vmatprep.subr.bf16.mxu0 %v3504
    %5561 = vmatpush1.bf16.msra.mxu0 %v3503
    %5562 = vmatprep.subr.bf16.mxu0 %v3508
    %5563 = vmatpush1.bf16.msra.mxu0 %v3507
    %5564 = vmatprep.subr.bf16.mxu0 %v3512
    %5565 = vmatpush1.bf16.msra.mxu0 %v3511
    %5566 = vmatprep.subr.bf16.mxu0 %v3516
    %5567 = vmatpush1.bf16.msra.mxu0 %v3515
    %5568 = vmatprep.subr.bf16.mxu0 %v3520
    %5569 = vmatpush1.bf16.msra.mxu0 %v3519
    %5570 = vmatprep.subr.bf16.mxu0 %v3524
    %5571 = vmatpush1.bf16.msra.mxu0 %v3523
    %5572 = vmatprep.subr.bf16.mxu0 %v3528
    %5573 = vmatpush1.bf16.msra.mxu0 %v3527
    %5574 = vmatprep.subr.bf16.mxu0 %v3532
    %5575 = vmatpush1.bf16.msra.mxu0 %v3531
    %5576 = vmatprep.subr.bf16.mxu0 %v3536
    %5577 = vmatpush1.bf16.msra.mxu0 %v3535
    %5578 = vmatprep.subr.bf16.mxu0 %v3540
    %5579 = vmatpush1.bf16.msra.mxu0 %v3539
    %5580 = vmatprep.subr.bf16.mxu0 %v3544
    %5581 = vmatpush1.bf16.msra.mxu0 %v3543
    %5582 = vmatprep.subr.bf16.mxu0 %v3548
    %5583 = vmatpush1.bf16.msra.mxu0 %v3547
    %5584 = vmatprep.subr.bf16.mxu0 %v3552
    %5585 = vmatpush1.bf16.msra.mxu0 %v3551
    %5586 = vmatprep.subr.bf16.mxu0 %v3556
    %5587 = vmatpush1.bf16.msra.mxu0 %v3555
    %5588 = vmatprep.subr.bf16.mxu0 %v3560
    %5589 = vmatpush1.bf16.msra.mxu0 %v3559
    %5590 = vmatprep.subr.bf16.mxu0 %v3564
    %5591 = vmatpush1.bf16.msra.mxu0 %v3563
    %5592 = vmatprep.mubr.bf16.mxu0 %v880
    %5593 = vmatmul.mubr.bf16.gmra.mrb[0].mxu0 %v866
    %v5594 = vpop.f32.mrb[0].mxu0
    %v5595 = vadd.f32 %v5554, %v5594
    %v5596 = vpop.f32.mrb[0].mxu0
    %v5597 = vadd.f32 %v5556, %v5596
    %v5598 = vpop.f32.mrb[0].mxu0
    %v5599 = vpop.f32.mrb[0].mxu0
    %5600 = vdwg.mxu0
    %5601 = vmatprep.subr.bf16.mxu0 %v3568
    %5602 = vmatpush1.bf16.msra.mxu0 %v3567
    %5603 = vmatprep.subr.bf16.mxu0 %v3572
    %5604 = vmatpush1.bf16.msra.mxu0 %v3571
    %5605 = vmatprep.subr.bf16.mxu0 %v3576
    %5606 = vmatpush1.bf16.msra.mxu0 %v3575
    %5607 = vmatprep.subr.bf16.mxu0 %v3580
    %5608 = vmatpush1.bf16.msra.mxu0 %v3579
    %5609 = vmatprep.subr.bf16.mxu0 %v3584
    %5610 = vmatpush1.bf16.msra.mxu0 %v3583
    %5611 = vmatprep.subr.bf16.mxu0 %v3588
    %5612 = vmatpush1.bf16.msra.mxu0 %v3587
    %5613 = vmatprep.subr.bf16.mxu0 %v3592
    %5614 = vmatpush1.bf16.msra.mxu0 %v3591
    %5615 = vmatprep.subr.bf16.mxu0 %v3596
    %5616 = vmatpush1.bf16.msra.mxu0 %v3595
    %5617 = vmatprep.subr.bf16.mxu0 %v3600
    %5618 = vmatpush1.bf16.msra.mxu0 %v3599
    %5619 = vmatprep.subr.bf16.mxu0 %v3604
    %5620 = vmatpush1.bf16.msra.mxu0 %v3603
    %5621 = vmatprep.subr.bf16.mxu0 %v3608
    %5622 = vmatpush1.bf16.msra.mxu0 %v3607
    %5623 = vmatprep.subr.bf16.mxu0 %v3612
    %5624 = vmatpush1.bf16.msra.mxu0 %v3611
    %5625 = vmatprep.subr.bf16.mxu0 %v3616
    %5626 = vmatpush1.bf16.msra.mxu0 %v3615
    %5627 = vmatprep.subr.bf16.mxu0 %v3620
    %5628 = vmatpush1.bf16.msra.mxu0 %v3619
    %5629 = vmatprep.subr.bf16.mxu0 %v3624
    %5630 = vmatpush1.bf16.msra.mxu0 %v3623
    %5631 = vmatprep.subr.bf16.mxu0 %v3628
    %5632 = vmatpush1.bf16.msra.mxu0 %v3627
    %5633 = vmatprep.mubr.bf16.mxu0 %v884
    %5634 = vmatmul.mubr.bf16.gmra.mrb[0].mxu0 %v882
    %v5635 = vpop.f32.mrb[0].mxu0
    %v5636 = vadd.f32 %v5595, %v5635
    %v5637 = vpop.f32.mrb[0].mxu0
    %v5638 = vadd.f32 %v5597, %v5637
    %v5639 = vpop.f32.mrb[0].mxu0
    %v5640 = vpop.f32.mrb[0].mxu0
    %5641 = vdwg.mxu0
    %5642 = vmatprep.subr.bf16.mxu0 %v3632
    %5643 = vmatpush1.bf16.msra.mxu0 %v3631
    %5644 = vmatprep.subr.bf16.mxu0 %v3636
    %5645 = vmatpush1.bf16.msra.mxu0 %v3635
    %5646 = vmatprep.subr.bf16.mxu0 %v3640
    %5647 = vmatpush1.bf16.msra.mxu0 %v3639
    %5648 = vmatprep.subr.bf16.mxu0 %v3644
    %5649 = vmatpush1.bf16.msra.mxu0 %v3643
    %5650 = vmatprep.subr.bf16.mxu0 %v3648
    %5651 = vmatpush1.bf16.msra.mxu0 %v3647
    %5652 = vmatprep.subr.bf16.mxu0 %v3652
    %5653 = vmatpush1.bf16.msra.mxu0 %v3651
    %5654 = vmatprep.subr.bf16.mxu0 %v3656
    %5655 = vmatpush1.bf16.msra.mxu0 %v3655
    %5656 = vmatprep.subr.bf16.mxu0 %v3660
    %5657 = vmatpush1.bf16.msra.mxu0 %v3659
    %5658 = vmatprep.subr.bf16.mxu0 %v3664
    %5659 = vmatpush1.bf16.msra.mxu0 %v3663
    %5660 = vmatprep.subr.bf16.mxu0 %v3668
    %5661 = vmatpush1.bf16.msra.mxu0 %v3667
    %5662 = vmatprep.subr.bf16.mxu0 %v3672
    %5663 = vmatpush1.bf16.msra.mxu0 %v3671
    %5664 = vmatprep.subr.bf16.mxu0 %v3676
    %5665 = vmatpush1.bf16.msra.mxu0 %v3675
    %5666 = vmatprep.subr.bf16.mxu0 %v3680
    %5667 = vmatpush1.bf16.msra.mxu0 %v3679
    %5668 = vmatprep.subr.bf16.mxu0 %v3684
    %5669 = vmatpush1.bf16.msra.mxu0 %v3683
    %5670 = vmatprep.subr.bf16.mxu0 %v3688
    %5671 = vmatpush1.bf16.msra.mxu0 %v3687
    %5672 = vmatprep.subr.bf16.mxu0 %v3692
    %5673 = vmatpush1.bf16.msra.mxu0 %v3691
    %5674 = vmatprep.mubr.bf16.mxu0 %v922
    %5675 = vmatmul.mubr.bf16.gmra.mrb[0].mxu0 %v908
    %v5676 = vpop.f32.mrb[0].mxu0
    %v5677 = vadd.f32 %v5636, %v5676
    %v5678 = vpop.f32.mrb[0].mxu0
    %v5679 = vadd.f32 %v5638, %v5678
    %v5680 = vpop.f32.mrb[0].mxu0
    %v5681 = vpop.f32.mrb[0].mxu0
    %5682 = vdwg.mxu0
    %5683 = vmatprep.subr.bf16.mxu0 %v3696
    %5684 = vmatpush1.bf16.msra.mxu0 %v3695
    %5685 = vmatprep.subr.bf16.mxu0 %v3700
    %5686 = vmatpush1.bf16.msra.mxu0 %v3699
    %5687 = vmatprep.subr.bf16.mxu0 %v3704
    %5688 = vmatpush1.bf16.msra.mxu0 %v3703
    %5689 = vmatprep.subr.bf16.mxu0 %v3708
    %5690 = vmatpush1.bf16.msra.mxu0 %v3707
    %5691 = vmatprep.subr.bf16.mxu0 %v3712
    %5692 = vmatpush1.bf16.msra.mxu0 %v3711
    %5693 = vmatprep.subr.bf16.mxu0 %v3716
    %5694 = vmatpush1.bf16.msra.mxu0 %v3715
    %5695 = vmatprep.subr.bf16.mxu0 %v3720
    %5696 = vmatpush1.bf16.msra.mxu0 %v3719
    %5697 = vmatprep.subr.bf16.mxu0 %v3724
    %5698 = vmatpush1.bf16.msra.mxu0 %v3723
    %5699 = vmatprep.subr.bf16.mxu0 %v3728
    %5700 = vmatpush1.bf16.msra.mxu0 %v3727
    %5701 = vmatprep.subr.bf16.mxu0 %v3732
    %5702 = vmatpush1.bf16.msra.mxu0 %v3731
    %5703 = vmatprep.subr.bf16.mxu0 %v3736
    %5704 = vmatpush1.bf16.msra.mxu0 %v3735
    %5705 = vmatprep.subr.bf16.mxu0 %v3740
    %5706 = vmatpush1.bf16.msra.mxu0 %v3739
    %5707 = vmatprep.subr.bf16.mxu0 %v3744
    %5708 = vmatpush1.bf16.msra.mxu0 %v3743
    %5709 = vmatprep.subr.bf16.mxu0 %v3748
    %5710 = vmatpush1.bf16.msra.mxu0 %v3747
    %5711 = vmatprep.subr.bf16.mxu0 %v3752
    %5712 = vmatpush1.bf16.msra.mxu0 %v3751
    %5713 = vmatprep.subr.bf16.mxu0 %v3756
    %5714 = vmatpush1.bf16.msra.mxu0 %v3755
    %5715 = vmatprep.mubr.bf16.mxu0 %v932
    %5716 = vmatmul.mubr.bf16.gmra.mrb[0].mxu0 %v930
    %v5717 = vpop.f32.mrb[0].mxu0
    %v5718 = vadd.f32 %v5677, %v5717
    %v5719 = vpop.f32.mrb[0].mxu0
    %v5720 = vadd.f32 %v5679, %v5719
    %v5721 = vpop.f32.mrb[0].mxu0
    %v5722 = vpop.f32.mrb[0].mxu0
    %5723 = vdwg.mxu0
    %5724 = vmatprep.subr.bf16.mxu0 %v3760
    %5725 = vmatpush1.bf16.msra.mxu0 %v3759
    %5726 = vmatprep.subr.bf16.mxu0 %v3764
    %5727 = vmatpush1.bf16.msra.mxu0 %v3763
    %5728 = vmatprep.subr.bf16.mxu0 %v3768
    %5729 = vmatpush1.bf16.msra.mxu0 %v3767
    %5730 = vmatprep.subr.bf16.mxu0 %v3772
    %5731 = vmatpush1.bf16.msra.mxu0 %v3771
    %5732 = vmatprep.subr.bf16.mxu0 %v3776
    %5733 = vmatpush1.bf16.msra.mxu0 %v3775
    %5734 = vmatprep.subr.bf16.mxu0 %v3780
    %5735 = vmatpush1.bf16.msra.mxu0 %v3779
    %5736 = vmatprep.subr.bf16.mxu0 %v3784
    %5737 = vmatpush1.bf16.msra.mxu0 %v3783
    %5738 = vmatprep.subr.bf16.mxu0 %v3788
    %5739 = vmatpush1.bf16.msra.mxu0 %v3787
    %5740 = vmatprep.subr.bf16.mxu0 %v3792
    %5741 = vmatpush1.bf16.msra.mxu0 %v3791
    %5742 = vmatprep.subr.bf16.mxu0 %v3796
    %5743 = vmatpush1.bf16.msra.mxu0 %v3795
    %5744 = vmatprep.subr.bf16.mxu0 %v3800
    %5745 = vmatpush1.bf16.msra.mxu0 %v3799
    %5746 = vmatprep.subr.bf16.mxu0 %v3804
    %5747 = vmatpush1.bf16.msra.mxu0 %v3803
    %5748 = vmatprep.subr.bf16.mxu0 %v3808
    %5749 = vmatpush1.bf16.msra.mxu0 %v3807
    %5750 = vmatprep.subr.bf16.mxu0 %v3812
    %5751 = vmatpush1.bf16.msra.mxu0 %v3811
    %5752 = vmatprep.subr.bf16.mxu0 %v3816
    %5753 = vmatpush1.bf16.msra.mxu0 %v3815
    %5754 = vmatprep.subr.bf16.mxu0 %v3820
    %5755 = vmatpush1.bf16.msra.mxu0 %v3819
    %5756 = vmatprep.mubr.bf16.mxu0 %v929
    %5757 = vmatmul.mubr.bf16.gmra.mrb[0].mxu0 %v915
    %v5758 = vpop.f32.mrb[0].mxu0
    %v5759 = vadd.f32 %v5718, %v5758
    %v5760 = vpop.f32.mrb[0].mxu0
    %v5761 = vadd.f32 %v5720, %v5760
    %v5762 = vpop.f32.mrb[0].mxu0
    %v5763 = vpop.f32.mrb[0].mxu0
    %5764 = vdwg.mxu0
    %5765 = vmatprep.subr.bf16.mxu0 %v3824
    %5766 = vmatpush1.bf16.msra.mxu0 %v3823
    %5767 = vmatprep.subr.bf16.mxu0 %v3828
    %5768 = vmatpush1.bf16.msra.mxu0 %v3827
    %5769 = vmatprep.subr.bf16.mxu0 %v3832
    %5770 = vmatpush1.bf16.msra.mxu0 %v3831
    %5771 = vmatprep.subr.bf16.mxu0 %v3836
    %5772 = vmatpush1.bf16.msra.mxu0 %v3835
    %5773 = vmatprep.subr.bf16.mxu0 %v3840
    %5774 = vmatpush1.bf16.msra.mxu0 %v3839
    %5775 = vmatprep.subr.bf16.mxu0 %v3844
    %5776 = vmatpush1.bf16.msra.mxu0 %v3843
    %5777 = vmatprep.subr.bf16.mxu0 %v3848
    %5778 = vmatpush1.bf16.msra.mxu0 %v3847
    %5779 = vmatprep.subr.bf16.mxu0 %v3852
    %5780 = vmatpush1.bf16.msra.mxu0 %v3851
    %5781 = vmatprep.subr.bf16.mxu0 %v3856
    %5782 = vmatpush1.bf16.msra.mxu0 %v3855
    %5783 = vmatprep.subr.bf16.mxu0 %v3860
    %5784 = vmatpush1.bf16.msra.mxu0 %v3859
    %5785 = vmatprep.subr.bf16.mxu0 %v3864
    %5786 = vmatpush1.bf16.msra.mxu0 %v3863
    %5787 = vmatprep.subr.bf16.mxu0 %v3868
    %5788 = vmatpush1.bf16.msra.mxu0 %v3867
    %5789 = vmatprep.subr.bf16.mxu0 %v3872
    %5790 = vmatpush1.bf16.msra.mxu0 %v3871
    %5791 = vmatprep.subr.bf16.mxu0 %v3876
    %5792 = vmatpush1.bf16.msra.mxu0 %v3875
    %5793 = vmatprep.subr.bf16.mxu0 %v3880
    %5794 = vmatpush1.bf16.msra.mxu0 %v3879
    %5795 = vmatprep.subr.bf16.mxu0 %v3884
    %5796 = vmatpush1.bf16.msra.mxu0 %v3883
    %5797 = vmatprep.mubr.bf16.mxu0 %v933
    %5798 = vmatmul.mubr.bf16.gmra.mrb[0].mxu0 %v931
    %v5799 = vpop.f32.mrb[0].mxu0
    %v5800 = vadd.f32 %v5759, %v5799
    %v5801 = vpop.f32.mrb[0].mxu0
    %v5802 = vadd.f32 %v5761, %v5801
    %v5803 = vpop.f32.mrb[0].mxu0
    %v5804 = vpop.f32.mrb[0].mxu0
    %5805 = vdwg.mxu0
    %5806 = vmatprep.subr.bf16.mxu0 %v3888
    %5807 = vmatpush1.bf16.msra.mxu0 %v3887
    %5808 = vmatprep.subr.bf16.mxu0 %v3892
    %5809 = vmatpush1.bf16.msra.mxu0 %v3891
    %5810 = vmatprep.subr.bf16.mxu0 %v3896
    %5811 = vmatpush1.bf16.msra.mxu0 %v3895
    %5812 = vmatprep.subr.bf16.mxu0 %v3900
    %5813 = vmatpush1.bf16.msra.mxu0 %v3899
    %5814 = vmatprep.subr.bf16.mxu0 %v3904
    %5815 = vmatpush1.bf16.msra.mxu0 %v3903
    %5816 = vmatprep.subr.bf16.mxu0 %v3908
    %5817 = vmatpush1.bf16.msra.mxu0 %v3907
    %5818 = vmatprep.subr.bf16.mxu0 %v3912
    %5819 = vmatpush1.bf16.msra.mxu0 %v3911
    %5820 = vmatprep.subr.bf16.mxu0 %v3916
    %5821 = vmatpush1.bf16.msra.mxu0 %v3915
    %5822 = vmatprep.subr.bf16.mxu0 %v3920
    %5823 = vmatpush1.bf16.msra.mxu0 %v3919
    %5824 = vmatprep.subr.bf16.mxu0 %v3924
    %5825 = vmatpush1.bf16.msra.mxu0 %v3923
    %5826 = vmatprep.subr.bf16.mxu0 %v3928
    %5827 = vmatpush1.bf16.msra.mxu0 %v3927
    %5828 = vmatprep.subr.bf16.mxu0 %v3932
    %5829 = vmatpush1.bf16.msra.mxu0 %v3931
    %5830 = vmatprep.subr.bf16.mxu0 %v3936
    %5831 = vmatpush1.bf16.msra.mxu0 %v3935
    %5832 = vmatprep.subr.bf16.mxu0 %v3940
    %5833 = vmatpush1.bf16.msra.mxu0 %v3939
    %5834 = vmatprep.subr.bf16.mxu0 %v3944
    %5835 = vmatpush1.bf16.msra.mxu0 %v3943
    %5836 = vmatprep.subr.bf16.mxu0 %v3948
    %5837 = vmatpush1.bf16.msra.mxu0 %v3947
    %5838 = vmatprep.mubr.bf16.mxu0 %v971
    %5839 = vmatmul.mubr.bf16.gmra.mrb[0].mxu0 %v957
    %v5840 = vpop.f32.mrb[0].mxu0
    %v5841 = vadd.f32 %v5800, %v5840
    %v5842 = vpop.f32.mrb[0].mxu0
    %v5843 = vadd.f32 %v5802, %v5842
    %v5844 = vpop.f32.mrb[0].mxu0
    %v5845 = vpop.f32.mrb[0].mxu0
    %5846 = vdwg.mxu0
    %5847 = vmatprep.subr.bf16.mxu0 %v3952
    %5848 = vmatpush1.bf16.msra.mxu0 %v3951
    %5849 = vmatprep.subr.bf16.mxu0 %v3956
    %5850 = vmatpush1.bf16.msra.mxu0 %v3955
    %5851 = vmatprep.subr.bf16.mxu0 %v3960
    %5852 = vmatpush1.bf16.msra.mxu0 %v3959
    %5853 = vmatprep.subr.bf16.mxu0 %v3964
    %5854 = vmatpush1.bf16.msra.mxu0 %v3963
    %5855 = vmatprep.subr.bf16.mxu0 %v3968
    %5856 = vmatpush1.bf16.msra.mxu0 %v3967
    %5857 = vmatprep.subr.bf16.mxu0 %v3972
    %5858 = vmatpush1.bf16.msra.mxu0 %v3971
    %5859 = vmatprep.subr.bf16.mxu0 %v3976
    %5860 = vmatpush1.bf16.msra.mxu0 %v3975
    %5861 = vmatprep.subr.bf16.mxu0 %v3980
    %5862 = vmatpush1.bf16.msra.mxu0 %v3979
    %5863 = vmatprep.subr.bf16.mxu0 %v3984
    %5864 = vmatpush1.bf16.msra.mxu0 %v3983
    %5865 = vmatprep.subr.bf16.mxu0 %v3988
    %5866 = vmatpush1.bf16.msra.mxu0 %v3987
    %5867 = vmatprep.subr.bf16.mxu0 %v3992
    %5868 = vmatpush1.bf16.msra.mxu0 %v3991
    %5869 = vmatprep.subr.bf16.mxu0 %v3996
    %5870 = vmatpush1.bf16.msra.mxu0 %v3995
    %5871 = vmatprep.subr.bf16.mxu0 %v4000
    %5872 = vmatpush1.bf16.msra.mxu0 %v3999
    %5873 = vmatprep.subr.bf16.mxu0 %v4004
    %5874 = vmatpush1.bf16.msra.mxu0 %v4003
    %5875 = vmatprep.subr.bf16.mxu0 %v4008
    %5876 = vmatpush1.bf16.msra.mxu0 %v4007
    %5877 = vmatprep.subr.bf16.mxu0 %v4012
    %5878 = vmatpush1.bf16.msra.mxu0 %v4011
    %5879 = vmatprep.mubr.bf16.mxu0 %v981
    %5880 = vmatmul.mubr.bf16.gmra.mrb[0].mxu0 %v979
    %v5881 = vpop.f32.mrb[0].mxu0
    %v5882 = vadd.f32 %v5841, %v5881
    %v5883 = vpop.f32.mrb[0].mxu0
    %v5884 = vadd.f32 %v5843, %v5883
    %v5885 = vpop.f32.mrb[0].mxu0
    %v5886 = vpop.f32.mrb[0].mxu0
    %5887 = vdwg.mxu0
    %5888 = vmatprep.subr.bf16.mxu0 %v4016
    %5889 = vmatpush1.bf16.msra.mxu0 %v4015
    %5890 = vmatprep.subr.bf16.mxu0 %v4020
    %5891 = vmatpush1.bf16.msra.mxu0 %v4019
    %5892 = vmatprep.subr.bf16.mxu0 %v4024
    %5893 = vmatpush1.bf16.msra.mxu0 %v4023
    %5894 = vmatprep.subr.bf16.mxu0 %v4028
    %5895 = vmatpush1.bf16.msra.mxu0 %v4027
    %5896 = vmatprep.subr.bf16.mxu0 %v4032
    %5897 = vmatpush1.bf16.msra.mxu0 %v4031
    %5898 = vmatprep.subr.bf16.mxu0 %v4036
    %5899 = vmatpush1.bf16.msra.mxu0 %v4035
    %5900 = vmatprep.subr.bf16.mxu0 %v4040
    %5901 = vmatpush1.bf16.msra.mxu0 %v4039
    %5902 = vmatprep.subr.bf16.mxu0 %v4044
    %5903 = vmatpush1.bf16.msra.mxu0 %v4043
    %5904 = vmatprep.subr.bf16.mxu0 %v4048
    %5905 = vmatpush1.bf16.msra.mxu0 %v4047
    %5906 = vmatprep.subr.bf16.mxu0 %v4052
    %5907 = vmatpush1.bf16.msra.mxu0 %v4051
    %5908 = vmatprep.subr.bf16.mxu0 %v4056
    %5909 = vmatpush1.bf16.msra.mxu0 %v4055
    %5910 = vmatprep.subr.bf16.mxu0 %v4060
    %5911 = vmatpush1.bf16.msra.mxu0 %v4059
    %5912 = vmatprep.subr.bf16.mxu0 %v4064
    %5913 = vmatpush1.bf16.msra.mxu0 %v4063
    %5914 = vmatprep.subr.bf16.mxu0 %v4068
    %5915 = vmatpush1.bf16.msra.mxu0 %v4067
    %5916 = vmatprep.subr.bf16.mxu0 %v4072
    %5917 = vmatpush1.bf16.msra.mxu0 %v4071
    %5918 = vmatprep.subr.bf16.mxu0 %v4076
    %5919 = vmatpush1.bf16.msra.mxu0 %v4075
    %5920 = vmatprep.mubr.bf16.mxu0 %v978
    %5921 = vmatmul.mubr.bf16.gmra.mrb[0].mxu0 %v964
    %v5922 = vpop.f32.mrb[0].mxu0
    %v5923 = vadd.f32 %v5882, %v5922
    %v5924 = vpop.f32.mrb[0].mxu0
    %v5925 = vadd.f32 %v5884, %v5924
    %v5926 = vpop.f32.mrb[0].mxu0
    %v5927 = vpop.f32.mrb[0].mxu0
    %5928 = vdwg.mxu0
    %5929 = vmatprep.subr.bf16.mxu0 %v4080
    %5930 = vmatpush1.bf16.msra.mxu0 %v4079
    %5931 = vmatprep.subr.bf16.mxu0 %v4084
    %5932 = vmatpush1.bf16.msra.mxu0 %v4083
    %5933 = vmatprep.subr.bf16.mxu0 %v4088
    %5934 = vmatpush1.bf16.msra.mxu0 %v4087
    %5935 = vmatprep.subr.bf16.mxu0 %v4092
    %5936 = vmatpush1.bf16.msra.mxu0 %v4091
    %5937 = vmatprep.subr.bf16.mxu0 %v4096
    %5938 = vmatpush1.bf16.msra.mxu0 %v4095
    %5939 = vmatprep.subr.bf16.mxu0 %v4100
    %5940 = vmatpush1.bf16.msra.mxu0 %v4099
    %5941 = vmatprep.subr.bf16.mxu0 %v4104
    %5942 = vmatpush1.bf16.msra.mxu0 %v4103
    %5943 = vmatprep.subr.bf16.mxu0 %v4108
    %5944 = vmatpush1.bf16.msra.mxu0 %v4107
    %5945 = vmatprep.subr.bf16.mxu0 %v4112
    %5946 = vmatpush1.bf16.msra.mxu0 %v4111
    %5947 = vmatprep.subr.bf16.mxu0 %v4116
    %5948 = vmatpush1.bf16.msra.mxu0 %v4115
    %5949 = vmatprep.subr.bf16.mxu0 %v4120
    %5950 = vmatpush1.bf16.msra.mxu0 %v4119
    %5951 = vmatprep.subr.bf16.mxu0 %v4124
    %5952 = vmatpush1.bf16.msra.mxu0 %v4123
    %5953 = vmatprep.subr.bf16.mxu0 %v4128
    %5954 = vmatpush1.bf16.msra.mxu0 %v4127
    %5955 = vmatprep.subr.bf16.mxu0 %v4132
    %5956 = vmatpush1.bf16.msra.mxu0 %v4131
    %5957 = vmatprep.subr.bf16.mxu0 %v4136
    %5958 = vmatpush1.bf16.msra.mxu0 %v4135
    %5959 = vmatprep.subr.bf16.mxu0 %v4140
    %5960 = vmatpush1.bf16.msra.mxu0 %v4139
    %5961 = vmatprep.mubr.bf16.mxu0 %v982
    %5962 = vmatmul.mubr.bf16.gmra.mrb[0].mxu0 %v980
    %v5963 = vpop.f32.mrb[0].mxu0
    %v5964 = vadd.f32 %v5923, %v5963
    %v5965 = vpop.f32.mrb[0].mxu0
    %v5966 = vadd.f32 %v5925, %v5965
    %v5967 = vpop.f32.mrb[0].mxu0
    %v5968 = vpop.f32.mrb[0].mxu0
    %5969 = vdwg.mxu0
    %5970 = vmatprep.subr.bf16.mxu0 %v4144
    %5971 = vmatpush1.bf16.msra.mxu0 %v4143
    %5972 = vmatprep.subr.bf16.mxu0 %v4148
    %5973 = vmatpush1.bf16.msra.mxu0 %v4147
    %5974 = vmatprep.subr.bf16.mxu0 %v4152
    %5975 = vmatpush1.bf16.msra.mxu0 %v4151
    %5976 = vmatprep.subr.bf16.mxu0 %v4156
    %5977 = vmatpush1.bf16.msra.mxu0 %v4155
    %5978 = vmatprep.subr.bf16.mxu0 0
    %5979 = vmatpush1.bf16.msra.mxu0 0
    %5980 = vmatprep.subr.bf16.mxu0 0
    %5981 = vmatpush1.bf16.msra.mxu0 0
    %5982 = vmatprep.subr.bf16.mxu0 0
    %5983 = vmatpush1.bf16.msra.mxu0 0
    %5984 = vmatprep.subr.bf16.mxu0 0
    %5985 = vmatpush1.bf16.msra.mxu0 0
    %5986 = vmatprep.subr.bf16.mxu0 0
    %5987 = vmatpush1.bf16.msra.mxu0 0
    %5988 = vmatprep.subr.bf16.mxu0 0
    %5989 = vmatpush1.bf16.msra.mxu0 0
    %5990 = vmatprep.subr.bf16.mxu0 0
    %5991 = vmatpush1.bf16.msra.mxu0 0
    %5992 = vmatprep.subr.bf16.mxu0 0
    %5993 = vmatpush1.bf16.msra.mxu0 0
    %5994 = vmatprep.subr.bf16.mxu0 0
    %5995 = vmatpush1.bf16.msra.mxu0 0
    %5996 = vmatprep.subr.bf16.mxu0 0
    %5997 = vmatpush1.bf16.msra.mxu0 0
    %5998 = vmatprep.subr.bf16.mxu0 0
    %5999 = vmatpush1.bf16.msra.mxu0 0
    %6000 = vmatprep.subr.bf16.mxu0 0
    %6001 = vmatpush1.bf16.msra.mxu0 0
    %6002 = vmatprep.mubr.bf16.mxu0 0
    %6003 = vmatmul.mubr.bf16.gmra.mrb[0].mxu0 %v4943
    %v6004 = vpop.f32.mrb[0].mxu0
    %v6005 = vadd.f32 %v5964, %v6004
    %v6006 = vpop.f32.mrb[0].mxu0
    %v6007 = vadd.f32 %v5966, %v6006
    %v6008 = vpop.f32.mrb[0].mxu0
    %v6009 = vpop.f32.mrb[0].mxu0
    %6010 = vdwg.mxu0
    %v6011 = vmax.f32 %v5472, 0.0
    %v6012 = vmax.f32 %v5474, 0.0
    %v6013 = vmax.f32 %v6005, 0.0
    %v6014 = vmax.f32 %v6007, 0.0
    %v6015 = vpack.c.bf16 %v6011, %v6011
    %v6016 = vpack.c.bf16 %v6012, %v6012
    %v6017 = vpack.c.bf16 %v6013, %v6013
    %v6018 = vpack.c.bf16 %v6014, %v6014
    %v6019 = vld [vmem:[%s3] sm:$0xf]
    %v6020 = vld [vmem:[%s3 + $0x4] sm:$0xf]
    %v6021 = vld [vmem:[%s3 + $0x8] sm:$0xf]
    %v6022 = vld [vmem:[%s3 + $0xc] sm:$0xf]
    %v6023 = vld [vmem:[%s3 + $0x10] sm:$0xf]
    %v6024 = vld [vmem:[%s3 + $0x14] sm:$0xf]
    %v6025 = vld [vmem:[%s3 + $0x18] sm:$0xf]
    %v6026 = vld [vmem:[%s3 + $0x1c] sm:$0xf]
    %v6027 = vld [vmem:[%s3 + $0x20] sm:$0xf]
    %v6028 = vld [vmem:[%s3 + $0x24] sm:$0xf]
    %v6029 = vld [vmem:[%s3 + $0x28] sm:$0xf]
    %v6030 = vld [vmem:[%s3 + $0x2c] sm:$0xf]
    %v6031 = vld [vmem:[%s3 + $0x30] sm:$0xf]
    %v6032 = vld [vmem:[%s3 + $0x34] sm:$0xf]
    %v6033 = vld [vmem:[%s3 + $0x38] sm:$0xf]
    %v6034 = vld [vmem:[%s3 + $0x3c] sm:$0xf]
    %v6035 = vld [vmem:[%s3 + $0x40] sm:$0xf]
    %v6036 = vld [vmem:[%s3 + $0x44] sm:$0xf]
    %v6037 = vld [vmem:[%s3 + $0x48] sm:$0xf]
    %v6038 = vld [vmem:[%s3 + $0x4c] sm:$0xf]
    %v6039 = vld [vmem:[%s3 + $0x50] sm:$0xf]
    %v6040 = vld [vmem:[%s3 + $0x54] sm:$0xf]
    %v6041 = vld [vmem:[%s3 + $0x58] sm:$0xf]
    %v6042 = vld [vmem:[%s3 + $0x5c] sm:$0xf]
    %v6043 = vld [vmem:[%s3 + $0x60] sm:$0xf]
    %v6044 = vld [vmem:[%s3 + $0x64] sm:$0xf]
    %v6045 = vld [vmem:[%s3 + $0x68] sm:$0xf]
    %v6046 = vld [vmem:[%s3 + $0x6c] sm:$0xf]
    %v6047 = vld [vmem:[%s3 + $0x70] sm:$0xf]
    %v6048 = vld [vmem:[%s3 + $0x74] sm:$0xf]
    %v6049 = vld [vmem:[%s3 + $0x78] sm:$0xf]
    %v6050 = vld [vmem:[%s3 + $0x7c] sm:$0xf]
    %v6051 = vld [vmem:[%s3 + $0x80] sm:$0xf]
    %v6052 = vld [vmem:[%s3 + $0x84] sm:$0xf]
    %v6053 = vld [vmem:[%s3 + $0x88] sm:$0xf]
    %v6054 = vld [vmem:[%s3 + $0x8c] sm:$0xf]
    %v6055 = vld [vmem:[%s3 + $0x90] sm:$0xf]
    %v6056 = vld [vmem:[%s3 + $0x94] sm:$0xf]
    %v6057 = vld [vmem:[%s3 + $0x98] sm:$0xf]
    %v6058 = vld [vmem:[%s3 + $0x9c] sm:$0xf]
    %v6059 = vld [vmem:[%s3 + $0xa0] sm:$0xf]
    %v6060 = vld [vmem:[%s3 + $0xa4] sm:$0xf]
    %v6061 = vld [vmem:[%s3 + $0xa8] sm:$0xf]
    %v6062 = vld [vmem:[%s3 + $0xac] sm:$0xf]
    %v6063 = vld [vmem:[%s3 + $0xb0] sm:$0xf]
    %v6064 = vld [vmem:[%s3 + $0xb4] sm:$0xf]
    %v6065 = vld [vmem:[%s3 + $0xb8] sm:$0xf]
    %v6066 = vld [vmem:[%s3 + $0xbc] sm:$0xf]
    %v6067 = vld [vmem:[%s3 + $0xc0] sm:$0xf]
    %v6068 = vld [vmem:[%s3 + $0xc4] sm:$0xf]
    %v6069 = vld [vmem:[%s3 + $0xc8] sm:$0xf]
    %v6070 = vld [vmem:[%s3 + $0xcc] sm:$0xf]
    %v6071 = vld [vmem:[%s3 + $0xd0] sm:$0xf]
    %v6072 = vld [vmem:[%s3 + $0xd4] sm:$0xf]
    %v6073 = vld [vmem:[%s3 + $0xd8] sm:$0xf]
    %v6074 = vld [vmem:[%s3 + $0xdc] sm:$0xf]
    %v6075 = vld [vmem:[%s3 + $0xe0] sm:$0xf]
    %v6076 = vld [vmem:[%s3 + $0xe4] sm:$0xf]
    %v6077 = vld [vmem:[%s3 + $0xe8] sm:$0xf]
    %v6078 = vld [vmem:[%s3 + $0xec] sm:$0xf]
    %v6079 = vld [vmem:[%s3 + $0xf0] sm:$0xf]
    %v6080 = vld [vmem:[%s3 + $0xf4] sm:$0xf]
    %v6081 = vld [vmem:[%s3 + $0xf8] sm:$0xf]
    %v6082 = vld [vmem:[%s3 + $0xfc] sm:$0xf]
    %v6083 = vld [vmem:[%s4] sm:$0x1]
    %v6085 = vlaneseq
    %v6086 = vshrl.u32 %v6085, 7
    %v6087 = vsub.s32 0, %v6086
    %v6088 = vrot.slane %v6083, %v6087
    %v6154 = vunpack.c.l.b16 %v6019
    %v6155 = vunpack.c.l.b16 %v6020
    %v6156 = vunpack.c.l.b16 %v6021
    %v6157 = vunpack.c.l.b16 %v6022
    %v6158 = vunpack.c.l.b16 %v6023
    %v6159 = vunpack.c.l.b16 %v6024
    %v6160 = vunpack.c.l.b16 %v6025
    %v6161 = vunpack.c.l.b16 %v6026
    %v6162 = vunpack.c.l.b16 %v6027
    %v6163 = vunpack.c.l.b16 %v6028
    %v6164 = vunpack.c.l.b16 %v6029
    %v6165 = vunpack.c.l.b16 %v6030
    %v6166 = vunpack.c.l.b16 %v6031
    %v6167 = vunpack.c.l.b16 %v6032
    %v6168 = vunpack.c.l.b16 %v6033
    %v6169 = vunpack.c.l.b16 %v6034
    %v6170 = vunpack.c.l.b16 %v6035
    %v6171 = vunpack.c.l.b16 %v6036
    %v6172 = vunpack.c.l.b16 %v6037
    %v6173 = vunpack.c.l.b16 %v6038
    %v6174 = vunpack.c.l.b16 %v6039
    %v6175 = vunpack.c.l.b16 %v6040
    %v6176 = vunpack.c.l.b16 %v6041
    %v6177 = vunpack.c.l.b16 %v6042
    %v6178 = vunpack.c.l.b16 %v6043
    %v6179 = vunpack.c.l.b16 %v6044
    %v6180 = vunpack.c.l.b16 %v6045
    %v6181 = vunpack.c.l.b16 %v6046
    %v6182 = vunpack.c.l.b16 %v6047
    %v6183 = vunpack.c.l.b16 %v6048
    %v6184 = vunpack.c.l.b16 %v6049
    %v6185 = vunpack.c.l.b16 %v6050
    %v6186 = vunpack.c.l.b16 %v6051
    %v6187 = vunpack.c.l.b16 %v6052
    %v6188 = vunpack.c.l.b16 %v6053
    %v6189 = vunpack.c.l.b16 %v6054
    %v6190 = vunpack.c.l.b16 %v6055
    %v6191 = vunpack.c.l.b16 %v6056
    %v6192 = vunpack.c.l.b16 %v6057
    %v6193 = vunpack.c.l.b16 %v6058
    %v6194 = vunpack.c.l.b16 %v6059
    %v6195 = vunpack.c.l.b16 %v6060
    %v6196 = vunpack.c.l.b16 %v6061
    %v6197 = vunpack.c.l.b16 %v6062
    %v6198 = vunpack.c.l.b16 %v6063
    %v6199 = vunpack.c.l.b16 %v6064
    %v6200 = vunpack.c.l.b16 %v6065
    %v6201 = vunpack.c.l.b16 %v6066
    %v6202 = vunpack.c.l.b16 %v6067
    %v6203 = vunpack.c.l.b16 %v6068
    %v6204 = vunpack.c.l.b16 %v6069
    %v6205 = vunpack.c.l.b16 %v6070
    %v6206 = vunpack.c.l.b16 %v6071
    %v6207 = vunpack.c.l.b16 %v6072
    %v6208 = vunpack.c.l.b16 %v6073
    %v6209 = vunpack.c.l.b16 %v6074
    %v6210 = vunpack.c.l.b16 %v6075
    %v6211 = vunpack.c.l.b16 %v6076
    %v6212 = vunpack.c.l.b16 %v6077
    %v6213 = vunpack.c.l.b16 %v6078
    %v6214 = vunpack.c.l.b16 %v6079
    %v6215 = vunpack.c.l.b16 %v6080
    %v6216 = vunpack.c.l.b16 %v6081
    %v6217 = vunpack.c.l.b16 %v6082
    %v6218 = vpack.c.b16 %v6155, %v6154
    %v6219 = vpack.c.b16 %v6157, %v6156
    %v6220 = vpack.c.b16 %v6159, %v6158
    %v6221 = vpack.c.b16 %v6161, %v6160
    %v6222 = vpack.c.b16 %v6163, %v6162
    %v6223 = vpack.c.b16 %v6165, %v6164
    %v6224 = vpack.c.b16 %v6167, %v6166
    %v6225 = vpack.c.b16 %v6169, %v6168
    %v6226 = vpack.c.b16 %v6171, %v6170
    %v6227 = vpack.c.b16 %v6173, %v6172
    %v6228 = vpack.c.b16 %v6175, %v6174
    %v6229 = vpack.c.b16 %v6177, %v6176
    %v6230 = vpack.c.b16 %v6179, %v6178
    %v6231 = vpack.c.b16 %v6181, %v6180
    %v6232 = vpack.c.b16 %v6183, %v6182
    %v6233 = vpack.c.b16 %v6185, %v6184
    %v6234 = vpack.c.b16 %v6187, %v6186
    %v6235 = vpack.c.b16 %v6189, %v6188
    %v6236 = vpack.c.b16 %v6191, %v6190
    %v6237 = vpack.c.b16 %v6193, %v6192
    %v6238 = vpack.c.b16 %v6195, %v6194
    %v6239 = vpack.c.b16 %v6197, %v6196
    %v6240 = vpack.c.b16 %v6199, %v6198
    %v6241 = vpack.c.b16 %v6201, %v6200
    %v6242 = vpack.c.b16 %v6203, %v6202
    %v6243 = vpack.c.b16 %v6205, %v6204
    %v6244 = vpack.c.b16 %v6207, %v6206
    %v6245 = vpack.c.b16 %v6209, %v6208
    %v6246 = vpack.c.b16 %v6211, %v6210
    %v6247 = vpack.c.b16 %v6213, %v6212
    %v6248 = vpack.c.b16 %v6215, %v6214
    %v6249 = vpack.c.b16 %v6217, %v6216
    %6282 = vmatprep.subr.bf16.mxu0 0
    %6283 = vmatpush1.bf16.msra.mxu0 %v6218
    %6284 = vmatprep.subr.bf16.mxu0 0
    %6285 = vmatpush1.bf16.msra.mxu0 %v6219
    %6286 = vmatprep.subr.bf16.mxu0 0
    %6287 = vmatpush1.bf16.msra.mxu0 %v6220
    %6288 = vmatprep.subr.bf16.mxu0 0
    %6289 = vmatpush1.bf16.msra.mxu0 %v6221
    %6290 = vmatprep.subr.bf16.mxu0 0
    %6291 = vmatpush1.bf16.msra.mxu0 %v6222
    %6292 = vmatprep.subr.bf16.mxu0 0
    %6293 = vmatpush1.bf16.msra.mxu0 %v6223
    %6294 = vmatprep.subr.bf16.mxu0 0
    %6295 = vmatpush1.bf16.msra.mxu0 %v6224
    %6296 = vmatprep.subr.bf16.mxu0 0
    %6297 = vmatpush1.bf16.msra.mxu0 %v6225
    %6298 = vmatprep.subr.bf16.mxu0 0
    %6299 = vmatpush1.bf16.msra.mxu0 %v6226
    %6300 = vmatprep.subr.bf16.mxu0 0
    %6301 = vmatpush1.bf16.msra.mxu0 %v6227
    %6302 = vmatprep.subr.bf16.mxu0 0
    %6303 = vmatpush1.bf16.msra.mxu0 %v6228
    %6304 = vmatprep.subr.bf16.mxu0 0
    %6305 = vmatpush1.bf16.msra.mxu0 %v6229
    %6306 = vmatprep.subr.bf16.mxu0 0
    %6307 = vmatpush1.bf16.msra.mxu0 %v6230
    %6308 = vmatprep.subr.bf16.mxu0 0
    %6309 = vmatpush1.bf16.msra.mxu0 %v6231
    %6310 = vmatprep.subr.bf16.mxu0 0
    %6311 = vmatpush1.bf16.msra.mxu0 %v6232
    %6312 = vmatprep.subr.bf16.mxu0 0
    %6313 = vmatpush1.bf16.msra.mxu0 %v6233
    %6314 = vmatprep.mubr.bf16.mxu0 %v6016
    %6315 = vmatmul.mubr.bf16.gmra.mrb[0].mxu0 %v6015
    %v6316 = vpop.f32.mrb[0].mxu0
    %v6317 = vadd.f32 %v6088, %v6316
    %v6318 = vpop.f32.mrb[0].mxu0
    %v6319 = vpop.f32.mrb[0].mxu0
    %v6320 = vpop.f32.mrb[0].mxu0
    %6321 = vdwg.mxu0
    %6322 = vmatprep.subr.bf16.mxu0 0
    %6323 = vmatpush1.bf16.msra.mxu0 %v6234
    %6324 = vmatprep.subr.bf16.mxu0 0
    %6325 = vmatpush1.bf16.msra.mxu0 %v6235
    %6326 = vmatprep.subr.bf16.mxu0 0
    %6327 = vmatpush1.bf16.msra.mxu0 %v6236
    %6328 = vmatprep.subr.bf16.mxu0 0
    %6329 = vmatpush1.bf16.msra.mxu0 %v6237
    %6330 = vmatprep.subr.bf16.mxu0 0
    %6331 = vmatpush1.bf16.msra.mxu0 %v6238
    %6332 = vmatprep.subr.bf16.mxu0 0
    %6333 = vmatpush1.bf16.msra.mxu0 %v6239
    %6334 = vmatprep.subr.bf16.mxu0 0
    %6335 = vmatpush1.bf16.msra.mxu0 %v6240
    %6336 = vmatprep.subr.bf16.mxu0 0
    %6337 = vmatpush1.bf16.msra.mxu0 %v6241
    %6338 = vmatprep.subr.bf16.mxu0 0
    %6339 = vmatpush1.bf16.msra.mxu0 %v6242
    %6340 = vmatprep.subr.bf16.mxu0 0
    %6341 = vmatpush1.bf16.msra.mxu0 %v6243
    %6342 = vmatprep.subr.bf16.mxu0 0
    %6343 = vmatpush1.bf16.msra.mxu0 %v6244
    %6344 = vmatprep.subr.bf16.mxu0 0
    %6345 = vmatpush1.bf16.msra.mxu0 %v6245
    %6346 = vmatprep.subr.bf16.mxu0 0
    %6347 = vmatpush1.bf16.msra.mxu0 %v6246
    %6348 = vmatprep.subr.bf16.mxu0 0
    %6349 = vmatpush1.bf16.msra.mxu0 %v6247
    %6350 = vmatprep.subr.bf16.mxu0 0
    %6351 = vmatpush1.bf16.msra.mxu0 %v6248
    %6352 = vmatprep.subr.bf16.mxu0 0
    %6353 = vmatpush1.bf16.msra.mxu0 %v6249
    %6354 = vmatprep.mubr.bf16.mxu0 %v6018
    %6355 = vmatmul.mubr.bf16.gmra.mrb[0].mxu0 %v6017
    %v6356 = vpop.f32.mrb[0].mxu0
    %v6357 = vadd.f32 %v6317, %v6356
    %v6358 = vpop.f32.mrb[0].mxu0
    %v6359 = vpop.f32.mrb[0].mxu0
    %v6360 = vpop.f32.mrb[0].mxu0
    %6361 = vdwg.mxu0
    %vm6362 = vcmask 74752
    %6363 = vst.msk [vmem:[#allocation2] sm:$0x3] %vm6362, %v6357
    // Predicated region
    $region22: #{_lambda_.5} parent=1 // pred_check
      _
    $region23: #{_lambda_.5} parent=1 // pred_check_branch
      %6365 = sbr.rel (0) target = $region25
    $region24: #{_lambda_.5} parent=1 // pred_region
      %s6367 = ssub.s32 32, 32
      %6368 = vsyncadd [#allocation3], %s6367
      %s6370 = sshll.u32 [#allocation2], 4
      %s6371 = int_to_ptr.vmem [resolvable:$true] %s6370
      %6373 = dma.vmem_to_hbm [thread:$0]  %s6371, 32, %s5, [#allocation3]
    $region25: #{_lambda_.5} parent=1 // pred_fallthru
      _
    // Predicated region
    $region26: #{_lambda_.5} parent=1 // pred_check
      _
    $region27: #{_lambda_.5} parent=1 // pred_check_branch
      %6375 = sbr.rel (0) target = $region29
    $region28: #{_lambda_.5} parent=1 // pred_region
      %6376 = dma.done [#allocation3], 32
    $region29: #{_lambda_.5} parent=1 // pred_fallthru
      _
    %6377 = vsyncpa [#allocation3], 1

</llo_original>
